<compile_context>
chip_gen: v5e
topology: v5e:2x2
jax: 0.10.0
libtpu: 0.0.40
codegen_flags: <defaults>
</compile_context>

<pallas_src>
from functools import partial

import jax
import jax.numpy as jnp
from jax.experimental import pallas as pl
from jax.experimental.pallas import tpu as pltpu


# --------------------------------------------------------------------------
# Pallas kernel 2: fused add + (tmp * tmp * hardsigmoid(tmp))
# (matches the CUDA kernel: out = tmp*tmp * clamp(tmp+3, 0, 6)/6)
# --------------------------------------------------------------------------
def _fused_add_hardswish_kernel(x_ref, a_ref, o_ref):
    tmp = x_ref[...] + a_ref[...]
    hsig = jnp.clip(tmp + 3.0, 0.0, 6.0) * (1.0 / 6.0)
    o_ref[...] = tmp * tmp * hsig


def fused_add_hardswish(x, add_input):
    """Elementwise fused op on same-shape arrays (here NCDHW, no transposes needed)."""
    shape = x.shape
    lane = int(shape[-1] * shape[-2])          # OH*OW -> lane-dense last dim
    rows = x.size // lane
    x2 = x.reshape(rows, lane).astype(jnp.float32)
    a2 = add_input.reshape(rows, lane).astype(jnp.float32)

    # ~2MB blocks (measured ~85%+ of HBM roofline); rows tile multiple of 8.
    tr = (2 * 1024 * 1024) // max(1, lane * 4)
    tr = max(1, min(tr, rows))
    if rows >= 8:
        tr = max(8, (tr // 8) * 8)

    out2 = pl.pallas_call(
        _fused_add_hardswish_kernel,
        out_shape=jax.ShapeDtypeStruct((rows, lane), jnp.float32),
        grid_spec=pltpu.PrefetchScalarGridSpec(
            num_scalar_prefetch=0,
            grid=(pl.cdiv(rows, tr),),
            in_specs=[
                pl.BlockSpec((tr, lane), lambda i: (i, 0)),
                pl.BlockSpec((tr, lane), lambda i: (i, 0)),
            ],
            out_specs=pl.BlockSpec((tr, lane), lambda i: (i, 0)),
        ),
        input_output_aliases={0: 0},   # write in place over the conv output buffer
        compiler_params=pltpu.CompilerParams(dimension_semantics=("parallel",)),
    )(x2, a2)
    return out2.reshape(shape)


# --------------------------------------------------------------------------
# Pallas kernel 1: output-stationary ConvTranspose3d (PyTorch semantics)
# --------------------------------------------------------------------------
def _ceil_div(a, b):
    return -(-a // b)


def _dim_plan(din, dout, k, s, p, round_to=1):
    """Polyphase plan for one spatial dim: per-parity-class tap list + input padding."""
    q = _ceil_div(dout, s)
    q = _ceil_div(q, round_to) * round_to
    taps = []
    for r in range(s):
        taps.append([(kk, (r + p - kk) // s) for kk in range(k) if (r + p - kk) % s == 0])
    shifts = [sh for lst in taps for (_, sh) in lst]
    lo = max(0, -min(shifts)) if shifts else 0
    hi = max(0, (q - 1 + (max(shifts) if shifts else 0)) - (din - 1))
    return q, taps, lo, hi


def conv_transpose3d(x, weight, bias, stride, padding, output_padding):
    """x: (N, Cin, D, H, W); weight: (Cin, Cout, kD, kH, kW); returns (N, Cout, OD, OH, OW) f32."""
    N, Cin, D, H, W = x.shape
    _, Cout, kD, kH, kW = weight.shape
    s, p, op = stride, padding, output_padding
    OD = (D - 1) * s - 2 * p + kD + op
    OH = (H - 1) * s - 2 * p + kH + op
    OW = (W - 1) * s - 2 * p + kW + op
    # TODO(synk): groups / dilation / per-dim stride are not supported.

    Qd, taps_d, plo_d, phi_d = _dim_plan(D, OD, kD, s, p)
    Qh, taps_h, plo_h, phi_h = _dim_plan(H, OH, kH, s, p)
    # keep the W sub-extent a multiple of 8 (sublane) so in-kernel reshapes are free
    Qw, taps_w, plo_w, phi_w = _dim_plan(W, OW, kW, s, p, round_to=8)

    # ---- static tap schedule: one entry per kernel tap, grouped by parity class ----
    w_starts = sorted({shw + plo_w for lst in taps_w for (_, shw) in lst}) or [0]
    w_start_idx = {v: i for i, v in enumerate(w_starts)}
    Jw = len(w_starts)

    sd_l, sh_l, jw_l, ki_l, cl_l, fi_l, va_l = [], [], [], [], [], [], []
    for rd in range(s):
        for rh in range(s):
            for rw in range(s):
                c = (rd * s + rh) * s + rw
                tri = [(kd, shd, kh, shh, kw, shw)
                       for (kd, shd) in taps_d[rd]
                       for (kh, shh) in taps_h[rh]
                       for (kw, shw) in taps_w[rw]]
                if not tri:  # class with no taps: bias-only sentinel step
                    sd_l.append(0); sh_l.append(0); jw_l.append(0); ki_l.append(0)
                    cl_l.append(c); fi_l.append(1); va_l.append(0)
                    continue
                for j, (kd, shd, kh, shh, kw, shw) in enumerate(tri):
                    sd_l.append(shd + plo_d)
                    sh_l.append(shh + plo_h)
                    jw_l.append(w_start_idx[shw + plo_w])
                    ki_l.append((kd * kH + kh) * kW + kw)
                    cl_l.append(c)
                    fi_l.append(1 if j == 0 else 0)
                    va_l.append(1)
    T = len(sd_l)
    tables = tuple(jnp.asarray(l, dtype=jnp.int32)
                   for l in (sd_l, sh_l, jw_l, ki_l, cl_l, fi_l, va_l))

    # ---- operand layout (channels-last internally, tap-major weights) ----
    x_cl = jnp.transpose(x, (0, 2, 3, 4, 1)).astype(jnp.float32)
    x_pad = jnp.pad(x_cl, ((0, 0), (plo_d, phi_d), (plo_h, phi_h), (plo_w, phi_w), (0, 0)))
    Dp, Hp = D + plo_d + phi_d, H + plo_h + phi_h
    # fold the few distinct W shifts into a small stacked axis -> only leading-dim
    # dynamic slicing inside the kernel.
    x_stack = jnp.stack([x_pad[:, :, :, w0:w0 + Qw, :] for w0 in w_starts], axis=1)
    w_taps = (jnp.transpose(weight, (2, 3, 4, 0, 1))
              .reshape(kD * kH * kW, Cin, Cout).astype(jnp.float32))
    b2 = bias.reshape(1, Cout).astype(jnp.float32)

    # ---- output tiling along the d axis (cap ~4MB per output block) ----
    blk_cap = 4 * 1024 * 1024
    TQD = 1
    for cand in range(Qd, 0, -1):
        if Qd % cand == 0 and cand * Qh * Qw * Cout * 4 <= blk_cap:
            TQD = cand
            break
    M2 = TQD * Qh * Qw
    C3 = s * s * s

    def kernel(sd, sh, jw, ki, cl, fi, va, x_ref, w_ref, b_ref, o_ref):
        t = pl.program_id(2)
        q = pl.program_id(1)

        @pl.when(fi[t] == 1)          # first tap of this parity class: init with bias
        def _init():
            o_ref[...] = jnp.broadcast_to(b_ref[...], (M2, Cout))

        @pl.when(va[t] == 1)          # accumulate this tap's contribution
        def _acc():
            d0 = q * TQD + sd[t]
            xs = x_ref[pl.ds(jw[t], 1), pl.ds(d0, TQD), pl.ds(sh[t], Qh), :, :]
            xs2 = xs.reshape(M2, Cin)
            o_ref[...] += jnp.dot(xs2, w_ref[ki[t]],
                                  preferred_element_type=jnp.float32)

    out_cm = pl.pallas_call(
        kernel,
        out_shape=jax.ShapeDtypeStruct((N, C3, Qd * Qh * Qw, Cout), jnp.float32),
        grid_spec=pltpu.PrefetchScalarGridSpec(
            num_scalar_prefetch=7,
            grid=(N, Qd // TQD, T),
            in_specs=[
                pl.BlockSpec((None, Jw, Dp, Hp, Qw, Cin),
                             lambda n, q, t, *_: (n, 0, 0, 0, 0, 0)),
                pl.BlockSpec((kD * kH * kW, Cin, Cout),
                             lambda n, q, t, *_: (0, 0, 0)),
                pl.BlockSpec((1, Cout),
                             lambda n, q, t, *_: (0, 0)),
            ],
            out_specs=pl.BlockSpec(
                (None, None, M2, Cout),
                lambda n, q, t, sd, sh, jw, ki, cl, fi, va: (n, cl[t], q, 0)),
        ),
        compiler_params=pltpu.CompilerParams(
            dimension_semantics=("parallel", "parallel", "arbitrary")),
    )(*tables, x_stack, w_taps, b2)

    # interleave the polyphase classes + go back to NCDHW in one XLA layout pass
    out8 = out_cm.reshape(N, s, s, s, Qd, Qh, Qw, Cout)
    out_t = jnp.transpose(out8, (0, 7, 4, 1, 5, 2, 6, 3))
    out_full = out_t.reshape(N, Cout, Qd * s, Qh * s, Qw * s)
    return out_full[:, :, :OD, :OH, :OW]


# --------------------------------------------------------------------------
# Full model forward (matches ModelNew.forward; note ModelNew.bias is unused there)
# --------------------------------------------------------------------------
@partial(jax.jit, static_argnums=(4, 5, 6))
def model_forward(x, add_input, weight, conv_bias, stride, padding, output_padding):
    conv = conv_transpose3d(x, weight, conv_bias, stride, padding, output_padding)
    return fused_add_hardswish(conv, add_input)


if __name__ == "__main__":
    key = jax.random.PRNGKey(0)
    k1, k2, k3, k4, k5 = jax.random.split(key, 5)

    # Small shapes consistent with the module (in=32, out=64, k=3, s=2, p=1, op=1).
    N, Cin, Cout = 2, 32, 64
    D, H, W = 8, 8, 8
    ksz, stride, padding, output_padding = 3, 2, 1, 1

    fan_in = Cin * ksz * ksz * ksz
    bound = float(1.0 / (fan_in ** 0.5))
    weight = jax.random.uniform(k1, (Cin, Cout, ksz, ksz, ksz), jnp.float32, -bound, bound)
    conv_bias = jax.random.uniform(k2, (Cout,), jnp.float32, -bound, bound)
    # ModelNew.bias (Cout,1,1,1,1) exists in the PyTorch module but is never used in forward.
    _unused_bias = jax.random.normal(k3, (Cout, 1, 1, 1, 1), jnp.float32)  # noqa: F841

    OD = (D - 1) * stride - 2 * padding + ksz + output_padding
    OH = (H - 1) * stride - 2 * padding + ksz + output_padding
    OW = (W - 1) * stride - 2 * padding + ksz + output_padding

    x = jax.random.normal(k4, (N, Cin, D, H, W), jnp.float32)
    add_input = jax.random.normal(k5, (N, Cout, OD, OH, OW), jnp.float32)

    out = model_forward(x, add_input, weight, conv_bias, stride, padding, output_padding)
    out = jax.block_until_ready(out)
    assert out.shape == (N, Cout, OD, OH, OW)
    assert out.dtype == jnp.float32

    # correctness check against an XLA reference (conv_general_dilated == transposed conv)
    rhs = jnp.flip(weight, axis=(2, 3, 4)).transpose(1, 0, 2, 3, 4)
    pads = [(ksz - 1 - padding, ksz - 1 - padding + output_padding)] * 3
    conv_ref = jax.lax.conv_general_dilated(
        x, rhs, window_strides=(1, 1, 1), padding=pads,
        lhs_dilation=(stride, stride, stride), rhs_dilation=(1, 1, 1),
        dimension_numbers=("NCDHW", "OIDHW", "NCDHW"),
        precision=jax.lax.Precision.HIGHEST,
    ) + conv_bias.reshape(1, Cout, 1, 1, 1)
    tmp = conv_ref + add_input
    ref = tmp * tmp * jnp.clip(tmp + 3.0, 0.0, 6.0) / 6.0
    max_err = float(jnp.max(jnp.abs(out - ref)))
    tol = 1e-2 * (1.0 + float(jnp.max(jnp.abs(ref))))
    assert max_err < tol, (max_err, tol)

    print("KERNEL_OK")
</pallas_src>

<mosaic_0001>
module attributes {stable_mosaic.version = 11 : i64} {
  func.func @kernel(%arg0: i32, %arg1: i32, %arg2: i32, %arg3: memref<27xi32, #tpu.memory_space<smem>>, %arg4: memref<27xi32, #tpu.memory_space<smem>>, %arg5: memref<27xi32, #tpu.memory_space<smem>>, %arg6: memref<27xi32, #tpu.memory_space<smem>>, %arg7: memref<27xi32, #tpu.memory_space<smem>>, %arg8: memref<27xi32, #tpu.memory_space<smem>>, %arg9: memref<27xi32, #tpu.memory_space<smem>>, %arg10: memref<1x2x9x9x8x32xf32, #tpu.memory_space<vmem>>, %arg11: memref<27x32x64xf32, #tpu.memory_space<vmem>>, %arg12: memref<1x64xf32, #tpu.memory_space<vmem>>, %arg13: memref<1x1x512x64xf32, #tpu.memory_space<vmem>>) attributes {dimension_semantics = [#tpu.dimension_semantics<parallel>, #tpu.dimension_semantics<parallel>, #tpu.dimension_semantics<arbitrary>], iteration_bounds = array<i64: 2, 1, 27>, scalar_prefetch = 7 : i64, scratch_operands = 0 : i64, tpu.core_type = #tpu.core_type<tc>, window_params = [{transform_indices = @transform_0, window_bounds = array<i64: 1, 2, 9, 9, 8, 32>}, {pipeline_mode = #tpu.pipeline_mode<synchronous>, transform_indices = @transform_1, window_bounds = array<i64: 27, 32, 64>}, {pipeline_mode = #tpu.pipeline_mode<synchronous>, transform_indices = @transform_2, window_bounds = array<i64: 1, 64>}, {transform_indices = @transform_3, window_bounds = array<i64: 1, 1, 512, 64>}]} {
    %0 = arith.index_cast %arg2 : i32 to index
    %1 = memref.load %arg8[%0] : memref<27xi32, #tpu.memory_space<smem>>
    %c1_i32 = arith.constant 1 : i32
    %2 = arith.cmpi eq, %1, %c1_i32 : i32
    %3 = arith.extui %2 : i1 to i32
    %c0_i32 = arith.constant 0 : i32
    %4 = arith.cmpi ne, %3, %c0_i32 : i32
    scf.if %4 {
      %c0 = arith.constant 0 : index
      %c0_2 = arith.constant 0 : index
      %10 = vector.load %arg12[%c0, %c0_2] : memref<1x64xf32, #tpu.memory_space<vmem>>, vector<1x64xf32>
      %11 = vector.shape_cast %10 : vector<1x64xf32> to vector<1x64xf32>
      %12 = vector.broadcast %11 : vector<1x64xf32> to vector<512x64xf32>
      %c0_3 = arith.constant 0 : index
      %c0_4 = arith.constant 0 : index
      %c0_5 = arith.constant 0 : index
      %c0_6 = arith.constant 0 : index
      %13 = vector.load %arg13[%c0_3, %c0_4, %c0_5, %c0_6] : memref<1x1x512x64xf32, #tpu.memory_space<vmem>>, vector<1x1x512x64xf32>
      %14 = vector.shape_cast %13 : vector<1x1x512x64xf32> to vector<512x64xf32>
      %15 = vector.shape_cast %12 : vector<512x64xf32> to vector<1x1x512x64xf32>
      tpu.vector_store %arg13[%c0_3, %c0_4, %c0_5, %c0_6], %15 {strides = array<i32>} : memref<1x1x512x64xf32, #tpu.memory_space<vmem>>, vector<1x1x512x64xf32>,
    } else {
    }
    %5 = arith.index_cast %arg2 : i32 to index
    %6 = memref.load %arg9[%5] : memref<27xi32, #tpu.memory_space<smem>>
    %c1_i32_0 = arith.constant 1 : i32
    %7 = arith.cmpi eq, %6, %c1_i32_0 : i32
    %8 = arith.extui %7 : i1 to i32
    %c0_i32_1 = arith.constant 0 : i32
    %9 = arith.cmpi ne, %8, %c0_i32_1 : i32
    scf.if %9 {
      %c8_i32 = arith.constant 8 : i32
      %10 = arith.muli %arg1, %c8_i32 : i32
      %11 = arith.index_cast %arg2 : i32 to index
      %12 = memref.load %arg3[%11] : memref<27xi32, #tpu.memory_space<smem>>
      %13 = arith.addi %10, %12 : i32
      %14 = arith.index_cast %arg2 : i32 to index
      %15 = memref.load %arg5[%14] : memref<27xi32, #tpu.memory_space<smem>>
      %16 = arith.index_cast %arg2 : i32 to index
      %17 = memref.load %arg4[%16] : memref<27xi32, #tpu.memory_space<smem>>
      %c0 = arith.constant 0 : index
      %18 = arith.index_cast %15 : i32 to index
      %19 = arith.index_cast %13 : i32 to index
      %20 = arith.index_cast %17 : i32 to index
      %c0_2 = arith.constant 0 : index
      %c0_3 = arith.constant 0 : index
      %21 = vector.load %arg10[%c0, %18, %19, %20, %c0_2, %c0_3] : memref<1x2x9x9x8x32xf32, #tpu.memory_space<vmem>>, vector<1x1x8x8x8x32xf32>
      %22 = vector.shape_cast %21 : vector<1x1x8x8x8x32xf32> to vector<1x8x8x8x32xf32>
      %23 = vector.shape_cast %22 : vector<1x8x8x8x32xf32> to vector<512x32xf32>
      %c0_4 = arith.constant 0 : index
      %c0_5 = arith.constant 0 : index
      %c0_6 = arith.constant 0 : index
      %c0_7 = arith.constant 0 : index
      %24 = vector.load %arg13[%c0_4, %c0_5, %c0_6, %c0_7] : memref<1x1x512x64xf32, #tpu.memory_space<vmem>>, vector<1x1x512x64xf32>
      %25 = vector.shape_cast %24 : vector<1x1x512x64xf32> to vector<512x64xf32>
      %26 = arith.index_cast %arg2 : i32 to index
      %27 = memref.load %arg6[%26] : memref<27xi32, #tpu.memory_space<smem>>
      %28 = arith.index_cast %27 : i32 to index
      %c0_8 = arith.constant 0 : index
      %c0_9 = arith.constant 0 : index
      %29 = vector.load %arg11[%28, %c0_8, %c0_9] : memref<27x32x64xf32, #tpu.memory_space<vmem>>, vector<1x32x64xf32>
      %30 = vector.shape_cast %29 : vector<1x32x64xf32> to vector<32x64xf32>
      %cst = arith.constant dense<0.000000e+00> : vector<512x64xf32>
      %31 = tpu.matmul %23, %30, %cst {dimension_numbers = #tpu.dot_dimension_numbers<[1], [0], [0], [1], [0, 0, 1, 1], [], []>} : vector<512x32xf32>, vector<32x64xf32>, vector<512x64xf32> -> vector<512x64xf32>
      %32 = arith.addf %25, %31 : vector<512x64xf32>
      %c0_10 = arith.constant 0 : index
      %c0_11 = arith.constant 0 : index
      %c0_12 = arith.constant 0 : index
      %c0_13 = arith.constant 0 : index
      %33 = vector.load %arg13[%c0_10, %c0_11, %c0_12, %c0_13] : memref<1x1x512x64xf32, #tpu.memory_space<vmem>>, vector<1x1x512x64xf32>
      %34 = vector.shape_cast %33 : vector<1x1x512x64xf32> to vector<512x64xf32>
      %35 = vector.shape_cast %32 : vector<512x64xf32> to vector<1x1x512x64xf32>
      tpu.vector_store %arg13[%c0_10, %c0_11, %c0_12, %c0_13], %35 {strides = array<i32>} : memref<1x1x512x64xf32, #tpu.memory_space<vmem>>, vector<1x1x512x64xf32>,
    } else {
    }
    return
  }
  func.func @transform_0(%arg0: i32, %arg1: i32, %arg2: i32, %arg3: memref<27xi32, #tpu.memory_space<smem>>, %arg4: memref<27xi32, #tpu.memory_space<smem>>, %arg5: memref<27xi32, #tpu.memory_space<smem>>, %arg6: memref<27xi32, #tpu.memory_space<smem>>, %arg7: memref<27xi32, #tpu.memory_space<smem>>, %arg8: memref<27xi32, #tpu.memory_space<smem>>, %arg9: memref<27xi32, #tpu.memory_space<smem>>) -> (i32, i32, i32, i32, i32, i32) {
    %c0_i32 = arith.constant 0 : i32
    %c0_i32_0 = arith.constant 0 : i32
    %c0_i32_1 = arith.constant 0 : i32
    %c0_i32_2 = arith.constant 0 : i32
    %c0_i32_3 = arith.constant 0 : i32
    %c0_i32_4 = arith.constant 0 : i32
    return %arg0, %c0_i32, %c0_i32_0, %c0_i32_1, %c0_i32_2, %c0_i32_3 : i32, i32, i32, i32, i32, i32
  }
  func.func @transform_1(%arg0: i32, %arg1: i32, %arg2: i32, %arg3: memref<27xi32, #tpu.memory_space<smem>>, %arg4: memref<27xi32, #tpu.memory_space<smem>>, %arg5: memref<27xi32, #tpu.memory_space<smem>>, %arg6: memref<27xi32, #tpu.memory_space<smem>>, %arg7: memref<27xi32, #tpu.memory_space<smem>>, %arg8: memref<27xi32, #tpu.memory_space<smem>>, %arg9: memref<27xi32, #tpu.memory_space<smem>>) -> (i32, i32, i32) {
    %c0_i32 = arith.constant 0 : i32
    %c0_i32_0 = arith.constant 0 : i32
    %c0_i32_1 = arith.constant 0 : i32
    %c0_i32_2 = arith.constant 0 : i32
    return %c0_i32, %c0_i32_0, %c0_i32_1 : i32, i32, i32
  }
  func.func @transform_2(%arg0: i32, %arg1: i32, %arg2: i32, %arg3: memref<27xi32, #tpu.memory_space<smem>>, %arg4: memref<27xi32, #tpu.memory_space<smem>>, %arg5: memref<27xi32, #tpu.memory_space<smem>>, %arg6: memref<27xi32, #tpu.memory_space<smem>>, %arg7: memref<27xi32, #tpu.memory_space<smem>>, %arg8: memref<27xi32, #tpu.memory_space<smem>>, %arg9: memref<27xi32, #tpu.memory_space<smem>>) -> (i32, i32) {
    %c0_i32 = arith.constant 0 : i32
    %c0_i32_0 = arith.constant 0 : i32
    %c0_i32_1 = arith.constant 0 : i32
    return %c0_i32, %c0_i32_0 : i32, i32
  }
  func.func @transform_3(%arg0: i32, %arg1: i32, %arg2: i32, %arg3: memref<27xi32, #tpu.memory_space<smem>>, %arg4: memref<27xi32, #tpu.memory_space<smem>>, %arg5: memref<27xi32, #tpu.memory_space<smem>>, %arg6: memref<27xi32, #tpu.memory_space<smem>>, %arg7: memref<27xi32, #tpu.memory_space<smem>>, %arg8: memref<27xi32, #tpu.memory_space<smem>>, %arg9: memref<27xi32, #tpu.memory_space<smem>>) -> (i32, i32, i32, i32) {
    %0 = arith.index_cast %arg2 : i32 to index
    %1 = memref.load %arg7[%0] : memref<27xi32, #tpu.memory_space<smem>>
    %c0_i32 = arith.constant 0 : i32
    %c0_i32_0 = arith.constant 0 : i32
    return %arg0, %1, %arg1, %c0_i32 : i32, i32, i32, i32
  }
}

module attributes {stable_mosaic.version = 11 : i64} {
  func.func @_fused_add_hardswish_kernel(%arg0: i32, %arg1: memref<2048x256xf32, #tpu.memory_space<vmem>>, %arg2: memref<2048x256xf32, #tpu.memory_space<vmem>>, %arg3: memref<2048x256xf32, #tpu.memory_space<vmem>>) attributes {dimension_semantics = [#tpu.dimension_semantics<parallel>], iteration_bounds = array<i64: 1>, scalar_prefetch = 0 : i64, scratch_operands = 0 : i64, tpu.core_type = #tpu.core_type<tc>, window_params = [{transform_indices = @transform_0, window_bounds = array<i64: 2048, 256>}, {transform_indices = @transform_1, window_bounds = array<i64: 2048, 256>}, {transform_indices = @transform_2, window_bounds = array<i64: 2048, 256>}]} {
    %c0 = arith.constant 0 : index
    %c0_0 = arith.constant 0 : index
    %0 = vector.load %arg1[%c0, %c0_0] : memref<2048x256xf32, #tpu.memory_space<vmem>>, vector<2048x256xf32>
    %c0_1 = arith.constant 0 : index
    %c0_2 = arith.constant 0 : index
    %1 = vector.load %arg2[%c0_1, %c0_2] : memref<2048x256xf32, #tpu.memory_space<vmem>>, vector<2048x256xf32>
    %2 = arith.addf %0, %1 : vector<2048x256xf32>
    %cst = arith.constant 3.000000e+00 : f32
    %3 = vector.broadcast %cst : f32 to vector<2048x256xf32>
    %4 = arith.addf %2, %3 : vector<2048x256xf32>
    %cst_3 = arith.constant 0.000000e+00 : f32
    %cst_4 = arith.constant 6.000000e+00 : f32
    %5 = vector.broadcast %cst_3 : f32 to vector<2048x256xf32>
    %6 = arith.maximumf %5, %4 : vector<2048x256xf32>
    %7 = vector.broadcast %cst_4 : f32 to vector<2048x256xf32>
    %8 = arith.minimumf %7, %6 : vector<2048x256xf32>
    %cst_5 = arith.constant 0.166666672 : f32
    %9 = vector.broadcast %cst_5 : f32 to vector<2048x256xf32>
    %10 = arith.mulf %8, %9 : vector<2048x256xf32>
    %11 = arith.mulf %2, %2 : vector<2048x256xf32>
    %12 = arith.mulf %11, %10 : vector<2048x256xf32>
    %c0_6 = arith.constant 0 : index
    %c0_7 = arith.constant 0 : index
    %13 = vector.load %arg3[%c0_6, %c0_7] : memref<2048x256xf32, #tpu.memory_space<vmem>>, vector<2048x256xf32>
    tpu.vector_store %arg3[%c0_6, %c0_7], %12 {strides = array<i32>} : memref<2048x256xf32, #tpu.memory_space<vmem>>, vector<2048x256xf32>,
    return
  }
  func.func @transform_0(%arg0: i32) -> (i32, i32) {
    %c0_i32 = arith.constant 0 : i32
    %c0_i32_0 = arith.constant 0 : i32
    return %arg0, %c0_i32 : i32, i32
  }
  func.func @transform_1(%arg0: i32) -> (i32, i32) {
    %c0_i32 = arith.constant 0 : i32
    %c0_i32_0 = arith.constant 0 : i32
    return %arg0, %c0_i32 : i32, i32
  }
  func.func @transform_2(%arg0: i32) -> (i32, i32) {
    %c0_i32 = arith.constant 0 : i32
    %c0_i32_0 = arith.constant 0 : i32
    return %arg0, %c0_i32 : i32, i32
  }
}

</mosaic_0001>

<llo_original>
// kernel: model_forward.2
$region0: #{model_forward.2}
  #allocation0 [shape = 'u32[]', space=smem, size = 0x4, offset = 0x4, fixed_abs, tag = 'smem constant byte address 0x4 - core index']
  #allocation1 [shape = 'u32[72,128]{1,0:T(1,128)}', space=vmem, size = 0x9000, scoped, tag = 'internal scratch']
  #allocation2 [shape = 's32[1]{0}', space=sflag, size = 0x4, scoped, tag = 'scoped memory for model_forward.2']
  #allocation3 [shape = 'u8[512]{0}', space=smem, size = 0x200, scoped, tag = 'prefetched SMEM operand 0']
  #allocation4 [shape = 'u8[512]{0}', space=smem, size = 0x200, scoped, tag = 'prefetched SMEM operand 1']
  #allocation5 [shape = 'u8[512]{0}', space=smem, size = 0x200, scoped, tag = 'prefetched SMEM operand 2']
  #allocation6 [shape = 'u8[512]{0}', space=smem, size = 0x200, scoped, tag = 'prefetched SMEM operand 3']
  #allocation7 [shape = 'u8[512]{0}', space=smem, size = 0x200, scoped, tag = 'prefetched SMEM operand 4']
  #allocation8 [shape = 'u8[512]{0}', space=smem, size = 0x200, scoped, tag = 'prefetched SMEM operand 5']
  #allocation9 [shape = 'u8[512]{0}', space=smem, size = 0x200, scoped, tag = 'prefetched SMEM operand 6']
  %s0 = inlined_call_operand.vmem [shape: s32[27], index: 0, kind: input, shape index: {}]
  %s1 = inlined_call_operand.vmem [shape: s32[27], index: 1, kind: input, shape index: {}]
  %s2 = inlined_call_operand.vmem [shape: s32[27], index: 2, kind: input, shape index: {}]
  %s3 = inlined_call_operand.vmem [shape: s32[27], index: 3, kind: input, shape index: {}]
  %s4 = inlined_call_operand.vmem [shape: s32[27], index: 4, kind: input, shape index: {}]
  %s5 = inlined_call_operand.vmem [shape: s32[27], index: 5, kind: input, shape index: {}]
  %s6 = inlined_call_operand.vmem [shape: s32[27], index: 6, kind: input, shape index: {}]
  %s7 = inlined_call_operand.vmem [shape: f32[2,2,9,9,8,32], index: 7, kind: input, shape index: {}]
  %s8 = inlined_call_operand.vmem [shape: f32[27,32,64], index: 8, kind: input, shape index: {}]
  %s9 = inlined_call_operand.vmem [shape: f32[1,64], index: 9, kind: input, shape index: {}]
  %s10 = inlined_call_operand.vmem [shape: f32[2,8,512,64], index: 10, kind: output, shape index: {}]
  %s11 = sld [smem:[#allocation0]]
  $region53: #{model_forward.2} parent=0
    _
  %s13 = ssub.s32 1, %s11
  %s14 = scalar_select 0, %s13, %s11
  %s16 = sshll.u32 %s0, 4
  %s17 = int_to_ptr.vmem [resolvable:$true] %s16
  %19 = dma.vmem_to_smem %s17, 16, [#allocation3], [#allocation2]
  %s21 = sshll.u32 %s1, 4
  %s22 = int_to_ptr.vmem [resolvable:$true] %s21
  %24 = dma.vmem_to_smem %s22, 16, [#allocation4], [#allocation2]
  %s26 = sshll.u32 %s2, 4
  %s27 = int_to_ptr.vmem [resolvable:$true] %s26
  %29 = dma.vmem_to_smem %s27, 16, [#allocation5], [#allocation2]
  %s31 = sshll.u32 %s3, 4
  %s32 = int_to_ptr.vmem [resolvable:$true] %s31
  %34 = dma.vmem_to_smem %s32, 16, [#allocation6], [#allocation2]
  %s36 = sshll.u32 %s4, 4
  %s37 = int_to_ptr.vmem [resolvable:$true] %s36
  %39 = dma.vmem_to_smem %s37, 16, [#allocation7], [#allocation2]
  %s41 = sshll.u32 %s5, 4
  %s42 = int_to_ptr.vmem [resolvable:$true] %s41
  %44 = dma.vmem_to_smem %s42, 16, [#allocation8], [#allocation2]
  %s46 = sshll.u32 %s6, 4
  %s47 = int_to_ptr.vmem [resolvable:$true] %s46
  %49 = dma.vmem_to_smem %s47, 16, [#allocation9], [#allocation2]
  %51 = dma.done [#allocation2], 112
  %52 = sfence
  loop: start=0, step=1, limit=56
  $region2: #{model_forward.2} parent=0 // loop_pre_header
    _
  $region3: #{model_forward.2} parent=0 // loop_header
    %s54 = sphi 0, %s58
    %p55 = scmp.ge.s32.totalorder %s54, 56
    %s61 = sphi 0, %s80
    %s62 = sphi 0, %s76
    %s63 = sphi 0, %s72
    %s64 = sphi 0, %s61
    %s65 = sphi 0, %s62
    %s66 = sphi 0, %s63
    %s67 = sphi 0, %s64
    %s68 = sphi 0, %s65
    %s69 = sphi 0, %s66
    %s83 = sphi 0, %s85
    %s86 = sphi 0, %s83
    %s87 = sphi 0, %s86
    %s103 = sphi 0, %s87
    %s107 = sphi 0, %s107
    %s109 = sphi 0, %s107
    %s110 = sphi 0, %s109
    %s124 = sphi 0, %s110
    %s128 = sphi 0, %s128
    %s130 = sphi 0, %s128
    %s131 = sphi 0, %s130
    %s145 = sphi 0, %s131
    %s157 = sphi 0, %s159
    %s160 = sphi 0, %s157
    %s161 = sphi 0, %s160
    %s177 = sphi 0, %s161
  $region4: #{model_forward.2} parent=0 // loop_header_branch
    %57 = sbr.rel (%p55) target = $region8
  $region5: #{model_forward.2} parent=0 // loop_body
    %s59 = ssub.s32 %s54, 1
    %s60 = ssub.s32 %s54, 2
    %s70 = sadd.s32 1, %s63
    %p71 = scmp.ge.s32.totalorder %s70, 27
    %s72 = scalar_select %p71, 0, %s70
    %s73 = sadd.s32 1, %s62
    %s74 = scalar_select %p71, %s73, %s62
    %p75 = scmp.ge.s32.totalorder %s74, 1
    %s76 = scalar_select %p75, 0, %s74
    %s77 = sadd.s32 1, %s61
    %s78 = scalar_select %p75, %s77, %s61
    %p79 = scmp.ge.s32.totalorder %s78, 2
    %s80 = scalar_select %p79, 0, %s78
    %s81 = ssub.s32 %s61, %s80
    %p82 = scmp.eq.s32.totalorder %s81, 0
    %s84 = sadd.s32 %s83, 1
    %s85 = scalar_select %p82, %s83, %s84
    %p88 = pneg %p82
    %p89 = scmp.eq.s32.totalorder %s54, 53
    %p90 = por %p88, %p89
    %p91 = scmp.ne.s32.totalorder %s83, %s86
    %p92 = scmp.eq.s32.totalorder %s54, 0
    %p93 = por %p91, %p92
    %p94 = scmp.ne.s32.totalorder %s83, %s86
    %p95 = scmp.eq.s32.totalorder %s59, 53
    %p96 = por %p94, %p95
    %p97 = scmp.ne.s32.totalorder %s86, %s87
    %p98 = scmp.eq.s32.totalorder %s59, 0
    %p99 = por %p97, %p98
    %p100 = scmp.ne.s32.totalorder %s86, %s87
    %p101 = scmp.eq.s32.totalorder %s60, 53
    %p102 = por %p100, %p101
    %p104 = scmp.ne.s32.totalorder %s87, %s103
    %p105 = scmp.eq.s32.totalorder %s60, 0
    %p106 = por %p104, %p105
    %s108 = sadd.s32 %s107, 1
    %p111 = scmp.eq.s32.totalorder %s54, 53
    %p112 = scmp.ne.s32.totalorder %s107, %s109
    %p113 = scmp.eq.s32.totalorder %s54, 0
    %p114 = por %p112, %p113
    %p115 = scmp.ne.s32.totalorder %s107, %s109
    %p116 = scmp.eq.s32.totalorder %s59, 53
    %p117 = por %p115, %p116
    %p118 = scmp.ne.s32.totalorder %s109, %s110
    %p119 = scmp.eq.s32.totalorder %s59, 0
    %p120 = por %p118, %p119
    %p121 = scmp.ne.s32.totalorder %s109, %s110
    %p122 = scmp.eq.s32.totalorder %s60, 53
    %p123 = por %p121, %p122
    %p125 = scmp.ne.s32.totalorder %s110, %s124
    %p126 = scmp.eq.s32.totalorder %s60, 0
    %p127 = por %p125, %p126
    %s129 = sadd.s32 %s128, 1
    %p132 = scmp.eq.s32.totalorder %s54, 53
    %p133 = scmp.ne.s32.totalorder %s128, %s130
    %p134 = scmp.eq.s32.totalorder %s54, 0
    %p135 = por %p133, %p134
    %p136 = scmp.ne.s32.totalorder %s128, %s130
    %p137 = scmp.eq.s32.totalorder %s59, 53
    %p138 = por %p136, %p137
    %p139 = scmp.ne.s32.totalorder %s130, %s131
    %p140 = scmp.eq.s32.totalorder %s59, 0
    %p141 = por %p139, %p140
    %p142 = scmp.ne.s32.totalorder %s130, %s131
    %p143 = scmp.eq.s32.totalorder %s60, 53
    %p144 = por %p142, %p143
    %p146 = scmp.ne.s32.totalorder %s131, %s145
    %p147 = scmp.eq.s32.totalorder %s60, 0
    %p148 = por %p146, %p147
    %s149 = sld [smem:[#allocation7 + %s63]]
    %s150 = sld [smem:[#allocation7 + %s72]]
    %s151 = ssub.s32 %s61, %s80
    %s152 = ssub.s32 %s149, %s150
    %s153 = sor.u32 %s151, %s152
    %s154 = ssub.s32 %s62, %s76
    %s155 = sor.u32 %s153, %s154
    %p156 = scmp.eq.s32.totalorder %s155, 0
    %s158 = sadd.s32 %s157, 1
    %s159 = scalar_select %p156, %s157, %s158
    %p162 = pneg %p156
    %p163 = scmp.eq.s32.totalorder %s54, 53
    %p164 = por %p162, %p163
    %p165 = scmp.ne.s32.totalorder %s157, %s160
    %p166 = scmp.eq.s32.totalorder %s54, 0
    %p167 = por %p165, %p166
    %p168 = scmp.ne.s32.totalorder %s157, %s160
    %p169 = scmp.eq.s32.totalorder %s59, 53
    %p170 = por %p168, %p169
    %p171 = scmp.ne.s32.totalorder %s160, %s161
    %p172 = scmp.eq.s32.totalorder %s59, 0
    %p173 = por %p171, %p172
    %p174 = scmp.ne.s32.totalorder %s160, %s161
    %p175 = scmp.eq.s32.totalorder %s60, 53
    %p176 = por %p174, %p175
    %p178 = scmp.ne.s32.totalorder %s161, %s177
    %p179 = scmp.eq.s32.totalorder %s60, 0
    %p180 = por %p178, %p179
    %p181 = scmp.le.s32.totalorder 1, %s54
    %p182 = scmp.lt.s32.totalorder %s54, 55
    %p183 = pnand %p181, %p182
    %p184 = pneg %p183
    // Predicated region
    $region9: #{model_forward.2} parent=5 // pred_check
      _
    $region10: #{model_forward.2} parent=5 // pred_check_branch
      %186 = sbr.rel (%p183) target = $region12
    $region11: #{model_forward.2} parent=5 // pred_region
      %s187 = ssub.s32 %s54, 1
      // Predicated region
      $region13: #{model_forward.2} parent=11 // pred_check
        %p188 = pneg %p120
      $region14: #{model_forward.2} parent=11 // pred_check_branch
        %190 = sbr.rel (%p188) target = $region16
      $region15: #{model_forward.2} parent=11 // pred_region
        _
      $region16: #{model_forward.2} parent=11 // pred_fallthru
        _
      // Predicated region
      $region17: #{model_forward.2} parent=11 // pred_check
        %p191 = pneg %p141
      $region18: #{model_forward.2} parent=11 // pred_check_branch
        %193 = sbr.rel (%p191) target = $region20
      $region19: #{model_forward.2} parent=11 // pred_region
        _
      $region20: #{model_forward.2} parent=11 // pred_fallthru
        _
    $region12: #{model_forward.2} parent=5 // pred_fallthru
      _
    %p194 = scmp.lt.s32.totalorder %s54, 54
    // Predicated region
    $region21: #{model_forward.2} parent=5 // pred_check
      %p195 = pneg %p194
    $region22: #{model_forward.2} parent=5 // pred_check_branch
      %197 = sbr.rel (%p195) target = $region24
    $region23: #{model_forward.2} parent=5 // pred_region
      // Predicated region
      $region25: #{model_forward.2} parent=23 // pred_check
        %p198 = pneg %p93
      $region26: #{model_forward.2} parent=23 // pred_check_branch
        %200 = sbr.rel (%p198) target = $region28
      $region27: #{model_forward.2} parent=23 // pred_region
        %p201 = scmp.lt.s32.totalorder %s61, 1
        %s202 = scalar_select %p201, %s61, 1
        %s203 = smul.addr %s202, 162
        %s204 = smul.addr %s203, 8
        %s205 = scalar_lea.vmem %s7, %s204
      $region28: #{model_forward.2} parent=23 // pred_fallthru
        _
    $region24: #{model_forward.2} parent=5 // pred_fallthru
      _
    %p206 = scmp.le.s32.totalorder 1, %s54
    %p207 = scmp.lt.s32.totalorder %s54, 55
    %p208 = pnand %p206, %p207
    %p209 = pneg %p208
    // Predicated region
    $region29: #{model_forward.2} parent=5 // pred_check
      _
    $region30: #{model_forward.2} parent=5 // pred_check_branch
      %211 = sbr.rel (%p208) target = $region32
    $region31: #{model_forward.2} parent=5 // pred_region
      %s212 = ssub.s32 %s54, 1
      %p213 = scmp.lt.s32.totalorder %s64, 1
      %s214 = scalar_select %p213, %s64, 1
      %s215 = smul.addr %s214, 162
      %s216 = smul.addr %s215, 8
      %s217 = scalar_lea.vmem %s7, %s216
      %p218 = pneg %p99
      %p219 = pneg %p96
      %p220 = pneg %p120
      %p221 = pneg %p117
      %p222 = pneg %p141
      %p223 = pneg %p138
      %p224 = pneg %p173
      %p225 = pneg %p170
      %s226 = sld [smem:[#allocation7 + %s66]]
      %s227 = smul.u32 64, %s65
      %p228 = scmp.lt.s32.totalorder %s64, 1
      %s229 = scalar_select %p228, %s64, 1
      %p230 = scmp.lt.s32.totalorder %s226, 7
      %s231 = scalar_select %p230, %s226, 7
      %p232 = scmp.lt.s32.totalorder %s227, 63
      %s233 = scalar_select %p232, %s227, 63
      %s234 = smul.addr %s231, 64
      %s235 = sadd.s32 %s233, %s234
      %s236 = smul.addr %s229, 512
      %s237 = sadd.s32 %s235, %s236
      %s238 = smul.addr %s237, 8
      %s239 = scalar_lea.vmem %s10, %s238
      %p240 = scmp.lt.s32.totalorder %s64, 1
      %s241 = scalar_select %p240, %s64, 1
      %s242 = smul.addr %s241, 162
      %s243 = smul.addr %s242, 8
      %s244 = scalar_lea.vmem %s7, %s243
      %s245 = sld [smem:[#allocation7 + %s66]]
      %s246 = smul.u32 64, %s65
      %p247 = scmp.lt.s32.totalorder %s64, 1
      %s248 = scalar_select %p247, %s64, 1
      %p249 = scmp.lt.s32.totalorder %s245, 7
      %s250 = scalar_select %p249, %s245, 7
      %p251 = scmp.lt.s32.totalorder %s246, 63
      %s252 = scalar_select %p251, %s246, 63
      %s253 = smul.addr %s250, 64
      %s254 = sadd.s32 %s252, %s253
      %s255 = smul.addr %s248, 512
      %s256 = sadd.s32 %s254, %s255
      %s257 = smul.addr %s256, 8
      %s258 = scalar_lea.vmem %s10, %s257
      %s259 = sld [smem:[#allocation7 + %s66]]
      %s260 = smul.u32 64, %s65
      %s261 = sld [smem:[#allocation8 + %s66]]
      %p262 = scmp.eq.s32.totalorder %s261, 1
      // Predicated region
      $region33: #{model_forward.2} parent=31 // pred_check
        %p263 = pneg %p262
      $region34: #{model_forward.2} parent=31 // pred_check_branch
        %265 = sbr.rel (%p263) target = $region36
      $region35: #{model_forward.2} parent=31 // pred_region
        %v266 = vld [vmem:[%s9] sm:$0x1]
        %v268 = vperm.slane %v266, 0
        %vm270 = vcmask 523264
        %271 = vst.msk [vmem:[%s258] sm:$0xff] %vm270, %v268
        %272 = vst.msk [vmem:[%s258 + $0x8] sm:$0xff] %vm270, %v268
        %273 = vst.msk [vmem:[%s258 + $0x10] sm:$0xff] %vm270, %v268
        %274 = vst.msk [vmem:[%s258 + $0x18] sm:$0xff] %vm270, %v268
        %275 = vst.msk [vmem:[%s258 + $0x20] sm:$0xff] %vm270, %v268
        %276 = vst.msk [vmem:[%s258 + $0x28] sm:$0xff] %vm270, %v268
        %277 = vst.msk [vmem:[%s258 + $0x30] sm:$0xff] %vm270, %v268
        %278 = vst.msk [vmem:[%s258 + $0x38] sm:$0xff] %vm270, %v268
        %279 = vst.msk [vmem:[%s258 + $0x40] sm:$0xff] %vm270, %v268
        %280 = vst.msk [vmem:[%s258 + $0x48] sm:$0xff] %vm270, %v268
        %281 = vst.msk [vmem:[%s258 + $0x50] sm:$0xff] %vm270, %v268
        %282 = vst.msk [vmem:[%s258 + $0x58] sm:$0xff] %vm270, %v268
        %283 = vst.msk [vmem:[%s258 + $0x60] sm:$0xff] %vm270, %v268
        %284 = vst.msk [vmem:[%s258 + $0x68] sm:$0xff] %vm270, %v268
        %285 = vst.msk [vmem:[%s258 + $0x70] sm:$0xff] %vm270, %v268
        %286 = vst.msk [vmem:[%s258 + $0x78] sm:$0xff] %vm270, %v268
        %287 = vst.msk [vmem:[%s258 + $0x80] sm:$0xff] %vm270, %v268
        %288 = vst.msk [vmem:[%s258 + $0x88] sm:$0xff] %vm270, %v268
        %289 = vst.msk [vmem:[%s258 + $0x90] sm:$0xff] %vm270, %v268
        %290 = vst.msk [vmem:[%s258 + $0x98] sm:$0xff] %vm270, %v268
        %291 = vst.msk [vmem:[%s258 + $0xa0] sm:$0xff] %vm270, %v268
        %292 = vst.msk [vmem:[%s258 + $0xa8] sm:$0xff] %vm270, %v268
        %293 = vst.msk [vmem:[%s258 + $0xb0] sm:$0xff] %vm270, %v268
        %294 = vst.msk [vmem:[%s258 + $0xb8] sm:$0xff] %vm270, %v268
        %295 = vst.msk [vmem:[%s258 + $0xc0] sm:$0xff] %vm270, %v268
        %296 = vst.msk [vmem:[%s258 + $0xc8] sm:$0xff] %vm270, %v268
        %297 = vst.msk [vmem:[%s258 + $0xd0] sm:$0xff] %vm270, %v268
        %298 = vst.msk [vmem:[%s258 + $0xd8] sm:$0xff] %vm270, %v268
        %299 = vst.msk [vmem:[%s258 + $0xe0] sm:$0xff] %vm270, %v268
        %300 = vst.msk [vmem:[%s258 + $0xe8] sm:$0xff] %vm270, %v268
        %301 = vst.msk [vmem:[%s258 + $0xf0] sm:$0xff] %vm270, %v268
        %302 = vst.msk [vmem:[%s258 + $0xf8] sm:$0xff] %vm270, %v268
        %303 = vst.msk [vmem:[%s258 + $0x100] sm:$0xff] %vm270, %v268
        %304 = vst.msk [vmem:[%s258 + $0x108] sm:$0xff] %vm270, %v268
        %305 = vst.msk [vmem:[%s258 + $0x110] sm:$0xff] %vm270, %v268
        %306 = vst.msk [vmem:[%s258 + $0x118] sm:$0xff] %vm270, %v268
        %307 = vst.msk [vmem:[%s258 + $0x120] sm:$0xff] %vm270, %v268
        %308 = vst.msk [vmem:[%s258 + $0x128] sm:$0xff] %vm270, %v268
        %309 = vst.msk [vmem:[%s258 + $0x130] sm:$0xff] %vm270, %v268
        %310 = vst.msk [vmem:[%s258 + $0x138] sm:$0xff] %vm270, %v268
        %311 = vst.msk [vmem:[%s258 + $0x140] sm:$0xff] %vm270, %v268
        %312 = vst.msk [vmem:[%s258 + $0x148] sm:$0xff] %vm270, %v268
        %313 = vst.msk [vmem:[%s258 + $0x150] sm:$0xff] %vm270, %v268
        %314 = vst.msk [vmem:[%s258 + $0x158] sm:$0xff] %vm270, %v268
        %315 = vst.msk [vmem:[%s258 + $0x160] sm:$0xff] %vm270, %v268
        %316 = vst.msk [vmem:[%s258 + $0x168] sm:$0xff] %vm270, %v268
        %317 = vst.msk [vmem:[%s258 + $0x170] sm:$0xff] %vm270, %v268
        %318 = vst.msk [vmem:[%s258 + $0x178] sm:$0xff] %vm270, %v268
        %319 = vst.msk [vmem:[%s258 + $0x180] sm:$0xff] %vm270, %v268
        %320 = vst.msk [vmem:[%s258 + $0x188] sm:$0xff] %vm270, %v268
        %321 = vst.msk [vmem:[%s258 + $0x190] sm:$0xff] %vm270, %v268
        %322 = vst.msk [vmem:[%s258 + $0x198] sm:$0xff] %vm270, %v268
        %323 = vst.msk [vmem:[%s258 + $0x1a0] sm:$0xff] %vm270, %v268
        %324 = vst.msk [vmem:[%s258 + $0x1a8] sm:$0xff] %vm270, %v268
        %325 = vst.msk [vmem:[%s258 + $0x1b0] sm:$0xff] %vm270, %v268
        %326 = vst.msk [vmem:[%s258 + $0x1b8] sm:$0xff] %vm270, %v268
        %327 = vst.msk [vmem:[%s258 + $0x1c0] sm:$0xff] %vm270, %v268
        %328 = vst.msk [vmem:[%s258 + $0x1c8] sm:$0xff] %vm270, %v268
        %329 = vst.msk [vmem:[%s258 + $0x1d0] sm:$0xff] %vm270, %v268
        %330 = vst.msk [vmem:[%s258 + $0x1d8] sm:$0xff] %vm270, %v268
        %331 = vst.msk [vmem:[%s258 + $0x1e0] sm:$0xff] %vm270, %v268
        %332 = vst.msk [vmem:[%s258 + $0x1e8] sm:$0xff] %vm270, %v268
        %333 = vst.msk [vmem:[%s258 + $0x1f0] sm:$0xff] %vm270, %v268
        %334 = vst.msk [vmem:[%s258 + $0x1f8] sm:$0xff] %vm270, %v268
      $region36: #{model_forward.2} parent=31 // pred_fallthru
        _
      %s335 = sld [smem:[#allocation9 + %s66]]
      %p336 = scmp.eq.s32.totalorder %s335, 1
      // Predicated region
      $region37: #{model_forward.2} parent=31 // pred_check
        %p337 = pneg %p336
      $region38: #{model_forward.2} parent=31 // pred_check_branch
        %339 = sbr.rel (%p337) target = $region40
      $region39: #{model_forward.2} parent=31 // pred_region
        %s340 = smul.u32 %s65, 8
        %s341 = sld [smem:[#allocation3 + %s66]]
        %s342 = sadd.s32 %s340, %s341
        %s343 = sld [smem:[#allocation5 + %s66]]
        %s344 = sld [smem:[#allocation4 + %s66]]
        %s345 = smul.u32 %s344, 8
        %s346 = smul.u32 %s342, 72
        %s347 = sadd.s32 %s345, %s346
        %s348 = smul.u32 %s343, 648
        %s349 = sadd.s32 %s347, %s348
        %s350 = scalar_lea.vmem %s244, %s349
        %v351 = vld [vmem:[%s350] sm:$0xff]
        %v352 = vld [vmem:[%s350 + $0x8] sm:$0xff]
        %v353 = vld [vmem:[%s350 + $0x10] sm:$0xff]
        %v354 = vld [vmem:[%s350 + $0x18] sm:$0xff]
        %v355 = vld [vmem:[%s350 + $0x20] sm:$0xff]
        %v356 = vld [vmem:[%s350 + $0x28] sm:$0xff]
        %v357 = vld [vmem:[%s350 + $0x30] sm:$0xff]
        %v358 = vld [vmem:[%s350 + $0x38] sm:$0xff]
        %v359 = vld [vmem:[%s350 + $0x48] sm:$0xff]
        %v360 = vld [vmem:[%s350 + $0x50] sm:$0xff]
        %v361 = vld [vmem:[%s350 + $0x58] sm:$0xff]
        %v362 = vld [vmem:[%s350 + $0x60] sm:$0xff]
        %v363 = vld [vmem:[%s350 + $0x68] sm:$0xff]
        %v364 = vld [vmem:[%s350 + $0x70] sm:$0xff]
        %v365 = vld [vmem:[%s350 + $0x78] sm:$0xff]
        %v366 = vld [vmem:[%s350 + $0x80] sm:$0xff]
        %v367 = vld [vmem:[%s350 + $0x90] sm:$0xff]
        %v368 = vld [vmem:[%s350 + $0x98] sm:$0xff]
        %v369 = vld [vmem:[%s350 + $0xa0] sm:$0xff]
        %v370 = vld [vmem:[%s350 + $0xa8] sm:$0xff]
        %v371 = vld [vmem:[%s350 + $0xb0] sm:$0xff]
        %v372 = vld [vmem:[%s350 + $0xb8] sm:$0xff]
        %v373 = vld [vmem:[%s350 + $0xc0] sm:$0xff]
        %v374 = vld [vmem:[%s350 + $0xc8] sm:$0xff]
        %v375 = vld [vmem:[%s350 + $0xd8] sm:$0xff]
        %v376 = vld [vmem:[%s350 + $0xe0] sm:$0xff]
        %v377 = vld [vmem:[%s350 + $0xe8] sm:$0xff]
        %v378 = vld [vmem:[%s350 + $0xf0] sm:$0xff]
        %v379 = vld [vmem:[%s350 + $0xf8] sm:$0xff]
        %v380 = vld [vmem:[%s350 + $0x100] sm:$0xff]
        %v381 = vld [vmem:[%s350 + $0x108] sm:$0xff]
        %v382 = vld [vmem:[%s350 + $0x110] sm:$0xff]
        %v383 = vld [vmem:[%s350 + $0x120] sm:$0xff]
        %v384 = vld [vmem:[%s350 + $0x128] sm:$0xff]
        %v385 = vld [vmem:[%s350 + $0x130] sm:$0xff]
        %v386 = vld [vmem:[%s350 + $0x138] sm:$0xff]
        %v387 = vld [vmem:[%s350 + $0x140] sm:$0xff]
        %v388 = vld [vmem:[%s350 + $0x148] sm:$0xff]
        %v389 = vld [vmem:[%s350 + $0x150] sm:$0xff]
        %v390 = vld [vmem:[%s350 + $0x158] sm:$0xff]
        %v391 = vld [vmem:[%s350 + $0x168] sm:$0xff]
        %v392 = vld [vmem:[%s350 + $0x170] sm:$0xff]
        %v393 = vld [vmem:[%s350 + $0x178] sm:$0xff]
        %v394 = vld [vmem:[%s350 + $0x180] sm:$0xff]
        %v395 = vld [vmem:[%s350 + $0x188] sm:$0xff]
        %v396 = vld [vmem:[%s350 + $0x190] sm:$0xff]
        %v397 = vld [vmem:[%s350 + $0x198] sm:$0xff]
        %v398 = vld [vmem:[%s350 + $0x1a0] sm:$0xff]
        %v399 = vld [vmem:[%s350 + $0x1b0] sm:$0xff]
        %v400 = vld [vmem:[%s350 + $0x1b8] sm:$0xff]
        %v401 = vld [vmem:[%s350 + $0x1c0] sm:$0xff]
        %v402 = vld [vmem:[%s350 + $0x1c8] sm:$0xff]
        %v403 = vld [vmem:[%s350 + $0x1d0] sm:$0xff]
        %v404 = vld [vmem:[%s350 + $0x1d8] sm:$0xff]
        %v405 = vld [vmem:[%s350 + $0x1e0] sm:$0xff]
        %v406 = vld [vmem:[%s350 + $0x1e8] sm:$0xff]
        %v407 = vld [vmem:[%s350 + $0x1f8] sm:$0xff]
        %v408 = vld [vmem:[%s350 + $0x200] sm:$0xff]
        %v409 = vld [vmem:[%s350 + $0x208] sm:$0xff]
        %v410 = vld [vmem:[%s350 + $0x210] sm:$0xff]
        %v411 = vld [vmem:[%s350 + $0x218] sm:$0xff]
        %v412 = vld [vmem:[%s350 + $0x220] sm:$0xff]
        %v413 = vld [vmem:[%s350 + $0x228] sm:$0xff]
        %v414 = vld [vmem:[%s350 + $0x230] sm:$0xff]
        %v415 = vld [vmem:[%s258] sm:$0xff]
        %v416 = vld [vmem:[%s258 + $0x8] sm:$0xff]
        %v417 = vld [vmem:[%s258 + $0x10] sm:$0xff]
        %v418 = vld [vmem:[%s258 + $0x18] sm:$0xff]
        %v419 = vld [vmem:[%s258 + $0x20] sm:$0xff]
        %v420 = vld [vmem:[%s258 + $0x28] sm:$0xff]
        %v421 = vld [vmem:[%s258 + $0x30] sm:$0xff]
        %v422 = vld [vmem:[%s258 + $0x38] sm:$0xff]
        %v423 = vld [vmem:[%s258 + $0x40] sm:$0xff]
        %v424 = vld [vmem:[%s258 + $0x48] sm:$0xff]
        %v425 = vld [vmem:[%s258 + $0x50] sm:$0xff]
        %v426 = vld [vmem:[%s258 + $0x58] sm:$0xff]
        %v427 = vld [vmem:[%s258 + $0x60] sm:$0xff]
        %v428 = vld [vmem:[%s258 + $0x68] sm:$0xff]
        %v429 = vld [vmem:[%s258 + $0x70] sm:$0xff]
        %v430 = vld [vmem:[%s258 + $0x78] sm:$0xff]
        %v431 = vld [vmem:[%s258 + $0x80] sm:$0xff]
        %v432 = vld [vmem:[%s258 + $0x88] sm:$0xff]
        %v433 = vld [vmem:[%s258 + $0x90] sm:$0xff]
        %v434 = vld [vmem:[%s258 + $0x98] sm:$0xff]
        %v435 = vld [vmem:[%s258 + $0xa0] sm:$0xff]
        %v436 = vld [vmem:[%s258 + $0xa8] sm:$0xff]
        %v437 = vld [vmem:[%s258 + $0xb0] sm:$0xff]
        %v438 = vld [vmem:[%s258 + $0xb8] sm:$0xff]
        %v439 = vld [vmem:[%s258 + $0xc0] sm:$0xff]
        %v440 = vld [vmem:[%s258 + $0xc8] sm:$0xff]
        %v441 = vld [vmem:[%s258 + $0xd0] sm:$0xff]
        %v442 = vld [vmem:[%s258 + $0xd8] sm:$0xff]
        %v443 = vld [vmem:[%s258 + $0xe0] sm:$0xff]
        %v444 = vld [vmem:[%s258 + $0xe8] sm:$0xff]
        %v445 = vld [vmem:[%s258 + $0xf0] sm:$0xff]
        %v446 = vld [vmem:[%s258 + $0xf8] sm:$0xff]
        %v447 = vld [vmem:[%s258 + $0x100] sm:$0xff]
        %v448 = vld [vmem:[%s258 + $0x108] sm:$0xff]
        %v449 = vld [vmem:[%s258 + $0x110] sm:$0xff]
        %v450 = vld [vmem:[%s258 + $0x118] sm:$0xff]
        %v451 = vld [vmem:[%s258 + $0x120] sm:$0xff]
        %v452 = vld [vmem:[%s258 + $0x128] sm:$0xff]
        %v453 = vld [vmem:[%s258 + $0x130] sm:$0xff]
        %v454 = vld [vmem:[%s258 + $0x138] sm:$0xff]
        %v455 = vld [vmem:[%s258 + $0x140] sm:$0xff]
        %v456 = vld [vmem:[%s258 + $0x148] sm:$0xff]
        %v457 = vld [vmem:[%s258 + $0x150] sm:$0xff]
        %v458 = vld [vmem:[%s258 + $0x158] sm:$0xff]
        %v459 = vld [vmem:[%s258 + $0x160] sm:$0xff]
        %v460 = vld [vmem:[%s258 + $0x168] sm:$0xff]
        %v461 = vld [vmem:[%s258 + $0x170] sm:$0xff]
        %v462 = vld [vmem:[%s258 + $0x178] sm:$0xff]
        %v463 = vld [vmem:[%s258 + $0x180] sm:$0xff]
        %v464 = vld [vmem:[%s258 + $0x188] sm:$0xff]
        %v465 = vld [vmem:[%s258 + $0x190] sm:$0xff]
        %v466 = vld [vmem:[%s258 + $0x198] sm:$0xff]
        %v467 = vld [vmem:[%s258 + $0x1a0] sm:$0xff]
        %v468 = vld [vmem:[%s258 + $0x1a8] sm:$0xff]
        %v469 = vld [vmem:[%s258 + $0x1b0] sm:$0xff]
        %v470 = vld [vmem:[%s258 + $0x1b8] sm:$0xff]
        %v471 = vld [vmem:[%s258 + $0x1c0] sm:$0xff]
        %v472 = vld [vmem:[%s258 + $0x1c8] sm:$0xff]
        %v473 = vld [vmem:[%s258 + $0x1d0] sm:$0xff]
        %v474 = vld [vmem:[%s258 + $0x1d8] sm:$0xff]
        %v475 = vld [vmem:[%s258 + $0x1e0] sm:$0xff]
        %v476 = vld [vmem:[%s258 + $0x1e8] sm:$0xff]
        %v477 = vld [vmem:[%s258 + $0x1f0] sm:$0xff]
        %v478 = vld [vmem:[%s258 + $0x1f8] sm:$0xff]
        %s479 = sld [smem:[#allocation6 + %s66]]
        %s480 = smul.u32 %s479, 32
        %s481 = scalar_lea.vmem %s8, %s480
        %v482 = vld [vmem:[%s481] sm:$0xff]
        %v483 = vld [vmem:[%s481 + $0x8] sm:$0xff]
        %v484 = vld [vmem:[%s481 + $0x10] sm:$0xff]
        %v485 = vld [vmem:[%s481 + $0x18] sm:$0xff]
        %vm486 = vcmask 261120
        %v488 = vsel %vm486, %v351, 0
        %v491 = vsel %vm486, %v352, 0
        %v494 = vsel %vm486, %v353, 0
        %v497 = vsel %vm486, %v354, 0
        %v500 = vsel %vm486, %v355, 0
        %v503 = vsel %vm486, %v356, 0
        %v506 = vsel %vm486, %v357, 0
        %v509 = vsel %vm486, %v358, 0
        %v512 = vsel %vm486, %v359, 0
        %v515 = vsel %vm486, %v360, 0
        %v518 = vsel %vm486, %v361, 0
        %v521 = vsel %vm486, %v362, 0
        %v524 = vsel %vm486, %v363, 0
        %v527 = vsel %vm486, %v364, 0
        %v530 = vsel %vm486, %v365, 0
        %v533 = vsel %vm486, %v366, 0
        %v536 = vsel %vm486, %v367, 0
        %v539 = vsel %vm486, %v368, 0
        %v542 = vsel %vm486, %v369, 0
        %v545 = vsel %vm486, %v370, 0
        %v548 = vsel %vm486, %v371, 0
        %v551 = vsel %vm486, %v372, 0
        %v554 = vsel %vm486, %v373, 0
        %v557 = vsel %vm486, %v374, 0
        %v560 = vsel %vm486, %v375, 0
        %v563 = vsel %vm486, %v376, 0
        %v566 = vsel %vm486, %v377, 0
        %v569 = vsel %vm486, %v378, 0
        %v572 = vsel %vm486, %v379, 0
        %v575 = vsel %vm486, %v380, 0
        %v578 = vsel %vm486, %v381, 0
        %v581 = vsel %vm486, %v382, 0
        %v584 = vsel %vm486, %v383, 0
        %v587 = vsel %vm486, %v384, 0
        %v590 = vsel %vm486, %v385, 0
        %v593 = vsel %vm486, %v386, 0
        %v596 = vsel %vm486, %v387, 0
        %v599 = vsel %vm486, %v388, 0
        %v602 = vsel %vm486, %v389, 0
        %v605 = vsel %vm486, %v390, 0
        %v608 = vsel %vm486, %v391, 0
        %v611 = vsel %vm486, %v392, 0
        %v614 = vsel %vm486, %v393, 0
        %v617 = vsel %vm486, %v394, 0
        %v620 = vsel %vm486, %v395, 0
        %v623 = vsel %vm486, %v396, 0
        %v626 = vsel %vm486, %v397, 0
        %v629 = vsel %vm486, %v398, 0
        %v632 = vsel %vm486, %v399, 0
        %v635 = vsel %vm486, %v400, 0
        %v638 = vsel %vm486, %v401, 0
        %v641 = vsel %vm486, %v402, 0
        %v644 = vsel %vm486, %v403, 0
        %v647 = vsel %vm486, %v404, 0
        %v650 = vsel %vm486, %v405, 0
        %v653 = vsel %vm486, %v406, 0
        %v656 = vsel %vm486, %v407, 0
        %v659 = vsel %vm486, %v408, 0
        %v662 = vsel %vm486, %v409, 0
        %v665 = vsel %vm486, %v410, 0
        %v668 = vsel %vm486, %v411, 0
        %v671 = vsel %vm486, %v412, 0
        %v674 = vsel %vm486, %v413, 0
        %v677 = vsel %vm486, %v414, 0
        %679 = vmatpush.msra.mxu0 0.0
        %680 = vmatpush.msra.mxu0 0.0
        %681 = vmatpush.msra.mxu0 0.0
        %682 = vmatpush.msra.mxu0 0.0
        %683 = vmatpush.msra.mxu0 0.0
        %684 = vmatpush.msra.mxu0 0.0
        %685 = vmatpush.msra.mxu0 0.0
        %686 = vmatpush.msra.mxu0 0.0
        %687 = vmatpush.msra.mxu0 0.0
        %688 = vmatpush.msra.mxu0 0.0
        %689 = vmatpush.msra.mxu0 0.0
        %690 = vmatpush.msra.mxu0 0.0
        %691 = vmatpush.msra.mxu0 %v485
        %692 = vmatpush.msra.mxu0 %v484
        %693 = vmatpush.msra.mxu0 %v483
        %694 = vmatpush.msra.mxu0 %v482
        %695 = vmatmul.f32.gmra.mxu0 %v488
        %v696 = vpop.f32.mrf.mxu0
        %v697 = vadd.f32 0.0, %v696
        %698 = vmatmul.f32.gmra.mxu0 %v491
        %v699 = vpop.f32.mrf.mxu0
        %v700 = vadd.f32 0.0, %v699
        %701 = vmatmul.f32.gmra.mxu0 %v494
        %v702 = vpop.f32.mrf.mxu0
        %v703 = vadd.f32 0.0, %v702
        %704 = vmatmul.f32.gmra.mxu0 %v497
        %v705 = vpop.f32.mrf.mxu0
        %v706 = vadd.f32 0.0, %v705
        %707 = vmatmul.f32.gmra.mxu0 %v500
        %v708 = vpop.f32.mrf.mxu0
        %v709 = vadd.f32 0.0, %v708
        %710 = vmatmul.f32.gmra.mxu0 %v503
        %v711 = vpop.f32.mrf.mxu0
        %v712 = vadd.f32 0.0, %v711
        %713 = vmatmul.f32.gmra.mxu0 %v506
        %v714 = vpop.f32.mrf.mxu0
        %v715 = vadd.f32 0.0, %v714
        %716 = vmatmul.f32.gmra.mxu0 %v509
        %v717 = vpop.f32.mrf.mxu0
        %v718 = vadd.f32 0.0, %v717
        %719 = vmatmul.f32.gmra.mxu0 %v512
        %v720 = vpop.f32.mrf.mxu0
        %v721 = vadd.f32 0.0, %v720
        %722 = vmatmul.f32.gmra.mxu0 %v515
        %v723 = vpop.f32.mrf.mxu0
        %v724 = vadd.f32 0.0, %v723
        %725 = vmatmul.f32.gmra.mxu0 %v518
        %v726 = vpop.f32.mrf.mxu0
        %v727 = vadd.f32 0.0, %v726
        %728 = vmatmul.f32.gmra.mxu0 %v521
        %v729 = vpop.f32.mrf.mxu0
        %v730 = vadd.f32 0.0, %v729
        %731 = vmatmul.f32.gmra.mxu0 %v524
        %v732 = vpop.f32.mrf.mxu0
        %v733 = vadd.f32 0.0, %v732
        %734 = vmatmul.f32.gmra.mxu0 %v527
        %v735 = vpop.f32.mrf.mxu0
        %v736 = vadd.f32 0.0, %v735
        %737 = vmatmul.f32.gmra.mxu0 %v530
        %v738 = vpop.f32.mrf.mxu0
        %v739 = vadd.f32 0.0, %v738
        %740 = vmatmul.f32.gmra.mxu0 %v533
        %v741 = vpop.f32.mrf.mxu0
        %v742 = vadd.f32 0.0, %v741
        %743 = vmatmul.f32.gmra.mxu0 %v536
        %v744 = vpop.f32.mrf.mxu0
        %v745 = vadd.f32 0.0, %v744
        %746 = vmatmul.f32.gmra.mxu0 %v539
        %v747 = vpop.f32.mrf.mxu0
        %v748 = vadd.f32 0.0, %v747
        %749 = vmatmul.f32.gmra.mxu0 %v542
        %v750 = vpop.f32.mrf.mxu0
        %v751 = vadd.f32 0.0, %v750
        %752 = vmatmul.f32.gmra.mxu0 %v545
        %v753 = vpop.f32.mrf.mxu0
        %v754 = vadd.f32 0.0, %v753
        %755 = vmatmul.f32.gmra.mxu0 %v548
        %v756 = vpop.f32.mrf.mxu0
        %v757 = vadd.f32 0.0, %v756
        %758 = vmatmul.f32.gmra.mxu0 %v551
        %v759 = vpop.f32.mrf.mxu0
        %v760 = vadd.f32 0.0, %v759
        %761 = vmatmul.f32.gmra.mxu0 %v554
        %v762 = vpop.f32.mrf.mxu0
        %v763 = vadd.f32 0.0, %v762
        %764 = vmatmul.f32.gmra.mxu0 %v557
        %v765 = vpop.f32.mrf.mxu0
        %v766 = vadd.f32 0.0, %v765
        %767 = vmatmul.f32.gmra.mxu0 %v560
        %v768 = vpop.f32.mrf.mxu0
        %v769 = vadd.f32 0.0, %v768
        %770 = vmatmul.f32.gmra.mxu0 %v563
        %v771 = vpop.f32.mrf.mxu0
        %v772 = vadd.f32 0.0, %v771
        %773 = vmatmul.f32.gmra.mxu0 %v566
        %v774 = vpop.f32.mrf.mxu0
        %v775 = vadd.f32 0.0, %v774
        %776 = vmatmul.f32.gmra.mxu0 %v569
        %v777 = vpop.f32.mrf.mxu0
        %v778 = vadd.f32 0.0, %v777
        %779 = vmatmul.f32.gmra.mxu0 %v572
        %v780 = vpop.f32.mrf.mxu0
        %v781 = vadd.f32 0.0, %v780
        %782 = vmatmul.f32.gmra.mxu0 %v575
        %v783 = vpop.f32.mrf.mxu0
        %v784 = vadd.f32 0.0, %v783
        %785 = vmatmul.f32.gmra.mxu0 %v578
        %v786 = vpop.f32.mrf.mxu0
        %v787 = vadd.f32 0.0, %v786
        %788 = vmatmul.f32.gmra.mxu0 %v581
        %v789 = vpop.f32.mrf.mxu0
        %v790 = vadd.f32 0.0, %v789
        %791 = vmatmul.f32.gmra.mxu0 %v584
        %v792 = vpop.f32.mrf.mxu0
        %v793 = vadd.f32 0.0, %v792
        %794 = vmatmul.f32.gmra.mxu0 %v587
        %v795 = vpop.f32.mrf.mxu0
        %v796 = vadd.f32 0.0, %v795
        %797 = vmatmul.f32.gmra.mxu0 %v590
        %v798 = vpop.f32.mrf.mxu0
        %v799 = vadd.f32 0.0, %v798
        %800 = vmatmul.f32.gmra.mxu0 %v593
        %v801 = vpop.f32.mrf.mxu0
        %v802 = vadd.f32 0.0, %v801
        %803 = vmatmul.f32.gmra.mxu0 %v596
        %v804 = vpop.f32.mrf.mxu0
        %v805 = vadd.f32 0.0, %v804
        %806 = vmatmul.f32.gmra.mxu0 %v599
        %v807 = vpop.f32.mrf.mxu0
        %v808 = vadd.f32 0.0, %v807
        %809 = vmatmul.f32.gmra.mxu0 %v602
        %v810 = vpop.f32.mrf.mxu0
        %v811 = vadd.f32 0.0, %v810
        %812 = vmatmul.f32.gmra.mxu0 %v605
        %v813 = vpop.f32.mrf.mxu0
        %v814 = vadd.f32 0.0, %v813
        %815 = vmatmul.f32.gmra.mxu0 %v608
        %v816 = vpop.f32.mrf.mxu0
        %v817 = vadd.f32 0.0, %v816
        %818 = vmatmul.f32.gmra.mxu0 %v611
        %v819 = vpop.f32.mrf.mxu0
        %v820 = vadd.f32 0.0, %v819
        %821 = vmatmul.f32.gmra.mxu0 %v614
        %v822 = vpop.f32.mrf.mxu0
        %v823 = vadd.f32 0.0, %v822
        %824 = vmatmul.f32.gmra.mxu0 %v617
        %v825 = vpop.f32.mrf.mxu0
        %v826 = vadd.f32 0.0, %v825
        %827 = vmatmul.f32.gmra.mxu0 %v620
        %v828 = vpop.f32.mrf.mxu0
        %v829 = vadd.f32 0.0, %v828
        %830 = vmatmul.f32.gmra.mxu0 %v623
        %v831 = vpop.f32.mrf.mxu0
        %v832 = vadd.f32 0.0, %v831
        %833 = vmatmul.f32.gmra.mxu0 %v626
        %v834 = vpop.f32.mrf.mxu0
        %v835 = vadd.f32 0.0, %v834
        %836 = vmatmul.f32.gmra.mxu0 %v629
        %v837 = vpop.f32.mrf.mxu0
        %v838 = vadd.f32 0.0, %v837
        %839 = vmatmul.f32.gmra.mxu0 %v632
        %v840 = vpop.f32.mrf.mxu0
        %v841 = vadd.f32 0.0, %v840
        %842 = vmatmul.f32.gmra.mxu0 %v635
        %v843 = vpop.f32.mrf.mxu0
        %v844 = vadd.f32 0.0, %v843
        %845 = vmatmul.f32.gmra.mxu0 %v638
        %v846 = vpop.f32.mrf.mxu0
        %v847 = vadd.f32 0.0, %v846
        %848 = vmatmul.f32.gmra.mxu0 %v641
        %v849 = vpop.f32.mrf.mxu0
        %v850 = vadd.f32 0.0, %v849
        %851 = vmatmul.f32.gmra.mxu0 %v644
        %v852 = vpop.f32.mrf.mxu0
        %v853 = vadd.f32 0.0, %v852
        %854 = vmatmul.f32.gmra.mxu0 %v647
        %v855 = vpop.f32.mrf.mxu0
        %v856 = vadd.f32 0.0, %v855
        %857 = vmatmul.f32.gmra.mxu0 %v650
        %v858 = vpop.f32.mrf.mxu0
        %v859 = vadd.f32 0.0, %v858
        %860 = vmatmul.f32.gmra.mxu0 %v653
        %v861 = vpop.f32.mrf.mxu0
        %v862 = vadd.f32 0.0, %v861
        %863 = vmatmul.f32.gmra.mxu0 %v656
        %v864 = vpop.f32.mrf.mxu0
        %v865 = vadd.f32 0.0, %v864
        %866 = vmatmul.f32.gmra.mxu0 %v659
        %v867 = vpop.f32.mrf.mxu0
        %v868 = vadd.f32 0.0, %v867
        %869 = vmatmul.f32.gmra.mxu0 %v662
        %v870 = vpop.f32.mrf.mxu0
        %v871 = vadd.f32 0.0, %v870
        %872 = vmatmul.f32.gmra.mxu0 %v665
        %v873 = vpop.f32.mrf.mxu0
        %v874 = vadd.f32 0.0, %v873
        %875 = vmatmul.f32.gmra.mxu0 %v668
        %v876 = vpop.f32.mrf.mxu0
        %v877 = vadd.f32 0.0, %v876
        %878 = vmatmul.f32.gmra.mxu0 %v671
        %v879 = vpop.f32.mrf.mxu0
        %v880 = vadd.f32 0.0, %v879
        %881 = vmatmul.f32.gmra.mxu0 %v674
        %v882 = vpop.f32.mrf.mxu0
        %v883 = vadd.f32 0.0, %v882
        %884 = vmatmul.f32.gmra.mxu0 %v677
        %v885 = vpop.f32.mrf.mxu0
        %v886 = vadd.f32 0.0, %v885
        %887 = vdwg.mxu0
        %v888 = vadd.f32 %v415, %v697
        %v889 = vadd.f32 %v416, %v700
        %v890 = vadd.f32 %v417, %v703
        %v891 = vadd.f32 %v418, %v706
        %v892 = vadd.f32 %v419, %v709
        %v893 = vadd.f32 %v420, %v712
        %v894 = vadd.f32 %v421, %v715
        %v895 = vadd.f32 %v422, %v718
        %v896 = vadd.f32 %v423, %v721
        %v897 = vadd.f32 %v424, %v724
        %v898 = vadd.f32 %v425, %v727
        %v899 = vadd.f32 %v426, %v730
        %v900 = vadd.f32 %v427, %v733
        %v901 = vadd.f32 %v428, %v736
        %v902 = vadd.f32 %v429, %v739
        %v903 = vadd.f32 %v430, %v742
        %v904 = vadd.f32 %v431, %v745
        %v905 = vadd.f32 %v432, %v748
        %v906 = vadd.f32 %v433, %v751
        %v907 = vadd.f32 %v434, %v754
        %v908 = vadd.f32 %v435, %v757
        %v909 = vadd.f32 %v436, %v760
        %v910 = vadd.f32 %v437, %v763
        %v911 = vadd.f32 %v438, %v766
        %v912 = vadd.f32 %v439, %v769
        %v913 = vadd.f32 %v440, %v772
        %v914 = vadd.f32 %v441, %v775
        %v915 = vadd.f32 %v442, %v778
        %v916 = vadd.f32 %v443, %v781
        %v917 = vadd.f32 %v444, %v784
        %v918 = vadd.f32 %v445, %v787
        %v919 = vadd.f32 %v446, %v790
        %v920 = vadd.f32 %v447, %v793
        %v921 = vadd.f32 %v448, %v796
        %v922 = vadd.f32 %v449, %v799
        %v923 = vadd.f32 %v450, %v802
        %v924 = vadd.f32 %v451, %v805
        %v925 = vadd.f32 %v452, %v808
        %v926 = vadd.f32 %v453, %v811
        %v927 = vadd.f32 %v454, %v814
        %v928 = vadd.f32 %v455, %v817
        %v929 = vadd.f32 %v456, %v820
        %v930 = vadd.f32 %v457, %v823
        %v931 = vadd.f32 %v458, %v826
        %v932 = vadd.f32 %v459, %v829
        %v933 = vadd.f32 %v460, %v832
        %v934 = vadd.f32 %v461, %v835
        %v935 = vadd.f32 %v462, %v838
        %v936 = vadd.f32 %v463, %v841
        %v937 = vadd.f32 %v464, %v844
        %v938 = vadd.f32 %v465, %v847
        %v939 = vadd.f32 %v466, %v850
        %v940 = vadd.f32 %v467, %v853
        %v941 = vadd.f32 %v468, %v856
        %v942 = vadd.f32 %v469, %v859
        %v943 = vadd.f32 %v470, %v862
        %v944 = vadd.f32 %v471, %v865
        %v945 = vadd.f32 %v472, %v868
        %v946 = vadd.f32 %v473, %v871
        %v947 = vadd.f32 %v474, %v874
        %v948 = vadd.f32 %v475, %v877
        %v949 = vadd.f32 %v476, %v880
        %v950 = vadd.f32 %v477, %v883
        %v951 = vadd.f32 %v478, %v886
        %vm952 = vcmask 523264
        %953 = vst.msk [vmem:[%s258] sm:$0xff] %vm952, %v888
        %954 = vst.msk [vmem:[%s258 + $0x8] sm:$0xff] %vm952, %v889
        %955 = vst.msk [vmem:[%s258 + $0x10] sm:$0xff] %vm952, %v890
        %956 = vst.msk [vmem:[%s258 + $0x18] sm:$0xff] %vm952, %v891
        %957 = vst.msk [vmem:[%s258 + $0x20] sm:$0xff] %vm952, %v892
        %958 = vst.msk [vmem:[%s258 + $0x28] sm:$0xff] %vm952, %v893
        %959 = vst.msk [vmem:[%s258 + $0x30] sm:$0xff] %vm952, %v894
        %960 = vst.msk [vmem:[%s258 + $0x38] sm:$0xff] %vm952, %v895
        %961 = vst.msk [vmem:[%s258 + $0x40] sm:$0xff] %vm952, %v896
        %962 = vst.msk [vmem:[%s258 + $0x48] sm:$0xff] %vm952, %v897
        %963 = vst.msk [vmem:[%s258 + $0x50] sm:$0xff] %vm952, %v898
        %964 = vst.msk [vmem:[%s258 + $0x58] sm:$0xff] %vm952, %v899
        %965 = vst.msk [vmem:[%s258 + $0x60] sm:$0xff] %vm952, %v900
        %966 = vst.msk [vmem:[%s258 + $0x68] sm:$0xff] %vm952, %v901
        %967 = vst.msk [vmem:[%s258 + $0x70] sm:$0xff] %vm952, %v902
        %968 = vst.msk [vmem:[%s258 + $0x78] sm:$0xff] %vm952, %v903
        %969 = vst.msk [vmem:[%s258 + $0x80] sm:$0xff] %vm952, %v904
        %970 = vst.msk [vmem:[%s258 + $0x88] sm:$0xff] %vm952, %v905
        %971 = vst.msk [vmem:[%s258 + $0x90] sm:$0xff] %vm952, %v906
        %972 = vst.msk [vmem:[%s258 + $0x98] sm:$0xff] %vm952, %v907
        %973 = vst.msk [vmem:[%s258 + $0xa0] sm:$0xff] %vm952, %v908
        %974 = vst.msk [vmem:[%s258 + $0xa8] sm:$0xff] %vm952, %v909
        %975 = vst.msk [vmem:[%s258 + $0xb0] sm:$0xff] %vm952, %v910
        %976 = vst.msk [vmem:[%s258 + $0xb8] sm:$0xff] %vm952, %v911
        %977 = vst.msk [vmem:[%s258 + $0xc0] sm:$0xff] %vm952, %v912
        %978 = vst.msk [vmem:[%s258 + $0xc8] sm:$0xff] %vm952, %v913
        %979 = vst.msk [vmem:[%s258 + $0xd0] sm:$0xff] %vm952, %v914
        %980 = vst.msk [vmem:[%s258 + $0xd8] sm:$0xff] %vm952, %v915
        %981 = vst.msk [vmem:[%s258 + $0xe0] sm:$0xff] %vm952, %v916
        %982 = vst.msk [vmem:[%s258 + $0xe8] sm:$0xff] %vm952, %v917
        %983 = vst.msk [vmem:[%s258 + $0xf0] sm:$0xff] %vm952, %v918
        %984 = vst.msk [vmem:[%s258 + $0xf8] sm:$0xff] %vm952, %v919
        %985 = vst.msk [vmem:[%s258 + $0x100] sm:$0xff] %vm952, %v920
        %986 = vst.msk [vmem:[%s258 + $0x108] sm:$0xff] %vm952, %v921
        %987 = vst.msk [vmem:[%s258 + $0x110] sm:$0xff] %vm952, %v922
        %988 = vst.msk [vmem:[%s258 + $0x118] sm:$0xff] %vm952, %v923
        %989 = vst.msk [vmem:[%s258 + $0x120] sm:$0xff] %vm952, %v924
        %990 = vst.msk [vmem:[%s258 + $0x128] sm:$0xff] %vm952, %v925
        %991 = vst.msk [vmem:[%s258 + $0x130] sm:$0xff] %vm952, %v926
        %992 = vst.msk [vmem:[%s258 + $0x138] sm:$0xff] %vm952, %v927
        %993 = vst.msk [vmem:[%s258 + $0x140] sm:$0xff] %vm952, %v928
        %994 = vst.msk [vmem:[%s258 + $0x148] sm:$0xff] %vm952, %v929
        %995 = vst.msk [vmem:[%s258 + $0x150] sm:$0xff] %vm952, %v930
        %996 = vst.msk [vmem:[%s258 + $0x158] sm:$0xff] %vm952, %v931
        %997 = vst.msk [vmem:[%s258 + $0x160] sm:$0xff] %vm952, %v932
        %998 = vst.msk [vmem:[%s258 + $0x168] sm:$0xff] %vm952, %v933
        %999 = vst.msk [vmem:[%s258 + $0x170] sm:$0xff] %vm952, %v934
        %1000 = vst.msk [vmem:[%s258 + $0x178] sm:$0xff] %vm952, %v935
        %1001 = vst.msk [vmem:[%s258 + $0x180] sm:$0xff] %vm952, %v936
        %1002 = vst.msk [vmem:[%s258 + $0x188] sm:$0xff] %vm952, %v937
        %1003 = vst.msk [vmem:[%s258 + $0x190] sm:$0xff] %vm952, %v938
        %1004 = vst.msk [vmem:[%s258 + $0x198] sm:$0xff] %vm952, %v939
        %1005 = vst.msk [vmem:[%s258 + $0x1a0] sm:$0xff] %vm952, %v940
        %1006 = vst.msk [vmem:[%s258 + $0x1a8] sm:$0xff] %vm952, %v941
        %1007 = vst.msk [vmem:[%s258 + $0x1b0] sm:$0xff] %vm952, %v942
        %1008 = vst.msk [vmem:[%s258 + $0x1b8] sm:$0xff] %vm952, %v943
        %1009 = vst.msk [vmem:[%s258 + $0x1c0] sm:$0xff] %vm952, %v944
        %1010 = vst.msk [vmem:[%s258 + $0x1c8] sm:$0xff] %vm952, %v945
        %1011 = vst.msk [vmem:[%s258 + $0x1d0] sm:$0xff] %vm952, %v946
        %1012 = vst.msk [vmem:[%s258 + $0x1d8] sm:$0xff] %vm952, %v947
        %1013 = vst.msk [vmem:[%s258 + $0x1e0] sm:$0xff] %vm952, %v948
        %1014 = vst.msk [vmem:[%s258 + $0x1e8] sm:$0xff] %vm952, %v949
        %1015 = vst.msk [vmem:[%s258 + $0x1f0] sm:$0xff] %vm952, %v950
        %1016 = vst.msk [vmem:[%s258 + $0x1f8] sm:$0xff] %vm952, %v951
      $region40: #{model_forward.2} parent=31 // pred_fallthru
        _
      %s1017 = sld [smem:[#allocation7 + %s66]]
      %s1018 = smul.u32 64, %s65
      %p1019 = scmp.lt.s32.totalorder %s64, 1
      %s1020 = scalar_select %p1019, %s64, 1
      %p1021 = scmp.lt.s32.totalorder %s1017, 7
      %s1022 = scalar_select %p1021, %s1017, 7
      %p1023 = scmp.lt.s32.totalorder %s1018, 63
      %s1024 = scalar_select %p1023, %s1018, 63
      %s1025 = smul.addr %s1022, 64
      %s1026 = sadd.s32 %s1024, %s1025
      %s1027 = smul.addr %s1020, 512
      %s1028 = sadd.s32 %s1026, %s1027
      %s1029 = smul.addr %s1028, 8
      %s1030 = scalar_lea.vmem %s10, %s1029
      // Predicated region
      $region41: #{model_forward.2} parent=31 // pred_check
        %p1031 = pneg %p170
      $region42: #{model_forward.2} parent=31 // pred_check_branch
        %1033 = sbr.rel (%p1031) target = $region44
      $region43: #{model_forward.2} parent=31 // pred_region
        %s1034 = sld [smem:[#allocation7 + %s66]]
        %s1035 = smul.u32 64, %s65
      $region44: #{model_forward.2} parent=31 // pred_fallthru
        _
    $region32: #{model_forward.2} parent=5 // pred_fallthru
      _
    %p1036 = scmp.le.s32.totalorder 2, %s54
    // Predicated region
    $region45: #{model_forward.2} parent=5 // pred_check
      %p1037 = pneg %p1036
    $region46: #{model_forward.2} parent=5 // pred_check_branch
      %1039 = sbr.rel (%p1037) target = $region48
    $region47: #{model_forward.2} parent=5 // pred_region
      %s1040 = ssub.s32 %s54, 2
      // Predicated region
      $region49: #{model_forward.2} parent=47 // pred_check
        %p1041 = pneg %p176
      $region50: #{model_forward.2} parent=47 // pred_check_branch
        %1043 = sbr.rel (%p1041) target = $region52
      $region51: #{model_forward.2} parent=47 // pred_region
        %s1044 = sld [smem:[#allocation7 + %s69]]
        %s1045 = smul.u32 64, %s68
        %p1046 = scmp.lt.s32.totalorder %s67, 1
        %s1047 = scalar_select %p1046, %s67, 1
        %p1048 = scmp.lt.s32.totalorder %s1044, 7
        %s1049 = scalar_select %p1048, %s1044, 7
        %p1050 = scmp.lt.s32.totalorder %s1045, 63
        %s1051 = scalar_select %p1050, %s1045, 63
        %s1052 = smul.addr %s1049, 64
        %s1053 = sadd.s32 %s1051, %s1052
        %s1054 = smul.addr %s1047, 512
        %s1055 = sadd.s32 %s1053, %s1054
        %s1056 = smul.addr %s1055, 8
        %s1057 = scalar_lea.vmem %s10, %s1056
      $region52: #{model_forward.2} parent=47 // pred_fallthru
        _
    $region48: #{model_forward.2} parent=5 // pred_fallthru
      _
  $region6: #{model_forward.2} parent=0 // loop_footer
    %s58 = sadd.s32 1, %s54
  $region7: #{model_forward.2} parent=0 // loop_footer_branch
    %53 = sbr.rel target = $region3
  $region8: #{model_forward.2} parent=0 // loop_exit
    _

// kernel: model_forward.3
$region0: #{model_forward.3}
  #allocation0 [shape = 'u32[]', space=smem, size = 0x4, offset = 0x4, fixed_abs, tag = 'smem constant byte address 0x4 - core index']
  #allocation1 [shape = 'u32[72,128]{1,0:T(1,128)}', space=vmem, size = 0x9000, scoped, tag = 'internal scratch']
  %s0 = inlined_call_operand.vmem [shape: f32[2048,256], index: 0, kind: input, shape index: {}, may-alias: {0,2}]
  %s1 = inlined_call_operand.vmem [shape: f32[2048,256], index: 1, kind: input, shape index: {}]
  %s2 = inlined_call_operand.vmem [shape: f32[2048,256], index: 2, kind: output, shape index: {}, may-alias: {0,2}]
  %s3 = sld [smem:[#allocation0]]
  $region18: #{model_forward.3} parent=0
    _
  %s5 = ssub.s32 1, %s3
  %s6 = scalar_select 0, %s5, %s3
  // Predicated region
  $region2: #{model_forward.3} parent=0 // pred_check
    _
  $region3: #{model_forward.3} parent=0 // pred_check_branch
    %8 = sbr.rel (0) target = $region5
  $region4: #{model_forward.3} parent=0 // pred_region
    _
  $region5: #{model_forward.3} parent=0 // pred_fallthru
    _
  // Predicated region
  $region6: #{model_forward.3} parent=0 // pred_check
    _
  $region7: #{model_forward.3} parent=0 // pred_check_branch
    %10 = sbr.rel (0) target = $region9
  $region8: #{model_forward.3} parent=0 // pred_region
    _
  $region9: #{model_forward.3} parent=0 // pred_fallthru
    _
  %v11 = vld [vmem:[%s0] sm:$0xff]
  %v12 = vld [vmem:[%s0 + $0x8] sm:$0xff]
  %v13 = vld [vmem:[%s0 + $0x10] sm:$0xff]
  %v14 = vld [vmem:[%s0 + $0x18] sm:$0xff]
  %v15 = vld [vmem:[%s0 + $0x20] sm:$0xff]
  %v16 = vld [vmem:[%s0 + $0x28] sm:$0xff]
  %v17 = vld [vmem:[%s0 + $0x30] sm:$0xff]
  %v18 = vld [vmem:[%s0 + $0x38] sm:$0xff]
  %v19 = vld [vmem:[%s0 + $0x40] sm:$0xff]
  %v20 = vld [vmem:[%s0 + $0x48] sm:$0xff]
  %v21 = vld [vmem:[%s0 + $0x50] sm:$0xff]
  %v22 = vld [vmem:[%s0 + $0x58] sm:$0xff]
  %v23 = vld [vmem:[%s0 + $0x60] sm:$0xff]
  %v24 = vld [vmem:[%s0 + $0x68] sm:$0xff]
  %v25 = vld [vmem:[%s0 + $0x70] sm:$0xff]
  %v26 = vld [vmem:[%s0 + $0x78] sm:$0xff]
  %v27 = vld [vmem:[%s0 + $0x80] sm:$0xff]
  %v28 = vld [vmem:[%s0 + $0x88] sm:$0xff]
  %v29 = vld [vmem:[%s0 + $0x90] sm:$0xff]
  %v30 = vld [vmem:[%s0 + $0x98] sm:$0xff]
  %v31 = vld [vmem:[%s0 + $0xa0] sm:$0xff]
  %v32 = vld [vmem:[%s0 + $0xa8] sm:$0xff]
  %v33 = vld [vmem:[%s0 + $0xb0] sm:$0xff]
  %v34 = vld [vmem:[%s0 + $0xb8] sm:$0xff]
  %v35 = vld [vmem:[%s0 + $0xc0] sm:$0xff]
  %v36 = vld [vmem:[%s0 + $0xc8] sm:$0xff]
  %v37 = vld [vmem:[%s0 + $0xd0] sm:$0xff]
  %v38 = vld [vmem:[%s0 + $0xd8] sm:$0xff]
  %v39 = vld [vmem:[%s0 + $0xe0] sm:$0xff]
  %v40 = vld [vmem:[%s0 + $0xe8] sm:$0xff]
  %v41 = vld [vmem:[%s0 + $0xf0] sm:$0xff]
  %v42 = vld [vmem:[%s0 + $0xf8] sm:$0xff]
  %v43 = vld [vmem:[%s0 + $0x100] sm:$0xff]
  %v44 = vld [vmem:[%s0 + $0x108] sm:$0xff]
  %v45 = vld [vmem:[%s0 + $0x110] sm:$0xff]
  %v46 = vld [vmem:[%s0 + $0x118] sm:$0xff]
  %v47 = vld [vmem:[%s0 + $0x120] sm:$0xff]
  %v48 = vld [vmem:[%s0 + $0x128] sm:$0xff]
  %v49 = vld [vmem:[%s0 + $0x130] sm:$0xff]
  %v50 = vld [vmem:[%s0 + $0x138] sm:$0xff]
  %v51 = vld [vmem:[%s0 + $0x140] sm:$0xff]
  %v52 = vld [vmem:[%s0 + $0x148] sm:$0xff]
  %v53 = vld [vmem:[%s0 + $0x150] sm:$0xff]
  %v54 = vld [vmem:[%s0 + $0x158] sm:$0xff]
  %v55 = vld [vmem:[%s0 + $0x160] sm:$0xff]
  %v56 = vld [vmem:[%s0 + $0x168] sm:$0xff]
  %v57 = vld [vmem:[%s0 + $0x170] sm:$0xff]
  %v58 = vld [vmem:[%s0 + $0x178] sm:$0xff]
  %v59 = vld [vmem:[%s0 + $0x180] sm:$0xff]
  %v60 = vld [vmem:[%s0 + $0x188] sm:$0xff]
  %v61 = vld [vmem:[%s0 + $0x190] sm:$0xff]
  %v62 = vld [vmem:[%s0 + $0x198] sm:$0xff]
  %v63 = vld [vmem:[%s0 + $0x1a0] sm:$0xff]
  %v64 = vld [vmem:[%s0 + $0x1a8] sm:$0xff]
  %v65 = vld [vmem:[%s0 + $0x1b0] sm:$0xff]
  %v66 = vld [vmem:[%s0 + $0x1b8] sm:$0xff]
  %v67 = vld [vmem:[%s0 + $0x1c0] sm:$0xff]
  %v68 = vld [vmem:[%s0 + $0x1c8] sm:$0xff]
  %v69 = vld [vmem:[%s0 + $0x1d0] sm:$0xff]
  %v70 = vld [vmem:[%s0 + $0x1d8] sm:$0xff]
  %v71 = vld [vmem:[%s0 + $0x1e0] sm:$0xff]
  %v72 = vld [vmem:[%s0 + $0x1e8] sm:$0xff]
  %v73 = vld [vmem:[%s0 + $0x1f0] sm:$0xff]
  %v74 = vld [vmem:[%s0 + $0x1f8] sm:$0xff]
  %v75 = vld [vmem:[%s0 + $0x200] sm:$0xff]
  %v76 = vld [vmem:[%s0 + $0x208] sm:$0xff]
  %v77 = vld [vmem:[%s0 + $0x210] sm:$0xff]
  %v78 = vld [vmem:[%s0 + $0x218] sm:$0xff]
  %v79 = vld [vmem:[%s0 + $0x220] sm:$0xff]
  %v80 = vld [vmem:[%s0 + $0x228] sm:$0xff]
  %v81 = vld [vmem:[%s0 + $0x230] sm:$0xff]
  %v82 = vld [vmem:[%s0 + $0x238] sm:$0xff]
  %v83 = vld [vmem:[%s0 + $0x240] sm:$0xff]
  %v84 = vld [vmem:[%s0 + $0x248] sm:$0xff]
  %v85 = vld [vmem:[%s0 + $0x250] sm:$0xff]
  %v86 = vld [vmem:[%s0 + $0x258] sm:$0xff]
  %v87 = vld [vmem:[%s0 + $0x260] sm:$0xff]
  %v88 = vld [vmem:[%s0 + $0x268] sm:$0xff]
  %v89 = vld [vmem:[%s0 + $0x270] sm:$0xff]
  %v90 = vld [vmem:[%s0 + $0x278] sm:$0xff]
  %v91 = vld [vmem:[%s0 + $0x280] sm:$0xff]
  %v92 = vld [vmem:[%s0 + $0x288] sm:$0xff]
  %v93 = vld [vmem:[%s0 + $0x290] sm:$0xff]
  %v94 = vld [vmem:[%s0 + $0x298] sm:$0xff]
  %v95 = vld [vmem:[%s0 + $0x2a0] sm:$0xff]
  %v96 = vld [vmem:[%s0 + $0x2a8] sm:$0xff]
  %v97 = vld [vmem:[%s0 + $0x2b0] sm:$0xff]
  %v98 = vld [vmem:[%s0 + $0x2b8] sm:$0xff]
  %v99 = vld [vmem:[%s0 + $0x2c0] sm:$0xff]
  %v100 = vld [vmem:[%s0 + $0x2c8] sm:$0xff]
  %v101 = vld [vmem:[%s0 + $0x2d0] sm:$0xff]
  %v102 = vld [vmem:[%s0 + $0x2d8] sm:$0xff]
  %v103 = vld [vmem:[%s0 + $0x2e0] sm:$0xff]
  %v104 = vld [vmem:[%s0 + $0x2e8] sm:$0xff]
  %v105 = vld [vmem:[%s0 + $0x2f0] sm:$0xff]
  %v106 = vld [vmem:[%s0 + $0x2f8] sm:$0xff]
  %v107 = vld [vmem:[%s0 + $0x300] sm:$0xff]
  %v108 = vld [vmem:[%s0 + $0x308] sm:$0xff]
  %v109 = vld [vmem:[%s0 + $0x310] sm:$0xff]
  %v110 = vld [vmem:[%s0 + $0x318] sm:$0xff]
  %v111 = vld [vmem:[%s0 + $0x320] sm:$0xff]
  %v112 = vld [vmem:[%s0 + $0x328] sm:$0xff]
  %v113 = vld [vmem:[%s0 + $0x330] sm:$0xff]
  %v114 = vld [vmem:[%s0 + $0x338] sm:$0xff]
  %v115 = vld [vmem:[%s0 + $0x340] sm:$0xff]
  %v116 = vld [vmem:[%s0 + $0x348] sm:$0xff]
  %v117 = vld [vmem:[%s0 + $0x350] sm:$0xff]
  %v118 = vld [vmem:[%s0 + $0x358] sm:$0xff]
  %v119 = vld [vmem:[%s0 + $0x360] sm:$0xff]
  %v120 = vld [vmem:[%s0 + $0x368] sm:$0xff]
  %v121 = vld [vmem:[%s0 + $0x370] sm:$0xff]
  %v122 = vld [vmem:[%s0 + $0x378] sm:$0xff]
  %v123 = vld [vmem:[%s0 + $0x380] sm:$0xff]
  %v124 = vld [vmem:[%s0 + $0x388] sm:$0xff]
  %v125 = vld [vmem:[%s0 + $0x390] sm:$0xff]
  %v126 = vld [vmem:[%s0 + $0x398] sm:$0xff]
  %v127 = vld [vmem:[%s0 + $0x3a0] sm:$0xff]
  %v128 = vld [vmem:[%s0 + $0x3a8] sm:$0xff]
  %v129 = vld [vmem:[%s0 + $0x3b0] sm:$0xff]
  %v130 = vld [vmem:[%s0 + $0x3b8] sm:$0xff]
  %v131 = vld [vmem:[%s0 + $0x3c0] sm:$0xff]
  %v132 = vld [vmem:[%s0 + $0x3c8] sm:$0xff]
  %v133 = vld [vmem:[%s0 + $0x3d0] sm:$0xff]
  %v134 = vld [vmem:[%s0 + $0x3d8] sm:$0xff]
  %v135 = vld [vmem:[%s0 + $0x3e0] sm:$0xff]
  %v136 = vld [vmem:[%s0 + $0x3e8] sm:$0xff]
  %v137 = vld [vmem:[%s0 + $0x3f0] sm:$0xff]
  %v138 = vld [vmem:[%s0 + $0x3f8] sm:$0xff]
  %v139 = vld [vmem:[%s0 + $0x400] sm:$0xff]
  %v140 = vld [vmem:[%s0 + $0x408] sm:$0xff]
  %v141 = vld [vmem:[%s0 + $0x410] sm:$0xff]
  %v142 = vld [vmem:[%s0 + $0x418] sm:$0xff]
  %v143 = vld [vmem:[%s0 + $0x420] sm:$0xff]
  %v144 = vld [vmem:[%s0 + $0x428] sm:$0xff]
  %v145 = vld [vmem:[%s0 + $0x430] sm:$0xff]
  %v146 = vld [vmem:[%s0 + $0x438] sm:$0xff]
  %v147 = vld [vmem:[%s0 + $0x440] sm:$0xff]
  %v148 = vld [vmem:[%s0 + $0x448] sm:$0xff]
  %v149 = vld [vmem:[%s0 + $0x450] sm:$0xff]
  %v150 = vld [vmem:[%s0 + $0x458] sm:$0xff]
  %v151 = vld [vmem:[%s0 + $0x460] sm:$0xff]
  %v152 = vld [vmem:[%s0 + $0x468] sm:$0xff]
  %v153 = vld [vmem:[%s0 + $0x470] sm:$0xff]
  %v154 = vld [vmem:[%s0 + $0x478] sm:$0xff]
  %v155 = vld [vmem:[%s0 + $0x480] sm:$0xff]
  %v156 = vld [vmem:[%s0 + $0x488] sm:$0xff]
  %v157 = vld [vmem:[%s0 + $0x490] sm:$0xff]
  %v158 = vld [vmem:[%s0 + $0x498] sm:$0xff]
  %v159 = vld [vmem:[%s0 + $0x4a0] sm:$0xff]
  %v160 = vld [vmem:[%s0 + $0x4a8] sm:$0xff]
  %v161 = vld [vmem:[%s0 + $0x4b0] sm:$0xff]
  %v162 = vld [vmem:[%s0 + $0x4b8] sm:$0xff]
  %v163 = vld [vmem:[%s0 + $0x4c0] sm:$0xff]
  %v164 = vld [vmem:[%s0 + $0x4c8] sm:$0xff]
  %v165 = vld [vmem:[%s0 + $0x4d0] sm:$0xff]
  %v166 = vld [vmem:[%s0 + $0x4d8] sm:$0xff]
  %v167 = vld [vmem:[%s0 + $0x4e0] sm:$0xff]
  %v168 = vld [vmem:[%s0 + $0x4e8] sm:$0xff]
  %v169 = vld [vmem:[%s0 + $0x4f0] sm:$0xff]
  %v170 = vld [vmem:[%s0 + $0x4f8] sm:$0xff]
  %v171 = vld [vmem:[%s0 + $0x500] sm:$0xff]
  %v172 = vld [vmem:[%s0 + $0x508] sm:$0xff]
  %v173 = vld [vmem:[%s0 + $0x510] sm:$0xff]
  %v174 = vld [vmem:[%s0 + $0x518] sm:$0xff]
  %v175 = vld [vmem:[%s0 + $0x520] sm:$0xff]
  %v176 = vld [vmem:[%s0 + $0x528] sm:$0xff]
  %v177 = vld [vmem:[%s0 + $0x530] sm:$0xff]
  %v178 = vld [vmem:[%s0 + $0x538] sm:$0xff]
  %v179 = vld [vmem:[%s0 + $0x540] sm:$0xff]
  %v180 = vld [vmem:[%s0 + $0x548] sm:$0xff]
  %v181 = vld [vmem:[%s0 + $0x550] sm:$0xff]
  %v182 = vld [vmem:[%s0 + $0x558] sm:$0xff]
  %v183 = vld [vmem:[%s0 + $0x560] sm:$0xff]
  %v184 = vld [vmem:[%s0 + $0x568] sm:$0xff]
  %v185 = vld [vmem:[%s0 + $0x570] sm:$0xff]
  %v186 = vld [vmem:[%s0 + $0x578] sm:$0xff]
  %v187 = vld [vmem:[%s0 + $0x580] sm:$0xff]
  %v188 = vld [vmem:[%s0 + $0x588] sm:$0xff]
  %v189 = vld [vmem:[%s0 + $0x590] sm:$0xff]
  %v190 = vld [vmem:[%s0 + $0x598] sm:$0xff]
  %v191 = vld [vmem:[%s0 + $0x5a0] sm:$0xff]
  %v192 = vld [vmem:[%s0 + $0x5a8] sm:$0xff]
  %v193 = vld [vmem:[%s0 + $0x5b0] sm:$0xff]
  %v194 = vld [vmem:[%s0 + $0x5b8] sm:$0xff]
  %v195 = vld [vmem:[%s0 + $0x5c0] sm:$0xff]
  %v196 = vld [vmem:[%s0 + $0x5c8] sm:$0xff]
  %v197 = vld [vmem:[%s0 + $0x5d0] sm:$0xff]
  %v198 = vld [vmem:[%s0 + $0x5d8] sm:$0xff]
  %v199 = vld [vmem:[%s0 + $0x5e0] sm:$0xff]
  %v200 = vld [vmem:[%s0 + $0x5e8] sm:$0xff]
  %v201 = vld [vmem:[%s0 + $0x5f0] sm:$0xff]
  %v202 = vld [vmem:[%s0 + $0x5f8] sm:$0xff]
  %v203 = vld [vmem:[%s0 + $0x600] sm:$0xff]
  %v204 = vld [vmem:[%s0 + $0x608] sm:$0xff]
  %v205 = vld [vmem:[%s0 + $0x610] sm:$0xff]
  %v206 = vld [vmem:[%s0 + $0x618] sm:$0xff]
  %v207 = vld [vmem:[%s0 + $0x620] sm:$0xff]
  %v208 = vld [vmem:[%s0 + $0x628] sm:$0xff]
  %v209 = vld [vmem:[%s0 + $0x630] sm:$0xff]
  %v210 = vld [vmem:[%s0 + $0x638] sm:$0xff]
  %v211 = vld [vmem:[%s0 + $0x640] sm:$0xff]
  %v212 = vld [vmem:[%s0 + $0x648] sm:$0xff]
  %v213 = vld [vmem:[%s0 + $0x650] sm:$0xff]
  %v214 = vld [vmem:[%s0 + $0x658] sm:$0xff]
  %v215 = vld [vmem:[%s0 + $0x660] sm:$0xff]
  %v216 = vld [vmem:[%s0 + $0x668] sm:$0xff]
  %v217 = vld [vmem:[%s0 + $0x670] sm:$0xff]
  %v218 = vld [vmem:[%s0 + $0x678] sm:$0xff]
  %v219 = vld [vmem:[%s0 + $0x680] sm:$0xff]
  %v220 = vld [vmem:[%s0 + $0x688] sm:$0xff]
  %v221 = vld [vmem:[%s0 + $0x690] sm:$0xff]
  %v222 = vld [vmem:[%s0 + $0x698] sm:$0xff]
  %v223 = vld [vmem:[%s0 + $0x6a0] sm:$0xff]
  %v224 = vld [vmem:[%s0 + $0x6a8] sm:$0xff]
  %v225 = vld [vmem:[%s0 + $0x6b0] sm:$0xff]
  %v226 = vld [vmem:[%s0 + $0x6b8] sm:$0xff]
  %v227 = vld [vmem:[%s0 + $0x6c0] sm:$0xff]
  %v228 = vld [vmem:[%s0 + $0x6c8] sm:$0xff]
  %v229 = vld [vmem:[%s0 + $0x6d0] sm:$0xff]
  %v230 = vld [vmem:[%s0 + $0x6d8] sm:$0xff]
  %v231 = vld [vmem:[%s0 + $0x6e0] sm:$0xff]
  %v232 = vld [vmem:[%s0 + $0x6e8] sm:$0xff]
  %v233 = vld [vmem:[%s0 + $0x6f0] sm:$0xff]
  %v234 = vld [vmem:[%s0 + $0x6f8] sm:$0xff]
  %v235 = vld [vmem:[%s0 + $0x700] sm:$0xff]
  %v236 = vld [vmem:[%s0 + $0x708] sm:$0xff]
  %v237 = vld [vmem:[%s0 + $0x710] sm:$0xff]
  %v238 = vld [vmem:[%s0 + $0x718] sm:$0xff]
  %v239 = vld [vmem:[%s0 + $0x720] sm:$0xff]
  %v240 = vld [vmem:[%s0 + $0x728] sm:$0xff]
  %v241 = vld [vmem:[%s0 + $0x730] sm:$0xff]
  %v242 = vld [vmem:[%s0 + $0x738] sm:$0xff]
  %v243 = vld [vmem:[%s0 + $0x740] sm:$0xff]
  %v244 = vld [vmem:[%s0 + $0x748] sm:$0xff]
  %v245 = vld [vmem:[%s0 + $0x750] sm:$0xff]
  %v246 = vld [vmem:[%s0 + $0x758] sm:$0xff]
  %v247 = vld [vmem:[%s0 + $0x760] sm:$0xff]
  %v248 = vld [vmem:[%s0 + $0x768] sm:$0xff]
  %v249 = vld [vmem:[%s0 + $0x770] sm:$0xff]
  %v250 = vld [vmem:[%s0 + $0x778] sm:$0xff]
  %v251 = vld [vmem:[%s0 + $0x780] sm:$0xff]
  %v252 = vld [vmem:[%s0 + $0x788] sm:$0xff]
  %v253 = vld [vmem:[%s0 + $0x790] sm:$0xff]
  %v254 = vld [vmem:[%s0 + $0x798] sm:$0xff]
  %v255 = vld [vmem:[%s0 + $0x7a0] sm:$0xff]
  %v256 = vld [vmem:[%s0 + $0x7a8] sm:$0xff]
  %v257 = vld [vmem:[%s0 + $0x7b0] sm:$0xff]
  %v258 = vld [vmem:[%s0 + $0x7b8] sm:$0xff]
  %v259 = vld [vmem:[%s0 + $0x7c0] sm:$0xff]
  %v260 = vld [vmem:[%s0 + $0x7c8] sm:$0xff]
  %v261 = vld [vmem:[%s0 + $0x7d0] sm:$0xff]
  %v262 = vld [vmem:[%s0 + $0x7d8] sm:$0xff]
  %v263 = vld [vmem:[%s0 + $0x7e0] sm:$0xff]
  %v264 = vld [vmem:[%s0 + $0x7e8] sm:$0xff]
  %v265 = vld [vmem:[%s0 + $0x7f0] sm:$0xff]
  %v266 = vld [vmem:[%s0 + $0x7f8] sm:$0xff]
  %v267 = vld [vmem:[%s0 + $0x800] sm:$0xff]
  %v268 = vld [vmem:[%s0 + $0x808] sm:$0xff]
  %v269 = vld [vmem:[%s0 + $0x810] sm:$0xff]
  %v270 = vld [vmem:[%s0 + $0x818] sm:$0xff]
  %v271 = vld [vmem:[%s0 + $0x820] sm:$0xff]
  %v272 = vld [vmem:[%s0 + $0x828] sm:$0xff]
  %v273 = vld [vmem:[%s0 + $0x830] sm:$0xff]
  %v274 = vld [vmem:[%s0 + $0x838] sm:$0xff]
  %v275 = vld [vmem:[%s0 + $0x840] sm:$0xff]
  %v276 = vld [vmem:[%s0 + $0x848] sm:$0xff]
  %v277 = vld [vmem:[%s0 + $0x850] sm:$0xff]
  %v278 = vld [vmem:[%s0 + $0x858] sm:$0xff]
  %v279 = vld [vmem:[%s0 + $0x860] sm:$0xff]
  %v280 = vld [vmem:[%s0 + $0x868] sm:$0xff]
  %v281 = vld [vmem:[%s0 + $0x870] sm:$0xff]
  %v282 = vld [vmem:[%s0 + $0x878] sm:$0xff]
  %v283 = vld [vmem:[%s0 + $0x880] sm:$0xff]
  %v284 = vld [vmem:[%s0 + $0x888] sm:$0xff]
  %v285 = vld [vmem:[%s0 + $0x890] sm:$0xff]
  %v286 = vld [vmem:[%s0 + $0x898] sm:$0xff]
  %v287 = vld [vmem:[%s0 + $0x8a0] sm:$0xff]
  %v288 = vld [vmem:[%s0 + $0x8a8] sm:$0xff]
  %v289 = vld [vmem:[%s0 + $0x8b0] sm:$0xff]
  %v290 = vld [vmem:[%s0 + $0x8b8] sm:$0xff]
  %v291 = vld [vmem:[%s0 + $0x8c0] sm:$0xff]
  %v292 = vld [vmem:[%s0 + $0x8c8] sm:$0xff]
  %v293 = vld [vmem:[%s0 + $0x8d0] sm:$0xff]
  %v294 = vld [vmem:[%s0 + $0x8d8] sm:$0xff]
  %v295 = vld [vmem:[%s0 + $0x8e0] sm:$0xff]
  %v296 = vld [vmem:[%s0 + $0x8e8] sm:$0xff]
  %v297 = vld [vmem:[%s0 + $0x8f0] sm:$0xff]
  %v298 = vld [vmem:[%s0 + $0x8f8] sm:$0xff]
  %v299 = vld [vmem:[%s0 + $0x900] sm:$0xff]
  %v300 = vld [vmem:[%s0 + $0x908] sm:$0xff]
  %v301 = vld [vmem:[%s0 + $0x910] sm:$0xff]
  %v302 = vld [vmem:[%s0 + $0x918] sm:$0xff]
  %v303 = vld [vmem:[%s0 + $0x920] sm:$0xff]
  %v304 = vld [vmem:[%s0 + $0x928] sm:$0xff]
  %v305 = vld [vmem:[%s0 + $0x930] sm:$0xff]
  %v306 = vld [vmem:[%s0 + $0x938] sm:$0xff]
  %v307 = vld [vmem:[%s0 + $0x940] sm:$0xff]
  %v308 = vld [vmem:[%s0 + $0x948] sm:$0xff]
  %v309 = vld [vmem:[%s0 + $0x950] sm:$0xff]
  %v310 = vld [vmem:[%s0 + $0x958] sm:$0xff]
  %v311 = vld [vmem:[%s0 + $0x960] sm:$0xff]
  %v312 = vld [vmem:[%s0 + $0x968] sm:$0xff]
  %v313 = vld [vmem:[%s0 + $0x970] sm:$0xff]
  %v314 = vld [vmem:[%s0 + $0x978] sm:$0xff]
  %v315 = vld [vmem:[%s0 + $0x980] sm:$0xff]
  %v316 = vld [vmem:[%s0 + $0x988] sm:$0xff]
  %v317 = vld [vmem:[%s0 + $0x990] sm:$0xff]
  %v318 = vld [vmem:[%s0 + $0x998] sm:$0xff]
  %v319 = vld [vmem:[%s0 + $0x9a0] sm:$0xff]
  %v320 = vld [vmem:[%s0 + $0x9a8] sm:$0xff]
  %v321 = vld [vmem:[%s0 + $0x9b0] sm:$0xff]
  %v322 = vld [vmem:[%s0 + $0x9b8] sm:$0xff]
  %v323 = vld [vmem:[%s0 + $0x9c0] sm:$0xff]
  %v324 = vld [vmem:[%s0 + $0x9c8] sm:$0xff]
  %v325 = vld [vmem:[%s0 + $0x9d0] sm:$0xff]
  %v326 = vld [vmem:[%s0 + $0x9d8] sm:$0xff]
  %v327 = vld [vmem:[%s0 + $0x9e0] sm:$0xff]
  %v328 = vld [vmem:[%s0 + $0x9e8] sm:$0xff]
  %v329 = vld [vmem:[%s0 + $0x9f0] sm:$0xff]
  %v330 = vld [vmem:[%s0 + $0x9f8] sm:$0xff]
  %v331 = vld [vmem:[%s0 + $0xa00] sm:$0xff]
  %v332 = vld [vmem:[%s0 + $0xa08] sm:$0xff]
  %v333 = vld [vmem:[%s0 + $0xa10] sm:$0xff]
  %v334 = vld [vmem:[%s0 + $0xa18] sm:$0xff]
  %v335 = vld [vmem:[%s0 + $0xa20] sm:$0xff]
  %v336 = vld [vmem:[%s0 + $0xa28] sm:$0xff]
  %v337 = vld [vmem:[%s0 + $0xa30] sm:$0xff]
  %v338 = vld [vmem:[%s0 + $0xa38] sm:$0xff]
  %v339 = vld [vmem:[%s0 + $0xa40] sm:$0xff]
  %v340 = vld [vmem:[%s0 + $0xa48] sm:$0xff]
  %v341 = vld [vmem:[%s0 + $0xa50] sm:$0xff]
  %v342 = vld [vmem:[%s0 + $0xa58] sm:$0xff]
  %v343 = vld [vmem:[%s0 + $0xa60] sm:$0xff]
  %v344 = vld [vmem:[%s0 + $0xa68] sm:$0xff]
  %v345 = vld [vmem:[%s0 + $0xa70] sm:$0xff]
  %v346 = vld [vmem:[%s0 + $0xa78] sm:$0xff]
  %v347 = vld [vmem:[%s0 + $0xa80] sm:$0xff]
  %v348 = vld [vmem:[%s0 + $0xa88] sm:$0xff]
  %v349 = vld [vmem:[%s0 + $0xa90] sm:$0xff]
  %v350 = vld [vmem:[%s0 + $0xa98] sm:$0xff]
  %v351 = vld [vmem:[%s0 + $0xaa0] sm:$0xff]
  %v352 = vld [vmem:[%s0 + $0xaa8] sm:$0xff]
  %v353 = vld [vmem:[%s0 + $0xab0] sm:$0xff]
  %v354 = vld [vmem:[%s0 + $0xab8] sm:$0xff]
  %v355 = vld [vmem:[%s0 + $0xac0] sm:$0xff]
  %v356 = vld [vmem:[%s0 + $0xac8] sm:$0xff]
  %v357 = vld [vmem:[%s0 + $0xad0] sm:$0xff]
  %v358 = vld [vmem:[%s0 + $0xad8] sm:$0xff]
  %v359 = vld [vmem:[%s0 + $0xae0] sm:$0xff]
  %v360 = vld [vmem:[%s0 + $0xae8] sm:$0xff]
  %v361 = vld [vmem:[%s0 + $0xaf0] sm:$0xff]
  %v362 = vld [vmem:[%s0 + $0xaf8] sm:$0xff]
  %v363 = vld [vmem:[%s0 + $0xb00] sm:$0xff]
  %v364 = vld [vmem:[%s0 + $0xb08] sm:$0xff]
  %v365 = vld [vmem:[%s0 + $0xb10] sm:$0xff]
  %v366 = vld [vmem:[%s0 + $0xb18] sm:$0xff]
  %v367 = vld [vmem:[%s0 + $0xb20] sm:$0xff]
  %v368 = vld [vmem:[%s0 + $0xb28] sm:$0xff]
  %v369 = vld [vmem:[%s0 + $0xb30] sm:$0xff]
  %v370 = vld [vmem:[%s0 + $0xb38] sm:$0xff]
  %v371 = vld [vmem:[%s0 + $0xb40] sm:$0xff]
  %v372 = vld [vmem:[%s0 + $0xb48] sm:$0xff]
  %v373 = vld [vmem:[%s0 + $0xb50] sm:$0xff]
  %v374 = vld [vmem:[%s0 + $0xb58] sm:$0xff]
  %v375 = vld [vmem:[%s0 + $0xb60] sm:$0xff]
  %v376 = vld [vmem:[%s0 + $0xb68] sm:$0xff]
  %v377 = vld [vmem:[%s0 + $0xb70] sm:$0xff]
  %v378 = vld [vmem:[%s0 + $0xb78] sm:$0xff]
  %v379 = vld [vmem:[%s0 + $0xb80] sm:$0xff]
  %v380 = vld [vmem:[%s0 + $0xb88] sm:$0xff]
  %v381 = vld [vmem:[%s0 + $0xb90] sm:$0xff]
  %v382 = vld [vmem:[%s0 + $0xb98] sm:$0xff]
  %v383 = vld [vmem:[%s0 + $0xba0] sm:$0xff]
  %v384 = vld [vmem:[%s0 + $0xba8] sm:$0xff]
  %v385 = vld [vmem:[%s0 + $0xbb0] sm:$0xff]
  %v386 = vld [vmem:[%s0 + $0xbb8] sm:$0xff]
  %v387 = vld [vmem:[%s0 + $0xbc0] sm:$0xff]
  %v388 = vld [vmem:[%s0 + $0xbc8] sm:$0xff]
  %v389 = vld [vmem:[%s0 + $0xbd0] sm:$0xff]
  %v390 = vld [vmem:[%s0 + $0xbd8] sm:$0xff]
  %v391 = vld [vmem:[%s0 + $0xbe0] sm:$0xff]
  %v392 = vld [vmem:[%s0 + $0xbe8] sm:$0xff]
  %v393 = vld [vmem:[%s0 + $0xbf0] sm:$0xff]
  %v394 = vld [vmem:[%s0 + $0xbf8] sm:$0xff]
  %v395 = vld [vmem:[%s0 + $0xc00] sm:$0xff]
  %v396 = vld [vmem:[%s0 + $0xc08] sm:$0xff]
  %v397 = vld [vmem:[%s0 + $0xc10] sm:$0xff]
  %v398 = vld [vmem:[%s0 + $0xc18] sm:$0xff]
  %v399 = vld [vmem:[%s0 + $0xc20] sm:$0xff]
  %v400 = vld [vmem:[%s0 + $0xc28] sm:$0xff]
  %v401 = vld [vmem:[%s0 + $0xc30] sm:$0xff]
  %v402 = vld [vmem:[%s0 + $0xc38] sm:$0xff]
  %v403 = vld [vmem:[%s0 + $0xc40] sm:$0xff]
  %v404 = vld [vmem:[%s0 + $0xc48] sm:$0xff]
  %v405 = vld [vmem:[%s0 + $0xc50] sm:$0xff]
  %v406 = vld [vmem:[%s0 + $0xc58] sm:$0xff]
  %v407 = vld [vmem:[%s0 + $0xc60] sm:$0xff]
  %v408 = vld [vmem:[%s0 + $0xc68] sm:$0xff]
  %v409 = vld [vmem:[%s0 + $0xc70] sm:$0xff]
  %v410 = vld [vmem:[%s0 + $0xc78] sm:$0xff]
  %v411 = vld [vmem:[%s0 + $0xc80] sm:$0xff]
  %v412 = vld [vmem:[%s0 + $0xc88] sm:$0xff]
  %v413 = vld [vmem:[%s0 + $0xc90] sm:$0xff]
  %v414 = vld [vmem:[%s0 + $0xc98] sm:$0xff]
  %v415 = vld [vmem:[%s0 + $0xca0] sm:$0xff]
  %v416 = vld [vmem:[%s0 + $0xca8] sm:$0xff]
  %v417 = vld [vmem:[%s0 + $0xcb0] sm:$0xff]
  %v418 = vld [vmem:[%s0 + $0xcb8] sm:$0xff]
  %v419 = vld [vmem:[%s0 + $0xcc0] sm:$0xff]
  %v420 = vld [vmem:[%s0 + $0xcc8] sm:$0xff]
  %v421 = vld [vmem:[%s0 + $0xcd0] sm:$0xff]
  %v422 = vld [vmem:[%s0 + $0xcd8] sm:$0xff]
  %v423 = vld [vmem:[%s0 + $0xce0] sm:$0xff]
  %v424 = vld [vmem:[%s0 + $0xce8] sm:$0xff]
  %v425 = vld [vmem:[%s0 + $0xcf0] sm:$0xff]
  %v426 = vld [vmem:[%s0 + $0xcf8] sm:$0xff]
  %v427 = vld [vmem:[%s0 + $0xd00] sm:$0xff]
  %v428 = vld [vmem:[%s0 + $0xd08] sm:$0xff]
  %v429 = vld [vmem:[%s0 + $0xd10] sm:$0xff]
  %v430 = vld [vmem:[%s0 + $0xd18] sm:$0xff]
  %v431 = vld [vmem:[%s0 + $0xd20] sm:$0xff]
  %v432 = vld [vmem:[%s0 + $0xd28] sm:$0xff]
  %v433 = vld [vmem:[%s0 + $0xd30] sm:$0xff]
  %v434 = vld [vmem:[%s0 + $0xd38] sm:$0xff]
  %v435 = vld [vmem:[%s0 + $0xd40] sm:$0xff]
  %v436 = vld [vmem:[%s0 + $0xd48] sm:$0xff]
  %v437 = vld [vmem:[%s0 + $0xd50] sm:$0xff]
  %v438 = vld [vmem:[%s0 + $0xd58] sm:$0xff]
  %v439 = vld [vmem:[%s0 + $0xd60] sm:$0xff]
  %v440 = vld [vmem:[%s0 + $0xd68] sm:$0xff]
  %v441 = vld [vmem:[%s0 + $0xd70] sm:$0xff]
  %v442 = vld [vmem:[%s0 + $0xd78] sm:$0xff]
  %v443 = vld [vmem:[%s0 + $0xd80] sm:$0xff]
  %v444 = vld [vmem:[%s0 + $0xd88] sm:$0xff]
  %v445 = vld [vmem:[%s0 + $0xd90] sm:$0xff]
  %v446 = vld [vmem:[%s0 + $0xd98] sm:$0xff]
  %v447 = vld [vmem:[%s0 + $0xda0] sm:$0xff]
  %v448 = vld [vmem:[%s0 + $0xda8] sm:$0xff]
  %v449 = vld [vmem:[%s0 + $0xdb0] sm:$0xff]
  %v450 = vld [vmem:[%s0 + $0xdb8] sm:$0xff]
  %v451 = vld [vmem:[%s0 + $0xdc0] sm:$0xff]
  %v452 = vld [vmem:[%s0 + $0xdc8] sm:$0xff]
  %v453 = vld [vmem:[%s0 + $0xdd0] sm:$0xff]
  %v454 = vld [vmem:[%s0 + $0xdd8] sm:$0xff]
  %v455 = vld [vmem:[%s0 + $0xde0] sm:$0xff]
  %v456 = vld [vmem:[%s0 + $0xde8] sm:$0xff]
  %v457 = vld [vmem:[%s0 + $0xdf0] sm:$0xff]
  %v458 = vld [vmem:[%s0 + $0xdf8] sm:$0xff]
  %v459 = vld [vmem:[%s0 + $0xe00] sm:$0xff]
  %v460 = vld [vmem:[%s0 + $0xe08] sm:$0xff]
  %v461 = vld [vmem:[%s0 + $0xe10] sm:$0xff]
  %v462 = vld [vmem:[%s0 + $0xe18] sm:$0xff]
  %v463 = vld [vmem:[%s0 + $0xe20] sm:$0xff]
  %v464 = vld [vmem:[%s0 + $0xe28] sm:$0xff]
  %v465 = vld [vmem:[%s0 + $0xe30] sm:$0xff]
  %v466 = vld [vmem:[%s0 + $0xe38] sm:$0xff]
  %v467 = vld [vmem:[%s0 + $0xe40] sm:$0xff]
  %v468 = vld [vmem:[%s0 + $0xe48] sm:$0xff]
  %v469 = vld [vmem:[%s0 + $0xe50] sm:$0xff]
  %v470 = vld [vmem:[%s0 + $0xe58] sm:$0xff]
  %v471 = vld [vmem:[%s0 + $0xe60] sm:$0xff]
  %v472 = vld [vmem:[%s0 + $0xe68] sm:$0xff]
  %v473 = vld [vmem:[%s0 + $0xe70] sm:$0xff]
  %v474 = vld [vmem:[%s0 + $0xe78] sm:$0xff]
  %v475 = vld [vmem:[%s0 + $0xe80] sm:$0xff]
  %v476 = vld [vmem:[%s0 + $0xe88] sm:$0xff]
  %v477 = vld [vmem:[%s0 + $0xe90] sm:$0xff]
  %v478 = vld [vmem:[%s0 + $0xe98] sm:$0xff]
  %v479 = vld [vmem:[%s0 + $0xea0] sm:$0xff]
  %v480 = vld [vmem:[%s0 + $0xea8] sm:$0xff]
  %v481 = vld [vmem:[%s0 + $0xeb0] sm:$0xff]
  %v482 = vld [vmem:[%s0 + $0xeb8] sm:$0xff]
  %v483 = vld [vmem:[%s0 + $0xec0] sm:$0xff]
  %v484 = vld [vmem:[%s0 + $0xec8] sm:$0xff]
  %v485 = vld [vmem:[%s0 + $0xed0] sm:$0xff]
  %v486 = vld [vmem:[%s0 + $0xed8] sm:$0xff]
  %v487 = vld [vmem:[%s0 + $0xee0] sm:$0xff]
  %v488 = vld [vmem:[%s0 + $0xee8] sm:$0xff]
  %v489 = vld [vmem:[%s0 + $0xef0] sm:$0xff]
  %v490 = vld [vmem:[%s0 + $0xef8] sm:$0xff]
  %v491 = vld [vmem:[%s0 + $0xf00] sm:$0xff]
  %v492 = vld [vmem:[%s0 + $0xf08] sm:$0xff]
  %v493 = vld [vmem:[%s0 + $0xf10] sm:$0xff]
  %v494 = vld [vmem:[%s0 + $0xf18] sm:$0xff]
  %v495 = vld [vmem:[%s0 + $0xf20] sm:$0xff]
  %v496 = vld [vmem:[%s0 + $0xf28] sm:$0xff]
  %v497 = vld [vmem:[%s0 + $0xf30] sm:$0xff]
  %v498 = vld [vmem:[%s0 + $0xf38] sm:$0xff]
  %v499 = vld [vmem:[%s0 + $0xf40] sm:$0xff]
  %v500 = vld [vmem:[%s0 + $0xf48] sm:$0xff]
  %v501 = vld [vmem:[%s0 + $0xf50] sm:$0xff]
  %v502 = vld [vmem:[%s0 + $0xf58] sm:$0xff]
  %v503 = vld [vmem:[%s0 + $0xf60] sm:$0xff]
  %v504 = vld [vmem:[%s0 + $0xf68] sm:$0xff]
  %v505 = vld [vmem:[%s0 + $0xf70] sm:$0xff]
  %v506 = vld [vmem:[%s0 + $0xf78] sm:$0xff]
  %v507 = vld [vmem:[%s0 + $0xf80] sm:$0xff]
  %v508 = vld [vmem:[%s0 + $0xf88] sm:$0xff]
  %v509 = vld [vmem:[%s0 + $0xf90] sm:$0xff]
  %v510 = vld [vmem:[%s0 + $0xf98] sm:$0xff]
  %v511 = vld [vmem:[%s0 + $0xfa0] sm:$0xff]
  %v512 = vld [vmem:[%s0 + $0xfa8] sm:$0xff]
  %v513 = vld [vmem:[%s0 + $0xfb0] sm:$0xff]
  %v514 = vld [vmem:[%s0 + $0xfb8] sm:$0xff]
  %v515 = vld [vmem:[%s0 + $0xfc0] sm:$0xff]
  %v516 = vld [vmem:[%s0 + $0xfc8] sm:$0xff]
  %v517 = vld [vmem:[%s0 + $0xfd0] sm:$0xff]
  %v518 = vld [vmem:[%s0 + $0xfd8] sm:$0xff]
  %v519 = vld [vmem:[%s0 + $0xfe0] sm:$0xff]
  %v520 = vld [vmem:[%s0 + $0xfe8] sm:$0xff]
  %v521 = vld [vmem:[%s0 + $0xff0] sm:$0xff]
  %v522 = vld [vmem:[%s0 + $0xff8] sm:$0xff]
  %v523 = vld [vmem:[%s1] sm:$0xff]
  %v524 = vld [vmem:[%s1 + $0x8] sm:$0xff]
  %v525 = vld [vmem:[%s1 + $0x10] sm:$0xff]
  %v526 = vld [vmem:[%s1 + $0x18] sm:$0xff]
  %v527 = vld [vmem:[%s1 + $0x20] sm:$0xff]
  %v528 = vld [vmem:[%s1 + $0x28] sm:$0xff]
  %v529 = vld [vmem:[%s1 + $0x30] sm:$0xff]
  %v530 = vld [vmem:[%s1 + $0x38] sm:$0xff]
  %v531 = vld [vmem:[%s1 + $0x40] sm:$0xff]
  %v532 = vld [vmem:[%s1 + $0x48] sm:$0xff]
  %v533 = vld [vmem:[%s1 + $0x50] sm:$0xff]
  %v534 = vld [vmem:[%s1 + $0x58] sm:$0xff]
  %v535 = vld [vmem:[%s1 + $0x60] sm:$0xff]
  %v536 = vld [vmem:[%s1 + $0x68] sm:$0xff]
  %v537 = vld [vmem:[%s1 + $0x70] sm:$0xff]
  %v538 = vld [vmem:[%s1 + $0x78] sm:$0xff]
  %v539 = vld [vmem:[%s1 + $0x80] sm:$0xff]
  %v540 = vld [vmem:[%s1 + $0x88] sm:$0xff]
  %v541 = vld [vmem:[%s1 + $0x90] sm:$0xff]
  %v542 = vld [vmem:[%s1 + $0x98] sm:$0xff]
  %v543 = vld [vmem:[%s1 + $0xa0] sm:$0xff]
  %v544 = vld [vmem:[%s1 + $0xa8] sm:$0xff]
  %v545 = vld [vmem:[%s1 + $0xb0] sm:$0xff]
  %v546 = vld [vmem:[%s1 + $0xb8] sm:$0xff]
  %v547 = vld [vmem:[%s1 + $0xc0] sm:$0xff]
  %v548 = vld [vmem:[%s1 + $0xc8] sm:$0xff]
  %v549 = vld [vmem:[%s1 + $0xd0] sm:$0xff]
  %v550 = vld [vmem:[%s1 + $0xd8] sm:$0xff]
  %v551 = vld [vmem:[%s1 + $0xe0] sm:$0xff]
  %v552 = vld [vmem:[%s1 + $0xe8] sm:$0xff]
  %v553 = vld [vmem:[%s1 + $0xf0] sm:$0xff]
  %v554 = vld [vmem:[%s1 + $0xf8] sm:$0xff]
  %v555 = vld [vmem:[%s1 + $0x100] sm:$0xff]
  %v556 = vld [vmem:[%s1 + $0x108] sm:$0xff]
  %v557 = vld [vmem:[%s1 + $0x110] sm:$0xff]
  %v558 = vld [vmem:[%s1 + $0x118] sm:$0xff]
  %v559 = vld [vmem:[%s1 + $0x120] sm:$0xff]
  %v560 = vld [vmem:[%s1 + $0x128] sm:$0xff]
  %v561 = vld [vmem:[%s1 + $0x130] sm:$0xff]
  %v562 = vld [vmem:[%s1 + $0x138] sm:$0xff]
  %v563 = vld [vmem:[%s1 + $0x140] sm:$0xff]
  %v564 = vld [vmem:[%s1 + $0x148] sm:$0xff]
  %v565 = vld [vmem:[%s1 + $0x150] sm:$0xff]
  %v566 = vld [vmem:[%s1 + $0x158] sm:$0xff]
  %v567 = vld [vmem:[%s1 + $0x160] sm:$0xff]
  %v568 = vld [vmem:[%s1 + $0x168] sm:$0xff]
  %v569 = vld [vmem:[%s1 + $0x170] sm:$0xff]
  %v570 = vld [vmem:[%s1 + $0x178] sm:$0xff]
  %v571 = vld [vmem:[%s1 + $0x180] sm:$0xff]
  %v572 = vld [vmem:[%s1 + $0x188] sm:$0xff]
  %v573 = vld [vmem:[%s1 + $0x190] sm:$0xff]
  %v574 = vld [vmem:[%s1 + $0x198] sm:$0xff]
  %v575 = vld [vmem:[%s1 + $0x1a0] sm:$0xff]
  %v576 = vld [vmem:[%s1 + $0x1a8] sm:$0xff]
  %v577 = vld [vmem:[%s1 + $0x1b0] sm:$0xff]
  %v578 = vld [vmem:[%s1 + $0x1b8] sm:$0xff]
  %v579 = vld [vmem:[%s1 + $0x1c0] sm:$0xff]
  %v580 = vld [vmem:[%s1 + $0x1c8] sm:$0xff]
  %v581 = vld [vmem:[%s1 + $0x1d0] sm:$0xff]
  %v582 = vld [vmem:[%s1 + $0x1d8] sm:$0xff]
  %v583 = vld [vmem:[%s1 + $0x1e0] sm:$0xff]
  %v584 = vld [vmem:[%s1 + $0x1e8] sm:$0xff]
  %v585 = vld [vmem:[%s1 + $0x1f0] sm:$0xff]
  %v586 = vld [vmem:[%s1 + $0x1f8] sm:$0xff]
  %v587 = vld [vmem:[%s1 + $0x200] sm:$0xff]
  %v588 = vld [vmem:[%s1 + $0x208] sm:$0xff]
  %v589 = vld [vmem:[%s1 + $0x210] sm:$0xff]
  %v590 = vld [vmem:[%s1 + $0x218] sm:$0xff]
  %v591 = vld [vmem:[%s1 + $0x220] sm:$0xff]
  %v592 = vld [vmem:[%s1 + $0x228] sm:$0xff]
  %v593 = vld [vmem:[%s1 + $0x230] sm:$0xff]
  %v594 = vld [vmem:[%s1 + $0x238] sm:$0xff]
  %v595 = vld [vmem:[%s1 + $0x240] sm:$0xff]
  %v596 = vld [vmem:[%s1 + $0x248] sm:$0xff]
  %v597 = vld [vmem:[%s1 + $0x250] sm:$0xff]
  %v598 = vld [vmem:[%s1 + $0x258] sm:$0xff]
  %v599 = vld [vmem:[%s1 + $0x260] sm:$0xff]
  %v600 = vld [vmem:[%s1 + $0x268] sm:$0xff]
  %v601 = vld [vmem:[%s1 + $0x270] sm:$0xff]
  %v602 = vld [vmem:[%s1 + $0x278] sm:$0xff]
  %v603 = vld [vmem:[%s1 + $0x280] sm:$0xff]
  %v604 = vld [vmem:[%s1 + $0x288] sm:$0xff]
  %v605 = vld [vmem:[%s1 + $0x290] sm:$0xff]
  %v606 = vld [vmem:[%s1 + $0x298] sm:$0xff]
  %v607 = vld [vmem:[%s1 + $0x2a0] sm:$0xff]
  %v608 = vld [vmem:[%s1 + $0x2a8] sm:$0xff]
  %v609 = vld [vmem:[%s1 + $0x2b0] sm:$0xff]
  %v610 = vld [vmem:[%s1 + $0x2b8] sm:$0xff]
  %v611 = vld [vmem:[%s1 + $0x2c0] sm:$0xff]
  %v612 = vld [vmem:[%s1 + $0x2c8] sm:$0xff]
  %v613 = vld [vmem:[%s1 + $0x2d0] sm:$0xff]
  %v614 = vld [vmem:[%s1 + $0x2d8] sm:$0xff]
  %v615 = vld [vmem:[%s1 + $0x2e0] sm:$0xff]
  %v616 = vld [vmem:[%s1 + $0x2e8] sm:$0xff]
  %v617 = vld [vmem:[%s1 + $0x2f0] sm:$0xff]
  %v618 = vld [vmem:[%s1 + $0x2f8] sm:$0xff]
  %v619 = vld [vmem:[%s1 + $0x300] sm:$0xff]
  %v620 = vld [vmem:[%s1 + $0x308] sm:$0xff]
  %v621 = vld [vmem:[%s1 + $0x310] sm:$0xff]
  %v622 = vld [vmem:[%s1 + $0x318] sm:$0xff]
  %v623 = vld [vmem:[%s1 + $0x320] sm:$0xff]
  %v624 = vld [vmem:[%s1 + $0x328] sm:$0xff]
  %v625 = vld [vmem:[%s1 + $0x330] sm:$0xff]
  %v626 = vld [vmem:[%s1 + $0x338] sm:$0xff]
  %v627 = vld [vmem:[%s1 + $0x340] sm:$0xff]
  %v628 = vld [vmem:[%s1 + $0x348] sm:$0xff]
  %v629 = vld [vmem:[%s1 + $0x350] sm:$0xff]
  %v630 = vld [vmem:[%s1 + $0x358] sm:$0xff]
  %v631 = vld [vmem:[%s1 + $0x360] sm:$0xff]
  %v632 = vld [vmem:[%s1 + $0x368] sm:$0xff]
  %v633 = vld [vmem:[%s1 + $0x370] sm:$0xff]
  %v634 = vld [vmem:[%s1 + $0x378] sm:$0xff]
  %v635 = vld [vmem:[%s1 + $0x380] sm:$0xff]
  %v636 = vld [vmem:[%s1 + $0x388] sm:$0xff]
  %v637 = vld [vmem:[%s1 + $0x390] sm:$0xff]
  %v638 = vld [vmem:[%s1 + $0x398] sm:$0xff]
  %v639 = vld [vmem:[%s1 + $0x3a0] sm:$0xff]
  %v640 = vld [vmem:[%s1 + $0x3a8] sm:$0xff]
  %v641 = vld [vmem:[%s1 + $0x3b0] sm:$0xff]
  %v642 = vld [vmem:[%s1 + $0x3b8] sm:$0xff]
  %v643 = vld [vmem:[%s1 + $0x3c0] sm:$0xff]
  %v644 = vld [vmem:[%s1 + $0x3c8] sm:$0xff]
  %v645 = vld [vmem:[%s1 + $0x3d0] sm:$0xff]
  %v646 = vld [vmem:[%s1 + $0x3d8] sm:$0xff]
  %v647 = vld [vmem:[%s1 + $0x3e0] sm:$0xff]
  %v648 = vld [vmem:[%s1 + $0x3e8] sm:$0xff]
  %v649 = vld [vmem:[%s1 + $0x3f0] sm:$0xff]
  %v650 = vld [vmem:[%s1 + $0x3f8] sm:$0xff]
  %v651 = vld [vmem:[%s1 + $0x400] sm:$0xff]
  %v652 = vld [vmem:[%s1 + $0x408] sm:$0xff]
  %v653 = vld [vmem:[%s1 + $0x410] sm:$0xff]
  %v654 = vld [vmem:[%s1 + $0x418] sm:$0xff]
  %v655 = vld [vmem:[%s1 + $0x420] sm:$0xff]
  %v656 = vld [vmem:[%s1 + $0x428] sm:$0xff]
  %v657 = vld [vmem:[%s1 + $0x430] sm:$0xff]
  %v658 = vld [vmem:[%s1 + $0x438] sm:$0xff]
  %v659 = vld [vmem:[%s1 + $0x440] sm:$0xff]
  %v660 = vld [vmem:[%s1 + $0x448] sm:$0xff]
  %v661 = vld [vmem:[%s1 + $0x450] sm:$0xff]
  %v662 = vld [vmem:[%s1 + $0x458] sm:$0xff]
  %v663 = vld [vmem:[%s1 + $0x460] sm:$0xff]
  %v664 = vld [vmem:[%s1 + $0x468] sm:$0xff]
  %v665 = vld [vmem:[%s1 + $0x470] sm:$0xff]
  %v666 = vld [vmem:[%s1 + $0x478] sm:$0xff]
  %v667 = vld [vmem:[%s1 + $0x480] sm:$0xff]
  %v668 = vld [vmem:[%s1 + $0x488] sm:$0xff]
  %v669 = vld [vmem:[%s1 + $0x490] sm:$0xff]
  %v670 = vld [vmem:[%s1 + $0x498] sm:$0xff]
  %v671 = vld [vmem:[%s1 + $0x4a0] sm:$0xff]
  %v672 = vld [vmem:[%s1 + $0x4a8] sm:$0xff]
  %v673 = vld [vmem:[%s1 + $0x4b0] sm:$0xff]
  %v674 = vld [vmem:[%s1 + $0x4b8] sm:$0xff]
  %v675 = vld [vmem:[%s1 + $0x4c0] sm:$0xff]
  %v676 = vld [vmem:[%s1 + $0x4c8] sm:$0xff]
  %v677 = vld [vmem:[%s1 + $0x4d0] sm:$0xff]
  %v678 = vld [vmem:[%s1 + $0x4d8] sm:$0xff]
  %v679 = vld [vmem:[%s1 + $0x4e0] sm:$0xff]
  %v680 = vld [vmem:[%s1 + $0x4e8] sm:$0xff]
  %v681 = vld [vmem:[%s1 + $0x4f0] sm:$0xff]
  %v682 = vld [vmem:[%s1 + $0x4f8] sm:$0xff]
  %v683 = vld [vmem:[%s1 + $0x500] sm:$0xff]
  %v684 = vld [vmem:[%s1 + $0x508] sm:$0xff]
  %v685 = vld [vmem:[%s1 + $0x510] sm:$0xff]
  %v686 = vld [vmem:[%s1 + $0x518] sm:$0xff]
  %v687 = vld [vmem:[%s1 + $0x520] sm:$0xff]
  %v688 = vld [vmem:[%s1 + $0x528] sm:$0xff]
  %v689 = vld [vmem:[%s1 + $0x530] sm:$0xff]
  %v690 = vld [vmem:[%s1 + $0x538] sm:$0xff]
  %v691 = vld [vmem:[%s1 + $0x540] sm:$0xff]
  %v692 = vld [vmem:[%s1 + $0x548] sm:$0xff]
  %v693 = vld [vmem:[%s1 + $0x550] sm:$0xff]
  %v694 = vld [vmem:[%s1 + $0x558] sm:$0xff]
  %v695 = vld [vmem:[%s1 + $0x560] sm:$0xff]
  %v696 = vld [vmem:[%s1 + $0x568] sm:$0xff]
  %v697 = vld [vmem:[%s1 + $0x570] sm:$0xff]
  %v698 = vld [vmem:[%s1 + $0x578] sm:$0xff]
  %v699 = vld [vmem:[%s1 + $0x580] sm:$0xff]
  %v700 = vld [vmem:[%s1 + $0x588] sm:$0xff]
  %v701 = vld [vmem:[%s1 + $0x590] sm:$0xff]
  %v702 = vld [vmem:[%s1 + $0x598] sm:$0xff]
  %v703 = vld [vmem:[%s1 + $0x5a0] sm:$0xff]
  %v704 = vld [vmem:[%s1 + $0x5a8] sm:$0xff]
  %v705 = vld [vmem:[%s1 + $0x5b0] sm:$0xff]
  %v706 = vld [vmem:[%s1 + $0x5b8] sm:$0xff]
  %v707 = vld [vmem:[%s1 + $0x5c0] sm:$0xff]
  %v708 = vld [vmem:[%s1 + $0x5c8] sm:$0xff]
  %v709 = vld [vmem:[%s1 + $0x5d0] sm:$0xff]
  %v710 = vld [vmem:[%s1 + $0x5d8] sm:$0xff]
  %v711 = vld [vmem:[%s1 + $0x5e0] sm:$0xff]
  %v712 = vld [vmem:[%s1 + $0x5e8] sm:$0xff]
  %v713 = vld [vmem:[%s1 + $0x5f0] sm:$0xff]
  %v714 = vld [vmem:[%s1 + $0x5f8] sm:$0xff]
  %v715 = vld [vmem:[%s1 + $0x600] sm:$0xff]
  %v716 = vld [vmem:[%s1 + $0x608] sm:$0xff]
  %v717 = vld [vmem:[%s1 + $0x610] sm:$0xff]
  %v718 = vld [vmem:[%s1 + $0x618] sm:$0xff]
  %v719 = vld [vmem:[%s1 + $0x620] sm:$0xff]
  %v720 = vld [vmem:[%s1 + $0x628] sm:$0xff]
  %v721 = vld [vmem:[%s1 + $0x630] sm:$0xff]
  %v722 = vld [vmem:[%s1 + $0x638] sm:$0xff]
  %v723 = vld [vmem:[%s1 + $0x640] sm:$0xff]
  %v724 = vld [vmem:[%s1 + $0x648] sm:$0xff]
  %v725 = vld [vmem:[%s1 + $0x650] sm:$0xff]
  %v726 = vld [vmem:[%s1 + $0x658] sm:$0xff]
  %v727 = vld [vmem:[%s1 + $0x660] sm:$0xff]
  %v728 = vld [vmem:[%s1 + $0x668] sm:$0xff]
  %v729 = vld [vmem:[%s1 + $0x670] sm:$0xff]
  %v730 = vld [vmem:[%s1 + $0x678] sm:$0xff]
  %v731 = vld [vmem:[%s1 + $0x680] sm:$0xff]
  %v732 = vld [vmem:[%s1 + $0x688] sm:$0xff]
  %v733 = vld [vmem:[%s1 + $0x690] sm:$0xff]
  %v734 = vld [vmem:[%s1 + $0x698] sm:$0xff]
  %v735 = vld [vmem:[%s1 + $0x6a0] sm:$0xff]
  %v736 = vld [vmem:[%s1 + $0x6a8] sm:$0xff]
  %v737 = vld [vmem:[%s1 + $0x6b0] sm:$0xff]
  %v738 = vld [vmem:[%s1 + $0x6b8] sm:$0xff]
  %v739 = vld [vmem:[%s1 + $0x6c0] sm:$0xff]
  %v740 = vld [vmem:[%s1 + $0x6c8] sm:$0xff]
  %v741 = vld [vmem:[%s1 + $0x6d0] sm:$0xff]
  %v742 = vld [vmem:[%s1 + $0x6d8] sm:$0xff]
  %v743 = vld [vmem:[%s1 + $0x6e0] sm:$0xff]
  %v744 = vld [vmem:[%s1 + $0x6e8] sm:$0xff]
  %v745 = vld [vmem:[%s1 + $0x6f0] sm:$0xff]
  %v746 = vld [vmem:[%s1 + $0x6f8] sm:$0xff]
  %v747 = vld [vmem:[%s1 + $0x700] sm:$0xff]
  %v748 = vld [vmem:[%s1 + $0x708] sm:$0xff]
  %v749 = vld [vmem:[%s1 + $0x710] sm:$0xff]
  %v750 = vld [vmem:[%s1 + $0x718] sm:$0xff]
  %v751 = vld [vmem:[%s1 + $0x720] sm:$0xff]
  %v752 = vld [vmem:[%s1 + $0x728] sm:$0xff]
  %v753 = vld [vmem:[%s1 + $0x730] sm:$0xff]
  %v754 = vld [vmem:[%s1 + $0x738] sm:$0xff]
  %v755 = vld [vmem:[%s1 + $0x740] sm:$0xff]
  %v756 = vld [vmem:[%s1 + $0x748] sm:$0xff]
  %v757 = vld [vmem:[%s1 + $0x750] sm:$0xff]
  %v758 = vld [vmem:[%s1 + $0x758] sm:$0xff]
  %v759 = vld [vmem:[%s1 + $0x760] sm:$0xff]
  %v760 = vld [vmem:[%s1 + $0x768] sm:$0xff]
  %v761 = vld [vmem:[%s1 + $0x770] sm:$0xff]
  %v762 = vld [vmem:[%s1 + $0x778] sm:$0xff]
  %v763 = vld [vmem:[%s1 + $0x780] sm:$0xff]
  %v764 = vld [vmem:[%s1 + $0x788] sm:$0xff]
  %v765 = vld [vmem:[%s1 + $0x790] sm:$0xff]
  %v766 = vld [vmem:[%s1 + $0x798] sm:$0xff]
  %v767 = vld [vmem:[%s1 + $0x7a0] sm:$0xff]
  %v768 = vld [vmem:[%s1 + $0x7a8] sm:$0xff]
  %v769 = vld [vmem:[%s1 + $0x7b0] sm:$0xff]
  %v770 = vld [vmem:[%s1 + $0x7b8] sm:$0xff]
  %v771 = vld [vmem:[%s1 + $0x7c0] sm:$0xff]
  %v772 = vld [vmem:[%s1 + $0x7c8] sm:$0xff]
  %v773 = vld [vmem:[%s1 + $0x7d0] sm:$0xff]
  %v774 = vld [vmem:[%s1 + $0x7d8] sm:$0xff]
  %v775 = vld [vmem:[%s1 + $0x7e0] sm:$0xff]
  %v776 = vld [vmem:[%s1 + $0x7e8] sm:$0xff]
  %v777 = vld [vmem:[%s1 + $0x7f0] sm:$0xff]
  %v778 = vld [vmem:[%s1 + $0x7f8] sm:$0xff]
  %v779 = vld [vmem:[%s1 + $0x800] sm:$0xff]
  %v780 = vld [vmem:[%s1 + $0x808] sm:$0xff]
  %v781 = vld [vmem:[%s1 + $0x810] sm:$0xff]
  %v782 = vld [vmem:[%s1 + $0x818] sm:$0xff]
  %v783 = vld [vmem:[%s1 + $0x820] sm:$0xff]
  %v784 = vld [vmem:[%s1 + $0x828] sm:$0xff]
  %v785 = vld [vmem:[%s1 + $0x830] sm:$0xff]
  %v786 = vld [vmem:[%s1 + $0x838] sm:$0xff]
  %v787 = vld [vmem:[%s1 + $0x840] sm:$0xff]
  %v788 = vld [vmem:[%s1 + $0x848] sm:$0xff]
  %v789 = vld [vmem:[%s1 + $0x850] sm:$0xff]
  %v790 = vld [vmem:[%s1 + $0x858] sm:$0xff]
  %v791 = vld [vmem:[%s1 + $0x860] sm:$0xff]
  %v792 = vld [vmem:[%s1 + $0x868] sm:$0xff]
  %v793 = vld [vmem:[%s1 + $0x870] sm:$0xff]
  %v794 = vld [vmem:[%s1 + $0x878] sm:$0xff]
  %v795 = vld [vmem:[%s1 + $0x880] sm:$0xff]
  %v796 = vld [vmem:[%s1 + $0x888] sm:$0xff]
  %v797 = vld [vmem:[%s1 + $0x890] sm:$0xff]
  %v798 = vld [vmem:[%s1 + $0x898] sm:$0xff]
  %v799 = vld [vmem:[%s1 + $0x8a0] sm:$0xff]
  %v800 = vld [vmem:[%s1 + $0x8a8] sm:$0xff]
  %v801 = vld [vmem:[%s1 + $0x8b0] sm:$0xff]
  %v802 = vld [vmem:[%s1 + $0x8b8] sm:$0xff]
  %v803 = vld [vmem:[%s1 + $0x8c0] sm:$0xff]
  %v804 = vld [vmem:[%s1 + $0x8c8] sm:$0xff]
  %v805 = vld [vmem:[%s1 + $0x8d0] sm:$0xff]
  %v806 = vld [vmem:[%s1 + $0x8d8] sm:$0xff]
  %v807 = vld [vmem:[%s1 + $0x8e0] sm:$0xff]
  %v808 = vld [vmem:[%s1 + $0x8e8] sm:$0xff]
  %v809 = vld [vmem:[%s1 + $0x8f0] sm:$0xff]
  %v810 = vld [vmem:[%s1 + $0x8f8] sm:$0xff]
  %v811 = vld [vmem:[%s1 + $0x900] sm:$0xff]
  %v812 = vld [vmem:[%s1 + $0x908] sm:$0xff]
  %v813 = vld [vmem:[%s1 + $0x910] sm:$0xff]
  %v814 = vld [vmem:[%s1 + $0x918] sm:$0xff]
  %v815 = vld [vmem:[%s1 + $0x920] sm:$0xff]
  %v816 = vld [vmem:[%s1 + $0x928] sm:$0xff]
  %v817 = vld [vmem:[%s1 + $0x930] sm:$0xff]
  %v818 = vld [vmem:[%s1 + $0x938] sm:$0xff]
  %v819 = vld [vmem:[%s1 + $0x940] sm:$0xff]
  %v820 = vld [vmem:[%s1 + $0x948] sm:$0xff]
  %v821 = vld [vmem:[%s1 + $0x950] sm:$0xff]
  %v822 = vld [vmem:[%s1 + $0x958] sm:$0xff]
  %v823 = vld [vmem:[%s1 + $0x960] sm:$0xff]
  %v824 = vld [vmem:[%s1 + $0x968] sm:$0xff]
  %v825 = vld [vmem:[%s1 + $0x970] sm:$0xff]
  %v826 = vld [vmem:[%s1 + $0x978] sm:$0xff]
  %v827 = vld [vmem:[%s1 + $0x980] sm:$0xff]
  %v828 = vld [vmem:[%s1 + $0x988] sm:$0xff]
  %v829 = vld [vmem:[%s1 + $0x990] sm:$0xff]
  %v830 = vld [vmem:[%s1 + $0x998] sm:$0xff]
  %v831 = vld [vmem:[%s1 + $0x9a0] sm:$0xff]
  %v832 = vld [vmem:[%s1 + $0x9a8] sm:$0xff]
  %v833 = vld [vmem:[%s1 + $0x9b0] sm:$0xff]
  %v834 = vld [vmem:[%s1 + $0x9b8] sm:$0xff]
  %v835 = vld [vmem:[%s1 + $0x9c0] sm:$0xff]
  %v836 = vld [vmem:[%s1 + $0x9c8] sm:$0xff]
  %v837 = vld [vmem:[%s1 + $0x9d0] sm:$0xff]
  %v838 = vld [vmem:[%s1 + $0x9d8] sm:$0xff]
  %v839 = vld [vmem:[%s1 + $0x9e0] sm:$0xff]
  %v840 = vld [vmem:[%s1 + $0x9e8] sm:$0xff]
  %v841 = vld [vmem:[%s1 + $0x9f0] sm:$0xff]
  %v842 = vld [vmem:[%s1 + $0x9f8] sm:$0xff]
  %v843 = vld [vmem:[%s1 + $0xa00] sm:$0xff]
  %v844 = vld [vmem:[%s1 + $0xa08] sm:$0xff]
  %v845 = vld [vmem:[%s1 + $0xa10] sm:$0xff]
  %v846 = vld [vmem:[%s1 + $0xa18] sm:$0xff]
  %v847 = vld [vmem:[%s1 + $0xa20] sm:$0xff]
  %v848 = vld [vmem:[%s1 + $0xa28] sm:$0xff]
  %v849 = vld [vmem:[%s1 + $0xa30] sm:$0xff]
  %v850 = vld [vmem:[%s1 + $0xa38] sm:$0xff]
  %v851 = vld [vmem:[%s1 + $0xa40] sm:$0xff]
  %v852 = vld [vmem:[%s1 + $0xa48] sm:$0xff]
  %v853 = vld [vmem:[%s1 + $0xa50] sm:$0xff]
  %v854 = vld [vmem:[%s1 + $0xa58] sm:$0xff]
  %v855 = vld [vmem:[%s1 + $0xa60] sm:$0xff]
  %v856 = vld [vmem:[%s1 + $0xa68] sm:$0xff]
  %v857 = vld [vmem:[%s1 + $0xa70] sm:$0xff]
  %v858 = vld [vmem:[%s1 + $0xa78] sm:$0xff]
  %v859 = vld [vmem:[%s1 + $0xa80] sm:$0xff]
  %v860 = vld [vmem:[%s1 + $0xa88] sm:$0xff]
  %v861 = vld [vmem:[%s1 + $0xa90] sm:$0xff]
  %v862 = vld [vmem:[%s1 + $0xa98] sm:$0xff]
  %v863 = vld [vmem:[%s1 + $0xaa0] sm:$0xff]
  %v864 = vld [vmem:[%s1 + $0xaa8] sm:$0xff]
  %v865 = vld [vmem:[%s1 + $0xab0] sm:$0xff]
  %v866 = vld [vmem:[%s1 + $0xab8] sm:$0xff]
  %v867 = vld [vmem:[%s1 + $0xac0] sm:$0xff]
  %v868 = vld [vmem:[%s1 + $0xac8] sm:$0xff]
  %v869 = vld [vmem:[%s1 + $0xad0] sm:$0xff]
  %v870 = vld [vmem:[%s1 + $0xad8] sm:$0xff]
  %v871 = vld [vmem:[%s1 + $0xae0] sm:$0xff]
  %v872 = vld [vmem:[%s1 + $0xae8] sm:$0xff]
  %v873 = vld [vmem:[%s1 + $0xaf0] sm:$0xff]
  %v874 = vld [vmem:[%s1 + $0xaf8] sm:$0xff]
  %v875 = vld [vmem:[%s1 + $0xb00] sm:$0xff]
  %v876 = vld [vmem:[%s1 + $0xb08] sm:$0xff]
  %v877 = vld [vmem:[%s1 + $0xb10] sm:$0xff]
  %v878 = vld [vmem:[%s1 + $0xb18] sm:$0xff]
  %v879 = vld [vmem:[%s1 + $0xb20] sm:$0xff]
  %v880 = vld [vmem:[%s1 + $0xb28] sm:$0xff]
  %v881 = vld [vmem:[%s1 + $0xb30] sm:$0xff]
  %v882 = vld [vmem:[%s1 + $0xb38] sm:$0xff]
  %v883 = vld [vmem:[%s1 + $0xb40] sm:$0xff]
  %v884 = vld [vmem:[%s1 + $0xb48] sm:$0xff]
  %v885 = vld [vmem:[%s1 + $0xb50] sm:$0xff]
  %v886 = vld [vmem:[%s1 + $0xb58] sm:$0xff]
  %v887 = vld [vmem:[%s1 + $0xb60] sm:$0xff]
  %v888 = vld [vmem:[%s1 + $0xb68] sm:$0xff]
  %v889 = vld [vmem:[%s1 + $0xb70] sm:$0xff]
  %v890 = vld [vmem:[%s1 + $0xb78] sm:$0xff]
  %v891 = vld [vmem:[%s1 + $0xb80] sm:$0xff]
  %v892 = vld [vmem:[%s1 + $0xb88] sm:$0xff]
  %v893 = vld [vmem:[%s1 + $0xb90] sm:$0xff]
  %v894 = vld [vmem:[%s1 + $0xb98] sm:$0xff]
  %v895 = vld [vmem:[%s1 + $0xba0] sm:$0xff]
  %v896 = vld [vmem:[%s1 + $0xba8] sm:$0xff]
  %v897 = vld [vmem:[%s1 + $0xbb0] sm:$0xff]
  %v898 = vld [vmem:[%s1 + $0xbb8] sm:$0xff]
  %v899 = vld [vmem:[%s1 + $0xbc0] sm:$0xff]
  %v900 = vld [vmem:[%s1 + $0xbc8] sm:$0xff]
  %v901 = vld [vmem:[%s1 + $0xbd0] sm:$0xff]
  %v902 = vld [vmem:[%s1 + $0xbd8] sm:$0xff]
  %v903 = vld [vmem:[%s1 + $0xbe0] sm:$0xff]
  %v904 = vld [vmem:[%s1 + $0xbe8] sm:$0xff]
  %v905 = vld [vmem:[%s1 + $0xbf0] sm:$0xff]
  %v906 = vld [vmem:[%s1 + $0xbf8] sm:$0xff]
  %v907 = vld [vmem:[%s1 + $0xc00] sm:$0xff]
  %v908 = vld [vmem:[%s1 + $0xc08] sm:$0xff]
  %v909 = vld [vmem:[%s1 + $0xc10] sm:$0xff]
  %v910 = vld [vmem:[%s1 + $0xc18] sm:$0xff]
  %v911 = vld [vmem:[%s1 + $0xc20] sm:$0xff]
  %v912 = vld [vmem:[%s1 + $0xc28] sm:$0xff]
  %v913 = vld [vmem:[%s1 + $0xc30] sm:$0xff]
  %v914 = vld [vmem:[%s1 + $0xc38] sm:$0xff]
  %v915 = vld [vmem:[%s1 + $0xc40] sm:$0xff]
  %v916 = vld [vmem:[%s1 + $0xc48] sm:$0xff]
  %v917 = vld [vmem:[%s1 + $0xc50] sm:$0xff]
  %v918 = vld [vmem:[%s1 + $0xc58] sm:$0xff]
  %v919 = vld [vmem:[%s1 + $0xc60] sm:$0xff]
  %v920 = vld [vmem:[%s1 + $0xc68] sm:$0xff]
  %v921 = vld [vmem:[%s1 + $0xc70] sm:$0xff]
  %v922 = vld [vmem:[%s1 + $0xc78] sm:$0xff]
  %v923 = vld [vmem:[%s1 + $0xc80] sm:$0xff]
  %v924 = vld [vmem:[%s1 + $0xc88] sm:$0xff]
  %v925 = vld [vmem:[%s1 + $0xc90] sm:$0xff]
  %v926 = vld [vmem:[%s1 + $0xc98] sm:$0xff]
  %v927 = vld [vmem:[%s1 + $0xca0] sm:$0xff]
  %v928 = vld [vmem:[%s1 + $0xca8] sm:$0xff]
  %v929 = vld [vmem:[%s1 + $0xcb0] sm:$0xff]
  %v930 = vld [vmem:[%s1 + $0xcb8] sm:$0xff]
  %v931 = vld [vmem:[%s1 + $0xcc0] sm:$0xff]
  %v932 = vld [vmem:[%s1 + $0xcc8] sm:$0xff]
  %v933 = vld [vmem:[%s1 + $0xcd0] sm:$0xff]
  %v934 = vld [vmem:[%s1 + $0xcd8] sm:$0xff]
  %v935 = vld [vmem:[%s1 + $0xce0] sm:$0xff]
  %v936 = vld [vmem:[%s1 + $0xce8] sm:$0xff]
  %v937 = vld [vmem:[%s1 + $0xcf0] sm:$0xff]
  %v938 = vld [vmem:[%s1 + $0xcf8] sm:$0xff]
  %v939 = vld [vmem:[%s1 + $0xd00] sm:$0xff]
  %v940 = vld [vmem:[%s1 + $0xd08] sm:$0xff]
  %v941 = vld [vmem:[%s1 + $0xd10] sm:$0xff]
  %v942 = vld [vmem:[%s1 + $0xd18] sm:$0xff]
  %v943 = vld [vmem:[%s1 + $0xd20] sm:$0xff]
  %v944 = vld [vmem:[%s1 + $0xd28] sm:$0xff]
  %v945 = vld [vmem:[%s1 + $0xd30] sm:$0xff]
  %v946 = vld [vmem:[%s1 + $0xd38] sm:$0xff]
  %v947 = vld [vmem:[%s1 + $0xd40] sm:$0xff]
  %v948 = vld [vmem:[%s1 + $0xd48] sm:$0xff]
  %v949 = vld [vmem:[%s1 + $0xd50] sm:$0xff]
  %v950 = vld [vmem:[%s1 + $0xd58] sm:$0xff]
  %v951 = vld [vmem:[%s1 + $0xd60] sm:$0xff]
  %v952 = vld [vmem:[%s1 + $0xd68] sm:$0xff]
  %v953 = vld [vmem:[%s1 + $0xd70] sm:$0xff]
  %v954 = vld [vmem:[%s1 + $0xd78] sm:$0xff]
  %v955 = vld [vmem:[%s1 + $0xd80] sm:$0xff]
  %v956 = vld [vmem:[%s1 + $0xd88] sm:$0xff]
  %v957 = vld [vmem:[%s1 + $0xd90] sm:$0xff]
  %v958 = vld [vmem:[%s1 + $0xd98] sm:$0xff]
  %v959 = vld [vmem:[%s1 + $0xda0] sm:$0xff]
  %v960 = vld [vmem:[%s1 + $0xda8] sm:$0xff]
  %v961 = vld [vmem:[%s1 + $0xdb0] sm:$0xff]
  %v962 = vld [vmem:[%s1 + $0xdb8] sm:$0xff]
  %v963 = vld [vmem:[%s1 + $0xdc0] sm:$0xff]
  %v964 = vld [vmem:[%s1 + $0xdc8] sm:$0xff]
  %v965 = vld [vmem:[%s1 + $0xdd0] sm:$0xff]
  %v966 = vld [vmem:[%s1 + $0xdd8] sm:$0xff]
  %v967 = vld [vmem:[%s1 + $0xde0] sm:$0xff]
  %v968 = vld [vmem:[%s1 + $0xde8] sm:$0xff]
  %v969 = vld [vmem:[%s1 + $0xdf0] sm:$0xff]
  %v970 = vld [vmem:[%s1 + $0xdf8] sm:$0xff]
  %v971 = vld [vmem:[%s1 + $0xe00] sm:$0xff]
  %v972 = vld [vmem:[%s1 + $0xe08] sm:$0xff]
  %v973 = vld [vmem:[%s1 + $0xe10] sm:$0xff]
  %v974 = vld [vmem:[%s1 + $0xe18] sm:$0xff]
  %v975 = vld [vmem:[%s1 + $0xe20] sm:$0xff]
  %v976 = vld [vmem:[%s1 + $0xe28] sm:$0xff]
  %v977 = vld [vmem:[%s1 + $0xe30] sm:$0xff]
  %v978 = vld [vmem:[%s1 + $0xe38] sm:$0xff]
  %v979 = vld [vmem:[%s1 + $0xe40] sm:$0xff]
  %v980 = vld [vmem:[%s1 + $0xe48] sm:$0xff]
  %v981 = vld [vmem:[%s1 + $0xe50] sm:$0xff]
  %v982 = vld [vmem:[%s1 + $0xe58] sm:$0xff]
  %v983 = vld [vmem:[%s1 + $0xe60] sm:$0xff]
  %v984 = vld [vmem:[%s1 + $0xe68] sm:$0xff]
  %v985 = vld [vmem:[%s1 + $0xe70] sm:$0xff]
  %v986 = vld [vmem:[%s1 + $0xe78] sm:$0xff]
  %v987 = vld [vmem:[%s1 + $0xe80] sm:$0xff]
  %v988 = vld [vmem:[%s1 + $0xe88] sm:$0xff]
  %v989 = vld [vmem:[%s1 + $0xe90] sm:$0xff]
  %v990 = vld [vmem:[%s1 + $0xe98] sm:$0xff]
  %v991 = vld [vmem:[%s1 + $0xea0] sm:$0xff]
  %v992 = vld [vmem:[%s1 + $0xea8] sm:$0xff]
  %v993 = vld [vmem:[%s1 + $0xeb0] sm:$0xff]
  %v994 = vld [vmem:[%s1 + $0xeb8] sm:$0xff]
  %v995 = vld [vmem:[%s1 + $0xec0] sm:$0xff]
  %v996 = vld [vmem:[%s1 + $0xec8] sm:$0xff]
  %v997 = vld [vmem:[%s1 + $0xed0] sm:$0xff]
  %v998 = vld [vmem:[%s1 + $0xed8] sm:$0xff]
  %v999 = vld [vmem:[%s1 + $0xee0] sm:$0xff]
  %v1000 = vld [vmem:[%s1 + $0xee8] sm:$0xff]
  %v1001 = vld [vmem:[%s1 + $0xef0] sm:$0xff]
  %v1002 = vld [vmem:[%s1 + $0xef8] sm:$0xff]
  %v1003 = vld [vmem:[%s1 + $0xf00] sm:$0xff]
  %v1004 = vld [vmem:[%s1 + $0xf08] sm:$0xff]
  %v1005 = vld [vmem:[%s1 + $0xf10] sm:$0xff]
  %v1006 = vld [vmem:[%s1 + $0xf18] sm:$0xff]
  %v1007 = vld [vmem:[%s1 + $0xf20] sm:$0xff]
  %v1008 = vld [vmem:[%s1 + $0xf28] sm:$0xff]
  %v1009 = vld [vmem:[%s1 + $0xf30] sm:$0xff]
  %v1010 = vld [vmem:[%s1 + $0xf38] sm:$0xff]
  %v1011 = vld [vmem:[%s1 + $0xf40] sm:$0xff]
  %v1012 = vld [vmem:[%s1 + $0xf48] sm:$0xff]
  %v1013 = vld [vmem:[%s1 + $0xf50] sm:$0xff]
  %v1014 = vld [vmem:[%s1 + $0xf58] sm:$0xff]
  %v1015 = vld [vmem:[%s1 + $0xf60] sm:$0xff]
  %v1016 = vld [vmem:[%s1 + $0xf68] sm:$0xff]
  %v1017 = vld [vmem:[%s1 + $0xf70] sm:$0xff]
  %v1018 = vld [vmem:[%s1 + $0xf78] sm:$0xff]
  %v1019 = vld [vmem:[%s1 + $0xf80] sm:$0xff]
  %v1020 = vld [vmem:[%s1 + $0xf88] sm:$0xff]
  %v1021 = vld [vmem:[%s1 + $0xf90] sm:$0xff]
  %v1022 = vld [vmem:[%s1 + $0xf98] sm:$0xff]
  %v1023 = vld [vmem:[%s1 + $0xfa0] sm:$0xff]
  %v1024 = vld [vmem:[%s1 + $0xfa8] sm:$0xff]
  %v1025 = vld [vmem:[%s1 + $0xfb0] sm:$0xff]
  %v1026 = vld [vmem:[%s1 + $0xfb8] sm:$0xff]
  %v1027 = vld [vmem:[%s1 + $0xfc0] sm:$0xff]
  %v1028 = vld [vmem:[%s1 + $0xfc8] sm:$0xff]
  %v1029 = vld [vmem:[%s1 + $0xfd0] sm:$0xff]
  %v1030 = vld [vmem:[%s1 + $0xfd8] sm:$0xff]
  %v1031 = vld [vmem:[%s1 + $0xfe0] sm:$0xff]
  %v1032 = vld [vmem:[%s1 + $0xfe8] sm:$0xff]
  %v1033 = vld [vmem:[%s1 + $0xff0] sm:$0xff]
  %v1034 = vld [vmem:[%s1 + $0xff8] sm:$0xff]
  %v1035 = vadd.f32 %v11, %v523
  %v1036 = vadd.f32 %v12, %v524
  %v1037 = vadd.f32 %v13, %v525
  %v1038 = vadd.f32 %v14, %v526
  %v1039 = vadd.f32 %v15, %v527
  %v1040 = vadd.f32 %v16, %v528
  %v1041 = vadd.f32 %v17, %v529
  %v1042 = vadd.f32 %v18, %v530
  %v1043 = vadd.f32 %v19, %v531
  %v1044 = vadd.f32 %v20, %v532
  %v1045 = vadd.f32 %v21, %v533
  %v1046 = vadd.f32 %v22, %v534
  %v1047 = vadd.f32 %v23, %v535
  %v1048 = vadd.f32 %v24, %v536
  %v1049 = vadd.f32 %v25, %v537
  %v1050 = vadd.f32 %v26, %v538
  %v1051 = vadd.f32 %v27, %v539
  %v1052 = vadd.f32 %v28, %v540
  %v1053 = vadd.f32 %v29, %v541
  %v1054 = vadd.f32 %v30, %v542
  %v1055 = vadd.f32 %v31, %v543
  %v1056 = vadd.f32 %v32, %v544
  %v1057 = vadd.f32 %v33, %v545
  %v1058 = vadd.f32 %v34, %v546
  %v1059 = vadd.f32 %v35, %v547
  %v1060 = vadd.f32 %v36, %v548
  %v1061 = vadd.f32 %v37, %v549
  %v1062 = vadd.f32 %v38, %v550
  %v1063 = vadd.f32 %v39, %v551
  %v1064 = vadd.f32 %v40, %v552
  %v1065 = vadd.f32 %v41, %v553
  %v1066 = vadd.f32 %v42, %v554
  %v1067 = vadd.f32 %v43, %v555
  %v1068 = vadd.f32 %v44, %v556
  %v1069 = vadd.f32 %v45, %v557
  %v1070 = vadd.f32 %v46, %v558
  %v1071 = vadd.f32 %v47, %v559
  %v1072 = vadd.f32 %v48, %v560
  %v1073 = vadd.f32 %v49, %v561
  %v1074 = vadd.f32 %v50, %v562
  %v1075 = vadd.f32 %v51, %v563
  %v1076 = vadd.f32 %v52, %v564
  %v1077 = vadd.f32 %v53, %v565
  %v1078 = vadd.f32 %v54, %v566
  %v1079 = vadd.f32 %v55, %v567
  %v1080 = vadd.f32 %v56, %v568
  %v1081 = vadd.f32 %v57, %v569
  %v1082 = vadd.f32 %v58, %v570
  %v1083 = vadd.f32 %v59, %v571
  %v1084 = vadd.f32 %v60, %v572
  %v1085 = vadd.f32 %v61, %v573
  %v1086 = vadd.f32 %v62, %v574
  %v1087 = vadd.f32 %v63, %v575
  %v1088 = vadd.f32 %v64, %v576
  %v1089 = vadd.f32 %v65, %v577
  %v1090 = vadd.f32 %v66, %v578
  %v1091 = vadd.f32 %v67, %v579
  %v1092 = vadd.f32 %v68, %v580
  %v1093 = vadd.f32 %v69, %v581
  %v1094 = vadd.f32 %v70, %v582
  %v1095 = vadd.f32 %v71, %v583
  %v1096 = vadd.f32 %v72, %v584
  %v1097 = vadd.f32 %v73, %v585
  %v1098 = vadd.f32 %v74, %v586
  %v1099 = vadd.f32 %v75, %v587
  %v1100 = vadd.f32 %v76, %v588
  %v1101 = vadd.f32 %v77, %v589
  %v1102 = vadd.f32 %v78, %v590
  %v1103 = vadd.f32 %v79, %v591
  %v1104 = vadd.f32 %v80, %v592
  %v1105 = vadd.f32 %v81, %v593
  %v1106 = vadd.f32 %v82, %v594
  %v1107 = vadd.f32 %v83, %v595
  %v1108 = vadd.f32 %v84, %v596
  %v1109 = vadd.f32 %v85, %v597
  %v1110 = vadd.f32 %v86, %v598
  %v1111 = vadd.f32 %v87, %v599
  %v1112 = vadd.f32 %v88, %v600
  %v1113 = vadd.f32 %v89, %v601
  %v1114 = vadd.f32 %v90, %v602
  %v1115 = vadd.f32 %v91, %v603
  %v1116 = vadd.f32 %v92, %v604
  %v1117 = vadd.f32 %v93, %v605
  %v1118 = vadd.f32 %v94, %v606
  %v1119 = vadd.f32 %v95, %v607
  %v1120 = vadd.f32 %v96, %v608
  %v1121 = vadd.f32 %v97, %v609
  %v1122 = vadd.f32 %v98, %v610
  %v1123 = vadd.f32 %v99, %v611
  %v1124 = vadd.f32 %v100, %v612
  %v1125 = vadd.f32 %v101, %v613
  %v1126 = vadd.f32 %v102, %v614
  %v1127 = vadd.f32 %v103, %v615
  %v1128 = vadd.f32 %v104, %v616
  %v1129 = vadd.f32 %v105, %v617
  %v1130 = vadd.f32 %v106, %v618
  %v1131 = vadd.f32 %v107, %v619
  %v1132 = vadd.f32 %v108, %v620
  %v1133 = vadd.f32 %v109, %v621
  %v1134 = vadd.f32 %v110, %v622
  %v1135 = vadd.f32 %v111, %v623
  %v1136 = vadd.f32 %v112, %v624
  %v1137 = vadd.f32 %v113, %v625
  %v1138 = vadd.f32 %v114, %v626
  %v1139 = vadd.f32 %v115, %v627
  %v1140 = vadd.f32 %v116, %v628
  %v1141 = vadd.f32 %v117, %v629
  %v1142 = vadd.f32 %v118, %v630
  %v1143 = vadd.f32 %v119, %v631
  %v1144 = vadd.f32 %v120, %v632
  %v1145 = vadd.f32 %v121, %v633
  %v1146 = vadd.f32 %v122, %v634
  %v1147 = vadd.f32 %v123, %v635
  %v1148 = vadd.f32 %v124, %v636
  %v1149 = vadd.f32 %v125, %v637
  %v1150 = vadd.f32 %v126, %v638
  %v1151 = vadd.f32 %v127, %v639
  %v1152 = vadd.f32 %v128, %v640
  %v1153 = vadd.f32 %v129, %v641
  %v1154 = vadd.f32 %v130, %v642
  %v1155 = vadd.f32 %v131, %v643
  %v1156 = vadd.f32 %v132, %v644
  %v1157 = vadd.f32 %v133, %v645
  %v1158 = vadd.f32 %v134, %v646
  %v1159 = vadd.f32 %v135, %v647
  %v1160 = vadd.f32 %v136, %v648
  %v1161 = vadd.f32 %v137, %v649
  %v1162 = vadd.f32 %v138, %v650
  %v1163 = vadd.f32 %v139, %v651
  %v1164 = vadd.f32 %v140, %v652
  %v1165 = vadd.f32 %v141, %v653
  %v1166 = vadd.f32 %v142, %v654
  %v1167 = vadd.f32 %v143, %v655
  %v1168 = vadd.f32 %v144, %v656
  %v1169 = vadd.f32 %v145, %v657
  %v1170 = vadd.f32 %v146, %v658
  %v1171 = vadd.f32 %v147, %v659
  %v1172 = vadd.f32 %v148, %v660
  %v1173 = vadd.f32 %v149, %v661
  %v1174 = vadd.f32 %v150, %v662
  %v1175 = vadd.f32 %v151, %v663
  %v1176 = vadd.f32 %v152, %v664
  %v1177 = vadd.f32 %v153, %v665
  %v1178 = vadd.f32 %v154, %v666
  %v1179 = vadd.f32 %v155, %v667
  %v1180 = vadd.f32 %v156, %v668
  %v1181 = vadd.f32 %v157, %v669
  %v1182 = vadd.f32 %v158, %v670
  %v1183 = vadd.f32 %v159, %v671
  %v1184 = vadd.f32 %v160, %v672
  %v1185 = vadd.f32 %v161, %v673
  %v1186 = vadd.f32 %v162, %v674
  %v1187 = vadd.f32 %v163, %v675
  %v1188 = vadd.f32 %v164, %v676
  %v1189 = vadd.f32 %v165, %v677
  %v1190 = vadd.f32 %v166, %v678
  %v1191 = vadd.f32 %v167, %v679
  %v1192 = vadd.f32 %v168, %v680
  %v1193 = vadd.f32 %v169, %v681
  %v1194 = vadd.f32 %v170, %v682
  %v1195 = vadd.f32 %v171, %v683
  %v1196 = vadd.f32 %v172, %v684
  %v1197 = vadd.f32 %v173, %v685
  %v1198 = vadd.f32 %v174, %v686
  %v1199 = vadd.f32 %v175, %v687
  %v1200 = vadd.f32 %v176, %v688
  %v1201 = vadd.f32 %v177, %v689
  %v1202 = vadd.f32 %v178, %v690
  %v1203 = vadd.f32 %v179, %v691
  %v1204 = vadd.f32 %v180, %v692
  %v1205 = vadd.f32 %v181, %v693
  %v1206 = vadd.f32 %v182, %v694
  %v1207 = vadd.f32 %v183, %v695
  %v1208 = vadd.f32 %v184, %v696
  %v1209 = vadd.f32 %v185, %v697
  %v1210 = vadd.f32 %v186, %v698
  %v1211 = vadd.f32 %v187, %v699
  %v1212 = vadd.f32 %v188, %v700
  %v1213 = vadd.f32 %v189, %v701
  %v1214 = vadd.f32 %v190, %v702
  %v1215 = vadd.f32 %v191, %v703
  %v1216 = vadd.f32 %v192, %v704
  %v1217 = vadd.f32 %v193, %v705
  %v1218 = vadd.f32 %v194, %v706
  %v1219 = vadd.f32 %v195, %v707
  %v1220 = vadd.f32 %v196, %v708
  %v1221 = vadd.f32 %v197, %v709
  %v1222 = vadd.f32 %v198, %v710
  %v1223 = vadd.f32 %v199, %v711
  %v1224 = vadd.f32 %v200, %v712
  %v1225 = vadd.f32 %v201, %v713
  %v1226 = vadd.f32 %v202, %v714
  %v1227 = vadd.f32 %v203, %v715
  %v1228 = vadd.f32 %v204, %v716
  %v1229 = vadd.f32 %v205, %v717
  %v1230 = vadd.f32 %v206, %v718
  %v1231 = vadd.f32 %v207, %v719
  %v1232 = vadd.f32 %v208, %v720
  %v1233 = vadd.f32 %v209, %v721
  %v1234 = vadd.f32 %v210, %v722
  %v1235 = vadd.f32 %v211, %v723
  %v1236 = vadd.f32 %v212, %v724
  %v1237 = vadd.f32 %v213, %v725
  %v1238 = vadd.f32 %v214, %v726
  %v1239 = vadd.f32 %v215, %v727
  %v1240 = vadd.f32 %v216, %v728
  %v1241 = vadd.f32 %v217, %v729
  %v1242 = vadd.f32 %v218, %v730
  %v1243 = vadd.f32 %v219, %v731
  %v1244 = vadd.f32 %v220, %v732
  %v1245 = vadd.f32 %v221, %v733
  %v1246 = vadd.f32 %v222, %v734
  %v1247 = vadd.f32 %v223, %v735
  %v1248 = vadd.f32 %v224, %v736
  %v1249 = vadd.f32 %v225, %v737
  %v1250 = vadd.f32 %v226, %v738
  %v1251 = vadd.f32 %v227, %v739
  %v1252 = vadd.f32 %v228, %v740
  %v1253 = vadd.f32 %v229, %v741
  %v1254 = vadd.f32 %v230, %v742
  %v1255 = vadd.f32 %v231, %v743
  %v1256 = vadd.f32 %v232, %v744
  %v1257 = vadd.f32 %v233, %v745
  %v1258 = vadd.f32 %v234, %v746
  %v1259 = vadd.f32 %v235, %v747
  %v1260 = vadd.f32 %v236, %v748
  %v1261 = vadd.f32 %v237, %v749
  %v1262 = vadd.f32 %v238, %v750
  %v1263 = vadd.f32 %v239, %v751
  %v1264 = vadd.f32 %v240, %v752
  %v1265 = vadd.f32 %v241, %v753
  %v1266 = vadd.f32 %v242, %v754
  %v1267 = vadd.f32 %v243, %v755
  %v1268 = vadd.f32 %v244, %v756
  %v1269 = vadd.f32 %v245, %v757
  %v1270 = vadd.f32 %v246, %v758
  %v1271 = vadd.f32 %v247, %v759
  %v1272 = vadd.f32 %v248, %v760
  %v1273 = vadd.f32 %v249, %v761
  %v1274 = vadd.f32 %v250, %v762
  %v1275 = vadd.f32 %v251, %v763
  %v1276 = vadd.f32 %v252, %v764
  %v1277 = vadd.f32 %v253, %v765
  %v1278 = vadd.f32 %v254, %v766
  %v1279 = vadd.f32 %v255, %v767
  %v1280 = vadd.f32 %v256, %v768
  %v1281 = vadd.f32 %v257, %v769
  %v1282 = vadd.f32 %v258, %v770
  %v1283 = vadd.f32 %v259, %v771
  %v1284 = vadd.f32 %v260, %v772
  %v1285 = vadd.f32 %v261, %v773
  %v1286 = vadd.f32 %v262, %v774
  %v1287 = vadd.f32 %v263, %v775
  %v1288 = vadd.f32 %v264, %v776
  %v1289 = vadd.f32 %v265, %v777
  %v1290 = vadd.f32 %v266, %v778
  %v1291 = vadd.f32 %v267, %v779
  %v1292 = vadd.f32 %v268, %v780
  %v1293 = vadd.f32 %v269, %v781
  %v1294 = vadd.f32 %v270, %v782
  %v1295 = vadd.f32 %v271, %v783
  %v1296 = vadd.f32 %v272, %v784
  %v1297 = vadd.f32 %v273, %v785
  %v1298 = vadd.f32 %v274, %v786
  %v1299 = vadd.f32 %v275, %v787
  %v1300 = vadd.f32 %v276, %v788
  %v1301 = vadd.f32 %v277, %v789
  %v1302 = vadd.f32 %v278, %v790
  %v1303 = vadd.f32 %v279, %v791
  %v1304 = vadd.f32 %v280, %v792
  %v1305 = vadd.f32 %v281, %v793
  %v1306 = vadd.f32 %v282, %v794
  %v1307 = vadd.f32 %v283, %v795
  %v1308 = vadd.f32 %v284, %v796
  %v1309 = vadd.f32 %v285, %v797
  %v1310 = vadd.f32 %v286, %v798
  %v1311 = vadd.f32 %v287, %v799
  %v1312 = vadd.f32 %v288, %v800
  %v1313 = vadd.f32 %v289, %v801
  %v1314 = vadd.f32 %v290, %v802
  %v1315 = vadd.f32 %v291, %v803
  %v1316 = vadd.f32 %v292, %v804
  %v1317 = vadd.f32 %v293, %v805
  %v1318 = vadd.f32 %v294, %v806
  %v1319 = vadd.f32 %v295, %v807
  %v1320 = vadd.f32 %v296, %v808
  %v1321 = vadd.f32 %v297, %v809
  %v1322 = vadd.f32 %v298, %v810
  %v1323 = vadd.f32 %v299, %v811
  %v1324 = vadd.f32 %v300, %v812
  %v1325 = vadd.f32 %v301, %v813
  %v1326 = vadd.f32 %v302, %v814
  %v1327 = vadd.f32 %v303, %v815
  %v1328 = vadd.f32 %v304, %v816
  %v1329 = vadd.f32 %v305, %v817
  %v1330 = vadd.f32 %v306, %v818
  %v1331 = vadd.f32 %v307, %v819
  %v1332 = vadd.f32 %v308, %v820
  %v1333 = vadd.f32 %v309, %v821
  %v1334 = vadd.f32 %v310, %v822
  %v1335 = vadd.f32 %v311, %v823
  %v1336 = vadd.f32 %v312, %v824
  %v1337 = vadd.f32 %v313, %v825
  %v1338 = vadd.f32 %v314, %v826
  %v1339 = vadd.f32 %v315, %v827
  %v1340 = vadd.f32 %v316, %v828
  %v1341 = vadd.f32 %v317, %v829
  %v1342 = vadd.f32 %v318, %v830
  %v1343 = vadd.f32 %v319, %v831
  %v1344 = vadd.f32 %v320, %v832
  %v1345 = vadd.f32 %v321, %v833
  %v1346 = vadd.f32 %v322, %v834
  %v1347 = vadd.f32 %v323, %v835
  %v1348 = vadd.f32 %v324, %v836
  %v1349 = vadd.f32 %v325, %v837
  %v1350 = vadd.f32 %v326, %v838
  %v1351 = vadd.f32 %v327, %v839
  %v1352 = vadd.f32 %v328, %v840
  %v1353 = vadd.f32 %v329, %v841
  %v1354 = vadd.f32 %v330, %v842
  %v1355 = vadd.f32 %v331, %v843
  %v1356 = vadd.f32 %v332, %v844
  %v1357 = vadd.f32 %v333, %v845
  %v1358 = vadd.f32 %v334, %v846
  %v1359 = vadd.f32 %v335, %v847
  %v1360 = vadd.f32 %v336, %v848
  %v1361 = vadd.f32 %v337, %v849
  %v1362 = vadd.f32 %v338, %v850
  %v1363 = vadd.f32 %v339, %v851
  %v1364 = vadd.f32 %v340, %v852
  %v1365 = vadd.f32 %v341, %v853
  %v1366 = vadd.f32 %v342, %v854
  %v1367 = vadd.f32 %v343, %v855
  %v1368 = vadd.f32 %v344, %v856
  %v1369 = vadd.f32 %v345, %v857
  %v1370 = vadd.f32 %v346, %v858
  %v1371 = vadd.f32 %v347, %v859
  %v1372 = vadd.f32 %v348, %v860
  %v1373 = vadd.f32 %v349, %v861
  %v1374 = vadd.f32 %v350, %v862
  %v1375 = vadd.f32 %v351, %v863
  %v1376 = vadd.f32 %v352, %v864
  %v1377 = vadd.f32 %v353, %v865
  %v1378 = vadd.f32 %v354, %v866
  %v1379 = vadd.f32 %v355, %v867
  %v1380 = vadd.f32 %v356, %v868
  %v1381 = vadd.f32 %v357, %v869
  %v1382 = vadd.f32 %v358, %v870
  %v1383 = vadd.f32 %v359, %v871
  %v1384 = vadd.f32 %v360, %v872
  %v1385 = vadd.f32 %v361, %v873
  %v1386 = vadd.f32 %v362, %v874
  %v1387 = vadd.f32 %v363, %v875
  %v1388 = vadd.f32 %v364, %v876
  %v1389 = vadd.f32 %v365, %v877
  %v1390 = vadd.f32 %v366, %v878
  %v1391 = vadd.f32 %v367, %v879
  %v1392 = vadd.f32 %v368, %v880
  %v1393 = vadd.f32 %v369, %v881
  %v1394 = vadd.f32 %v370, %v882
  %v1395 = vadd.f32 %v371, %v883
  %v1396 = vadd.f32 %v372, %v884
  %v1397 = vadd.f32 %v373, %v885
  %v1398 = vadd.f32 %v374, %v886
  %v1399 = vadd.f32 %v375, %v887
  %v1400 = vadd.f32 %v376, %v888
  %v1401 = vadd.f32 %v377, %v889
  %v1402 = vadd.f32 %v378, %v890
  %v1403 = vadd.f32 %v379, %v891
  %v1404 = vadd.f32 %v380, %v892
  %v1405 = vadd.f32 %v381, %v893
  %v1406 = vadd.f32 %v382, %v894
  %v1407 = vadd.f32 %v383, %v895
  %v1408 = vadd.f32 %v384, %v896
  %v1409 = vadd.f32 %v385, %v897
  %v1410 = vadd.f32 %v386, %v898
  %v1411 = vadd.f32 %v387, %v899
  %v1412 = vadd.f32 %v388, %v900
  %v1413 = vadd.f32 %v389, %v901
  %v1414 = vadd.f32 %v390, %v902
  %v1415 = vadd.f32 %v391, %v903
  %v1416 = vadd.f32 %v392, %v904
  %v1417 = vadd.f32 %v393, %v905
  %v1418 = vadd.f32 %v394, %v906
  %v1419 = vadd.f32 %v395, %v907
  %v1420 = vadd.f32 %v396, %v908
  %v1421 = vadd.f32 %v397, %v909
  %v1422 = vadd.f32 %v398, %v910
  %v1423 = vadd.f32 %v399, %v911
  %v1424 = vadd.f32 %v400, %v912
  %v1425 = vadd.f32 %v401, %v913
  %v1426 = vadd.f32 %v402, %v914
  %v1427 = vadd.f32 %v403, %v915
  %v1428 = vadd.f32 %v404, %v916
  %v1429 = vadd.f32 %v405, %v917
  %v1430 = vadd.f32 %v406, %v918
  %v1431 = vadd.f32 %v407, %v919
  %v1432 = vadd.f32 %v408, %v920
  %v1433 = vadd.f32 %v409, %v921
  %v1434 = vadd.f32 %v410, %v922
  %v1435 = vadd.f32 %v411, %v923
  %v1436 = vadd.f32 %v412, %v924
  %v1437 = vadd.f32 %v413, %v925
  %v1438 = vadd.f32 %v414, %v926
  %v1439 = vadd.f32 %v415, %v927
  %v1440 = vadd.f32 %v416, %v928
  %v1441 = vadd.f32 %v417, %v929
  %v1442 = vadd.f32 %v418, %v930
  %v1443 = vadd.f32 %v419, %v931
  %v1444 = vadd.f32 %v420, %v932
  %v1445 = vadd.f32 %v421, %v933
  %v1446 = vadd.f32 %v422, %v934
  %v1447 = vadd.f32 %v423, %v935
  %v1448 = vadd.f32 %v424, %v936
  %v1449 = vadd.f32 %v425, %v937
  %v1450 = vadd.f32 %v426, %v938
  %v1451 = vadd.f32 %v427, %v939
  %v1452 = vadd.f32 %v428, %v940
  %v1453 = vadd.f32 %v429, %v941
  %v1454 = vadd.f32 %v430, %v942
  %v1455 = vadd.f32 %v431, %v943
  %v1456 = vadd.f32 %v432, %v944
  %v1457 = vadd.f32 %v433, %v945
  %v1458 = vadd.f32 %v434, %v946
  %v1459 = vadd.f32 %v435, %v947
  %v1460 = vadd.f32 %v436, %v948
  %v1461 = vadd.f32 %v437, %v949
  %v1462 = vadd.f32 %v438, %v950
  %v1463 = vadd.f32 %v439, %v951
  %v1464 = vadd.f32 %v440, %v952
  %v1465 = vadd.f32 %v441, %v953
  %v1466 = vadd.f32 %v442, %v954
  %v1467 = vadd.f32 %v443, %v955
  %v1468 = vadd.f32 %v444, %v956
  %v1469 = vadd.f32 %v445, %v957
  %v1470 = vadd.f32 %v446, %v958
  %v1471 = vadd.f32 %v447, %v959
  %v1472 = vadd.f32 %v448, %v960
  %v1473 = vadd.f32 %v449, %v961
  %v1474 = vadd.f32 %v450, %v962
  %v1475 = vadd.f32 %v451, %v963
  %v1476 = vadd.f32 %v452, %v964
  %v1477 = vadd.f32 %v453, %v965
  %v1478 = vadd.f32 %v454, %v966
  %v1479 = vadd.f32 %v455, %v967
  %v1480 = vadd.f32 %v456, %v968
  %v1481 = vadd.f32 %v457, %v969
  %v1482 = vadd.f32 %v458, %v970
  %v1483 = vadd.f32 %v459, %v971
  %v1484 = vadd.f32 %v460, %v972
  %v1485 = vadd.f32 %v461, %v973
  %v1486 = vadd.f32 %v462, %v974
  %v1487 = vadd.f32 %v463, %v975
  %v1488 = vadd.f32 %v464, %v976
  %v1489 = vadd.f32 %v465, %v977
  %v1490 = vadd.f32 %v466, %v978
  %v1491 = vadd.f32 %v467, %v979
  %v1492 = vadd.f32 %v468, %v980
  %v1493 = vadd.f32 %v469, %v981
  %v1494 = vadd.f32 %v470, %v982
  %v1495 = vadd.f32 %v471, %v983
  %v1496 = vadd.f32 %v472, %v984
  %v1497 = vadd.f32 %v473, %v985
  %v1498 = vadd.f32 %v474, %v986
  %v1499 = vadd.f32 %v475, %v987
  %v1500 = vadd.f32 %v476, %v988
  %v1501 = vadd.f32 %v477, %v989
  %v1502 = vadd.f32 %v478, %v990
  %v1503 = vadd.f32 %v479, %v991
  %v1504 = vadd.f32 %v480, %v992
  %v1505 = vadd.f32 %v481, %v993
  %v1506 = vadd.f32 %v482, %v994
  %v1507 = vadd.f32 %v483, %v995
  %v1508 = vadd.f32 %v484, %v996
  %v1509 = vadd.f32 %v485, %v997
  %v1510 = vadd.f32 %v486, %v998
  %v1511 = vadd.f32 %v487, %v999
  %v1512 = vadd.f32 %v488, %v1000
  %v1513 = vadd.f32 %v489, %v1001
  %v1514 = vadd.f32 %v490, %v1002
  %v1515 = vadd.f32 %v491, %v1003
  %v1516 = vadd.f32 %v492, %v1004
  %v1517 = vadd.f32 %v493, %v1005
  %v1518 = vadd.f32 %v494, %v1006
  %v1519 = vadd.f32 %v495, %v1007
  %v1520 = vadd.f32 %v496, %v1008
  %v1521 = vadd.f32 %v497, %v1009
  %v1522 = vadd.f32 %v498, %v1010
  %v1523 = vadd.f32 %v499, %v1011
  %v1524 = vadd.f32 %v500, %v1012
  %v1525 = vadd.f32 %v501, %v1013
  %v1526 = vadd.f32 %v502, %v1014
  %v1527 = vadd.f32 %v503, %v1015
  %v1528 = vadd.f32 %v504, %v1016
  %v1529 = vadd.f32 %v505, %v1017
  %v1530 = vadd.f32 %v506, %v1018
  %v1531 = vadd.f32 %v507, %v1019
  %v1532 = vadd.f32 %v508, %v1020
  %v1533 = vadd.f32 %v509, %v1021
  %v1534 = vadd.f32 %v510, %v1022
  %v1535 = vadd.f32 %v511, %v1023
  %v1536 = vadd.f32 %v512, %v1024
  %v1537 = vadd.f32 %v513, %v1025
  %v1538 = vadd.f32 %v514, %v1026
  %v1539 = vadd.f32 %v515, %v1027
  %v1540 = vadd.f32 %v516, %v1028
  %v1541 = vadd.f32 %v517, %v1029
  %v1542 = vadd.f32 %v518, %v1030
  %v1543 = vadd.f32 %v519, %v1031
  %v1544 = vadd.f32 %v520, %v1032
  %v1545 = vadd.f32 %v521, %v1033
  %v1546 = vadd.f32 %v522, %v1034
  %v1547 = vadd.f32 %v1035, 3.0
  %v1548 = vadd.f32 %v1036, 3.0
  %v1549 = vadd.f32 %v1037, 3.0
  %v1550 = vadd.f32 %v1038, 3.0
  %v1551 = vadd.f32 %v1039, 3.0
  %v1552 = vadd.f32 %v1040, 3.0
  %v1553 = vadd.f32 %v1041, 3.0
  %v1554 = vadd.f32 %v1042, 3.0
  %v1555 = vadd.f32 %v1043, 3.0
  %v1556 = vadd.f32 %v1044, 3.0
  %v1557 = vadd.f32 %v1045, 3.0
  %v1558 = vadd.f32 %v1046, 3.0
  %v1559 = vadd.f32 %v1047, 3.0
  %v1560 = vadd.f32 %v1048, 3.0
  %v1561 = vadd.f32 %v1049, 3.0
  %v1562 = vadd.f32 %v1050, 3.0
  %v1563 = vadd.f32 %v1051, 3.0
  %v1564 = vadd.f32 %v1052, 3.0
  %v1565 = vadd.f32 %v1053, 3.0
  %v1566 = vadd.f32 %v1054, 3.0
  %v1567 = vadd.f32 %v1055, 3.0
  %v1568 = vadd.f32 %v1056, 3.0
  %v1569 = vadd.f32 %v1057, 3.0
  %v1570 = vadd.f32 %v1058, 3.0
  %v1571 = vadd.f32 %v1059, 3.0
  %v1572 = vadd.f32 %v1060, 3.0
  %v1573 = vadd.f32 %v1061, 3.0
  %v1574 = vadd.f32 %v1062, 3.0
  %v1575 = vadd.f32 %v1063, 3.0
  %v1576 = vadd.f32 %v1064, 3.0
  %v1577 = vadd.f32 %v1065, 3.0
  %v1578 = vadd.f32 %v1066, 3.0
  %v1579 = vadd.f32 %v1067, 3.0
  %v1580 = vadd.f32 %v1068, 3.0
  %v1581 = vadd.f32 %v1069, 3.0
  %v1582 = vadd.f32 %v1070, 3.0
  %v1583 = vadd.f32 %v1071, 3.0
  %v1584 = vadd.f32 %v1072, 3.0
  %v1585 = vadd.f32 %v1073, 3.0
  %v1586 = vadd.f32 %v1074, 3.0
  %v1587 = vadd.f32 %v1075, 3.0
  %v1588 = vadd.f32 %v1076, 3.0
  %v1589 = vadd.f32 %v1077, 3.0
  %v1590 = vadd.f32 %v1078, 3.0
  %v1591 = vadd.f32 %v1079, 3.0
  %v1592 = vadd.f32 %v1080, 3.0
  %v1593 = vadd.f32 %v1081, 3.0
  %v1594 = vadd.f32 %v1082, 3.0
  %v1595 = vadd.f32 %v1083, 3.0
  %v1596 = vadd.f32 %v1084, 3.0
  %v1597 = vadd.f32 %v1085, 3.0
  %v1598 = vadd.f32 %v1086, 3.0
  %v1599 = vadd.f32 %v1087, 3.0
  %v1600 = vadd.f32 %v1088, 3.0
  %v1601 = vadd.f32 %v1089, 3.0
  %v1602 = vadd.f32 %v1090, 3.0
  %v1603 = vadd.f32 %v1091, 3.0
  %v1604 = vadd.f32 %v1092, 3.0
  %v1605 = vadd.f32 %v1093, 3.0
  %v1606 = vadd.f32 %v1094, 3.0
  %v1607 = vadd.f32 %v1095, 3.0
  %v1608 = vadd.f32 %v1096, 3.0
  %v1609 = vadd.f32 %v1097, 3.0
  %v1610 = vadd.f32 %v1098, 3.0
  %v1611 = vadd.f32 %v1099, 3.0
  %v1612 = vadd.f32 %v1100, 3.0
  %v1613 = vadd.f32 %v1101, 3.0
  %v1614 = vadd.f32 %v1102, 3.0
  %v1615 = vadd.f32 %v1103, 3.0
  %v1616 = vadd.f32 %v1104, 3.0
  %v1617 = vadd.f32 %v1105, 3.0
  %v1618 = vadd.f32 %v1106, 3.0
  %v1619 = vadd.f32 %v1107, 3.0
  %v1620 = vadd.f32 %v1108, 3.0
  %v1621 = vadd.f32 %v1109, 3.0
  %v1622 = vadd.f32 %v1110, 3.0
  %v1623 = vadd.f32 %v1111, 3.0
  %v1624 = vadd.f32 %v1112, 3.0
  %v1625 = vadd.f32 %v1113, 3.0
  %v1626 = vadd.f32 %v1114, 3.0
  %v1627 = vadd.f32 %v1115, 3.0
  %v1628 = vadd.f32 %v1116, 3.0
  %v1629 = vadd.f32 %v1117, 3.0
  %v1630 = vadd.f32 %v1118, 3.0
  %v1631 = vadd.f32 %v1119, 3.0
  %v1632 = vadd.f32 %v1120, 3.0
  %v1633 = vadd.f32 %v1121, 3.0
  %v1634 = vadd.f32 %v1122, 3.0
  %v1635 = vadd.f32 %v1123, 3.0
  %v1636 = vadd.f32 %v1124, 3.0
  %v1637 = vadd.f32 %v1125, 3.0
  %v1638 = vadd.f32 %v1126, 3.0
  %v1639 = vadd.f32 %v1127, 3.0
  %v1640 = vadd.f32 %v1128, 3.0
  %v1641 = vadd.f32 %v1129, 3.0
  %v1642 = vadd.f32 %v1130, 3.0
  %v1643 = vadd.f32 %v1131, 3.0
  %v1644 = vadd.f32 %v1132, 3.0
  %v1645 = vadd.f32 %v1133, 3.0
  %v1646 = vadd.f32 %v1134, 3.0
  %v1647 = vadd.f32 %v1135, 3.0
  %v1648 = vadd.f32 %v1136, 3.0
  %v1649 = vadd.f32 %v1137, 3.0
  %v1650 = vadd.f32 %v1138, 3.0
  %v1651 = vadd.f32 %v1139, 3.0
  %v1652 = vadd.f32 %v1140, 3.0
  %v1653 = vadd.f32 %v1141, 3.0
  %v1654 = vadd.f32 %v1142, 3.0
  %v1655 = vadd.f32 %v1143, 3.0
  %v1656 = vadd.f32 %v1144, 3.0
  %v1657 = vadd.f32 %v1145, 3.0
  %v1658 = vadd.f32 %v1146, 3.0
  %v1659 = vadd.f32 %v1147, 3.0
  %v1660 = vadd.f32 %v1148, 3.0
  %v1661 = vadd.f32 %v1149, 3.0
  %v1662 = vadd.f32 %v1150, 3.0
  %v1663 = vadd.f32 %v1151, 3.0
  %v1664 = vadd.f32 %v1152, 3.0
  %v1665 = vadd.f32 %v1153, 3.0
  %v1666 = vadd.f32 %v1154, 3.0
  %v1667 = vadd.f32 %v1155, 3.0
  %v1668 = vadd.f32 %v1156, 3.0
  %v1669 = vadd.f32 %v1157, 3.0
  %v1670 = vadd.f32 %v1158, 3.0
  %v1671 = vadd.f32 %v1159, 3.0
  %v1672 = vadd.f32 %v1160, 3.0
  %v1673 = vadd.f32 %v1161, 3.0
  %v1674 = vadd.f32 %v1162, 3.0
  %v1675 = vadd.f32 %v1163, 3.0
  %v1676 = vadd.f32 %v1164, 3.0
  %v1677 = vadd.f32 %v1165, 3.0
  %v1678 = vadd.f32 %v1166, 3.0
  %v1679 = vadd.f32 %v1167, 3.0
  %v1680 = vadd.f32 %v1168, 3.0
  %v1681 = vadd.f32 %v1169, 3.0
  %v1682 = vadd.f32 %v1170, 3.0
  %v1683 = vadd.f32 %v1171, 3.0
  %v1684 = vadd.f32 %v1172, 3.0
  %v1685 = vadd.f32 %v1173, 3.0
  %v1686 = vadd.f32 %v1174, 3.0
  %v1687 = vadd.f32 %v1175, 3.0
  %v1688 = vadd.f32 %v1176, 3.0
  %v1689 = vadd.f32 %v1177, 3.0
  %v1690 = vadd.f32 %v1178, 3.0
  %v1691 = vadd.f32 %v1179, 3.0
  %v1692 = vadd.f32 %v1180, 3.0
  %v1693 = vadd.f32 %v1181, 3.0
  %v1694 = vadd.f32 %v1182, 3.0
  %v1695 = vadd.f32 %v1183, 3.0
  %v1696 = vadd.f32 %v1184, 3.0
  %v1697 = vadd.f32 %v1185, 3.0
  %v1698 = vadd.f32 %v1186, 3.0
  %v1699 = vadd.f32 %v1187, 3.0
  %v1700 = vadd.f32 %v1188, 3.0
  %v1701 = vadd.f32 %v1189, 3.0
  %v1702 = vadd.f32 %v1190, 3.0
  %v1703 = vadd.f32 %v1191, 3.0
  %v1704 = vadd.f32 %v1192, 3.0
  %v1705 = vadd.f32 %v1193, 3.0
  %v1706 = vadd.f32 %v1194, 3.0
  %v1707 = vadd.f32 %v1195, 3.0
  %v1708 = vadd.f32 %v1196, 3.0
  %v1709 = vadd.f32 %v1197, 3.0
  %v1710 = vadd.f32 %v1198, 3.0
  %v1711 = vadd.f32 %v1199, 3.0
  %v1712 = vadd.f32 %v1200, 3.0
  %v1713 = vadd.f32 %v1201, 3.0
  %v1714 = vadd.f32 %v1202, 3.0
  %v1715 = vadd.f32 %v1203, 3.0
  %v1716 = vadd.f32 %v1204, 3.0
  %v1717 = vadd.f32 %v1205, 3.0
  %v1718 = vadd.f32 %v1206, 3.0
  %v1719 = vadd.f32 %v1207, 3.0
  %v1720 = vadd.f32 %v1208, 3.0
  %v1721 = vadd.f32 %v1209, 3.0
  %v1722 = vadd.f32 %v1210, 3.0
  %v1723 = vadd.f32 %v1211, 3.0
  %v1724 = vadd.f32 %v1212, 3.0
  %v1725 = vadd.f32 %v1213, 3.0
  %v1726 = vadd.f32 %v1214, 3.0
  %v1727 = vadd.f32 %v1215, 3.0
  %v1728 = vadd.f32 %v1216, 3.0
  %v1729 = vadd.f32 %v1217, 3.0
  %v1730 = vadd.f32 %v1218, 3.0
  %v1731 = vadd.f32 %v1219, 3.0
  %v1732 = vadd.f32 %v1220, 3.0
  %v1733 = vadd.f32 %v1221, 3.0
  %v1734 = vadd.f32 %v1222, 3.0
  %v1735 = vadd.f32 %v1223, 3.0
  %v1736 = vadd.f32 %v1224, 3.0
  %v1737 = vadd.f32 %v1225, 3.0
  %v1738 = vadd.f32 %v1226, 3.0
  %v1739 = vadd.f32 %v1227, 3.0
  %v1740 = vadd.f32 %v1228, 3.0
  %v1741 = vadd.f32 %v1229, 3.0
  %v1742 = vadd.f32 %v1230, 3.0
  %v1743 = vadd.f32 %v1231, 3.0
  %v1744 = vadd.f32 %v1232, 3.0
  %v1745 = vadd.f32 %v1233, 3.0
  %v1746 = vadd.f32 %v1234, 3.0
  %v1747 = vadd.f32 %v1235, 3.0
  %v1748 = vadd.f32 %v1236, 3.0
  %v1749 = vadd.f32 %v1237, 3.0
  %v1750 = vadd.f32 %v1238, 3.0
  %v1751 = vadd.f32 %v1239, 3.0
  %v1752 = vadd.f32 %v1240, 3.0
  %v1753 = vadd.f32 %v1241, 3.0
  %v1754 = vadd.f32 %v1242, 3.0
  %v1755 = vadd.f32 %v1243, 3.0
  %v1756 = vadd.f32 %v1244, 3.0
  %v1757 = vadd.f32 %v1245, 3.0
  %v1758 = vadd.f32 %v1246, 3.0
  %v1759 = vadd.f32 %v1247, 3.0
  %v1760 = vadd.f32 %v1248, 3.0
  %v1761 = vadd.f32 %v1249, 3.0
  %v1762 = vadd.f32 %v1250, 3.0
  %v1763 = vadd.f32 %v1251, 3.0
  %v1764 = vadd.f32 %v1252, 3.0
  %v1765 = vadd.f32 %v1253, 3.0
  %v1766 = vadd.f32 %v1254, 3.0
  %v1767 = vadd.f32 %v1255, 3.0
  %v1768 = vadd.f32 %v1256, 3.0
  %v1769 = vadd.f32 %v1257, 3.0
  %v1770 = vadd.f32 %v1258, 3.0
  %v1771 = vadd.f32 %v1259, 3.0
  %v1772 = vadd.f32 %v1260, 3.0
  %v1773 = vadd.f32 %v1261, 3.0
  %v1774 = vadd.f32 %v1262, 3.0
  %v1775 = vadd.f32 %v1263, 3.0
  %v1776 = vadd.f32 %v1264, 3.0
  %v1777 = vadd.f32 %v1265, 3.0
  %v1778 = vadd.f32 %v1266, 3.0
  %v1779 = vadd.f32 %v1267, 3.0
  %v1780 = vadd.f32 %v1268, 3.0
  %v1781 = vadd.f32 %v1269, 3.0
  %v1782 = vadd.f32 %v1270, 3.0
  %v1783 = vadd.f32 %v1271, 3.0
  %v1784 = vadd.f32 %v1272, 3.0
  %v1785 = vadd.f32 %v1273, 3.0
  %v1786 = vadd.f32 %v1274, 3.0
  %v1787 = vadd.f32 %v1275, 3.0
  %v1788 = vadd.f32 %v1276, 3.0
  %v1789 = vadd.f32 %v1277, 3.0
  %v1790 = vadd.f32 %v1278, 3.0
  %v1791 = vadd.f32 %v1279, 3.0
  %v1792 = vadd.f32 %v1280, 3.0
  %v1793 = vadd.f32 %v1281, 3.0
  %v1794 = vadd.f32 %v1282, 3.0
  %v1795 = vadd.f32 %v1283, 3.0
  %v1796 = vadd.f32 %v1284, 3.0
  %v1797 = vadd.f32 %v1285, 3.0
  %v1798 = vadd.f32 %v1286, 3.0
  %v1799 = vadd.f32 %v1287, 3.0
  %v1800 = vadd.f32 %v1288, 3.0
  %v1801 = vadd.f32 %v1289, 3.0
  %v1802 = vadd.f32 %v1290, 3.0
  %v1803 = vadd.f32 %v1291, 3.0
  %v1804 = vadd.f32 %v1292, 3.0
  %v1805 = vadd.f32 %v1293, 3.0
  %v1806 = vadd.f32 %v1294, 3.0
  %v1807 = vadd.f32 %v1295, 3.0
  %v1808 = vadd.f32 %v1296, 3.0
  %v1809 = vadd.f32 %v1297, 3.0
  %v1810 = vadd.f32 %v1298, 3.0
  %v1811 = vadd.f32 %v1299, 3.0
  %v1812 = vadd.f32 %v1300, 3.0
  %v1813 = vadd.f32 %v1301, 3.0
  %v1814 = vadd.f32 %v1302, 3.0
  %v1815 = vadd.f32 %v1303, 3.0
  %v1816 = vadd.f32 %v1304, 3.0
  %v1817 = vadd.f32 %v1305, 3.0
  %v1818 = vadd.f32 %v1306, 3.0
  %v1819 = vadd.f32 %v1307, 3.0
  %v1820 = vadd.f32 %v1308, 3.0
  %v1821 = vadd.f32 %v1309, 3.0
  %v1822 = vadd.f32 %v1310, 3.0
  %v1823 = vadd.f32 %v1311, 3.0
  %v1824 = vadd.f32 %v1312, 3.0
  %v1825 = vadd.f32 %v1313, 3.0
  %v1826 = vadd.f32 %v1314, 3.0
  %v1827 = vadd.f32 %v1315, 3.0
  %v1828 = vadd.f32 %v1316, 3.0
  %v1829 = vadd.f32 %v1317, 3.0
  %v1830 = vadd.f32 %v1318, 3.0
  %v1831 = vadd.f32 %v1319, 3.0
  %v1832 = vadd.f32 %v1320, 3.0
  %v1833 = vadd.f32 %v1321, 3.0
  %v1834 = vadd.f32 %v1322, 3.0
  %v1835 = vadd.f32 %v1323, 3.0
  %v1836 = vadd.f32 %v1324, 3.0
  %v1837 = vadd.f32 %v1325, 3.0
  %v1838 = vadd.f32 %v1326, 3.0
  %v1839 = vadd.f32 %v1327, 3.0
  %v1840 = vadd.f32 %v1328, 3.0
  %v1841 = vadd.f32 %v1329, 3.0
  %v1842 = vadd.f32 %v1330, 3.0
  %v1843 = vadd.f32 %v1331, 3.0
  %v1844 = vadd.f32 %v1332, 3.0
  %v1845 = vadd.f32 %v1333, 3.0
  %v1846 = vadd.f32 %v1334, 3.0
  %v1847 = vadd.f32 %v1335, 3.0
  %v1848 = vadd.f32 %v1336, 3.0
  %v1849 = vadd.f32 %v1337, 3.0
  %v1850 = vadd.f32 %v1338, 3.0
  %v1851 = vadd.f32 %v1339, 3.0
  %v1852 = vadd.f32 %v1340, 3.0
  %v1853 = vadd.f32 %v1341, 3.0
  %v1854 = vadd.f32 %v1342, 3.0
  %v1855 = vadd.f32 %v1343, 3.0
  %v1856 = vadd.f32 %v1344, 3.0
  %v1857 = vadd.f32 %v1345, 3.0
  %v1858 = vadd.f32 %v1346, 3.0
  %v1859 = vadd.f32 %v1347, 3.0
  %v1860 = vadd.f32 %v1348, 3.0
  %v1861 = vadd.f32 %v1349, 3.0
  %v1862 = vadd.f32 %v1350, 3.0
  %v1863 = vadd.f32 %v1351, 3.0
  %v1864 = vadd.f32 %v1352, 3.0
  %v1865 = vadd.f32 %v1353, 3.0
  %v1866 = vadd.f32 %v1354, 3.0
  %v1867 = vadd.f32 %v1355, 3.0
  %v1868 = vadd.f32 %v1356, 3.0
  %v1869 = vadd.f32 %v1357, 3.0
  %v1870 = vadd.f32 %v1358, 3.0
  %v1871 = vadd.f32 %v1359, 3.0
  %v1872 = vadd.f32 %v1360, 3.0
  %v1873 = vadd.f32 %v1361, 3.0
  %v1874 = vadd.f32 %v1362, 3.0
  %v1875 = vadd.f32 %v1363, 3.0
  %v1876 = vadd.f32 %v1364, 3.0
  %v1877 = vadd.f32 %v1365, 3.0
  %v1878 = vadd.f32 %v1366, 3.0
  %v1879 = vadd.f32 %v1367, 3.0
  %v1880 = vadd.f32 %v1368, 3.0
  %v1881 = vadd.f32 %v1369, 3.0
  %v1882 = vadd.f32 %v1370, 3.0
  %v1883 = vadd.f32 %v1371, 3.0
  %v1884 = vadd.f32 %v1372, 3.0
  %v1885 = vadd.f32 %v1373, 3.0
  %v1886 = vadd.f32 %v1374, 3.0
  %v1887 = vadd.f32 %v1375, 3.0
  %v1888 = vadd.f32 %v1376, 3.0
  %v1889 = vadd.f32 %v1377, 3.0
  %v1890 = vadd.f32 %v1378, 3.0
  %v1891 = vadd.f32 %v1379, 3.0
  %v1892 = vadd.f32 %v1380, 3.0
  %v1893 = vadd.f32 %v1381, 3.0
  %v1894 = vadd.f32 %v1382, 3.0
  %v1895 = vadd.f32 %v1383, 3.0
  %v1896 = vadd.f32 %v1384, 3.0
  %v1897 = vadd.f32 %v1385, 3.0
  %v1898 = vadd.f32 %v1386, 3.0
  %v1899 = vadd.f32 %v1387, 3.0
  %v1900 = vadd.f32 %v1388, 3.0
  %v1901 = vadd.f32 %v1389, 3.0
  %v1902 = vadd.f32 %v1390, 3.0
  %v1903 = vadd.f32 %v1391, 3.0
  %v1904 = vadd.f32 %v1392, 3.0
  %v1905 = vadd.f32 %v1393, 3.0
  %v1906 = vadd.f32 %v1394, 3.0
  %v1907 = vadd.f32 %v1395, 3.0
  %v1908 = vadd.f32 %v1396, 3.0
  %v1909 = vadd.f32 %v1397, 3.0
  %v1910 = vadd.f32 %v1398, 3.0
  %v1911 = vadd.f32 %v1399, 3.0
  %v1912 = vadd.f32 %v1400, 3.0
  %v1913 = vadd.f32 %v1401, 3.0
  %v1914 = vadd.f32 %v1402, 3.0
  %v1915 = vadd.f32 %v1403, 3.0
  %v1916 = vadd.f32 %v1404, 3.0
  %v1917 = vadd.f32 %v1405, 3.0
  %v1918 = vadd.f32 %v1406, 3.0
  %v1919 = vadd.f32 %v1407, 3.0
  %v1920 = vadd.f32 %v1408, 3.0
  %v1921 = vadd.f32 %v1409, 3.0
  %v1922 = vadd.f32 %v1410, 3.0
  %v1923 = vadd.f32 %v1411, 3.0
  %v1924 = vadd.f32 %v1412, 3.0
  %v1925 = vadd.f32 %v1413, 3.0
  %v1926 = vadd.f32 %v1414, 3.0
  %v1927 = vadd.f32 %v1415, 3.0
  %v1928 = vadd.f32 %v1416, 3.0
  %v1929 = vadd.f32 %v1417, 3.0
  %v1930 = vadd.f32 %v1418, 3.0
  %v1931 = vadd.f32 %v1419, 3.0
  %v1932 = vadd.f32 %v1420, 3.0
  %v1933 = vadd.f32 %v1421, 3.0
  %v1934 = vadd.f32 %v1422, 3.0
  %v1935 = vadd.f32 %v1423, 3.0
  %v1936 = vadd.f32 %v1424, 3.0
  %v1937 = vadd.f32 %v1425, 3.0
  %v1938 = vadd.f32 %v1426, 3.0
  %v1939 = vadd.f32 %v1427, 3.0
  %v1940 = vadd.f32 %v1428, 3.0
  %v1941 = vadd.f32 %v1429, 3.0
  %v1942 = vadd.f32 %v1430, 3.0
  %v1943 = vadd.f32 %v1431, 3.0
  %v1944 = vadd.f32 %v1432, 3.0
  %v1945 = vadd.f32 %v1433, 3.0
  %v1946 = vadd.f32 %v1434, 3.0
  %v1947 = vadd.f32 %v1435, 3.0
  %v1948 = vadd.f32 %v1436, 3.0
  %v1949 = vadd.f32 %v1437, 3.0
  %v1950 = vadd.f32 %v1438, 3.0
  %v1951 = vadd.f32 %v1439, 3.0
  %v1952 = vadd.f32 %v1440, 3.0
  %v1953 = vadd.f32 %v1441, 3.0
  %v1954 = vadd.f32 %v1442, 3.0
  %v1955 = vadd.f32 %v1443, 3.0
  %v1956 = vadd.f32 %v1444, 3.0
  %v1957 = vadd.f32 %v1445, 3.0
  %v1958 = vadd.f32 %v1446, 3.0
  %v1959 = vadd.f32 %v1447, 3.0
  %v1960 = vadd.f32 %v1448, 3.0
  %v1961 = vadd.f32 %v1449, 3.0
  %v1962 = vadd.f32 %v1450, 3.0
  %v1963 = vadd.f32 %v1451, 3.0
  %v1964 = vadd.f32 %v1452, 3.0
  %v1965 = vadd.f32 %v1453, 3.0
  %v1966 = vadd.f32 %v1454, 3.0
  %v1967 = vadd.f32 %v1455, 3.0
  %v1968 = vadd.f32 %v1456, 3.0
  %v1969 = vadd.f32 %v1457, 3.0
  %v1970 = vadd.f32 %v1458, 3.0
  %v1971 = vadd.f32 %v1459, 3.0
  %v1972 = vadd.f32 %v1460, 3.0
  %v1973 = vadd.f32 %v1461, 3.0
  %v1974 = vadd.f32 %v1462, 3.0
  %v1975 = vadd.f32 %v1463, 3.0
  %v1976 = vadd.f32 %v1464, 3.0
  %v1977 = vadd.f32 %v1465, 3.0
  %v1978 = vadd.f32 %v1466, 3.0
  %v1979 = vadd.f32 %v1467, 3.0
  %v1980 = vadd.f32 %v1468, 3.0
  %v1981 = vadd.f32 %v1469, 3.0
  %v1982 = vadd.f32 %v1470, 3.0
  %v1983 = vadd.f32 %v1471, 3.0
  %v1984 = vadd.f32 %v1472, 3.0
  %v1985 = vadd.f32 %v1473, 3.0
  %v1986 = vadd.f32 %v1474, 3.0
  %v1987 = vadd.f32 %v1475, 3.0
  %v1988 = vadd.f32 %v1476, 3.0
  %v1989 = vadd.f32 %v1477, 3.0
  %v1990 = vadd.f32 %v1478, 3.0
  %v1991 = vadd.f32 %v1479, 3.0
  %v1992 = vadd.f32 %v1480, 3.0
  %v1993 = vadd.f32 %v1481, 3.0
  %v1994 = vadd.f32 %v1482, 3.0
  %v1995 = vadd.f32 %v1483, 3.0
  %v1996 = vadd.f32 %v1484, 3.0
  %v1997 = vadd.f32 %v1485, 3.0
  %v1998 = vadd.f32 %v1486, 3.0
  %v1999 = vadd.f32 %v1487, 3.0
  %v2000 = vadd.f32 %v1488, 3.0
  %v2001 = vadd.f32 %v1489, 3.0
  %v2002 = vadd.f32 %v1490, 3.0
  %v2003 = vadd.f32 %v1491, 3.0
  %v2004 = vadd.f32 %v1492, 3.0
  %v2005 = vadd.f32 %v1493, 3.0
  %v2006 = vadd.f32 %v1494, 3.0
  %v2007 = vadd.f32 %v1495, 3.0
  %v2008 = vadd.f32 %v1496, 3.0
  %v2009 = vadd.f32 %v1497, 3.0
  %v2010 = vadd.f32 %v1498, 3.0
  %v2011 = vadd.f32 %v1499, 3.0
  %v2012 = vadd.f32 %v1500, 3.0
  %v2013 = vadd.f32 %v1501, 3.0
  %v2014 = vadd.f32 %v1502, 3.0
  %v2015 = vadd.f32 %v1503, 3.0
  %v2016 = vadd.f32 %v1504, 3.0
  %v2017 = vadd.f32 %v1505, 3.0
  %v2018 = vadd.f32 %v1506, 3.0
  %v2019 = vadd.f32 %v1507, 3.0
  %v2020 = vadd.f32 %v1508, 3.0
  %v2021 = vadd.f32 %v1509, 3.0
  %v2022 = vadd.f32 %v1510, 3.0
  %v2023 = vadd.f32 %v1511, 3.0
  %v2024 = vadd.f32 %v1512, 3.0
  %v2025 = vadd.f32 %v1513, 3.0
  %v2026 = vadd.f32 %v1514, 3.0
  %v2027 = vadd.f32 %v1515, 3.0
  %v2028 = vadd.f32 %v1516, 3.0
  %v2029 = vadd.f32 %v1517, 3.0
  %v2030 = vadd.f32 %v1518, 3.0
  %v2031 = vadd.f32 %v1519, 3.0
  %v2032 = vadd.f32 %v1520, 3.0
  %v2033 = vadd.f32 %v1521, 3.0
  %v2034 = vadd.f32 %v1522, 3.0
  %v2035 = vadd.f32 %v1523, 3.0
  %v2036 = vadd.f32 %v1524, 3.0
  %v2037 = vadd.f32 %v1525, 3.0
  %v2038 = vadd.f32 %v1526, 3.0
  %v2039 = vadd.f32 %v1527, 3.0
  %v2040 = vadd.f32 %v1528, 3.0
  %v2041 = vadd.f32 %v1529, 3.0
  %v2042 = vadd.f32 %v1530, 3.0
  %v2043 = vadd.f32 %v1531, 3.0
  %v2044 = vadd.f32 %v1532, 3.0
  %v2045 = vadd.f32 %v1533, 3.0
  %v2046 = vadd.f32 %v1534, 3.0
  %v2047 = vadd.f32 %v1535, 3.0
  %v2048 = vadd.f32 %v1536, 3.0
  %v2049 = vadd.f32 %v1537, 3.0
  %v2050 = vadd.f32 %v1538, 3.0
  %v2051 = vadd.f32 %v1539, 3.0
  %v2052 = vadd.f32 %v1540, 3.0
  %v2053 = vadd.f32 %v1541, 3.0
  %v2054 = vadd.f32 %v1542, 3.0
  %v2055 = vadd.f32 %v1543, 3.0
  %v2056 = vadd.f32 %v1544, 3.0
  %v2057 = vadd.f32 %v1545, 3.0
  %v2058 = vadd.f32 %v1546, 3.0
  %v2059 = vmax.f32 %v1547, 0.0
  %v2060 = vmax.f32 %v1548, 0.0
  %v2061 = vmax.f32 %v1549, 0.0
  %v2062 = vmax.f32 %v1550, 0.0
  %v2063 = vmax.f32 %v1551, 0.0
  %v2064 = vmax.f32 %v1552, 0.0
  %v2065 = vmax.f32 %v1553, 0.0
  %v2066 = vmax.f32 %v1554, 0.0
  %v2067 = vmax.f32 %v1555, 0.0
  %v2068 = vmax.f32 %v1556, 0.0
  %v2069 = vmax.f32 %v1557, 0.0
  %v2070 = vmax.f32 %v1558, 0.0
  %v2071 = vmax.f32 %v1559, 0.0
  %v2072 = vmax.f32 %v1560, 0.0
  %v2073 = vmax.f32 %v1561, 0.0
  %v2074 = vmax.f32 %v1562, 0.0
  %v2075 = vmax.f32 %v1563, 0.0
  %v2076 = vmax.f32 %v1564, 0.0
  %v2077 = vmax.f32 %v1565, 0.0
  %v2078 = vmax.f32 %v1566, 0.0
  %v2079 = vmax.f32 %v1567, 0.0
  %v2080 = vmax.f32 %v1568, 0.0
  %v2081 = vmax.f32 %v1569, 0.0
  %v2082 = vmax.f32 %v1570, 0.0
  %v2083 = vmax.f32 %v1571, 0.0
  %v2084 = vmax.f32 %v1572, 0.0
  %v2085 = vmax.f32 %v1573, 0.0
  %v2086 = vmax.f32 %v1574, 0.0
  %v2087 = vmax.f32 %v1575, 0.0
  %v2088 = vmax.f32 %v1576, 0.0
  %v2089 = vmax.f32 %v1577, 0.0
  %v2090 = vmax.f32 %v1578, 0.0
  %v2091 = vmax.f32 %v1579, 0.0
  %v2092 = vmax.f32 %v1580, 0.0
  %v2093 = vmax.f32 %v1581, 0.0
  %v2094 = vmax.f32 %v1582, 0.0
  %v2095 = vmax.f32 %v1583, 0.0
  %v2096 = vmax.f32 %v1584, 0.0
  %v2097 = vmax.f32 %v1585, 0.0
  %v2098 = vmax.f32 %v1586, 0.0
  %v2099 = vmax.f32 %v1587, 0.0
  %v2100 = vmax.f32 %v1588, 0.0
  %v2101 = vmax.f32 %v1589, 0.0
  %v2102 = vmax.f32 %v1590, 0.0
  %v2103 = vmax.f32 %v1591, 0.0
  %v2104 = vmax.f32 %v1592, 0.0
  %v2105 = vmax.f32 %v1593, 0.0
  %v2106 = vmax.f32 %v1594, 0.0
  %v2107 = vmax.f32 %v1595, 0.0
  %v2108 = vmax.f32 %v1596, 0.0
  %v2109 = vmax.f32 %v1597, 0.0
  %v2110 = vmax.f32 %v1598, 0.0
  %v2111 = vmax.f32 %v1599, 0.0
  %v2112 = vmax.f32 %v1600, 0.0
  %v2113 = vmax.f32 %v1601, 0.0
  %v2114 = vmax.f32 %v1602, 0.0
  %v2115 = vmax.f32 %v1603, 0.0
  %v2116 = vmax.f32 %v1604, 0.0
  %v2117 = vmax.f32 %v1605, 0.0
  %v2118 = vmax.f32 %v1606, 0.0
  %v2119 = vmax.f32 %v1607, 0.0
  %v2120 = vmax.f32 %v1608, 0.0
  %v2121 = vmax.f32 %v1609, 0.0
  %v2122 = vmax.f32 %v1610, 0.0
  %v2123 = vmax.f32 %v1611, 0.0
  %v2124 = vmax.f32 %v1612, 0.0
  %v2125 = vmax.f32 %v1613, 0.0
  %v2126 = vmax.f32 %v1614, 0.0
  %v2127 = vmax.f32 %v1615, 0.0
  %v2128 = vmax.f32 %v1616, 0.0
  %v2129 = vmax.f32 %v1617, 0.0
  %v2130 = vmax.f32 %v1618, 0.0
  %v2131 = vmax.f32 %v1619, 0.0
  %v2132 = vmax.f32 %v1620, 0.0
  %v2133 = vmax.f32 %v1621, 0.0
  %v2134 = vmax.f32 %v1622, 0.0
  %v2135 = vmax.f32 %v1623, 0.0
  %v2136 = vmax.f32 %v1624, 0.0
  %v2137 = vmax.f32 %v1625, 0.0
  %v2138 = vmax.f32 %v1626, 0.0
  %v2139 = vmax.f32 %v1627, 0.0
  %v2140 = vmax.f32 %v1628, 0.0
  %v2141 = vmax.f32 %v1629, 0.0
  %v2142 = vmax.f32 %v1630, 0.0
  %v2143 = vmax.f32 %v1631, 0.0
  %v2144 = vmax.f32 %v1632, 0.0
  %v2145 = vmax.f32 %v1633, 0.0
  %v2146 = vmax.f32 %v1634, 0.0
  %v2147 = vmax.f32 %v1635, 0.0
  %v2148 = vmax.f32 %v1636, 0.0
  %v2149 = vmax.f32 %v1637, 0.0
  %v2150 = vmax.f32 %v1638, 0.0
  %v2151 = vmax.f32 %v1639, 0.0
  %v2152 = vmax.f32 %v1640, 0.0
  %v2153 = vmax.f32 %v1641, 0.0
  %v2154 = vmax.f32 %v1642, 0.0
  %v2155 = vmax.f32 %v1643, 0.0
  %v2156 = vmax.f32 %v1644, 0.0
  %v2157 = vmax.f32 %v1645, 0.0
  %v2158 = vmax.f32 %v1646, 0.0
  %v2159 = vmax.f32 %v1647, 0.0
  %v2160 = vmax.f32 %v1648, 0.0
  %v2161 = vmax.f32 %v1649, 0.0
  %v2162 = vmax.f32 %v1650, 0.0
  %v2163 = vmax.f32 %v1651, 0.0
  %v2164 = vmax.f32 %v1652, 0.0
  %v2165 = vmax.f32 %v1653, 0.0
  %v2166 = vmax.f32 %v1654, 0.0
  %v2167 = vmax.f32 %v1655, 0.0
  %v2168 = vmax.f32 %v1656, 0.0
  %v2169 = vmax.f32 %v1657, 0.0
  %v2170 = vmax.f32 %v1658, 0.0
  %v2171 = vmax.f32 %v1659, 0.0
  %v2172 = vmax.f32 %v1660, 0.0
  %v2173 = vmax.f32 %v1661, 0.0
  %v2174 = vmax.f32 %v1662, 0.0
  %v2175 = vmax.f32 %v1663, 0.0
  %v2176 = vmax.f32 %v1664, 0.0
  %v2177 = vmax.f32 %v1665, 0.0
  %v2178 = vmax.f32 %v1666, 0.0
  %v2179 = vmax.f32 %v1667, 0.0
  %v2180 = vmax.f32 %v1668, 0.0
  %v2181 = vmax.f32 %v1669, 0.0
  %v2182 = vmax.f32 %v1670, 0.0
  %v2183 = vmax.f32 %v1671, 0.0
  %v2184 = vmax.f32 %v1672, 0.0
  %v2185 = vmax.f32 %v1673, 0.0
  %v2186 = vmax.f32 %v1674, 0.0
  %v2187 = vmax.f32 %v1675, 0.0
  %v2188 = vmax.f32 %v1676, 0.0
  %v2189 = vmax.f32 %v1677, 0.0
  %v2190 = vmax.f32 %v1678, 0.0
  %v2191 = vmax.f32 %v1679, 0.0
  %v2192 = vmax.f32 %v1680, 0.0
  %v2193 = vmax.f32 %v1681, 0.0
  %v2194 = vmax.f32 %v1682, 0.0
  %v2195 = vmax.f32 %v1683, 0.0
  %v2196 = vmax.f32 %v1684, 0.0
  %v2197 = vmax.f32 %v1685, 0.0
  %v2198 = vmax.f32 %v1686, 0.0
  %v2199 = vmax.f32 %v1687, 0.0
  %v2200 = vmax.f32 %v1688, 0.0
  %v2201 = vmax.f32 %v1689, 0.0
  %v2202 = vmax.f32 %v1690, 0.0
  %v2203 = vmax.f32 %v1691, 0.0
  %v2204 = vmax.f32 %v1692, 0.0
  %v2205 = vmax.f32 %v1693, 0.0
  %v2206 = vmax.f32 %v1694, 0.0
  %v2207 = vmax.f32 %v1695, 0.0
  %v2208 = vmax.f32 %v1696, 0.0
  %v2209 = vmax.f32 %v1697, 0.0
  %v2210 = vmax.f32 %v1698, 0.0
  %v2211 = vmax.f32 %v1699, 0.0
  %v2212 = vmax.f32 %v1700, 0.0
  %v2213 = vmax.f32 %v1701, 0.0
  %v2214 = vmax.f32 %v1702, 0.0
  %v2215 = vmax.f32 %v1703, 0.0
  %v2216 = vmax.f32 %v1704, 0.0
  %v2217 = vmax.f32 %v1705, 0.0
  %v2218 = vmax.f32 %v1706, 0.0
  %v2219 = vmax.f32 %v1707, 0.0
  %v2220 = vmax.f32 %v1708, 0.0
  %v2221 = vmax.f32 %v1709, 0.0
  %v2222 = vmax.f32 %v1710, 0.0
  %v2223 = vmax.f32 %v1711, 0.0
  %v2224 = vmax.f32 %v1712, 0.0
  %v2225 = vmax.f32 %v1713, 0.0
  %v2226 = vmax.f32 %v1714, 0.0
  %v2227 = vmax.f32 %v1715, 0.0
  %v2228 = vmax.f32 %v1716, 0.0
  %v2229 = vmax.f32 %v1717, 0.0
  %v2230 = vmax.f32 %v1718, 0.0
  %v2231 = vmax.f32 %v1719, 0.0
  %v2232 = vmax.f32 %v1720, 0.0
  %v2233 = vmax.f32 %v1721, 0.0
  %v2234 = vmax.f32 %v1722, 0.0
  %v2235 = vmax.f32 %v1723, 0.0
  %v2236 = vmax.f32 %v1724, 0.0
  %v2237 = vmax.f32 %v1725, 0.0
  %v2238 = vmax.f32 %v1726, 0.0
  %v2239 = vmax.f32 %v1727, 0.0
  %v2240 = vmax.f32 %v1728, 0.0
  %v2241 = vmax.f32 %v1729, 0.0
  %v2242 = vmax.f32 %v1730, 0.0
  %v2243 = vmax.f32 %v1731, 0.0
  %v2244 = vmax.f32 %v1732, 0.0
  %v2245 = vmax.f32 %v1733, 0.0
  %v2246 = vmax.f32 %v1734, 0.0
  %v2247 = vmax.f32 %v1735, 0.0
  %v2248 = vmax.f32 %v1736, 0.0
  %v2249 = vmax.f32 %v1737, 0.0
  %v2250 = vmax.f32 %v1738, 0.0
  %v2251 = vmax.f32 %v1739, 0.0
  %v2252 = vmax.f32 %v1740, 0.0
  %v2253 = vmax.f32 %v1741, 0.0
  %v2254 = vmax.f32 %v1742, 0.0
  %v2255 = vmax.f32 %v1743, 0.0
  %v2256 = vmax.f32 %v1744, 0.0
  %v2257 = vmax.f32 %v1745, 0.0
  %v2258 = vmax.f32 %v1746, 0.0
  %v2259 = vmax.f32 %v1747, 0.0
  %v2260 = vmax.f32 %v1748, 0.0
  %v2261 = vmax.f32 %v1749, 0.0
  %v2262 = vmax.f32 %v1750, 0.0
  %v2263 = vmax.f32 %v1751, 0.0
  %v2264 = vmax.f32 %v1752, 0.0
  %v2265 = vmax.f32 %v1753, 0.0
  %v2266 = vmax.f32 %v1754, 0.0
  %v2267 = vmax.f32 %v1755, 0.0
  %v2268 = vmax.f32 %v1756, 0.0
  %v2269 = vmax.f32 %v1757, 0.0
  %v2270 = vmax.f32 %v1758, 0.0
  %v2271 = vmax.f32 %v1759, 0.0
  %v2272 = vmax.f32 %v1760, 0.0
  %v2273 = vmax.f32 %v1761, 0.0
  %v2274 = vmax.f32 %v1762, 0.0
  %v2275 = vmax.f32 %v1763, 0.0
  %v2276 = vmax.f32 %v1764, 0.0
  %v2277 = vmax.f32 %v1765, 0.0
  %v2278 = vmax.f32 %v1766, 0.0
  %v2279 = vmax.f32 %v1767, 0.0
  %v2280 = vmax.f32 %v1768, 0.0
  %v2281 = vmax.f32 %v1769, 0.0
  %v2282 = vmax.f32 %v1770, 0.0
  %v2283 = vmax.f32 %v1771, 0.0
  %v2284 = vmax.f32 %v1772, 0.0
  %v2285 = vmax.f32 %v1773, 0.0
  %v2286 = vmax.f32 %v1774, 0.0
  %v2287 = vmax.f32 %v1775, 0.0
  %v2288 = vmax.f32 %v1776, 0.0
  %v2289 = vmax.f32 %v1777, 0.0
  %v2290 = vmax.f32 %v1778, 0.0
  %v2291 = vmax.f32 %v1779, 0.0
  %v2292 = vmax.f32 %v1780, 0.0
  %v2293 = vmax.f32 %v1781, 0.0
  %v2294 = vmax.f32 %v1782, 0.0
  %v2295 = vmax.f32 %v1783, 0.0
  %v2296 = vmax.f32 %v1784, 0.0
  %v2297 = vmax.f32 %v1785, 0.0
  %v2298 = vmax.f32 %v1786, 0.0
  %v2299 = vmax.f32 %v1787, 0.0
  %v2300 = vmax.f32 %v1788, 0.0
  %v2301 = vmax.f32 %v1789, 0.0
  %v2302 = vmax.f32 %v1790, 0.0
  %v2303 = vmax.f32 %v1791, 0.0
  %v2304 = vmax.f32 %v1792, 0.0
  %v2305 = vmax.f32 %v1793, 0.0
  %v2306 = vmax.f32 %v1794, 0.0
  %v2307 = vmax.f32 %v1795, 0.0
  %v2308 = vmax.f32 %v1796, 0.0
  %v2309 = vmax.f32 %v1797, 0.0
  %v2310 = vmax.f32 %v1798, 0.0
  %v2311 = vmax.f32 %v1799, 0.0
  %v2312 = vmax.f32 %v1800, 0.0
  %v2313 = vmax.f32 %v1801, 0.0
  %v2314 = vmax.f32 %v1802, 0.0
  %v2315 = vmax.f32 %v1803, 0.0
  %v2316 = vmax.f32 %v1804, 0.0
  %v2317 = vmax.f32 %v1805, 0.0
  %v2318 = vmax.f32 %v1806, 0.0
  %v2319 = vmax.f32 %v1807, 0.0
  %v2320 = vmax.f32 %v1808, 0.0
  %v2321 = vmax.f32 %v1809, 0.0
  %v2322 = vmax.f32 %v1810, 0.0
  %v2323 = vmax.f32 %v1811, 0.0
  %v2324 = vmax.f32 %v1812, 0.0
  %v2325 = vmax.f32 %v1813, 0.0
  %v2326 = vmax.f32 %v1814, 0.0
  %v2327 = vmax.f32 %v1815, 0.0
  %v2328 = vmax.f32 %v1816, 0.0
  %v2329 = vmax.f32 %v1817, 0.0
  %v2330 = vmax.f32 %v1818, 0.0
  %v2331 = vmax.f32 %v1819, 0.0
  %v2332 = vmax.f32 %v1820, 0.0
  %v2333 = vmax.f32 %v1821, 0.0
  %v2334 = vmax.f32 %v1822, 0.0
  %v2335 = vmax.f32 %v1823, 0.0
  %v2336 = vmax.f32 %v1824, 0.0
  %v2337 = vmax.f32 %v1825, 0.0
  %v2338 = vmax.f32 %v1826, 0.0
  %v2339 = vmax.f32 %v1827, 0.0
  %v2340 = vmax.f32 %v1828, 0.0
  %v2341 = vmax.f32 %v1829, 0.0
  %v2342 = vmax.f32 %v1830, 0.0
  %v2343 = vmax.f32 %v1831, 0.0
  %v2344 = vmax.f32 %v1832, 0.0
  %v2345 = vmax.f32 %v1833, 0.0
  %v2346 = vmax.f32 %v1834, 0.0
  %v2347 = vmax.f32 %v1835, 0.0
  %v2348 = vmax.f32 %v1836, 0.0
  %v2349 = vmax.f32 %v1837, 0.0
  %v2350 = vmax.f32 %v1838, 0.0
  %v2351 = vmax.f32 %v1839, 0.0
  %v2352 = vmax.f32 %v1840, 0.0
  %v2353 = vmax.f32 %v1841, 0.0
  %v2354 = vmax.f32 %v1842, 0.0
  %v2355 = vmax.f32 %v1843, 0.0
  %v2356 = vmax.f32 %v1844, 0.0
  %v2357 = vmax.f32 %v1845, 0.0
  %v2358 = vmax.f32 %v1846, 0.0
  %v2359 = vmax.f32 %v1847, 0.0
  %v2360 = vmax.f32 %v1848, 0.0
  %v2361 = vmax.f32 %v1849, 0.0
  %v2362 = vmax.f32 %v1850, 0.0
  %v2363 = vmax.f32 %v1851, 0.0
  %v2364 = vmax.f32 %v1852, 0.0
  %v2365 = vmax.f32 %v1853, 0.0
  %v2366 = vmax.f32 %v1854, 0.0
  %v2367 = vmax.f32 %v1855, 0.0
  %v2368 = vmax.f32 %v1856, 0.0
  %v2369 = vmax.f32 %v1857, 0.0
  %v2370 = vmax.f32 %v1858, 0.0
  %v2371 = vmax.f32 %v1859, 0.0
  %v2372 = vmax.f32 %v1860, 0.0
  %v2373 = vmax.f32 %v1861, 0.0
  %v2374 = vmax.f32 %v1862, 0.0
  %v2375 = vmax.f32 %v1863, 0.0
  %v2376 = vmax.f32 %v1864, 0.0
  %v2377 = vmax.f32 %v1865, 0.0
  %v2378 = vmax.f32 %v1866, 0.0
  %v2379 = vmax.f32 %v1867, 0.0
  %v2380 = vmax.f32 %v1868, 0.0
  %v2381 = vmax.f32 %v1869, 0.0
  %v2382 = vmax.f32 %v1870, 0.0
  %v2383 = vmax.f32 %v1871, 0.0
  %v2384 = vmax.f32 %v1872, 0.0
  %v2385 = vmax.f32 %v1873, 0.0
  %v2386 = vmax.f32 %v1874, 0.0
  %v2387 = vmax.f32 %v1875, 0.0
  %v2388 = vmax.f32 %v1876, 0.0
  %v2389 = vmax.f32 %v1877, 0.0
  %v2390 = vmax.f32 %v1878, 0.0
  %v2391 = vmax.f32 %v1879, 0.0
  %v2392 = vmax.f32 %v1880, 0.0
  %v2393 = vmax.f32 %v1881, 0.0
  %v2394 = vmax.f32 %v1882, 0.0
  %v2395 = vmax.f32 %v1883, 0.0
  %v2396 = vmax.f32 %v1884, 0.0
  %v2397 = vmax.f32 %v1885, 0.0
  %v2398 = vmax.f32 %v1886, 0.0
  %v2399 = vmax.f32 %v1887, 0.0
  %v2400 = vmax.f32 %v1888, 0.0
  %v2401 = vmax.f32 %v1889, 0.0
  %v2402 = vmax.f32 %v1890, 0.0
  %v2403 = vmax.f32 %v1891, 0.0
  %v2404 = vmax.f32 %v1892, 0.0
  %v2405 = vmax.f32 %v1893, 0.0
  %v2406 = vmax.f32 %v1894, 0.0
  %v2407 = vmax.f32 %v1895, 0.0
  %v2408 = vmax.f32 %v1896, 0.0
  %v2409 = vmax.f32 %v1897, 0.0
  %v2410 = vmax.f32 %v1898, 0.0
  %v2411 = vmax.f32 %v1899, 0.0
  %v2412 = vmax.f32 %v1900, 0.0
  %v2413 = vmax.f32 %v1901, 0.0
  %v2414 = vmax.f32 %v1902, 0.0
  %v2415 = vmax.f32 %v1903, 0.0
  %v2416 = vmax.f32 %v1904, 0.0
  %v2417 = vmax.f32 %v1905, 0.0
  %v2418 = vmax.f32 %v1906, 0.0
  %v2419 = vmax.f32 %v1907, 0.0
  %v2420 = vmax.f32 %v1908, 0.0
  %v2421 = vmax.f32 %v1909, 0.0
  %v2422 = vmax.f32 %v1910, 0.0
  %v2423 = vmax.f32 %v1911, 0.0
  %v2424 = vmax.f32 %v1912, 0.0
  %v2425 = vmax.f32 %v1913, 0.0
  %v2426 = vmax.f32 %v1914, 0.0
  %v2427 = vmax.f32 %v1915, 0.0
  %v2428 = vmax.f32 %v1916, 0.0
  %v2429 = vmax.f32 %v1917, 0.0
  %v2430 = vmax.f32 %v1918, 0.0
  %v2431 = vmax.f32 %v1919, 0.0
  %v2432 = vmax.f32 %v1920, 0.0
  %v2433 = vmax.f32 %v1921, 0.0
  %v2434 = vmax.f32 %v1922, 0.0
  %v2435 = vmax.f32 %v1923, 0.0
  %v2436 = vmax.f32 %v1924, 0.0
  %v2437 = vmax.f32 %v1925, 0.0
  %v2438 = vmax.f32 %v1926, 0.0
  %v2439 = vmax.f32 %v1927, 0.0
  %v2440 = vmax.f32 %v1928, 0.0
  %v2441 = vmax.f32 %v1929, 0.0
  %v2442 = vmax.f32 %v1930, 0.0
  %v2443 = vmax.f32 %v1931, 0.0
  %v2444 = vmax.f32 %v1932, 0.0
  %v2445 = vmax.f32 %v1933, 0.0
  %v2446 = vmax.f32 %v1934, 0.0
  %v2447 = vmax.f32 %v1935, 0.0
  %v2448 = vmax.f32 %v1936, 0.0
  %v2449 = vmax.f32 %v1937, 0.0
  %v2450 = vmax.f32 %v1938, 0.0
  %v2451 = vmax.f32 %v1939, 0.0
  %v2452 = vmax.f32 %v1940, 0.0
  %v2453 = vmax.f32 %v1941, 0.0
  %v2454 = vmax.f32 %v1942, 0.0
  %v2455 = vmax.f32 %v1943, 0.0
  %v2456 = vmax.f32 %v1944, 0.0
  %v2457 = vmax.f32 %v1945, 0.0
  %v2458 = vmax.f32 %v1946, 0.0
  %v2459 = vmax.f32 %v1947, 0.0
  %v2460 = vmax.f32 %v1948, 0.0
  %v2461 = vmax.f32 %v1949, 0.0
  %v2462 = vmax.f32 %v1950, 0.0
  %v2463 = vmax.f32 %v1951, 0.0
  %v2464 = vmax.f32 %v1952, 0.0
  %v2465 = vmax.f32 %v1953, 0.0
  %v2466 = vmax.f32 %v1954, 0.0
  %v2467 = vmax.f32 %v1955, 0.0
  %v2468 = vmax.f32 %v1956, 0.0
  %v2469 = vmax.f32 %v1957, 0.0
  %v2470 = vmax.f32 %v1958, 0.0
  %v2471 = vmax.f32 %v1959, 0.0
  %v2472 = vmax.f32 %v1960, 0.0
  %v2473 = vmax.f32 %v1961, 0.0
  %v2474 = vmax.f32 %v1962, 0.0
  %v2475 = vmax.f32 %v1963, 0.0
  %v2476 = vmax.f32 %v1964, 0.0
  %v2477 = vmax.f32 %v1965, 0.0
  %v2478 = vmax.f32 %v1966, 0.0
  %v2479 = vmax.f32 %v1967, 0.0
  %v2480 = vmax.f32 %v1968, 0.0
  %v2481 = vmax.f32 %v1969, 0.0
  %v2482 = vmax.f32 %v1970, 0.0
  %v2483 = vmax.f32 %v1971, 0.0
  %v2484 = vmax.f32 %v1972, 0.0
  %v2485 = vmax.f32 %v1973, 0.0
  %v2486 = vmax.f32 %v1974, 0.0
  %v2487 = vmax.f32 %v1975, 0.0
  %v2488 = vmax.f32 %v1976, 0.0
  %v2489 = vmax.f32 %v1977, 0.0
  %v2490 = vmax.f32 %v1978, 0.0
  %v2491 = vmax.f32 %v1979, 0.0
  %v2492 = vmax.f32 %v1980, 0.0
  %v2493 = vmax.f32 %v1981, 0.0
  %v2494 = vmax.f32 %v1982, 0.0
  %v2495 = vmax.f32 %v1983, 0.0
  %v2496 = vmax.f32 %v1984, 0.0
  %v2497 = vmax.f32 %v1985, 0.0
  %v2498 = vmax.f32 %v1986, 0.0
  %v2499 = vmax.f32 %v1987, 0.0
  %v2500 = vmax.f32 %v1988, 0.0
  %v2501 = vmax.f32 %v1989, 0.0
  %v2502 = vmax.f32 %v1990, 0.0
  %v2503 = vmax.f32 %v1991, 0.0
  %v2504 = vmax.f32 %v1992, 0.0
  %v2505 = vmax.f32 %v1993, 0.0
  %v2506 = vmax.f32 %v1994, 0.0
  %v2507 = vmax.f32 %v1995, 0.0
  %v2508 = vmax.f32 %v1996, 0.0
  %v2509 = vmax.f32 %v1997, 0.0
  %v2510 = vmax.f32 %v1998, 0.0
  %v2511 = vmax.f32 %v1999, 0.0
  %v2512 = vmax.f32 %v2000, 0.0
  %v2513 = vmax.f32 %v2001, 0.0
  %v2514 = vmax.f32 %v2002, 0.0
  %v2515 = vmax.f32 %v2003, 0.0
  %v2516 = vmax.f32 %v2004, 0.0
  %v2517 = vmax.f32 %v2005, 0.0
  %v2518 = vmax.f32 %v2006, 0.0
  %v2519 = vmax.f32 %v2007, 0.0
  %v2520 = vmax.f32 %v2008, 0.0
  %v2521 = vmax.f32 %v2009, 0.0
  %v2522 = vmax.f32 %v2010, 0.0
  %v2523 = vmax.f32 %v2011, 0.0
  %v2524 = vmax.f32 %v2012, 0.0
  %v2525 = vmax.f32 %v2013, 0.0
  %v2526 = vmax.f32 %v2014, 0.0
  %v2527 = vmax.f32 %v2015, 0.0
  %v2528 = vmax.f32 %v2016, 0.0
  %v2529 = vmax.f32 %v2017, 0.0
  %v2530 = vmax.f32 %v2018, 0.0
  %v2531 = vmax.f32 %v2019, 0.0
  %v2532 = vmax.f32 %v2020, 0.0
  %v2533 = vmax.f32 %v2021, 0.0
  %v2534 = vmax.f32 %v2022, 0.0
  %v2535 = vmax.f32 %v2023, 0.0
  %v2536 = vmax.f32 %v2024, 0.0
  %v2537 = vmax.f32 %v2025, 0.0
  %v2538 = vmax.f32 %v2026, 0.0
  %v2539 = vmax.f32 %v2027, 0.0
  %v2540 = vmax.f32 %v2028, 0.0
  %v2541 = vmax.f32 %v2029, 0.0
  %v2542 = vmax.f32 %v2030, 0.0
  %v2543 = vmax.f32 %v2031, 0.0
  %v2544 = vmax.f32 %v2032, 0.0
  %v2545 = vmax.f32 %v2033, 0.0
  %v2546 = vmax.f32 %v2034, 0.0
  %v2547 = vmax.f32 %v2035, 0.0
  %v2548 = vmax.f32 %v2036, 0.0
  %v2549 = vmax.f32 %v2037, 0.0
  %v2550 = vmax.f32 %v2038, 0.0
  %v2551 = vmax.f32 %v2039, 0.0
  %v2552 = vmax.f32 %v2040, 0.0
  %v2553 = vmax.f32 %v2041, 0.0
  %v2554 = vmax.f32 %v2042, 0.0
  %v2555 = vmax.f32 %v2043, 0.0
  %v2556 = vmax.f32 %v2044, 0.0
  %v2557 = vmax.f32 %v2045, 0.0
  %v2558 = vmax.f32 %v2046, 0.0
  %v2559 = vmax.f32 %v2047, 0.0
  %v2560 = vmax.f32 %v2048, 0.0
  %v2561 = vmax.f32 %v2049, 0.0
  %v2562 = vmax.f32 %v2050, 0.0
  %v2563 = vmax.f32 %v2051, 0.0
  %v2564 = vmax.f32 %v2052, 0.0
  %v2565 = vmax.f32 %v2053, 0.0
  %v2566 = vmax.f32 %v2054, 0.0
  %v2567 = vmax.f32 %v2055, 0.0
  %v2568 = vmax.f32 %v2056, 0.0
  %v2569 = vmax.f32 %v2057, 0.0
  %v2570 = vmax.f32 %v2058, 0.0
  %v2571 = vmin.f32 %v2059, 6.0
  %v2572 = vmin.f32 %v2060, 6.0
  %v2573 = vmin.f32 %v2061, 6.0
  %v2574 = vmin.f32 %v2062, 6.0
  %v2575 = vmin.f32 %v2063, 6.0
  %v2576 = vmin.f32 %v2064, 6.0
  %v2577 = vmin.f32 %v2065, 6.0
  %v2578 = vmin.f32 %v2066, 6.0
  %v2579 = vmin.f32 %v2067, 6.0
  %v2580 = vmin.f32 %v2068, 6.0
  %v2581 = vmin.f32 %v2069, 6.0
  %v2582 = vmin.f32 %v2070, 6.0
  %v2583 = vmin.f32 %v2071, 6.0
  %v2584 = vmin.f32 %v2072, 6.0
  %v2585 = vmin.f32 %v2073, 6.0
  %v2586 = vmin.f32 %v2074, 6.0
  %v2587 = vmin.f32 %v2075, 6.0
  %v2588 = vmin.f32 %v2076, 6.0
  %v2589 = vmin.f32 %v2077, 6.0
  %v2590 = vmin.f32 %v2078, 6.0
  %v2591 = vmin.f32 %v2079, 6.0
  %v2592 = vmin.f32 %v2080, 6.0
  %v2593 = vmin.f32 %v2081, 6.0
  %v2594 = vmin.f32 %v2082, 6.0
  %v2595 = vmin.f32 %v2083, 6.0
  %v2596 = vmin.f32 %v2084, 6.0
  %v2597 = vmin.f32 %v2085, 6.0
  %v2598 = vmin.f32 %v2086, 6.0
  %v2599 = vmin.f32 %v2087, 6.0
  %v2600 = vmin.f32 %v2088, 6.0
  %v2601 = vmin.f32 %v2089, 6.0
  %v2602 = vmin.f32 %v2090, 6.0
  %v2603 = vmin.f32 %v2091, 6.0
  %v2604 = vmin.f32 %v2092, 6.0
  %v2605 = vmin.f32 %v2093, 6.0
  %v2606 = vmin.f32 %v2094, 6.0
  %v2607 = vmin.f32 %v2095, 6.0
  %v2608 = vmin.f32 %v2096, 6.0
  %v2609 = vmin.f32 %v2097, 6.0
  %v2610 = vmin.f32 %v2098, 6.0
  %v2611 = vmin.f32 %v2099, 6.0
  %v2612 = vmin.f32 %v2100, 6.0
  %v2613 = vmin.f32 %v2101, 6.0
  %v2614 = vmin.f32 %v2102, 6.0
  %v2615 = vmin.f32 %v2103, 6.0
  %v2616 = vmin.f32 %v2104, 6.0
  %v2617 = vmin.f32 %v2105, 6.0
  %v2618 = vmin.f32 %v2106, 6.0
  %v2619 = vmin.f32 %v2107, 6.0
  %v2620 = vmin.f32 %v2108, 6.0
  %v2621 = vmin.f32 %v2109, 6.0
  %v2622 = vmin.f32 %v2110, 6.0
  %v2623 = vmin.f32 %v2111, 6.0
  %v2624 = vmin.f32 %v2112, 6.0
  %v2625 = vmin.f32 %v2113, 6.0
  %v2626 = vmin.f32 %v2114, 6.0
  %v2627 = vmin.f32 %v2115, 6.0
  %v2628 = vmin.f32 %v2116, 6.0
  %v2629 = vmin.f32 %v2117, 6.0
  %v2630 = vmin.f32 %v2118, 6.0
  %v2631 = vmin.f32 %v2119, 6.0
  %v2632 = vmin.f32 %v2120, 6.0
  %v2633 = vmin.f32 %v2121, 6.0
  %v2634 = vmin.f32 %v2122, 6.0
  %v2635 = vmin.f32 %v2123, 6.0
  %v2636 = vmin.f32 %v2124, 6.0
  %v2637 = vmin.f32 %v2125, 6.0
  %v2638 = vmin.f32 %v2126, 6.0
  %v2639 = vmin.f32 %v2127, 6.0
  %v2640 = vmin.f32 %v2128, 6.0
  %v2641 = vmin.f32 %v2129, 6.0
  %v2642 = vmin.f32 %v2130, 6.0
  %v2643 = vmin.f32 %v2131, 6.0
  %v2644 = vmin.f32 %v2132, 6.0
  %v2645 = vmin.f32 %v2133, 6.0
  %v2646 = vmin.f32 %v2134, 6.0
  %v2647 = vmin.f32 %v2135, 6.0
  %v2648 = vmin.f32 %v2136, 6.0
  %v2649 = vmin.f32 %v2137, 6.0
  %v2650 = vmin.f32 %v2138, 6.0
  %v2651 = vmin.f32 %v2139, 6.0
  %v2652 = vmin.f32 %v2140, 6.0
  %v2653 = vmin.f32 %v2141, 6.0
  %v2654 = vmin.f32 %v2142, 6.0
  %v2655 = vmin.f32 %v2143, 6.0
  %v2656 = vmin.f32 %v2144, 6.0
  %v2657 = vmin.f32 %v2145, 6.0
  %v2658 = vmin.f32 %v2146, 6.0
  %v2659 = vmin.f32 %v2147, 6.0
  %v2660 = vmin.f32 %v2148, 6.0
  %v2661 = vmin.f32 %v2149, 6.0
  %v2662 = vmin.f32 %v2150, 6.0
  %v2663 = vmin.f32 %v2151, 6.0
  %v2664 = vmin.f32 %v2152, 6.0
  %v2665 = vmin.f32 %v2153, 6.0
  %v2666 = vmin.f32 %v2154, 6.0
  %v2667 = vmin.f32 %v2155, 6.0
  %v2668 = vmin.f32 %v2156, 6.0
  %v2669 = vmin.f32 %v2157, 6.0
  %v2670 = vmin.f32 %v2158, 6.0
  %v2671 = vmin.f32 %v2159, 6.0
  %v2672 = vmin.f32 %v2160, 6.0
  %v2673 = vmin.f32 %v2161, 6.0
  %v2674 = vmin.f32 %v2162, 6.0
  %v2675 = vmin.f32 %v2163, 6.0
  %v2676 = vmin.f32 %v2164, 6.0
  %v2677 = vmin.f32 %v2165, 6.0
  %v2678 = vmin.f32 %v2166, 6.0
  %v2679 = vmin.f32 %v2167, 6.0
  %v2680 = vmin.f32 %v2168, 6.0
  %v2681 = vmin.f32 %v2169, 6.0
  %v2682 = vmin.f32 %v2170, 6.0
  %v2683 = vmin.f32 %v2171, 6.0
  %v2684 = vmin.f32 %v2172, 6.0
  %v2685 = vmin.f32 %v2173, 6.0
  %v2686 = vmin.f32 %v2174, 6.0
  %v2687 = vmin.f32 %v2175, 6.0
  %v2688 = vmin.f32 %v2176, 6.0
  %v2689 = vmin.f32 %v2177, 6.0
  %v2690 = vmin.f32 %v2178, 6.0
  %v2691 = vmin.f32 %v2179, 6.0
  %v2692 = vmin.f32 %v2180, 6.0
  %v2693 = vmin.f32 %v2181, 6.0
  %v2694 = vmin.f32 %v2182, 6.0
  %v2695 = vmin.f32 %v2183, 6.0
  %v2696 = vmin.f32 %v2184, 6.0
  %v2697 = vmin.f32 %v2185, 6.0
  %v2698 = vmin.f32 %v2186, 6.0
  %v2699 = vmin.f32 %v2187, 6.0
  %v2700 = vmin.f32 %v2188, 6.0
  %v2701 = vmin.f32 %v2189, 6.0
  %v2702 = vmin.f32 %v2190, 6.0
  %v2703 = vmin.f32 %v2191, 6.0
  %v2704 = vmin.f32 %v2192, 6.0
  %v2705 = vmin.f32 %v2193, 6.0
  %v2706 = vmin.f32 %v2194, 6.0
  %v2707 = vmin.f32 %v2195, 6.0
  %v2708 = vmin.f32 %v2196, 6.0
  %v2709 = vmin.f32 %v2197, 6.0
  %v2710 = vmin.f32 %v2198, 6.0
  %v2711 = vmin.f32 %v2199, 6.0
  %v2712 = vmin.f32 %v2200, 6.0
  %v2713 = vmin.f32 %v2201, 6.0
  %v2714 = vmin.f32 %v2202, 6.0
  %v2715 = vmin.f32 %v2203, 6.0
  %v2716 = vmin.f32 %v2204, 6.0
  %v2717 = vmin.f32 %v2205, 6.0
  %v2718 = vmin.f32 %v2206, 6.0
  %v2719 = vmin.f32 %v2207, 6.0
  %v2720 = vmin.f32 %v2208, 6.0
  %v2721 = vmin.f32 %v2209, 6.0
  %v2722 = vmin.f32 %v2210, 6.0
  %v2723 = vmin.f32 %v2211, 6.0
  %v2724 = vmin.f32 %v2212, 6.0
  %v2725 = vmin.f32 %v2213, 6.0
  %v2726 = vmin.f32 %v2214, 6.0
  %v2727 = vmin.f32 %v2215, 6.0
  %v2728 = vmin.f32 %v2216, 6.0
  %v2729 = vmin.f32 %v2217, 6.0
  %v2730 = vmin.f32 %v2218, 6.0
  %v2731 = vmin.f32 %v2219, 6.0
  %v2732 = vmin.f32 %v2220, 6.0
  %v2733 = vmin.f32 %v2221, 6.0
  %v2734 = vmin.f32 %v2222, 6.0
  %v2735 = vmin.f32 %v2223, 6.0
  %v2736 = vmin.f32 %v2224, 6.0
  %v2737 = vmin.f32 %v2225, 6.0
  %v2738 = vmin.f32 %v2226, 6.0
  %v2739 = vmin.f32 %v2227, 6.0
  %v2740 = vmin.f32 %v2228, 6.0
  %v2741 = vmin.f32 %v2229, 6.0
  %v2742 = vmin.f32 %v2230, 6.0
  %v2743 = vmin.f32 %v2231, 6.0
  %v2744 = vmin.f32 %v2232, 6.0
  %v2745 = vmin.f32 %v2233, 6.0
  %v2746 = vmin.f32 %v2234, 6.0
  %v2747 = vmin.f32 %v2235, 6.0
  %v2748 = vmin.f32 %v2236, 6.0
  %v2749 = vmin.f32 %v2237, 6.0
  %v2750 = vmin.f32 %v2238, 6.0
  %v2751 = vmin.f32 %v2239, 6.0
  %v2752 = vmin.f32 %v2240, 6.0
  %v2753 = vmin.f32 %v2241, 6.0
  %v2754 = vmin.f32 %v2242, 6.0
  %v2755 = vmin.f32 %v2243, 6.0
  %v2756 = vmin.f32 %v2244, 6.0
  %v2757 = vmin.f32 %v2245, 6.0
  %v2758 = vmin.f32 %v2246, 6.0
  %v2759 = vmin.f32 %v2247, 6.0
  %v2760 = vmin.f32 %v2248, 6.0
  %v2761 = vmin.f32 %v2249, 6.0
  %v2762 = vmin.f32 %v2250, 6.0
  %v2763 = vmin.f32 %v2251, 6.0
  %v2764 = vmin.f32 %v2252, 6.0
  %v2765 = vmin.f32 %v2253, 6.0
  %v2766 = vmin.f32 %v2254, 6.0
  %v2767 = vmin.f32 %v2255, 6.0
  %v2768 = vmin.f32 %v2256, 6.0
  %v2769 = vmin.f32 %v2257, 6.0
  %v2770 = vmin.f32 %v2258, 6.0
  %v2771 = vmin.f32 %v2259, 6.0
  %v2772 = vmin.f32 %v2260, 6.0
  %v2773 = vmin.f32 %v2261, 6.0
  %v2774 = vmin.f32 %v2262, 6.0
  %v2775 = vmin.f32 %v2263, 6.0
  %v2776 = vmin.f32 %v2264, 6.0
  %v2777 = vmin.f32 %v2265, 6.0
  %v2778 = vmin.f32 %v2266, 6.0
  %v2779 = vmin.f32 %v2267, 6.0
  %v2780 = vmin.f32 %v2268, 6.0
  %v2781 = vmin.f32 %v2269, 6.0
  %v2782 = vmin.f32 %v2270, 6.0
  %v2783 = vmin.f32 %v2271, 6.0
  %v2784 = vmin.f32 %v2272, 6.0
  %v2785 = vmin.f32 %v2273, 6.0
  %v2786 = vmin.f32 %v2274, 6.0
  %v2787 = vmin.f32 %v2275, 6.0
  %v2788 = vmin.f32 %v2276, 6.0
  %v2789 = vmin.f32 %v2277, 6.0
  %v2790 = vmin.f32 %v2278, 6.0
  %v2791 = vmin.f32 %v2279, 6.0
  %v2792 = vmin.f32 %v2280, 6.0
  %v2793 = vmin.f32 %v2281, 6.0
  %v2794 = vmin.f32 %v2282, 6.0
  %v2795 = vmin.f32 %v2283, 6.0
  %v2796 = vmin.f32 %v2284, 6.0
  %v2797 = vmin.f32 %v2285, 6.0
  %v2798 = vmin.f32 %v2286, 6.0
  %v2799 = vmin.f32 %v2287, 6.0
  %v2800 = vmin.f32 %v2288, 6.0
  %v2801 = vmin.f32 %v2289, 6.0
  %v2802 = vmin.f32 %v2290, 6.0
  %v2803 = vmin.f32 %v2291, 6.0
  %v2804 = vmin.f32 %v2292, 6.0
  %v2805 = vmin.f32 %v2293, 6.0
  %v2806 = vmin.f32 %v2294, 6.0
  %v2807 = vmin.f32 %v2295, 6.0
  %v2808 = vmin.f32 %v2296, 6.0
  %v2809 = vmin.f32 %v2297, 6.0
  %v2810 = vmin.f32 %v2298, 6.0
  %v2811 = vmin.f32 %v2299, 6.0
  %v2812 = vmin.f32 %v2300, 6.0
  %v2813 = vmin.f32 %v2301, 6.0
  %v2814 = vmin.f32 %v2302, 6.0
  %v2815 = vmin.f32 %v2303, 6.0
  %v2816 = vmin.f32 %v2304, 6.0
  %v2817 = vmin.f32 %v2305, 6.0
  %v2818 = vmin.f32 %v2306, 6.0
  %v2819 = vmin.f32 %v2307, 6.0
  %v2820 = vmin.f32 %v2308, 6.0
  %v2821 = vmin.f32 %v2309, 6.0
  %v2822 = vmin.f32 %v2310, 6.0
  %v2823 = vmin.f32 %v2311, 6.0
  %v2824 = vmin.f32 %v2312, 6.0
  %v2825 = vmin.f32 %v2313, 6.0
  %v2826 = vmin.f32 %v2314, 6.0
  %v2827 = vmin.f32 %v2315, 6.0
  %v2828 = vmin.f32 %v2316, 6.0
  %v2829 = vmin.f32 %v2317, 6.0
  %v2830 = vmin.f32 %v2318, 6.0
  %v2831 = vmin.f32 %v2319, 6.0
  %v2832 = vmin.f32 %v2320, 6.0
  %v2833 = vmin.f32 %v2321, 6.0
  %v2834 = vmin.f32 %v2322, 6.0
  %v2835 = vmin.f32 %v2323, 6.0
  %v2836 = vmin.f32 %v2324, 6.0
  %v2837 = vmin.f32 %v2325, 6.0
  %v2838 = vmin.f32 %v2326, 6.0
  %v2839 = vmin.f32 %v2327, 6.0
  %v2840 = vmin.f32 %v2328, 6.0
  %v2841 = vmin.f32 %v2329, 6.0
  %v2842 = vmin.f32 %v2330, 6.0
  %v2843 = vmin.f32 %v2331, 6.0
  %v2844 = vmin.f32 %v2332, 6.0
  %v2845 = vmin.f32 %v2333, 6.0
  %v2846 = vmin.f32 %v2334, 6.0
  %v2847 = vmin.f32 %v2335, 6.0
  %v2848 = vmin.f32 %v2336, 6.0
  %v2849 = vmin.f32 %v2337, 6.0
  %v2850 = vmin.f32 %v2338, 6.0
  %v2851 = vmin.f32 %v2339, 6.0
  %v2852 = vmin.f32 %v2340, 6.0
  %v2853 = vmin.f32 %v2341, 6.0
  %v2854 = vmin.f32 %v2342, 6.0
  %v2855 = vmin.f32 %v2343, 6.0
  %v2856 = vmin.f32 %v2344, 6.0
  %v2857 = vmin.f32 %v2345, 6.0
  %v2858 = vmin.f32 %v2346, 6.0
  %v2859 = vmin.f32 %v2347, 6.0
  %v2860 = vmin.f32 %v2348, 6.0
  %v2861 = vmin.f32 %v2349, 6.0
  %v2862 = vmin.f32 %v2350, 6.0
  %v2863 = vmin.f32 %v2351, 6.0
  %v2864 = vmin.f32 %v2352, 6.0
  %v2865 = vmin.f32 %v2353, 6.0
  %v2866 = vmin.f32 %v2354, 6.0
  %v2867 = vmin.f32 %v2355, 6.0
  %v2868 = vmin.f32 %v2356, 6.0
  %v2869 = vmin.f32 %v2357, 6.0
  %v2870 = vmin.f32 %v2358, 6.0
  %v2871 = vmin.f32 %v2359, 6.0
  %v2872 = vmin.f32 %v2360, 6.0
  %v2873 = vmin.f32 %v2361, 6.0
  %v2874 = vmin.f32 %v2362, 6.0
  %v2875 = vmin.f32 %v2363, 6.0
  %v2876 = vmin.f32 %v2364, 6.0
  %v2877 = vmin.f32 %v2365, 6.0
  %v2878 = vmin.f32 %v2366, 6.0
  %v2879 = vmin.f32 %v2367, 6.0
  %v2880 = vmin.f32 %v2368, 6.0
  %v2881 = vmin.f32 %v2369, 6.0
  %v2882 = vmin.f32 %v2370, 6.0
  %v2883 = vmin.f32 %v2371, 6.0
  %v2884 = vmin.f32 %v2372, 6.0
  %v2885 = vmin.f32 %v2373, 6.0
  %v2886 = vmin.f32 %v2374, 6.0
  %v2887 = vmin.f32 %v2375, 6.0
  %v2888 = vmin.f32 %v2376, 6.0
  %v2889 = vmin.f32 %v2377, 6.0
  %v2890 = vmin.f32 %v2378, 6.0
  %v2891 = vmin.f32 %v2379, 6.0
  %v2892 = vmin.f32 %v2380, 6.0
  %v2893 = vmin.f32 %v2381, 6.0
  %v2894 = vmin.f32 %v2382, 6.0
  %v2895 = vmin.f32 %v2383, 6.0
  %v2896 = vmin.f32 %v2384, 6.0
  %v2897 = vmin.f32 %v2385, 6.0
  %v2898 = vmin.f32 %v2386, 6.0
  %v2899 = vmin.f32 %v2387, 6.0
  %v2900 = vmin.f32 %v2388, 6.0
  %v2901 = vmin.f32 %v2389, 6.0
  %v2902 = vmin.f32 %v2390, 6.0
  %v2903 = vmin.f32 %v2391, 6.0
  %v2904 = vmin.f32 %v2392, 6.0
  %v2905 = vmin.f32 %v2393, 6.0
  %v2906 = vmin.f32 %v2394, 6.0
  %v2907 = vmin.f32 %v2395, 6.0
  %v2908 = vmin.f32 %v2396, 6.0
  %v2909 = vmin.f32 %v2397, 6.0
  %v2910 = vmin.f32 %v2398, 6.0
  %v2911 = vmin.f32 %v2399, 6.0
  %v2912 = vmin.f32 %v2400, 6.0
  %v2913 = vmin.f32 %v2401, 6.0
  %v2914 = vmin.f32 %v2402, 6.0
  %v2915 = vmin.f32 %v2403, 6.0
  %v2916 = vmin.f32 %v2404, 6.0
  %v2917 = vmin.f32 %v2405, 6.0
  %v2918 = vmin.f32 %v2406, 6.0
  %v2919 = vmin.f32 %v2407, 6.0
  %v2920 = vmin.f32 %v2408, 6.0
  %v2921 = vmin.f32 %v2409, 6.0
  %v2922 = vmin.f32 %v2410, 6.0
  %v2923 = vmin.f32 %v2411, 6.0
  %v2924 = vmin.f32 %v2412, 6.0
  %v2925 = vmin.f32 %v2413, 6.0
  %v2926 = vmin.f32 %v2414, 6.0
  %v2927 = vmin.f32 %v2415, 6.0
  %v2928 = vmin.f32 %v2416, 6.0
  %v2929 = vmin.f32 %v2417, 6.0
  %v2930 = vmin.f32 %v2418, 6.0
  %v2931 = vmin.f32 %v2419, 6.0
  %v2932 = vmin.f32 %v2420, 6.0
  %v2933 = vmin.f32 %v2421, 6.0
  %v2934 = vmin.f32 %v2422, 6.0
  %v2935 = vmin.f32 %v2423, 6.0
  %v2936 = vmin.f32 %v2424, 6.0
  %v2937 = vmin.f32 %v2425, 6.0
  %v2938 = vmin.f32 %v2426, 6.0
  %v2939 = vmin.f32 %v2427, 6.0
  %v2940 = vmin.f32 %v2428, 6.0
  %v2941 = vmin.f32 %v2429, 6.0
  %v2942 = vmin.f32 %v2430, 6.0
  %v2943 = vmin.f32 %v2431, 6.0
  %v2944 = vmin.f32 %v2432, 6.0
  %v2945 = vmin.f32 %v2433, 6.0
  %v2946 = vmin.f32 %v2434, 6.0
  %v2947 = vmin.f32 %v2435, 6.0
  %v2948 = vmin.f32 %v2436, 6.0
  %v2949 = vmin.f32 %v2437, 6.0
  %v2950 = vmin.f32 %v2438, 6.0
  %v2951 = vmin.f32 %v2439, 6.0
  %v2952 = vmin.f32 %v2440, 6.0
  %v2953 = vmin.f32 %v2441, 6.0
  %v2954 = vmin.f32 %v2442, 6.0
  %v2955 = vmin.f32 %v2443, 6.0
  %v2956 = vmin.f32 %v2444, 6.0
  %v2957 = vmin.f32 %v2445, 6.0
  %v2958 = vmin.f32 %v2446, 6.0
  %v2959 = vmin.f32 %v2447, 6.0
  %v2960 = vmin.f32 %v2448, 6.0
  %v2961 = vmin.f32 %v2449, 6.0
  %v2962 = vmin.f32 %v2450, 6.0
  %v2963 = vmin.f32 %v2451, 6.0
  %v2964 = vmin.f32 %v2452, 6.0
  %v2965 = vmin.f32 %v2453, 6.0
  %v2966 = vmin.f32 %v2454, 6.0
  %v2967 = vmin.f32 %v2455, 6.0
  %v2968 = vmin.f32 %v2456, 6.0
  %v2969 = vmin.f32 %v2457, 6.0
  %v2970 = vmin.f32 %v2458, 6.0
  %v2971 = vmin.f32 %v2459, 6.0
  %v2972 = vmin.f32 %v2460, 6.0
  %v2973 = vmin.f32 %v2461, 6.0
  %v2974 = vmin.f32 %v2462, 6.0
  %v2975 = vmin.f32 %v2463, 6.0
  %v2976 = vmin.f32 %v2464, 6.0
  %v2977 = vmin.f32 %v2465, 6.0
  %v2978 = vmin.f32 %v2466, 6.0
  %v2979 = vmin.f32 %v2467, 6.0
  %v2980 = vmin.f32 %v2468, 6.0
  %v2981 = vmin.f32 %v2469, 6.0
  %v2982 = vmin.f32 %v2470, 6.0
  %v2983 = vmin.f32 %v2471, 6.0
  %v2984 = vmin.f32 %v2472, 6.0
  %v2985 = vmin.f32 %v2473, 6.0
  %v2986 = vmin.f32 %v2474, 6.0
  %v2987 = vmin.f32 %v2475, 6.0
  %v2988 = vmin.f32 %v2476, 6.0
  %v2989 = vmin.f32 %v2477, 6.0
  %v2990 = vmin.f32 %v2478, 6.0
  %v2991 = vmin.f32 %v2479, 6.0
  %v2992 = vmin.f32 %v2480, 6.0
  %v2993 = vmin.f32 %v2481, 6.0
  %v2994 = vmin.f32 %v2482, 6.0
  %v2995 = vmin.f32 %v2483, 6.0
  %v2996 = vmin.f32 %v2484, 6.0
  %v2997 = vmin.f32 %v2485, 6.0
  %v2998 = vmin.f32 %v2486, 6.0
  %v2999 = vmin.f32 %v2487, 6.0
  %v3000 = vmin.f32 %v2488, 6.0
  %v3001 = vmin.f32 %v2489, 6.0
  %v3002 = vmin.f32 %v2490, 6.0
  %v3003 = vmin.f32 %v2491, 6.0
  %v3004 = vmin.f32 %v2492, 6.0
  %v3005 = vmin.f32 %v2493, 6.0
  %v3006 = vmin.f32 %v2494, 6.0
  %v3007 = vmin.f32 %v2495, 6.0
  %v3008 = vmin.f32 %v2496, 6.0
  %v3009 = vmin.f32 %v2497, 6.0
  %v3010 = vmin.f32 %v2498, 6.0
  %v3011 = vmin.f32 %v2499, 6.0
  %v3012 = vmin.f32 %v2500, 6.0
  %v3013 = vmin.f32 %v2501, 6.0
  %v3014 = vmin.f32 %v2502, 6.0
  %v3015 = vmin.f32 %v2503, 6.0
  %v3016 = vmin.f32 %v2504, 6.0
  %v3017 = vmin.f32 %v2505, 6.0
  %v3018 = vmin.f32 %v2506, 6.0
  %v3019 = vmin.f32 %v2507, 6.0
  %v3020 = vmin.f32 %v2508, 6.0
  %v3021 = vmin.f32 %v2509, 6.0
  %v3022 = vmin.f32 %v2510, 6.0
  %v3023 = vmin.f32 %v2511, 6.0
  %v3024 = vmin.f32 %v2512, 6.0
  %v3025 = vmin.f32 %v2513, 6.0
  %v3026 = vmin.f32 %v2514, 6.0
  %v3027 = vmin.f32 %v2515, 6.0
  %v3028 = vmin.f32 %v2516, 6.0
  %v3029 = vmin.f32 %v2517, 6.0
  %v3030 = vmin.f32 %v2518, 6.0
  %v3031 = vmin.f32 %v2519, 6.0
  %v3032 = vmin.f32 %v2520, 6.0
  %v3033 = vmin.f32 %v2521, 6.0
  %v3034 = vmin.f32 %v2522, 6.0
  %v3035 = vmin.f32 %v2523, 6.0
  %v3036 = vmin.f32 %v2524, 6.0
  %v3037 = vmin.f32 %v2525, 6.0
  %v3038 = vmin.f32 %v2526, 6.0
  %v3039 = vmin.f32 %v2527, 6.0
  %v3040 = vmin.f32 %v2528, 6.0
  %v3041 = vmin.f32 %v2529, 6.0
  %v3042 = vmin.f32 %v2530, 6.0
  %v3043 = vmin.f32 %v2531, 6.0
  %v3044 = vmin.f32 %v2532, 6.0
  %v3045 = vmin.f32 %v2533, 6.0
  %v3046 = vmin.f32 %v2534, 6.0
  %v3047 = vmin.f32 %v2535, 6.0
  %v3048 = vmin.f32 %v2536, 6.0
  %v3049 = vmin.f32 %v2537, 6.0
  %v3050 = vmin.f32 %v2538, 6.0
  %v3051 = vmin.f32 %v2539, 6.0
  %v3052 = vmin.f32 %v2540, 6.0
  %v3053 = vmin.f32 %v2541, 6.0
  %v3054 = vmin.f32 %v2542, 6.0
  %v3055 = vmin.f32 %v2543, 6.0
  %v3056 = vmin.f32 %v2544, 6.0
  %v3057 = vmin.f32 %v2545, 6.0
  %v3058 = vmin.f32 %v2546, 6.0
  %v3059 = vmin.f32 %v2547, 6.0
  %v3060 = vmin.f32 %v2548, 6.0
  %v3061 = vmin.f32 %v2549, 6.0
  %v3062 = vmin.f32 %v2550, 6.0
  %v3063 = vmin.f32 %v2551, 6.0
  %v3064 = vmin.f32 %v2552, 6.0
  %v3065 = vmin.f32 %v2553, 6.0
  %v3066 = vmin.f32 %v2554, 6.0
  %v3067 = vmin.f32 %v2555, 6.0
  %v3068 = vmin.f32 %v2556, 6.0
  %v3069 = vmin.f32 %v2557, 6.0
  %v3070 = vmin.f32 %v2558, 6.0
  %v3071 = vmin.f32 %v2559, 6.0
  %v3072 = vmin.f32 %v2560, 6.0
  %v3073 = vmin.f32 %v2561, 6.0
  %v3074 = vmin.f32 %v2562, 6.0
  %v3075 = vmin.f32 %v2563, 6.0
  %v3076 = vmin.f32 %v2564, 6.0
  %v3077 = vmin.f32 %v2565, 6.0
  %v3078 = vmin.f32 %v2566, 6.0
  %v3079 = vmin.f32 %v2567, 6.0
  %v3080 = vmin.f32 %v2568, 6.0
  %v3081 = vmin.f32 %v2569, 6.0
  %v3082 = vmin.f32 %v2570, 6.0
  %v3083 = vmul.f32 %v2571, 0.16666667
  %v3084 = vmul.f32 %v2572, 0.16666667
  %v3085 = vmul.f32 %v2573, 0.16666667
  %v3086 = vmul.f32 %v2574, 0.16666667
  %v3087 = vmul.f32 %v2575, 0.16666667
  %v3088 = vmul.f32 %v2576, 0.16666667
  %v3089 = vmul.f32 %v2577, 0.16666667
  %v3090 = vmul.f32 %v2578, 0.16666667
  %v3091 = vmul.f32 %v2579, 0.16666667
  %v3092 = vmul.f32 %v2580, 0.16666667
  %v3093 = vmul.f32 %v2581, 0.16666667
  %v3094 = vmul.f32 %v2582, 0.16666667
  %v3095 = vmul.f32 %v2583, 0.16666667
  %v3096 = vmul.f32 %v2584, 0.16666667
  %v3097 = vmul.f32 %v2585, 0.16666667
  %v3098 = vmul.f32 %v2586, 0.16666667
  %v3099 = vmul.f32 %v2587, 0.16666667
  %v3100 = vmul.f32 %v2588, 0.16666667
  %v3101 = vmul.f32 %v2589, 0.16666667
  %v3102 = vmul.f32 %v2590, 0.16666667
  %v3103 = vmul.f32 %v2591, 0.16666667
  %v3104 = vmul.f32 %v2592, 0.16666667
  %v3105 = vmul.f32 %v2593, 0.16666667
  %v3106 = vmul.f32 %v2594, 0.16666667
  %v3107 = vmul.f32 %v2595, 0.16666667
  %v3108 = vmul.f32 %v2596, 0.16666667
  %v3109 = vmul.f32 %v2597, 0.16666667
  %v3110 = vmul.f32 %v2598, 0.16666667
  %v3111 = vmul.f32 %v2599, 0.16666667
  %v3112 = vmul.f32 %v2600, 0.16666667
  %v3113 = vmul.f32 %v2601, 0.16666667
  %v3114 = vmul.f32 %v2602, 0.16666667
  %v3115 = vmul.f32 %v2603, 0.16666667
  %v3116 = vmul.f32 %v2604, 0.16666667
  %v3117 = vmul.f32 %v2605, 0.16666667
  %v3118 = vmul.f32 %v2606, 0.16666667
  %v3119 = vmul.f32 %v2607, 0.16666667
  %v3120 = vmul.f32 %v2608, 0.16666667
  %v3121 = vmul.f32 %v2609, 0.16666667
  %v3122 = vmul.f32 %v2610, 0.16666667
  %v3123 = vmul.f32 %v2611, 0.16666667
  %v3124 = vmul.f32 %v2612, 0.16666667
  %v3125 = vmul.f32 %v2613, 0.16666667
  %v3126 = vmul.f32 %v2614, 0.16666667
  %v3127 = vmul.f32 %v2615, 0.16666667
  %v3128 = vmul.f32 %v2616, 0.16666667
  %v3129 = vmul.f32 %v2617, 0.16666667
  %v3130 = vmul.f32 %v2618, 0.16666667
  %v3131 = vmul.f32 %v2619, 0.16666667
  %v3132 = vmul.f32 %v2620, 0.16666667
  %v3133 = vmul.f32 %v2621, 0.16666667
  %v3134 = vmul.f32 %v2622, 0.16666667
  %v3135 = vmul.f32 %v2623, 0.16666667
  %v3136 = vmul.f32 %v2624, 0.16666667
  %v3137 = vmul.f32 %v2625, 0.16666667
  %v3138 = vmul.f32 %v2626, 0.16666667
  %v3139 = vmul.f32 %v2627, 0.16666667
  %v3140 = vmul.f32 %v2628, 0.16666667
  %v3141 = vmul.f32 %v2629, 0.16666667
  %v3142 = vmul.f32 %v2630, 0.16666667
  %v3143 = vmul.f32 %v2631, 0.16666667
  %v3144 = vmul.f32 %v2632, 0.16666667
  %v3145 = vmul.f32 %v2633, 0.16666667
  %v3146 = vmul.f32 %v2634, 0.16666667
  %v3147 = vmul.f32 %v2635, 0.16666667
  %v3148 = vmul.f32 %v2636, 0.16666667
  %v3149 = vmul.f32 %v2637, 0.16666667
  %v3150 = vmul.f32 %v2638, 0.16666667
  %v3151 = vmul.f32 %v2639, 0.16666667
  %v3152 = vmul.f32 %v2640, 0.16666667
  %v3153 = vmul.f32 %v2641, 0.16666667
  %v3154 = vmul.f32 %v2642, 0.16666667
  %v3155 = vmul.f32 %v2643, 0.16666667
  %v3156 = vmul.f32 %v2644, 0.16666667
  %v3157 = vmul.f32 %v2645, 0.16666667
  %v3158 = vmul.f32 %v2646, 0.16666667
  %v3159 = vmul.f32 %v2647, 0.16666667
  %v3160 = vmul.f32 %v2648, 0.16666667
  %v3161 = vmul.f32 %v2649, 0.16666667
  %v3162 = vmul.f32 %v2650, 0.16666667
  %v3163 = vmul.f32 %v2651, 0.16666667
  %v3164 = vmul.f32 %v2652, 0.16666667
  %v3165 = vmul.f32 %v2653, 0.16666667
  %v3166 = vmul.f32 %v2654, 0.16666667
  %v3167 = vmul.f32 %v2655, 0.16666667
  %v3168 = vmul.f32 %v2656, 0.16666667
  %v3169 = vmul.f32 %v2657, 0.16666667
  %v3170 = vmul.f32 %v2658, 0.16666667
  %v3171 = vmul.f32 %v2659, 0.16666667
  %v3172 = vmul.f32 %v2660, 0.16666667
  %v3173 = vmul.f32 %v2661, 0.16666667
  %v3174 = vmul.f32 %v2662, 0.16666667
  %v3175 = vmul.f32 %v2663, 0.16666667
  %v3176 = vmul.f32 %v2664, 0.16666667
  %v3177 = vmul.f32 %v2665, 0.16666667
  %v3178 = vmul.f32 %v2666, 0.16666667
  %v3179 = vmul.f32 %v2667, 0.16666667
  %v3180 = vmul.f32 %v2668, 0.16666667
  %v3181 = vmul.f32 %v2669, 0.16666667
  %v3182 = vmul.f32 %v2670, 0.16666667
  %v3183 = vmul.f32 %v2671, 0.16666667
  %v3184 = vmul.f32 %v2672, 0.16666667
  %v3185 = vmul.f32 %v2673, 0.16666667
  %v3186 = vmul.f32 %v2674, 0.16666667
  %v3187 = vmul.f32 %v2675, 0.16666667
  %v3188 = vmul.f32 %v2676, 0.16666667
  %v3189 = vmul.f32 %v2677, 0.16666667
  %v3190 = vmul.f32 %v2678, 0.16666667
  %v3191 = vmul.f32 %v2679, 0.16666667
  %v3192 = vmul.f32 %v2680, 0.16666667
  %v3193 = vmul.f32 %v2681, 0.16666667
  %v3194 = vmul.f32 %v2682, 0.16666667
  %v3195 = vmul.f32 %v2683, 0.16666667
  %v3196 = vmul.f32 %v2684, 0.16666667
  %v3197 = vmul.f32 %v2685, 0.16666667
  %v3198 = vmul.f32 %v2686, 0.16666667
  %v3199 = vmul.f32 %v2687, 0.16666667
  %v3200 = vmul.f32 %v2688, 0.16666667
  %v3201 = vmul.f32 %v2689, 0.16666667
  %v3202 = vmul.f32 %v2690, 0.16666667
  %v3203 = vmul.f32 %v2691, 0.16666667
  %v3204 = vmul.f32 %v2692, 0.16666667
  %v3205 = vmul.f32 %v2693, 0.16666667
  %v3206 = vmul.f32 %v2694, 0.16666667
  %v3207 = vmul.f32 %v2695, 0.16666667
  %v3208 = vmul.f32 %v2696, 0.16666667
  %v3209 = vmul.f32 %v2697, 0.16666667
  %v3210 = vmul.f32 %v2698, 0.16666667
  %v3211 = vmul.f32 %v2699, 0.16666667
  %v3212 = vmul.f32 %v2700, 0.16666667
  %v3213 = vmul.f32 %v2701, 0.16666667
  %v3214 = vmul.f32 %v2702, 0.16666667
  %v3215 = vmul.f32 %v2703, 0.16666667
  %v3216 = vmul.f32 %v2704, 0.16666667
  %v3217 = vmul.f32 %v2705, 0.16666667
  %v3218 = vmul.f32 %v2706, 0.16666667
  %v3219 = vmul.f32 %v2707, 0.16666667
  %v3220 = vmul.f32 %v2708, 0.16666667
  %v3221 = vmul.f32 %v2709, 0.16666667
  %v3222 = vmul.f32 %v2710, 0.16666667
  %v3223 = vmul.f32 %v2711, 0.16666667
  %v3224 = vmul.f32 %v2712, 0.16666667
  %v3225 = vmul.f32 %v2713, 0.16666667
  %v3226 = vmul.f32 %v2714, 0.16666667
  %v3227 = vmul.f32 %v2715, 0.16666667
  %v3228 = vmul.f32 %v2716, 0.16666667
  %v3229 = vmul.f32 %v2717, 0.16666667
  %v3230 = vmul.f32 %v2718, 0.16666667
  %v3231 = vmul.f32 %v2719, 0.16666667
  %v3232 = vmul.f32 %v2720, 0.16666667
  %v3233 = vmul.f32 %v2721, 0.16666667
  %v3234 = vmul.f32 %v2722, 0.16666667
  %v3235 = vmul.f32 %v2723, 0.16666667
  %v3236 = vmul.f32 %v2724, 0.16666667
  %v3237 = vmul.f32 %v2725, 0.16666667
  %v3238 = vmul.f32 %v2726, 0.16666667
  %v3239 = vmul.f32 %v2727, 0.16666667
  %v3240 = vmul.f32 %v2728, 0.16666667
  %v3241 = vmul.f32 %v2729, 0.16666667
  %v3242 = vmul.f32 %v2730, 0.16666667
  %v3243 = vmul.f32 %v2731, 0.16666667
  %v3244 = vmul.f32 %v2732, 0.16666667
  %v3245 = vmul.f32 %v2733, 0.16666667
  %v3246 = vmul.f32 %v2734, 0.16666667
  %v3247 = vmul.f32 %v2735, 0.16666667
  %v3248 = vmul.f32 %v2736, 0.16666667
  %v3249 = vmul.f32 %v2737, 0.16666667
  %v3250 = vmul.f32 %v2738, 0.16666667
  %v3251 = vmul.f32 %v2739, 0.16666667
  %v3252 = vmul.f32 %v2740, 0.16666667
  %v3253 = vmul.f32 %v2741, 0.16666667
  %v3254 = vmul.f32 %v2742, 0.16666667
  %v3255 = vmul.f32 %v2743, 0.16666667
  %v3256 = vmul.f32 %v2744, 0.16666667
  %v3257 = vmul.f32 %v2745, 0.16666667
  %v3258 = vmul.f32 %v2746, 0.16666667
  %v3259 = vmul.f32 %v2747, 0.16666667
  %v3260 = vmul.f32 %v2748, 0.16666667
  %v3261 = vmul.f32 %v2749, 0.16666667
  %v3262 = vmul.f32 %v2750, 0.16666667
  %v3263 = vmul.f32 %v2751, 0.16666667
  %v3264 = vmul.f32 %v2752, 0.16666667
  %v3265 = vmul.f32 %v2753, 0.16666667
  %v3266 = vmul.f32 %v2754, 0.16666667
  %v3267 = vmul.f32 %v2755, 0.16666667
  %v3268 = vmul.f32 %v2756, 0.16666667
  %v3269 = vmul.f32 %v2757, 0.16666667
  %v3270 = vmul.f32 %v2758, 0.16666667
  %v3271 = vmul.f32 %v2759, 0.16666667
  %v3272 = vmul.f32 %v2760, 0.16666667
  %v3273 = vmul.f32 %v2761, 0.16666667
  %v3274 = vmul.f32 %v2762, 0.16666667
  %v3275 = vmul.f32 %v2763, 0.16666667
  %v3276 = vmul.f32 %v2764, 0.16666667
  %v3277 = vmul.f32 %v2765, 0.16666667
  %v3278 = vmul.f32 %v2766, 0.16666667
  %v3279 = vmul.f32 %v2767, 0.16666667
  %v3280 = vmul.f32 %v2768, 0.16666667
  %v3281 = vmul.f32 %v2769, 0.16666667
  %v3282 = vmul.f32 %v2770, 0.16666667
  %v3283 = vmul.f32 %v2771, 0.16666667
  %v3284 = vmul.f32 %v2772, 0.16666667
  %v3285 = vmul.f32 %v2773, 0.16666667
  %v3286 = vmul.f32 %v2774, 0.16666667
  %v3287 = vmul.f32 %v2775, 0.16666667
  %v3288 = vmul.f32 %v2776, 0.16666667
  %v3289 = vmul.f32 %v2777, 0.16666667
  %v3290 = vmul.f32 %v2778, 0.16666667
  %v3291 = vmul.f32 %v2779, 0.16666667
  %v3292 = vmul.f32 %v2780, 0.16666667
  %v3293 = vmul.f32 %v2781, 0.16666667
  %v3294 = vmul.f32 %v2782, 0.16666667
  %v3295 = vmul.f32 %v2783, 0.16666667
  %v3296 = vmul.f32 %v2784, 0.16666667
  %v3297 = vmul.f32 %v2785, 0.16666667
  %v3298 = vmul.f32 %v2786, 0.16666667
  %v3299 = vmul.f32 %v2787, 0.16666667
  %v3300 = vmul.f32 %v2788, 0.16666667
  %v3301 = vmul.f32 %v2789, 0.16666667
  %v3302 = vmul.f32 %v2790, 0.16666667
  %v3303 = vmul.f32 %v2791, 0.16666667
  %v3304 = vmul.f32 %v2792, 0.16666667
  %v3305 = vmul.f32 %v2793, 0.16666667
  %v3306 = vmul.f32 %v2794, 0.16666667
  %v3307 = vmul.f32 %v2795, 0.16666667
  %v3308 = vmul.f32 %v2796, 0.16666667
  %v3309 = vmul.f32 %v2797, 0.16666667
  %v3310 = vmul.f32 %v2798, 0.16666667
  %v3311 = vmul.f32 %v2799, 0.16666667
  %v3312 = vmul.f32 %v2800, 0.16666667
  %v3313 = vmul.f32 %v2801, 0.16666667
  %v3314 = vmul.f32 %v2802, 0.16666667
  %v3315 = vmul.f32 %v2803, 0.16666667
  %v3316 = vmul.f32 %v2804, 0.16666667
  %v3317 = vmul.f32 %v2805, 0.16666667
  %v3318 = vmul.f32 %v2806, 0.16666667
  %v3319 = vmul.f32 %v2807, 0.16666667
  %v3320 = vmul.f32 %v2808, 0.16666667
  %v3321 = vmul.f32 %v2809, 0.16666667
  %v3322 = vmul.f32 %v2810, 0.16666667
  %v3323 = vmul.f32 %v2811, 0.16666667
  %v3324 = vmul.f32 %v2812, 0.16666667
  %v3325 = vmul.f32 %v2813, 0.16666667
  %v3326 = vmul.f32 %v2814, 0.16666667
  %v3327 = vmul.f32 %v2815, 0.16666667
  %v3328 = vmul.f32 %v2816, 0.16666667
  %v3329 = vmul.f32 %v2817, 0.16666667
  %v3330 = vmul.f32 %v2818, 0.16666667
  %v3331 = vmul.f32 %v2819, 0.16666667
  %v3332 = vmul.f32 %v2820, 0.16666667
  %v3333 = vmul.f32 %v2821, 0.16666667
  %v3334 = vmul.f32 %v2822, 0.16666667
  %v3335 = vmul.f32 %v2823, 0.16666667
  %v3336 = vmul.f32 %v2824, 0.16666667
  %v3337 = vmul.f32 %v2825, 0.16666667
  %v3338 = vmul.f32 %v2826, 0.16666667
  %v3339 = vmul.f32 %v2827, 0.16666667
  %v3340 = vmul.f32 %v2828, 0.16666667
  %v3341 = vmul.f32 %v2829, 0.16666667
  %v3342 = vmul.f32 %v2830, 0.16666667
  %v3343 = vmul.f32 %v2831, 0.16666667
  %v3344 = vmul.f32 %v2832, 0.16666667
  %v3345 = vmul.f32 %v2833, 0.16666667
  %v3346 = vmul.f32 %v2834, 0.16666667
  %v3347 = vmul.f32 %v2835, 0.16666667
  %v3348 = vmul.f32 %v2836, 0.16666667
  %v3349 = vmul.f32 %v2837, 0.16666667
  %v3350 = vmul.f32 %v2838, 0.16666667
  %v3351 = vmul.f32 %v2839, 0.16666667
  %v3352 = vmul.f32 %v2840, 0.16666667
  %v3353 = vmul.f32 %v2841, 0.16666667
  %v3354 = vmul.f32 %v2842, 0.16666667
  %v3355 = vmul.f32 %v2843, 0.16666667
  %v3356 = vmul.f32 %v2844, 0.16666667
  %v3357 = vmul.f32 %v2845, 0.16666667
  %v3358 = vmul.f32 %v2846, 0.16666667
  %v3359 = vmul.f32 %v2847, 0.16666667
  %v3360 = vmul.f32 %v2848, 0.16666667
  %v3361 = vmul.f32 %v2849, 0.16666667
  %v3362 = vmul.f32 %v2850, 0.16666667
  %v3363 = vmul.f32 %v2851, 0.16666667
  %v3364 = vmul.f32 %v2852, 0.16666667
  %v3365 = vmul.f32 %v2853, 0.16666667
  %v3366 = vmul.f32 %v2854, 0.16666667
  %v3367 = vmul.f32 %v2855, 0.16666667
  %v3368 = vmul.f32 %v2856, 0.16666667
  %v3369 = vmul.f32 %v2857, 0.16666667
  %v3370 = vmul.f32 %v2858, 0.16666667
  %v3371 = vmul.f32 %v2859, 0.16666667
  %v3372 = vmul.f32 %v2860, 0.16666667
  %v3373 = vmul.f32 %v2861, 0.16666667
  %v3374 = vmul.f32 %v2862, 0.16666667
  %v3375 = vmul.f32 %v2863, 0.16666667
  %v3376 = vmul.f32 %v2864, 0.16666667
  %v3377 = vmul.f32 %v2865, 0.16666667
  %v3378 = vmul.f32 %v2866, 0.16666667
  %v3379 = vmul.f32 %v2867, 0.16666667
  %v3380 = vmul.f32 %v2868, 0.16666667
  %v3381 = vmul.f32 %v2869, 0.16666667
  %v3382 = vmul.f32 %v2870, 0.16666667
  %v3383 = vmul.f32 %v2871, 0.16666667
  %v3384 = vmul.f32 %v2872, 0.16666667
  %v3385 = vmul.f32 %v2873, 0.16666667
  %v3386 = vmul.f32 %v2874, 0.16666667
  %v3387 = vmul.f32 %v2875, 0.16666667
  %v3388 = vmul.f32 %v2876, 0.16666667
  %v3389 = vmul.f32 %v2877, 0.16666667
  %v3390 = vmul.f32 %v2878, 0.16666667
  %v3391 = vmul.f32 %v2879, 0.16666667
  %v3392 = vmul.f32 %v2880, 0.16666667
  %v3393 = vmul.f32 %v2881, 0.16666667
  %v3394 = vmul.f32 %v2882, 0.16666667
  %v3395 = vmul.f32 %v2883, 0.16666667
  %v3396 = vmul.f32 %v2884, 0.16666667
  %v3397 = vmul.f32 %v2885, 0.16666667
  %v3398 = vmul.f32 %v2886, 0.16666667
  %v3399 = vmul.f32 %v2887, 0.16666667
  %v3400 = vmul.f32 %v2888, 0.16666667
  %v3401 = vmul.f32 %v2889, 0.16666667
  %v3402 = vmul.f32 %v2890, 0.16666667
  %v3403 = vmul.f32 %v2891, 0.16666667
  %v3404 = vmul.f32 %v2892, 0.16666667
  %v3405 = vmul.f32 %v2893, 0.16666667
  %v3406 = vmul.f32 %v2894, 0.16666667
  %v3407 = vmul.f32 %v2895, 0.16666667
  %v3408 = vmul.f32 %v2896, 0.16666667
  %v3409 = vmul.f32 %v2897, 0.16666667
  %v3410 = vmul.f32 %v2898, 0.16666667
  %v3411 = vmul.f32 %v2899, 0.16666667
  %v3412 = vmul.f32 %v2900, 0.16666667
  %v3413 = vmul.f32 %v2901, 0.16666667
  %v3414 = vmul.f32 %v2902, 0.16666667
  %v3415 = vmul.f32 %v2903, 0.16666667
  %v3416 = vmul.f32 %v2904, 0.16666667
  %v3417 = vmul.f32 %v2905, 0.16666667
  %v3418 = vmul.f32 %v2906, 0.16666667
  %v3419 = vmul.f32 %v2907, 0.16666667
  %v3420 = vmul.f32 %v2908, 0.16666667
  %v3421 = vmul.f32 %v2909, 0.16666667
  %v3422 = vmul.f32 %v2910, 0.16666667
  %v3423 = vmul.f32 %v2911, 0.16666667
  %v3424 = vmul.f32 %v2912, 0.16666667
  %v3425 = vmul.f32 %v2913, 0.16666667
  %v3426 = vmul.f32 %v2914, 0.16666667
  %v3427 = vmul.f32 %v2915, 0.16666667
  %v3428 = vmul.f32 %v2916, 0.16666667
  %v3429 = vmul.f32 %v2917, 0.16666667
  %v3430 = vmul.f32 %v2918, 0.16666667
  %v3431 = vmul.f32 %v2919, 0.16666667
  %v3432 = vmul.f32 %v2920, 0.16666667
  %v3433 = vmul.f32 %v2921, 0.16666667
  %v3434 = vmul.f32 %v2922, 0.16666667
  %v3435 = vmul.f32 %v2923, 0.16666667
  %v3436 = vmul.f32 %v2924, 0.16666667
  %v3437 = vmul.f32 %v2925, 0.16666667
  %v3438 = vmul.f32 %v2926, 0.16666667
  %v3439 = vmul.f32 %v2927, 0.16666667
  %v3440 = vmul.f32 %v2928, 0.16666667
  %v3441 = vmul.f32 %v2929, 0.16666667
  %v3442 = vmul.f32 %v2930, 0.16666667
  %v3443 = vmul.f32 %v2931, 0.16666667
  %v3444 = vmul.f32 %v2932, 0.16666667
  %v3445 = vmul.f32 %v2933, 0.16666667
  %v3446 = vmul.f32 %v2934, 0.16666667
  %v3447 = vmul.f32 %v2935, 0.16666667
  %v3448 = vmul.f32 %v2936, 0.16666667
  %v3449 = vmul.f32 %v2937, 0.16666667
  %v3450 = vmul.f32 %v2938, 0.16666667
  %v3451 = vmul.f32 %v2939, 0.16666667
  %v3452 = vmul.f32 %v2940, 0.16666667
  %v3453 = vmul.f32 %v2941, 0.16666667
  %v3454 = vmul.f32 %v2942, 0.16666667
  %v3455 = vmul.f32 %v2943, 0.16666667
  %v3456 = vmul.f32 %v2944, 0.16666667
  %v3457 = vmul.f32 %v2945, 0.16666667
  %v3458 = vmul.f32 %v2946, 0.16666667
  %v3459 = vmul.f32 %v2947, 0.16666667
  %v3460 = vmul.f32 %v2948, 0.16666667
  %v3461 = vmul.f32 %v2949, 0.16666667
  %v3462 = vmul.f32 %v2950, 0.16666667
  %v3463 = vmul.f32 %v2951, 0.16666667
  %v3464 = vmul.f32 %v2952, 0.16666667
  %v3465 = vmul.f32 %v2953, 0.16666667
  %v3466 = vmul.f32 %v2954, 0.16666667
  %v3467 = vmul.f32 %v2955, 0.16666667
  %v3468 = vmul.f32 %v2956, 0.16666667
  %v3469 = vmul.f32 %v2957, 0.16666667
  %v3470 = vmul.f32 %v2958, 0.16666667
  %v3471 = vmul.f32 %v2959, 0.16666667
  %v3472 = vmul.f32 %v2960, 0.16666667
  %v3473 = vmul.f32 %v2961, 0.16666667
  %v3474 = vmul.f32 %v2962, 0.16666667
  %v3475 = vmul.f32 %v2963, 0.16666667
  %v3476 = vmul.f32 %v2964, 0.16666667
  %v3477 = vmul.f32 %v2965, 0.16666667
  %v3478 = vmul.f32 %v2966, 0.16666667
  %v3479 = vmul.f32 %v2967, 0.16666667
  %v3480 = vmul.f32 %v2968, 0.16666667
  %v3481 = vmul.f32 %v2969, 0.16666667
  %v3482 = vmul.f32 %v2970, 0.16666667
  %v3483 = vmul.f32 %v2971, 0.16666667
  %v3484 = vmul.f32 %v2972, 0.16666667
  %v3485 = vmul.f32 %v2973, 0.16666667
  %v3486 = vmul.f32 %v2974, 0.16666667
  %v3487 = vmul.f32 %v2975, 0.16666667
  %v3488 = vmul.f32 %v2976, 0.16666667
  %v3489 = vmul.f32 %v2977, 0.16666667
  %v3490 = vmul.f32 %v2978, 0.16666667
  %v3491 = vmul.f32 %v2979, 0.16666667
  %v3492 = vmul.f32 %v2980, 0.16666667
  %v3493 = vmul.f32 %v2981, 0.16666667
  %v3494 = vmul.f32 %v2982, 0.16666667
  %v3495 = vmul.f32 %v2983, 0.16666667
  %v3496 = vmul.f32 %v2984, 0.16666667
  %v3497 = vmul.f32 %v2985, 0.16666667
  %v3498 = vmul.f32 %v2986, 0.16666667
  %v3499 = vmul.f32 %v2987, 0.16666667
  %v3500 = vmul.f32 %v2988, 0.16666667
  %v3501 = vmul.f32 %v2989, 0.16666667
  %v3502 = vmul.f32 %v2990, 0.16666667
  %v3503 = vmul.f32 %v2991, 0.16666667
  %v3504 = vmul.f32 %v2992, 0.16666667
  %v3505 = vmul.f32 %v2993, 0.16666667
  %v3506 = vmul.f32 %v2994, 0.16666667
  %v3507 = vmul.f32 %v2995, 0.16666667
  %v3508 = vmul.f32 %v2996, 0.16666667
  %v3509 = vmul.f32 %v2997, 0.16666667
  %v3510 = vmul.f32 %v2998, 0.16666667
  %v3511 = vmul.f32 %v2999, 0.16666667
  %v3512 = vmul.f32 %v3000, 0.16666667
  %v3513 = vmul.f32 %v3001, 0.16666667
  %v3514 = vmul.f32 %v3002, 0.16666667
  %v3515 = vmul.f32 %v3003, 0.16666667
  %v3516 = vmul.f32 %v3004, 0.16666667
  %v3517 = vmul.f32 %v3005, 0.16666667
  %v3518 = vmul.f32 %v3006, 0.16666667
  %v3519 = vmul.f32 %v3007, 0.16666667
  %v3520 = vmul.f32 %v3008, 0.16666667
  %v3521 = vmul.f32 %v3009, 0.16666667
  %v3522 = vmul.f32 %v3010, 0.16666667
  %v3523 = vmul.f32 %v3011, 0.16666667
  %v3524 = vmul.f32 %v3012, 0.16666667
  %v3525 = vmul.f32 %v3013, 0.16666667
  %v3526 = vmul.f32 %v3014, 0.16666667
  %v3527 = vmul.f32 %v3015, 0.16666667
  %v3528 = vmul.f32 %v3016, 0.16666667
  %v3529 = vmul.f32 %v3017, 0.16666667
  %v3530 = vmul.f32 %v3018, 0.16666667
  %v3531 = vmul.f32 %v3019, 0.16666667
  %v3532 = vmul.f32 %v3020, 0.16666667
  %v3533 = vmul.f32 %v3021, 0.16666667
  %v3534 = vmul.f32 %v3022, 0.16666667
  %v3535 = vmul.f32 %v3023, 0.16666667
  %v3536 = vmul.f32 %v3024, 0.16666667
  %v3537 = vmul.f32 %v3025, 0.16666667
  %v3538 = vmul.f32 %v3026, 0.16666667
  %v3539 = vmul.f32 %v3027, 0.16666667
  %v3540 = vmul.f32 %v3028, 0.16666667
  %v3541 = vmul.f32 %v3029, 0.16666667
  %v3542 = vmul.f32 %v3030, 0.16666667
  %v3543 = vmul.f32 %v3031, 0.16666667
  %v3544 = vmul.f32 %v3032, 0.16666667
  %v3545 = vmul.f32 %v3033, 0.16666667
  %v3546 = vmul.f32 %v3034, 0.16666667
  %v3547 = vmul.f32 %v3035, 0.16666667
  %v3548 = vmul.f32 %v3036, 0.16666667
  %v3549 = vmul.f32 %v3037, 0.16666667
  %v3550 = vmul.f32 %v3038, 0.16666667
  %v3551 = vmul.f32 %v3039, 0.16666667
  %v3552 = vmul.f32 %v3040, 0.16666667
  %v3553 = vmul.f32 %v3041, 0.16666667
  %v3554 = vmul.f32 %v3042, 0.16666667
  %v3555 = vmul.f32 %v3043, 0.16666667
  %v3556 = vmul.f32 %v3044, 0.16666667
  %v3557 = vmul.f32 %v3045, 0.16666667
  %v3558 = vmul.f32 %v3046, 0.16666667
  %v3559 = vmul.f32 %v3047, 0.16666667
  %v3560 = vmul.f32 %v3048, 0.16666667
  %v3561 = vmul.f32 %v3049, 0.16666667
  %v3562 = vmul.f32 %v3050, 0.16666667
  %v3563 = vmul.f32 %v3051, 0.16666667
  %v3564 = vmul.f32 %v3052, 0.16666667
  %v3565 = vmul.f32 %v3053, 0.16666667
  %v3566 = vmul.f32 %v3054, 0.16666667
  %v3567 = vmul.f32 %v3055, 0.16666667
  %v3568 = vmul.f32 %v3056, 0.16666667
  %v3569 = vmul.f32 %v3057, 0.16666667
  %v3570 = vmul.f32 %v3058, 0.16666667
  %v3571 = vmul.f32 %v3059, 0.16666667
  %v3572 = vmul.f32 %v3060, 0.16666667
  %v3573 = vmul.f32 %v3061, 0.16666667
  %v3574 = vmul.f32 %v3062, 0.16666667
  %v3575 = vmul.f32 %v3063, 0.16666667
  %v3576 = vmul.f32 %v3064, 0.16666667
  %v3577 = vmul.f32 %v3065, 0.16666667
  %v3578 = vmul.f32 %v3066, 0.16666667
  %v3579 = vmul.f32 %v3067, 0.16666667
  %v3580 = vmul.f32 %v3068, 0.16666667
  %v3581 = vmul.f32 %v3069, 0.16666667
  %v3582 = vmul.f32 %v3070, 0.16666667
  %v3583 = vmul.f32 %v3071, 0.16666667
  %v3584 = vmul.f32 %v3072, 0.16666667
  %v3585 = vmul.f32 %v3073, 0.16666667
  %v3586 = vmul.f32 %v3074, 0.16666667
  %v3587 = vmul.f32 %v3075, 0.16666667
  %v3588 = vmul.f32 %v3076, 0.16666667
  %v3589 = vmul.f32 %v3077, 0.16666667
  %v3590 = vmul.f32 %v3078, 0.16666667
  %v3591 = vmul.f32 %v3079, 0.16666667
  %v3592 = vmul.f32 %v3080, 0.16666667
  %v3593 = vmul.f32 %v3081, 0.16666667
  %v3594 = vmul.f32 %v3082, 0.16666667
  %v3595 = vmul.f32 %v1035, %v1035
  %v3596 = vmul.f32 %v1036, %v1036
  %v3597 = vmul.f32 %v1037, %v1037
  %v3598 = vmul.f32 %v1038, %v1038
  %v3599 = vmul.f32 %v1039, %v1039
  %v3600 = vmul.f32 %v1040, %v1040
  %v3601 = vmul.f32 %v1041, %v1041
  %v3602 = vmul.f32 %v1042, %v1042
  %v3603 = vmul.f32 %v1043, %v1043
  %v3604 = vmul.f32 %v1044, %v1044
  %v3605 = vmul.f32 %v1045, %v1045
  %v3606 = vmul.f32 %v1046, %v1046
  %v3607 = vmul.f32 %v1047, %v1047
  %v3608 = vmul.f32 %v1048, %v1048
  %v3609 = vmul.f32 %v1049, %v1049
  %v3610 = vmul.f32 %v1050, %v1050
  %v3611 = vmul.f32 %v1051, %v1051
  %v3612 = vmul.f32 %v1052, %v1052
  %v3613 = vmul.f32 %v1053, %v1053
  %v3614 = vmul.f32 %v1054, %v1054
  %v3615 = vmul.f32 %v1055, %v1055
  %v3616 = vmul.f32 %v1056, %v1056
  %v3617 = vmul.f32 %v1057, %v1057
  %v3618 = vmul.f32 %v1058, %v1058
  %v3619 = vmul.f32 %v1059, %v1059
  %v3620 = vmul.f32 %v1060, %v1060
  %v3621 = vmul.f32 %v1061, %v1061
  %v3622 = vmul.f32 %v1062, %v1062
  %v3623 = vmul.f32 %v1063, %v1063
  %v3624 = vmul.f32 %v1064, %v1064
  %v3625 = vmul.f32 %v1065, %v1065
  %v3626 = vmul.f32 %v1066, %v1066
  %v3627 = vmul.f32 %v1067, %v1067
  %v3628 = vmul.f32 %v1068, %v1068
  %v3629 = vmul.f32 %v1069, %v1069
  %v3630 = vmul.f32 %v1070, %v1070
  %v3631 = vmul.f32 %v1071, %v1071
  %v3632 = vmul.f32 %v1072, %v1072
  %v3633 = vmul.f32 %v1073, %v1073
  %v3634 = vmul.f32 %v1074, %v1074
  %v3635 = vmul.f32 %v1075, %v1075
  %v3636 = vmul.f32 %v1076, %v1076
  %v3637 = vmul.f32 %v1077, %v1077
  %v3638 = vmul.f32 %v1078, %v1078
  %v3639 = vmul.f32 %v1079, %v1079
  %v3640 = vmul.f32 %v1080, %v1080
  %v3641 = vmul.f32 %v1081, %v1081
  %v3642 = vmul.f32 %v1082, %v1082
  %v3643 = vmul.f32 %v1083, %v1083
  %v3644 = vmul.f32 %v1084, %v1084
  %v3645 = vmul.f32 %v1085, %v1085
  %v3646 = vmul.f32 %v1086, %v1086
  %v3647 = vmul.f32 %v1087, %v1087
  %v3648 = vmul.f32 %v1088, %v1088
  %v3649 = vmul.f32 %v1089, %v1089
  %v3650 = vmul.f32 %v1090, %v1090
  %v3651 = vmul.f32 %v1091, %v1091
  %v3652 = vmul.f32 %v1092, %v1092
  %v3653 = vmul.f32 %v1093, %v1093
  %v3654 = vmul.f32 %v1094, %v1094
  %v3655 = vmul.f32 %v1095, %v1095
  %v3656 = vmul.f32 %v1096, %v1096
  %v3657 = vmul.f32 %v1097, %v1097
  %v3658 = vmul.f32 %v1098, %v1098
  %v3659 = vmul.f32 %v1099, %v1099
  %v3660 = vmul.f32 %v1100, %v1100
  %v3661 = vmul.f32 %v1101, %v1101
  %v3662 = vmul.f32 %v1102, %v1102
  %v3663 = vmul.f32 %v1103, %v1103
  %v3664 = vmul.f32 %v1104, %v1104
  %v3665 = vmul.f32 %v1105, %v1105
  %v3666 = vmul.f32 %v1106, %v1106
  %v3667 = vmul.f32 %v1107, %v1107
  %v3668 = vmul.f32 %v1108, %v1108
  %v3669 = vmul.f32 %v1109, %v1109
  %v3670 = vmul.f32 %v1110, %v1110
  %v3671 = vmul.f32 %v1111, %v1111
  %v3672 = vmul.f32 %v1112, %v1112
  %v3673 = vmul.f32 %v1113, %v1113
  %v3674 = vmul.f32 %v1114, %v1114
  %v3675 = vmul.f32 %v1115, %v1115
  %v3676 = vmul.f32 %v1116, %v1116
  %v3677 = vmul.f32 %v1117, %v1117
  %v3678 = vmul.f32 %v1118, %v1118
  %v3679 = vmul.f32 %v1119, %v1119
  %v3680 = vmul.f32 %v1120, %v1120
  %v3681 = vmul.f32 %v1121, %v1121
  %v3682 = vmul.f32 %v1122, %v1122
  %v3683 = vmul.f32 %v1123, %v1123
  %v3684 = vmul.f32 %v1124, %v1124
  %v3685 = vmul.f32 %v1125, %v1125
  %v3686 = vmul.f32 %v1126, %v1126
  %v3687 = vmul.f32 %v1127, %v1127
  %v3688 = vmul.f32 %v1128, %v1128
  %v3689 = vmul.f32 %v1129, %v1129
  %v3690 = vmul.f32 %v1130, %v1130
  %v3691 = vmul.f32 %v1131, %v1131
  %v3692 = vmul.f32 %v1132, %v1132
  %v3693 = vmul.f32 %v1133, %v1133
  %v3694 = vmul.f32 %v1134, %v1134
  %v3695 = vmul.f32 %v1135, %v1135
  %v3696 = vmul.f32 %v1136, %v1136
  %v3697 = vmul.f32 %v1137, %v1137
  %v3698 = vmul.f32 %v1138, %v1138
  %v3699 = vmul.f32 %v1139, %v1139
  %v3700 = vmul.f32 %v1140, %v1140
  %v3701 = vmul.f32 %v1141, %v1141
  %v3702 = vmul.f32 %v1142, %v1142
  %v3703 = vmul.f32 %v1143, %v1143
  %v3704 = vmul.f32 %v1144, %v1144
  %v3705 = vmul.f32 %v1145, %v1145
  %v3706 = vmul.f32 %v1146, %v1146
  %v3707 = vmul.f32 %v1147, %v1147
  %v3708 = vmul.f32 %v1148, %v1148
  %v3709 = vmul.f32 %v1149, %v1149
  %v3710 = vmul.f32 %v1150, %v1150
  %v3711 = vmul.f32 %v1151, %v1151
  %v3712 = vmul.f32 %v1152, %v1152
  %v3713 = vmul.f32 %v1153, %v1153
  %v3714 = vmul.f32 %v1154, %v1154
  %v3715 = vmul.f32 %v1155, %v1155
  %v3716 = vmul.f32 %v1156, %v1156
  %v3717 = vmul.f32 %v1157, %v1157
  %v3718 = vmul.f32 %v1158, %v1158
  %v3719 = vmul.f32 %v1159, %v1159
  %v3720 = vmul.f32 %v1160, %v1160
  %v3721 = vmul.f32 %v1161, %v1161
  %v3722 = vmul.f32 %v1162, %v1162
  %v3723 = vmul.f32 %v1163, %v1163
  %v3724 = vmul.f32 %v1164, %v1164
  %v3725 = vmul.f32 %v1165, %v1165
  %v3726 = vmul.f32 %v1166, %v1166
  %v3727 = vmul.f32 %v1167, %v1167
  %v3728 = vmul.f32 %v1168, %v1168
  %v3729 = vmul.f32 %v1169, %v1169
  %v3730 = vmul.f32 %v1170, %v1170
  %v3731 = vmul.f32 %v1171, %v1171
  %v3732 = vmul.f32 %v1172, %v1172
  %v3733 = vmul.f32 %v1173, %v1173
  %v3734 = vmul.f32 %v1174, %v1174
  %v3735 = vmul.f32 %v1175, %v1175
  %v3736 = vmul.f32 %v1176, %v1176
  %v3737 = vmul.f32 %v1177, %v1177
  %v3738 = vmul.f32 %v1178, %v1178
  %v3739 = vmul.f32 %v1179, %v1179
  %v3740 = vmul.f32 %v1180, %v1180
  %v3741 = vmul.f32 %v1181, %v1181
  %v3742 = vmul.f32 %v1182, %v1182
  %v3743 = vmul.f32 %v1183, %v1183
  %v3744 = vmul.f32 %v1184, %v1184
  %v3745 = vmul.f32 %v1185, %v1185
  %v3746 = vmul.f32 %v1186, %v1186
  %v3747 = vmul.f32 %v1187, %v1187
  %v3748 = vmul.f32 %v1188, %v1188
  %v3749 = vmul.f32 %v1189, %v1189
  %v3750 = vmul.f32 %v1190, %v1190
  %v3751 = vmul.f32 %v1191, %v1191
  %v3752 = vmul.f32 %v1192, %v1192
  %v3753 = vmul.f32 %v1193, %v1193
  %v3754 = vmul.f32 %v1194, %v1194
  %v3755 = vmul.f32 %v1195, %v1195
  %v3756 = vmul.f32 %v1196, %v1196
  %v3757 = vmul.f32 %v1197, %v1197
  %v3758 = vmul.f32 %v1198, %v1198
  %v3759 = vmul.f32 %v1199, %v1199
  %v3760 = vmul.f32 %v1200, %v1200
  %v3761 = vmul.f32 %v1201, %v1201
  %v3762 = vmul.f32 %v1202, %v1202
  %v3763 = vmul.f32 %v1203, %v1203
  %v3764 = vmul.f32 %v1204, %v1204
  %v3765 = vmul.f32 %v1205, %v1205
  %v3766 = vmul.f32 %v1206, %v1206
  %v3767 = vmul.f32 %v1207, %v1207
  %v3768 = vmul.f32 %v1208, %v1208
  %v3769 = vmul.f32 %v1209, %v1209
  %v3770 = vmul.f32 %v1210, %v1210
  %v3771 = vmul.f32 %v1211, %v1211
  %v3772 = vmul.f32 %v1212, %v1212
  %v3773 = vmul.f32 %v1213, %v1213
  %v3774 = vmul.f32 %v1214, %v1214
  %v3775 = vmul.f32 %v1215, %v1215
  %v3776 = vmul.f32 %v1216, %v1216
  %v3777 = vmul.f32 %v1217, %v1217
  %v3778 = vmul.f32 %v1218, %v1218
  %v3779 = vmul.f32 %v1219, %v1219
  %v3780 = vmul.f32 %v1220, %v1220
  %v3781 = vmul.f32 %v1221, %v1221
  %v3782 = vmul.f32 %v1222, %v1222
  %v3783 = vmul.f32 %v1223, %v1223
  %v3784 = vmul.f32 %v1224, %v1224
  %v3785 = vmul.f32 %v1225, %v1225
  %v3786 = vmul.f32 %v1226, %v1226
  %v3787 = vmul.f32 %v1227, %v1227
  %v3788 = vmul.f32 %v1228, %v1228
  %v3789 = vmul.f32 %v1229, %v1229
  %v3790 = vmul.f32 %v1230, %v1230
  %v3791 = vmul.f32 %v1231, %v1231
  %v3792 = vmul.f32 %v1232, %v1232
  %v3793 = vmul.f32 %v1233, %v1233
  %v3794 = vmul.f32 %v1234, %v1234
  %v3795 = vmul.f32 %v1235, %v1235
  %v3796 = vmul.f32 %v1236, %v1236
  %v3797 = vmul.f32 %v1237, %v1237
  %v3798 = vmul.f32 %v1238, %v1238
  %v3799 = vmul.f32 %v1239, %v1239
  %v3800 = vmul.f32 %v1240, %v1240
  %v3801 = vmul.f32 %v1241, %v1241
  %v3802 = vmul.f32 %v1242, %v1242
  %v3803 = vmul.f32 %v1243, %v1243
  %v3804 = vmul.f32 %v1244, %v1244
  %v3805 = vmul.f32 %v1245, %v1245
  %v3806 = vmul.f32 %v1246, %v1246
  %v3807 = vmul.f32 %v1247, %v1247
  %v3808 = vmul.f32 %v1248, %v1248
  %v3809 = vmul.f32 %v1249, %v1249
  %v3810 = vmul.f32 %v1250, %v1250
  %v3811 = vmul.f32 %v1251, %v1251
  %v3812 = vmul.f32 %v1252, %v1252
  %v3813 = vmul.f32 %v1253, %v1253
  %v3814 = vmul.f32 %v1254, %v1254
  %v3815 = vmul.f32 %v1255, %v1255
  %v3816 = vmul.f32 %v1256, %v1256
  %v3817 = vmul.f32 %v1257, %v1257
  %v3818 = vmul.f32 %v1258, %v1258
  %v3819 = vmul.f32 %v1259, %v1259
  %v3820 = vmul.f32 %v1260, %v1260
  %v3821 = vmul.f32 %v1261, %v1261
  %v3822 = vmul.f32 %v1262, %v1262
  %v3823 = vmul.f32 %v1263, %v1263
  %v3824 = vmul.f32 %v1264, %v1264
  %v3825 = vmul.f32 %v1265, %v1265
  %v3826 = vmul.f32 %v1266, %v1266
  %v3827 = vmul.f32 %v1267, %v1267
  %v3828 = vmul.f32 %v1268, %v1268
  %v3829 = vmul.f32 %v1269, %v1269
  %v3830 = vmul.f32 %v1270, %v1270
  %v3831 = vmul.f32 %v1271, %v1271
  %v3832 = vmul.f32 %v1272, %v1272
  %v3833 = vmul.f32 %v1273, %v1273
  %v3834 = vmul.f32 %v1274, %v1274
  %v3835 = vmul.f32 %v1275, %v1275
  %v3836 = vmul.f32 %v1276, %v1276
  %v3837 = vmul.f32 %v1277, %v1277
  %v3838 = vmul.f32 %v1278, %v1278
  %v3839 = vmul.f32 %v1279, %v1279
  %v3840 = vmul.f32 %v1280, %v1280
  %v3841 = vmul.f32 %v1281, %v1281
  %v3842 = vmul.f32 %v1282, %v1282
  %v3843 = vmul.f32 %v1283, %v1283
  %v3844 = vmul.f32 %v1284, %v1284
  %v3845 = vmul.f32 %v1285, %v1285
  %v3846 = vmul.f32 %v1286, %v1286
  %v3847 = vmul.f32 %v1287, %v1287
  %v3848 = vmul.f32 %v1288, %v1288
  %v3849 = vmul.f32 %v1289, %v1289
  %v3850 = vmul.f32 %v1290, %v1290
  %v3851 = vmul.f32 %v1291, %v1291
  %v3852 = vmul.f32 %v1292, %v1292
  %v3853 = vmul.f32 %v1293, %v1293
  %v3854 = vmul.f32 %v1294, %v1294
  %v3855 = vmul.f32 %v1295, %v1295
  %v3856 = vmul.f32 %v1296, %v1296
  %v3857 = vmul.f32 %v1297, %v1297
  %v3858 = vmul.f32 %v1298, %v1298
  %v3859 = vmul.f32 %v1299, %v1299
  %v3860 = vmul.f32 %v1300, %v1300
  %v3861 = vmul.f32 %v1301, %v1301
  %v3862 = vmul.f32 %v1302, %v1302
  %v3863 = vmul.f32 %v1303, %v1303
  %v3864 = vmul.f32 %v1304, %v1304
  %v3865 = vmul.f32 %v1305, %v1305
  %v3866 = vmul.f32 %v1306, %v1306
  %v3867 = vmul.f32 %v1307, %v1307
  %v3868 = vmul.f32 %v1308, %v1308
  %v3869 = vmul.f32 %v1309, %v1309
  %v3870 = vmul.f32 %v1310, %v1310
  %v3871 = vmul.f32 %v1311, %v1311
  %v3872 = vmul.f32 %v1312, %v1312
  %v3873 = vmul.f32 %v1313, %v1313
  %v3874 = vmul.f32 %v1314, %v1314
  %v3875 = vmul.f32 %v1315, %v1315
  %v3876 = vmul.f32 %v1316, %v1316
  %v3877 = vmul.f32 %v1317, %v1317
  %v3878 = vmul.f32 %v1318, %v1318
  %v3879 = vmul.f32 %v1319, %v1319
  %v3880 = vmul.f32 %v1320, %v1320
  %v3881 = vmul.f32 %v1321, %v1321
  %v3882 = vmul.f32 %v1322, %v1322
  %v3883 = vmul.f32 %v1323, %v1323
  %v3884 = vmul.f32 %v1324, %v1324
  %v3885 = vmul.f32 %v1325, %v1325
  %v3886 = vmul.f32 %v1326, %v1326
  %v3887 = vmul.f32 %v1327, %v1327
  %v3888 = vmul.f32 %v1328, %v1328
  %v3889 = vmul.f32 %v1329, %v1329
  %v3890 = vmul.f32 %v1330, %v1330
  %v3891 = vmul.f32 %v1331, %v1331
  %v3892 = vmul.f32 %v1332, %v1332
  %v3893 = vmul.f32 %v1333, %v1333
  %v3894 = vmul.f32 %v1334, %v1334
  %v3895 = vmul.f32 %v1335, %v1335
  %v3896 = vmul.f32 %v1336, %v1336
  %v3897 = vmul.f32 %v1337, %v1337
  %v3898 = vmul.f32 %v1338, %v1338
  %v3899 = vmul.f32 %v1339, %v1339
  %v3900 = vmul.f32 %v1340, %v1340
  %v3901 = vmul.f32 %v1341, %v1341
  %v3902 = vmul.f32 %v1342, %v1342
  %v3903 = vmul.f32 %v1343, %v1343
  %v3904 = vmul.f32 %v1344, %v1344
  %v3905 = vmul.f32 %v1345, %v1345
  %v3906 = vmul.f32 %v1346, %v1346
  %v3907 = vmul.f32 %v1347, %v1347
  %v3908 = vmul.f32 %v1348, %v1348
  %v3909 = vmul.f32 %v1349, %v1349
  %v3910 = vmul.f32 %v1350, %v1350
  %v3911 = vmul.f32 %v1351, %v1351
  %v3912 = vmul.f32 %v1352, %v1352
  %v3913 = vmul.f32 %v1353, %v1353
  %v3914 = vmul.f32 %v1354, %v1354
  %v3915 = vmul.f32 %v1355, %v1355
  %v3916 = vmul.f32 %v1356, %v1356
  %v3917 = vmul.f32 %v1357, %v1357
  %v3918 = vmul.f32 %v1358, %v1358
  %v3919 = vmul.f32 %v1359, %v1359
  %v3920 = vmul.f32 %v1360, %v1360
  %v3921 = vmul.f32 %v1361, %v1361
  %v3922 = vmul.f32 %v1362, %v1362
  %v3923 = vmul.f32 %v1363, %v1363
  %v3924 = vmul.f32 %v1364, %v1364
  %v3925 = vmul.f32 %v1365, %v1365
  %v3926 = vmul.f32 %v1366, %v1366
  %v3927 = vmul.f32 %v1367, %v1367
  %v3928 = vmul.f32 %v1368, %v1368
  %v3929 = vmul.f32 %v1369, %v1369
  %v3930 = vmul.f32 %v1370, %v1370
  %v3931 = vmul.f32 %v1371, %v1371
  %v3932 = vmul.f32 %v1372, %v1372
  %v3933 = vmul.f32 %v1373, %v1373
  %v3934 = vmul.f32 %v1374, %v1374
  %v3935 = vmul.f32 %v1375, %v1375
  %v3936 = vmul.f32 %v1376, %v1376
  %v3937 = vmul.f32 %v1377, %v1377
  %v3938 = vmul.f32 %v1378, %v1378
  %v3939 = vmul.f32 %v1379, %v1379
  %v3940 = vmul.f32 %v1380, %v1380
  %v3941 = vmul.f32 %v1381, %v1381
  %v3942 = vmul.f32 %v1382, %v1382
  %v3943 = vmul.f32 %v1383, %v1383
  %v3944 = vmul.f32 %v1384, %v1384
  %v3945 = vmul.f32 %v1385, %v1385
  %v3946 = vmul.f32 %v1386, %v1386
  %v3947 = vmul.f32 %v1387, %v1387
  %v3948 = vmul.f32 %v1388, %v1388
  %v3949 = vmul.f32 %v1389, %v1389
  %v3950 = vmul.f32 %v1390, %v1390
  %v3951 = vmul.f32 %v1391, %v1391
  %v3952 = vmul.f32 %v1392, %v1392
  %v3953 = vmul.f32 %v1393, %v1393
  %v3954 = vmul.f32 %v1394, %v1394
  %v3955 = vmul.f32 %v1395, %v1395
  %v3956 = vmul.f32 %v1396, %v1396
  %v3957 = vmul.f32 %v1397, %v1397
  %v3958 = vmul.f32 %v1398, %v1398
  %v3959 = vmul.f32 %v1399, %v1399
  %v3960 = vmul.f32 %v1400, %v1400
  %v3961 = vmul.f32 %v1401, %v1401
  %v3962 = vmul.f32 %v1402, %v1402
  %v3963 = vmul.f32 %v1403, %v1403
  %v3964 = vmul.f32 %v1404, %v1404
  %v3965 = vmul.f32 %v1405, %v1405
  %v3966 = vmul.f32 %v1406, %v1406
  %v3967 = vmul.f32 %v1407, %v1407
  %v3968 = vmul.f32 %v1408, %v1408
  %v3969 = vmul.f32 %v1409, %v1409
  %v3970 = vmul.f32 %v1410, %v1410
  %v3971 = vmul.f32 %v1411, %v1411
  %v3972 = vmul.f32 %v1412, %v1412
  %v3973 = vmul.f32 %v1413, %v1413
  %v3974 = vmul.f32 %v1414, %v1414
  %v3975 = vmul.f32 %v1415, %v1415
  %v3976 = vmul.f32 %v1416, %v1416
  %v3977 = vmul.f32 %v1417, %v1417
  %v3978 = vmul.f32 %v1418, %v1418
  %v3979 = vmul.f32 %v1419, %v1419
  %v3980 = vmul.f32 %v1420, %v1420
  %v3981 = vmul.f32 %v1421, %v1421
  %v3982 = vmul.f32 %v1422, %v1422
  %v3983 = vmul.f32 %v1423, %v1423
  %v3984 = vmul.f32 %v1424, %v1424
  %v3985 = vmul.f32 %v1425, %v1425
  %v3986 = vmul.f32 %v1426, %v1426
  %v3987 = vmul.f32 %v1427, %v1427
  %v3988 = vmul.f32 %v1428, %v1428
  %v3989 = vmul.f32 %v1429, %v1429
  %v3990 = vmul.f32 %v1430, %v1430
  %v3991 = vmul.f32 %v1431, %v1431
  %v3992 = vmul.f32 %v1432, %v1432
  %v3993 = vmul.f32 %v1433, %v1433
  %v3994 = vmul.f32 %v1434, %v1434
  %v3995 = vmul.f32 %v1435, %v1435
  %v3996 = vmul.f32 %v1436, %v1436
  %v3997 = vmul.f32 %v1437, %v1437
  %v3998 = vmul.f32 %v1438, %v1438
  %v3999 = vmul.f32 %v1439, %v1439
  %v4000 = vmul.f32 %v1440, %v1440
  %v4001 = vmul.f32 %v1441, %v1441
  %v4002 = vmul.f32 %v1442, %v1442
  %v4003 = vmul.f32 %v1443, %v1443
  %v4004 = vmul.f32 %v1444, %v1444
  %v4005 = vmul.f32 %v1445, %v1445
  %v4006 = vmul.f32 %v1446, %v1446
  %v4007 = vmul.f32 %v1447, %v1447
  %v4008 = vmul.f32 %v1448, %v1448
  %v4009 = vmul.f32 %v1449, %v1449
  %v4010 = vmul.f32 %v1450, %v1450
  %v4011 = vmul.f32 %v1451, %v1451
  %v4012 = vmul.f32 %v1452, %v1452
  %v4013 = vmul.f32 %v1453, %v1453
  %v4014 = vmul.f32 %v1454, %v1454
  %v4015 = vmul.f32 %v1455, %v1455
  %v4016 = vmul.f32 %v1456, %v1456
  %v4017 = vmul.f32 %v1457, %v1457
  %v4018 = vmul.f32 %v1458, %v1458
  %v4019 = vmul.f32 %v1459, %v1459
  %v4020 = vmul.f32 %v1460, %v1460
  %v4021 = vmul.f32 %v1461, %v1461
  %v4022 = vmul.f32 %v1462, %v1462
  %v4023 = vmul.f32 %v1463, %v1463
  %v4024 = vmul.f32 %v1464, %v1464
  %v4025 = vmul.f32 %v1465, %v1465
  %v4026 = vmul.f32 %v1466, %v1466
  %v4027 = vmul.f32 %v1467, %v1467
  %v4028 = vmul.f32 %v1468, %v1468
  %v4029 = vmul.f32 %v1469, %v1469
  %v4030 = vmul.f32 %v1470, %v1470
  %v4031 = vmul.f32 %v1471, %v1471
  %v4032 = vmul.f32 %v1472, %v1472
  %v4033 = vmul.f32 %v1473, %v1473
  %v4034 = vmul.f32 %v1474, %v1474
  %v4035 = vmul.f32 %v1475, %v1475
  %v4036 = vmul.f32 %v1476, %v1476
  %v4037 = vmul.f32 %v1477, %v1477
  %v4038 = vmul.f32 %v1478, %v1478
  %v4039 = vmul.f32 %v1479, %v1479
  %v4040 = vmul.f32 %v1480, %v1480
  %v4041 = vmul.f32 %v1481, %v1481
  %v4042 = vmul.f32 %v1482, %v1482
  %v4043 = vmul.f32 %v1483, %v1483
  %v4044 = vmul.f32 %v1484, %v1484
  %v4045 = vmul.f32 %v1485, %v1485
  %v4046 = vmul.f32 %v1486, %v1486
  %v4047 = vmul.f32 %v1487, %v1487
  %v4048 = vmul.f32 %v1488, %v1488
  %v4049 = vmul.f32 %v1489, %v1489
  %v4050 = vmul.f32 %v1490, %v1490
  %v4051 = vmul.f32 %v1491, %v1491
  %v4052 = vmul.f32 %v1492, %v1492
  %v4053 = vmul.f32 %v1493, %v1493
  %v4054 = vmul.f32 %v1494, %v1494
  %v4055 = vmul.f32 %v1495, %v1495
  %v4056 = vmul.f32 %v1496, %v1496
  %v4057 = vmul.f32 %v1497, %v1497
  %v4058 = vmul.f32 %v1498, %v1498
  %v4059 = vmul.f32 %v1499, %v1499
  %v4060 = vmul.f32 %v1500, %v1500
  %v4061 = vmul.f32 %v1501, %v1501
  %v4062 = vmul.f32 %v1502, %v1502
  %v4063 = vmul.f32 %v1503, %v1503
  %v4064 = vmul.f32 %v1504, %v1504
  %v4065 = vmul.f32 %v1505, %v1505
  %v4066 = vmul.f32 %v1506, %v1506
  %v4067 = vmul.f32 %v1507, %v1507
  %v4068 = vmul.f32 %v1508, %v1508
  %v4069 = vmul.f32 %v1509, %v1509
  %v4070 = vmul.f32 %v1510, %v1510
  %v4071 = vmul.f32 %v1511, %v1511
  %v4072 = vmul.f32 %v1512, %v1512
  %v4073 = vmul.f32 %v1513, %v1513
  %v4074 = vmul.f32 %v1514, %v1514
  %v4075 = vmul.f32 %v1515, %v1515
  %v4076 = vmul.f32 %v1516, %v1516
  %v4077 = vmul.f32 %v1517, %v1517
  %v4078 = vmul.f32 %v1518, %v1518
  %v4079 = vmul.f32 %v1519, %v1519
  %v4080 = vmul.f32 %v1520, %v1520
  %v4081 = vmul.f32 %v1521, %v1521
  %v4082 = vmul.f32 %v1522, %v1522
  %v4083 = vmul.f32 %v1523, %v1523
  %v4084 = vmul.f32 %v1524, %v1524
  %v4085 = vmul.f32 %v1525, %v1525
  %v4086 = vmul.f32 %v1526, %v1526
  %v4087 = vmul.f32 %v1527, %v1527
  %v4088 = vmul.f32 %v1528, %v1528
  %v4089 = vmul.f32 %v1529, %v1529
  %v4090 = vmul.f32 %v1530, %v1530
  %v4091 = vmul.f32 %v1531, %v1531
  %v4092 = vmul.f32 %v1532, %v1532
  %v4093 = vmul.f32 %v1533, %v1533
  %v4094 = vmul.f32 %v1534, %v1534
  %v4095 = vmul.f32 %v1535, %v1535
  %v4096 = vmul.f32 %v1536, %v1536
  %v4097 = vmul.f32 %v1537, %v1537
  %v4098 = vmul.f32 %v1538, %v1538
  %v4099 = vmul.f32 %v1539, %v1539
  %v4100 = vmul.f32 %v1540, %v1540
  %v4101 = vmul.f32 %v1541, %v1541
  %v4102 = vmul.f32 %v1542, %v1542
  %v4103 = vmul.f32 %v1543, %v1543
  %v4104 = vmul.f32 %v1544, %v1544
  %v4105 = vmul.f32 %v1545, %v1545
  %v4106 = vmul.f32 %v1546, %v1546
  %v4107 = vmul.f32 %v3595, %v3083
  %v4108 = vmul.f32 %v3596, %v3084
  %v4109 = vmul.f32 %v3597, %v3085
  %v4110 = vmul.f32 %v3598, %v3086
  %v4111 = vmul.f32 %v3599, %v3087
  %v4112 = vmul.f32 %v3600, %v3088
  %v4113 = vmul.f32 %v3601, %v3089
  %v4114 = vmul.f32 %v3602, %v3090
  %v4115 = vmul.f32 %v3603, %v3091
  %v4116 = vmul.f32 %v3604, %v3092
  %v4117 = vmul.f32 %v3605, %v3093
  %v4118 = vmul.f32 %v3606, %v3094
  %v4119 = vmul.f32 %v3607, %v3095
  %v4120 = vmul.f32 %v3608, %v3096
  %v4121 = vmul.f32 %v3609, %v3097
  %v4122 = vmul.f32 %v3610, %v3098
  %v4123 = vmul.f32 %v3611, %v3099
  %v4124 = vmul.f32 %v3612, %v3100
  %v4125 = vmul.f32 %v3613, %v3101
  %v4126 = vmul.f32 %v3614, %v3102
  %v4127 = vmul.f32 %v3615, %v3103
  %v4128 = vmul.f32 %v3616, %v3104
  %v4129 = vmul.f32 %v3617, %v3105
  %v4130 = vmul.f32 %v3618, %v3106
  %v4131 = vmul.f32 %v3619, %v3107
  %v4132 = vmul.f32 %v3620, %v3108
  %v4133 = vmul.f32 %v3621, %v3109
  %v4134 = vmul.f32 %v3622, %v3110
  %v4135 = vmul.f32 %v3623, %v3111
  %v4136 = vmul.f32 %v3624, %v3112
  %v4137 = vmul.f32 %v3625, %v3113
  %v4138 = vmul.f32 %v3626, %v3114
  %v4139 = vmul.f32 %v3627, %v3115
  %v4140 = vmul.f32 %v3628, %v3116
  %v4141 = vmul.f32 %v3629, %v3117
  %v4142 = vmul.f32 %v3630, %v3118
  %v4143 = vmul.f32 %v3631, %v3119
  %v4144 = vmul.f32 %v3632, %v3120
  %v4145 = vmul.f32 %v3633, %v3121
  %v4146 = vmul.f32 %v3634, %v3122
  %v4147 = vmul.f32 %v3635, %v3123
  %v4148 = vmul.f32 %v3636, %v3124
  %v4149 = vmul.f32 %v3637, %v3125
  %v4150 = vmul.f32 %v3638, %v3126
  %v4151 = vmul.f32 %v3639, %v3127
  %v4152 = vmul.f32 %v3640, %v3128
  %v4153 = vmul.f32 %v3641, %v3129
  %v4154 = vmul.f32 %v3642, %v3130
  %v4155 = vmul.f32 %v3643, %v3131
  %v4156 = vmul.f32 %v3644, %v3132
  %v4157 = vmul.f32 %v3645, %v3133
  %v4158 = vmul.f32 %v3646, %v3134
  %v4159 = vmul.f32 %v3647, %v3135
  %v4160 = vmul.f32 %v3648, %v3136
  %v4161 = vmul.f32 %v3649, %v3137
  %v4162 = vmul.f32 %v3650, %v3138
  %v4163 = vmul.f32 %v3651, %v3139
  %v4164 = vmul.f32 %v3652, %v3140
  %v4165 = vmul.f32 %v3653, %v3141
  %v4166 = vmul.f32 %v3654, %v3142
  %v4167 = vmul.f32 %v3655, %v3143
  %v4168 = vmul.f32 %v3656, %v3144
  %v4169 = vmul.f32 %v3657, %v3145
  %v4170 = vmul.f32 %v3658, %v3146
  %v4171 = vmul.f32 %v3659, %v3147
  %v4172 = vmul.f32 %v3660, %v3148
  %v4173 = vmul.f32 %v3661, %v3149
  %v4174 = vmul.f32 %v3662, %v3150
  %v4175 = vmul.f32 %v3663, %v3151
  %v4176 = vmul.f32 %v3664, %v3152
  %v4177 = vmul.f32 %v3665, %v3153
  %v4178 = vmul.f32 %v3666, %v3154
  %v4179 = vmul.f32 %v3667, %v3155
  %v4180 = vmul.f32 %v3668, %v3156
  %v4181 = vmul.f32 %v3669, %v3157
  %v4182 = vmul.f32 %v3670, %v3158
  %v4183 = vmul.f32 %v3671, %v3159
  %v4184 = vmul.f32 %v3672, %v3160
  %v4185 = vmul.f32 %v3673, %v3161
  %v4186 = vmul.f32 %v3674, %v3162
  %v4187 = vmul.f32 %v3675, %v3163
  %v4188 = vmul.f32 %v3676, %v3164
  %v4189 = vmul.f32 %v3677, %v3165
  %v4190 = vmul.f32 %v3678, %v3166
  %v4191 = vmul.f32 %v3679, %v3167
  %v4192 = vmul.f32 %v3680, %v3168
  %v4193 = vmul.f32 %v3681, %v3169
  %v4194 = vmul.f32 %v3682, %v3170
  %v4195 = vmul.f32 %v3683, %v3171
  %v4196 = vmul.f32 %v3684, %v3172
  %v4197 = vmul.f32 %v3685, %v3173
  %v4198 = vmul.f32 %v3686, %v3174
  %v4199 = vmul.f32 %v3687, %v3175
  %v4200 = vmul.f32 %v3688, %v3176
  %v4201 = vmul.f32 %v3689, %v3177
  %v4202 = vmul.f32 %v3690, %v3178
  %v4203 = vmul.f32 %v3691, %v3179
  %v4204 = vmul.f32 %v3692, %v3180
  %v4205 = vmul.f32 %v3693, %v3181
  %v4206 = vmul.f32 %v3694, %v3182
  %v4207 = vmul.f32 %v3695, %v3183
  %v4208 = vmul.f32 %v3696, %v3184
  %v4209 = vmul.f32 %v3697, %v3185
  %v4210 = vmul.f32 %v3698, %v3186
  %v4211 = vmul.f32 %v3699, %v3187
  %v4212 = vmul.f32 %v3700, %v3188
  %v4213 = vmul.f32 %v3701, %v3189
  %v4214 = vmul.f32 %v3702, %v3190
  %v4215 = vmul.f32 %v3703, %v3191
  %v4216 = vmul.f32 %v3704, %v3192
  %v4217 = vmul.f32 %v3705, %v3193
  %v4218 = vmul.f32 %v3706, %v3194
  %v4219 = vmul.f32 %v3707, %v3195
  %v4220 = vmul.f32 %v3708, %v3196
  %v4221 = vmul.f32 %v3709, %v3197
  %v4222 = vmul.f32 %v3710, %v3198
  %v4223 = vmul.f32 %v3711, %v3199
  %v4224 = vmul.f32 %v3712, %v3200
  %v4225 = vmul.f32 %v3713, %v3201
  %v4226 = vmul.f32 %v3714, %v3202
  %v4227 = vmul.f32 %v3715, %v3203
  %v4228 = vmul.f32 %v3716, %v3204
  %v4229 = vmul.f32 %v3717, %v3205
  %v4230 = vmul.f32 %v3718, %v3206
  %v4231 = vmul.f32 %v3719, %v3207
  %v4232 = vmul.f32 %v3720, %v3208
  %v4233 = vmul.f32 %v3721, %v3209
  %v4234 = vmul.f32 %v3722, %v3210
  %v4235 = vmul.f32 %v3723, %v3211
  %v4236 = vmul.f32 %v3724, %v3212
  %v4237 = vmul.f32 %v3725, %v3213
  %v4238 = vmul.f32 %v3726, %v3214
  %v4239 = vmul.f32 %v3727, %v3215
  %v4240 = vmul.f32 %v3728, %v3216
  %v4241 = vmul.f32 %v3729, %v3217
  %v4242 = vmul.f32 %v3730, %v3218
  %v4243 = vmul.f32 %v3731, %v3219
  %v4244 = vmul.f32 %v3732, %v3220
  %v4245 = vmul.f32 %v3733, %v3221
  %v4246 = vmul.f32 %v3734, %v3222
  %v4247 = vmul.f32 %v3735, %v3223
  %v4248 = vmul.f32 %v3736, %v3224
  %v4249 = vmul.f32 %v3737, %v3225
  %v4250 = vmul.f32 %v3738, %v3226
  %v4251 = vmul.f32 %v3739, %v3227
  %v4252 = vmul.f32 %v3740, %v3228
  %v4253 = vmul.f32 %v3741, %v3229
  %v4254 = vmul.f32 %v3742, %v3230
  %v4255 = vmul.f32 %v3743, %v3231
  %v4256 = vmul.f32 %v3744, %v3232
  %v4257 = vmul.f32 %v3745, %v3233
  %v4258 = vmul.f32 %v3746, %v3234
  %v4259 = vmul.f32 %v3747, %v3235
  %v4260 = vmul.f32 %v3748, %v3236
  %v4261 = vmul.f32 %v3749, %v3237
  %v4262 = vmul.f32 %v3750, %v3238
  %v4263 = vmul.f32 %v3751, %v3239
  %v4264 = vmul.f32 %v3752, %v3240
  %v4265 = vmul.f32 %v3753, %v3241
  %v4266 = vmul.f32 %v3754, %v3242
  %v4267 = vmul.f32 %v3755, %v3243
  %v4268 = vmul.f32 %v3756, %v3244
  %v4269 = vmul.f32 %v3757, %v3245
  %v4270 = vmul.f32 %v3758, %v3246
  %v4271 = vmul.f32 %v3759, %v3247
  %v4272 = vmul.f32 %v3760, %v3248
  %v4273 = vmul.f32 %v3761, %v3249
  %v4274 = vmul.f32 %v3762, %v3250
  %v4275 = vmul.f32 %v3763, %v3251
  %v4276 = vmul.f32 %v3764, %v3252
  %v4277 = vmul.f32 %v3765, %v3253
  %v4278 = vmul.f32 %v3766, %v3254
  %v4279 = vmul.f32 %v3767, %v3255
  %v4280 = vmul.f32 %v3768, %v3256
  %v4281 = vmul.f32 %v3769, %v3257
  %v4282 = vmul.f32 %v3770, %v3258
  %v4283 = vmul.f32 %v3771, %v3259
  %v4284 = vmul.f32 %v3772, %v3260
  %v4285 = vmul.f32 %v3773, %v3261
  %v4286 = vmul.f32 %v3774, %v3262
  %v4287 = vmul.f32 %v3775, %v3263
  %v4288 = vmul.f32 %v3776, %v3264
  %v4289 = vmul.f32 %v3777, %v3265
  %v4290 = vmul.f32 %v3778, %v3266
  %v4291 = vmul.f32 %v3779, %v3267
  %v4292 = vmul.f32 %v3780, %v3268
  %v4293 = vmul.f32 %v3781, %v3269
  %v4294 = vmul.f32 %v3782, %v3270
  %v4295 = vmul.f32 %v3783, %v3271
  %v4296 = vmul.f32 %v3784, %v3272
  %v4297 = vmul.f32 %v3785, %v3273
  %v4298 = vmul.f32 %v3786, %v3274
  %v4299 = vmul.f32 %v3787, %v3275
  %v4300 = vmul.f32 %v3788, %v3276
  %v4301 = vmul.f32 %v3789, %v3277
  %v4302 = vmul.f32 %v3790, %v3278
  %v4303 = vmul.f32 %v3791, %v3279
  %v4304 = vmul.f32 %v3792, %v3280
  %v4305 = vmul.f32 %v3793, %v3281
  %v4306 = vmul.f32 %v3794, %v3282
  %v4307 = vmul.f32 %v3795, %v3283
  %v4308 = vmul.f32 %v3796, %v3284
  %v4309 = vmul.f32 %v3797, %v3285
  %v4310 = vmul.f32 %v3798, %v3286
  %v4311 = vmul.f32 %v3799, %v3287
  %v4312 = vmul.f32 %v3800, %v3288
  %v4313 = vmul.f32 %v3801, %v3289
  %v4314 = vmul.f32 %v3802, %v3290
  %v4315 = vmul.f32 %v3803, %v3291
  %v4316 = vmul.f32 %v3804, %v3292
  %v4317 = vmul.f32 %v3805, %v3293
  %v4318 = vmul.f32 %v3806, %v3294
  %v4319 = vmul.f32 %v3807, %v3295
  %v4320 = vmul.f32 %v3808, %v3296
  %v4321 = vmul.f32 %v3809, %v3297
  %v4322 = vmul.f32 %v3810, %v3298
  %v4323 = vmul.f32 %v3811, %v3299
  %v4324 = vmul.f32 %v3812, %v3300
  %v4325 = vmul.f32 %v3813, %v3301
  %v4326 = vmul.f32 %v3814, %v3302
  %v4327 = vmul.f32 %v3815, %v3303
  %v4328 = vmul.f32 %v3816, %v3304
  %v4329 = vmul.f32 %v3817, %v3305
  %v4330 = vmul.f32 %v3818, %v3306
  %v4331 = vmul.f32 %v3819, %v3307
  %v4332 = vmul.f32 %v3820, %v3308
  %v4333 = vmul.f32 %v3821, %v3309
  %v4334 = vmul.f32 %v3822, %v3310
  %v4335 = vmul.f32 %v3823, %v3311
  %v4336 = vmul.f32 %v3824, %v3312
  %v4337 = vmul.f32 %v3825, %v3313
  %v4338 = vmul.f32 %v3826, %v3314
  %v4339 = vmul.f32 %v3827, %v3315
  %v4340 = vmul.f32 %v3828, %v3316
  %v4341 = vmul.f32 %v3829, %v3317
  %v4342 = vmul.f32 %v3830, %v3318
  %v4343 = vmul.f32 %v3831, %v3319
  %v4344 = vmul.f32 %v3832, %v3320
  %v4345 = vmul.f32 %v3833, %v3321
  %v4346 = vmul.f32 %v3834, %v3322
  %v4347 = vmul.f32 %v3835, %v3323
  %v4348 = vmul.f32 %v3836, %v3324
  %v4349 = vmul.f32 %v3837, %v3325
  %v4350 = vmul.f32 %v3838, %v3326
  %v4351 = vmul.f32 %v3839, %v3327
  %v4352 = vmul.f32 %v3840, %v3328
  %v4353 = vmul.f32 %v3841, %v3329
  %v4354 = vmul.f32 %v3842, %v3330
  %v4355 = vmul.f32 %v3843, %v3331
  %v4356 = vmul.f32 %v3844, %v3332
  %v4357 = vmul.f32 %v3845, %v3333
  %v4358 = vmul.f32 %v3846, %v3334
  %v4359 = vmul.f32 %v3847, %v3335
  %v4360 = vmul.f32 %v3848, %v3336
  %v4361 = vmul.f32 %v3849, %v3337
  %v4362 = vmul.f32 %v3850, %v3338
  %v4363 = vmul.f32 %v3851, %v3339
  %v4364 = vmul.f32 %v3852, %v3340
  %v4365 = vmul.f32 %v3853, %v3341
  %v4366 = vmul.f32 %v3854, %v3342
  %v4367 = vmul.f32 %v3855, %v3343
  %v4368 = vmul.f32 %v3856, %v3344
  %v4369 = vmul.f32 %v3857, %v3345
  %v4370 = vmul.f32 %v3858, %v3346
  %v4371 = vmul.f32 %v3859, %v3347
  %v4372 = vmul.f32 %v3860, %v3348
  %v4373 = vmul.f32 %v3861, %v3349
  %v4374 = vmul.f32 %v3862, %v3350
  %v4375 = vmul.f32 %v3863, %v3351
  %v4376 = vmul.f32 %v3864, %v3352
  %v4377 = vmul.f32 %v3865, %v3353
  %v4378 = vmul.f32 %v3866, %v3354
  %v4379 = vmul.f32 %v3867, %v3355
  %v4380 = vmul.f32 %v3868, %v3356
  %v4381 = vmul.f32 %v3869, %v3357
  %v4382 = vmul.f32 %v3870, %v3358
  %v4383 = vmul.f32 %v3871, %v3359
  %v4384 = vmul.f32 %v3872, %v3360
  %v4385 = vmul.f32 %v3873, %v3361
  %v4386 = vmul.f32 %v3874, %v3362
  %v4387 = vmul.f32 %v3875, %v3363
  %v4388 = vmul.f32 %v3876, %v3364
  %v4389 = vmul.f32 %v3877, %v3365
  %v4390 = vmul.f32 %v3878, %v3366
  %v4391 = vmul.f32 %v3879, %v3367
  %v4392 = vmul.f32 %v3880, %v3368
  %v4393 = vmul.f32 %v3881, %v3369
  %v4394 = vmul.f32 %v3882, %v3370
  %v4395 = vmul.f32 %v3883, %v3371
  %v4396 = vmul.f32 %v3884, %v3372
  %v4397 = vmul.f32 %v3885, %v3373
  %v4398 = vmul.f32 %v3886, %v3374
  %v4399 = vmul.f32 %v3887, %v3375
  %v4400 = vmul.f32 %v3888, %v3376
  %v4401 = vmul.f32 %v3889, %v3377
  %v4402 = vmul.f32 %v3890, %v3378
  %v4403 = vmul.f32 %v3891, %v3379
  %v4404 = vmul.f32 %v3892, %v3380
  %v4405 = vmul.f32 %v3893, %v3381
  %v4406 = vmul.f32 %v3894, %v3382
  %v4407 = vmul.f32 %v3895, %v3383
  %v4408 = vmul.f32 %v3896, %v3384
  %v4409 = vmul.f32 %v3897, %v3385
  %v4410 = vmul.f32 %v3898, %v3386
  %v4411 = vmul.f32 %v3899, %v3387
  %v4412 = vmul.f32 %v3900, %v3388
  %v4413 = vmul.f32 %v3901, %v3389
  %v4414 = vmul.f32 %v3902, %v3390
  %v4415 = vmul.f32 %v3903, %v3391
  %v4416 = vmul.f32 %v3904, %v3392
  %v4417 = vmul.f32 %v3905, %v3393
  %v4418 = vmul.f32 %v3906, %v3394
  %v4419 = vmul.f32 %v3907, %v3395
  %v4420 = vmul.f32 %v3908, %v3396
  %v4421 = vmul.f32 %v3909, %v3397
  %v4422 = vmul.f32 %v3910, %v3398
  %v4423 = vmul.f32 %v3911, %v3399
  %v4424 = vmul.f32 %v3912, %v3400
  %v4425 = vmul.f32 %v3913, %v3401
  %v4426 = vmul.f32 %v3914, %v3402
  %v4427 = vmul.f32 %v3915, %v3403
  %v4428 = vmul.f32 %v3916, %v3404
  %v4429 = vmul.f32 %v3917, %v3405
  %v4430 = vmul.f32 %v3918, %v3406
  %v4431 = vmul.f32 %v3919, %v3407
  %v4432 = vmul.f32 %v3920, %v3408
  %v4433 = vmul.f32 %v3921, %v3409
  %v4434 = vmul.f32 %v3922, %v3410
  %v4435 = vmul.f32 %v3923, %v3411
  %v4436 = vmul.f32 %v3924, %v3412
  %v4437 = vmul.f32 %v3925, %v3413
  %v4438 = vmul.f32 %v3926, %v3414
  %v4439 = vmul.f32 %v3927, %v3415
  %v4440 = vmul.f32 %v3928, %v3416
  %v4441 = vmul.f32 %v3929, %v3417
  %v4442 = vmul.f32 %v3930, %v3418
  %v4443 = vmul.f32 %v3931, %v3419
  %v4444 = vmul.f32 %v3932, %v3420
  %v4445 = vmul.f32 %v3933, %v3421
  %v4446 = vmul.f32 %v3934, %v3422
  %v4447 = vmul.f32 %v3935, %v3423
  %v4448 = vmul.f32 %v3936, %v3424
  %v4449 = vmul.f32 %v3937, %v3425
  %v4450 = vmul.f32 %v3938, %v3426
  %v4451 = vmul.f32 %v3939, %v3427
  %v4452 = vmul.f32 %v3940, %v3428
  %v4453 = vmul.f32 %v3941, %v3429
  %v4454 = vmul.f32 %v3942, %v3430
  %v4455 = vmul.f32 %v3943, %v3431
  %v4456 = vmul.f32 %v3944, %v3432
  %v4457 = vmul.f32 %v3945, %v3433
  %v4458 = vmul.f32 %v3946, %v3434
  %v4459 = vmul.f32 %v3947, %v3435
  %v4460 = vmul.f32 %v3948, %v3436
  %v4461 = vmul.f32 %v3949, %v3437
  %v4462 = vmul.f32 %v3950, %v3438
  %v4463 = vmul.f32 %v3951, %v3439
  %v4464 = vmul.f32 %v3952, %v3440
  %v4465 = vmul.f32 %v3953, %v3441
  %v4466 = vmul.f32 %v3954, %v3442
  %v4467 = vmul.f32 %v3955, %v3443
  %v4468 = vmul.f32 %v3956, %v3444
  %v4469 = vmul.f32 %v3957, %v3445
  %v4470 = vmul.f32 %v3958, %v3446
  %v4471 = vmul.f32 %v3959, %v3447
  %v4472 = vmul.f32 %v3960, %v3448
  %v4473 = vmul.f32 %v3961, %v3449
  %v4474 = vmul.f32 %v3962, %v3450
  %v4475 = vmul.f32 %v3963, %v3451
  %v4476 = vmul.f32 %v3964, %v3452
  %v4477 = vmul.f32 %v3965, %v3453
  %v4478 = vmul.f32 %v3966, %v3454
  %v4479 = vmul.f32 %v3967, %v3455
  %v4480 = vmul.f32 %v3968, %v3456
  %v4481 = vmul.f32 %v3969, %v3457
  %v4482 = vmul.f32 %v3970, %v3458
  %v4483 = vmul.f32 %v3971, %v3459
  %v4484 = vmul.f32 %v3972, %v3460
  %v4485 = vmul.f32 %v3973, %v3461
  %v4486 = vmul.f32 %v3974, %v3462
  %v4487 = vmul.f32 %v3975, %v3463
  %v4488 = vmul.f32 %v3976, %v3464
  %v4489 = vmul.f32 %v3977, %v3465
  %v4490 = vmul.f32 %v3978, %v3466
  %v4491 = vmul.f32 %v3979, %v3467
  %v4492 = vmul.f32 %v3980, %v3468
  %v4493 = vmul.f32 %v3981, %v3469
  %v4494 = vmul.f32 %v3982, %v3470
  %v4495 = vmul.f32 %v3983, %v3471
  %v4496 = vmul.f32 %v3984, %v3472
  %v4497 = vmul.f32 %v3985, %v3473
  %v4498 = vmul.f32 %v3986, %v3474
  %v4499 = vmul.f32 %v3987, %v3475
  %v4500 = vmul.f32 %v3988, %v3476
  %v4501 = vmul.f32 %v3989, %v3477
  %v4502 = vmul.f32 %v3990, %v3478
  %v4503 = vmul.f32 %v3991, %v3479
  %v4504 = vmul.f32 %v3992, %v3480
  %v4505 = vmul.f32 %v3993, %v3481
  %v4506 = vmul.f32 %v3994, %v3482
  %v4507 = vmul.f32 %v3995, %v3483
  %v4508 = vmul.f32 %v3996, %v3484
  %v4509 = vmul.f32 %v3997, %v3485
  %v4510 = vmul.f32 %v3998, %v3486
  %v4511 = vmul.f32 %v3999, %v3487
  %v4512 = vmul.f32 %v4000, %v3488
  %v4513 = vmul.f32 %v4001, %v3489
  %v4514 = vmul.f32 %v4002, %v3490
  %v4515 = vmul.f32 %v4003, %v3491
  %v4516 = vmul.f32 %v4004, %v3492
  %v4517 = vmul.f32 %v4005, %v3493
  %v4518 = vmul.f32 %v4006, %v3494
  %v4519 = vmul.f32 %v4007, %v3495
  %v4520 = vmul.f32 %v4008, %v3496
  %v4521 = vmul.f32 %v4009, %v3497
  %v4522 = vmul.f32 %v4010, %v3498
  %v4523 = vmul.f32 %v4011, %v3499
  %v4524 = vmul.f32 %v4012, %v3500
  %v4525 = vmul.f32 %v4013, %v3501
  %v4526 = vmul.f32 %v4014, %v3502
  %v4527 = vmul.f32 %v4015, %v3503
  %v4528 = vmul.f32 %v4016, %v3504
  %v4529 = vmul.f32 %v4017, %v3505
  %v4530 = vmul.f32 %v4018, %v3506
  %v4531 = vmul.f32 %v4019, %v3507
  %v4532 = vmul.f32 %v4020, %v3508
  %v4533 = vmul.f32 %v4021, %v3509
  %v4534 = vmul.f32 %v4022, %v3510
  %v4535 = vmul.f32 %v4023, %v3511
  %v4536 = vmul.f32 %v4024, %v3512
  %v4537 = vmul.f32 %v4025, %v3513
  %v4538 = vmul.f32 %v4026, %v3514
  %v4539 = vmul.f32 %v4027, %v3515
  %v4540 = vmul.f32 %v4028, %v3516
  %v4541 = vmul.f32 %v4029, %v3517
  %v4542 = vmul.f32 %v4030, %v3518
  %v4543 = vmul.f32 %v4031, %v3519
  %v4544 = vmul.f32 %v4032, %v3520
  %v4545 = vmul.f32 %v4033, %v3521
  %v4546 = vmul.f32 %v4034, %v3522
  %v4547 = vmul.f32 %v4035, %v3523
  %v4548 = vmul.f32 %v4036, %v3524
  %v4549 = vmul.f32 %v4037, %v3525
  %v4550 = vmul.f32 %v4038, %v3526
  %v4551 = vmul.f32 %v4039, %v3527
  %v4552 = vmul.f32 %v4040, %v3528
  %v4553 = vmul.f32 %v4041, %v3529
  %v4554 = vmul.f32 %v4042, %v3530
  %v4555 = vmul.f32 %v4043, %v3531
  %v4556 = vmul.f32 %v4044, %v3532
  %v4557 = vmul.f32 %v4045, %v3533
  %v4558 = vmul.f32 %v4046, %v3534
  %v4559 = vmul.f32 %v4047, %v3535
  %v4560 = vmul.f32 %v4048, %v3536
  %v4561 = vmul.f32 %v4049, %v3537
  %v4562 = vmul.f32 %v4050, %v3538
  %v4563 = vmul.f32 %v4051, %v3539
  %v4564 = vmul.f32 %v4052, %v3540
  %v4565 = vmul.f32 %v4053, %v3541
  %v4566 = vmul.f32 %v4054, %v3542
  %v4567 = vmul.f32 %v4055, %v3543
  %v4568 = vmul.f32 %v4056, %v3544
  %v4569 = vmul.f32 %v4057, %v3545
  %v4570 = vmul.f32 %v4058, %v3546
  %v4571 = vmul.f32 %v4059, %v3547
  %v4572 = vmul.f32 %v4060, %v3548
  %v4573 = vmul.f32 %v4061, %v3549
  %v4574 = vmul.f32 %v4062, %v3550
  %v4575 = vmul.f32 %v4063, %v3551
  %v4576 = vmul.f32 %v4064, %v3552
  %v4577 = vmul.f32 %v4065, %v3553
  %v4578 = vmul.f32 %v4066, %v3554
  %v4579 = vmul.f32 %v4067, %v3555
  %v4580 = vmul.f32 %v4068, %v3556
  %v4581 = vmul.f32 %v4069, %v3557
  %v4582 = vmul.f32 %v4070, %v3558
  %v4583 = vmul.f32 %v4071, %v3559
  %v4584 = vmul.f32 %v4072, %v3560
  %v4585 = vmul.f32 %v4073, %v3561
  %v4586 = vmul.f32 %v4074, %v3562
  %v4587 = vmul.f32 %v4075, %v3563
  %v4588 = vmul.f32 %v4076, %v3564
  %v4589 = vmul.f32 %v4077, %v3565
  %v4590 = vmul.f32 %v4078, %v3566
  %v4591 = vmul.f32 %v4079, %v3567
  %v4592 = vmul.f32 %v4080, %v3568
  %v4593 = vmul.f32 %v4081, %v3569
  %v4594 = vmul.f32 %v4082, %v3570
  %v4595 = vmul.f32 %v4083, %v3571
  %v4596 = vmul.f32 %v4084, %v3572
  %v4597 = vmul.f32 %v4085, %v3573
  %v4598 = vmul.f32 %v4086, %v3574
  %v4599 = vmul.f32 %v4087, %v3575
  %v4600 = vmul.f32 %v4088, %v3576
  %v4601 = vmul.f32 %v4089, %v3577
  %v4602 = vmul.f32 %v4090, %v3578
  %v4603 = vmul.f32 %v4091, %v3579
  %v4604 = vmul.f32 %v4092, %v3580
  %v4605 = vmul.f32 %v4093, %v3581
  %v4606 = vmul.f32 %v4094, %v3582
  %v4607 = vmul.f32 %v4095, %v3583
  %v4608 = vmul.f32 %v4096, %v3584
  %v4609 = vmul.f32 %v4097, %v3585
  %v4610 = vmul.f32 %v4098, %v3586
  %v4611 = vmul.f32 %v4099, %v3587
  %v4612 = vmul.f32 %v4100, %v3588
  %v4613 = vmul.f32 %v4101, %v3589
  %v4614 = vmul.f32 %v4102, %v3590
  %v4615 = vmul.f32 %v4103, %v3591
  %v4616 = vmul.f32 %v4104, %v3592
  %v4617 = vmul.f32 %v4105, %v3593
  %v4618 = vmul.f32 %v4106, %v3594
  %4619 = vst [vmem:[%s2] sm:$0xff] %v4107
  %4620 = vst [vmem:[%s2 + $0x8] sm:$0xff] %v4108
  %4621 = vst [vmem:[%s2 + $0x10] sm:$0xff] %v4109
  %4622 = vst [vmem:[%s2 + $0x18] sm:$0xff] %v4110
  %4623 = vst [vmem:[%s2 + $0x20] sm:$0xff] %v4111
  %4624 = vst [vmem:[%s2 + $0x28] sm:$0xff] %v4112
  %4625 = vst [vmem:[%s2 + $0x30] sm:$0xff] %v4113
  %4626 = vst [vmem:[%s2 + $0x38] sm:$0xff] %v4114
  %4627 = vst [vmem:[%s2 + $0x40] sm:$0xff] %v4115
  %4628 = vst [vmem:[%s2 + $0x48] sm:$0xff] %v4116
  %4629 = vst [vmem:[%s2 + $0x50] sm:$0xff] %v4117
  %4630 = vst [vmem:[%s2 + $0x58] sm:$0xff] %v4118
  %4631 = vst [vmem:[%s2 + $0x60] sm:$0xff] %v4119
  %4632 = vst [vmem:[%s2 + $0x68] sm:$0xff] %v4120
  %4633 = vst [vmem:[%s2 + $0x70] sm:$0xff] %v4121
  %4634 = vst [vmem:[%s2 + $0x78] sm:$0xff] %v4122
  %4635 = vst [vmem:[%s2 + $0x80] sm:$0xff] %v4123
  %4636 = vst [vmem:[%s2 + $0x88] sm:$0xff] %v4124
  %4637 = vst [vmem:[%s2 + $0x90] sm:$0xff] %v4125
  %4638 = vst [vmem:[%s2 + $0x98] sm:$0xff] %v4126
  %4639 = vst [vmem:[%s2 + $0xa0] sm:$0xff] %v4127
  %4640 = vst [vmem:[%s2 + $0xa8] sm:$0xff] %v4128
  %4641 = vst [vmem:[%s2 + $0xb0] sm:$0xff] %v4129
  %4642 = vst [vmem:[%s2 + $0xb8] sm:$0xff] %v4130
  %4643 = vst [vmem:[%s2 + $0xc0] sm:$0xff] %v4131
  %4644 = vst [vmem:[%s2 + $0xc8] sm:$0xff] %v4132
  %4645 = vst [vmem:[%s2 + $0xd0] sm:$0xff] %v4133
  %4646 = vst [vmem:[%s2 + $0xd8] sm:$0xff] %v4134
  %4647 = vst [vmem:[%s2 + $0xe0] sm:$0xff] %v4135
  %4648 = vst [vmem:[%s2 + $0xe8] sm:$0xff] %v4136
  %4649 = vst [vmem:[%s2 + $0xf0] sm:$0xff] %v4137
  %4650 = vst [vmem:[%s2 + $0xf8] sm:$0xff] %v4138
  %4651 = vst [vmem:[%s2 + $0x100] sm:$0xff] %v4139
  %4652 = vst [vmem:[%s2 + $0x108] sm:$0xff] %v4140
  %4653 = vst [vmem:[%s2 + $0x110] sm:$0xff] %v4141
  %4654 = vst [vmem:[%s2 + $0x118] sm:$0xff] %v4142
  %4655 = vst [vmem:[%s2 + $0x120] sm:$0xff] %v4143
  %4656 = vst [vmem:[%s2 + $0x128] sm:$0xff] %v4144
  %4657 = vst [vmem:[%s2 + $0x130] sm:$0xff] %v4145
  %4658 = vst [vmem:[%s2 + $0x138] sm:$0xff] %v4146
  %4659 = vst [vmem:[%s2 + $0x140] sm:$0xff] %v4147
  %4660 = vst [vmem:[%s2 + $0x148] sm:$0xff] %v4148
  %4661 = vst [vmem:[%s2 + $0x150] sm:$0xff] %v4149
  %4662 = vst [vmem:[%s2 + $0x158] sm:$0xff] %v4150
  %4663 = vst [vmem:[%s2 + $0x160] sm:$0xff] %v4151
  %4664 = vst [vmem:[%s2 + $0x168] sm:$0xff] %v4152
  %4665 = vst [vmem:[%s2 + $0x170] sm:$0xff] %v4153
  %4666 = vst [vmem:[%s2 + $0x178] sm:$0xff] %v4154
  %4667 = vst [vmem:[%s2 + $0x180] sm:$0xff] %v4155
  %4668 = vst [vmem:[%s2 + $0x188] sm:$0xff] %v4156
  %4669 = vst [vmem:[%s2 + $0x190] sm:$0xff] %v4157
  %4670 = vst [vmem:[%s2 + $0x198] sm:$0xff] %v4158
  %4671 = vst [vmem:[%s2 + $0x1a0] sm:$0xff] %v4159
  %4672 = vst [vmem:[%s2 + $0x1a8] sm:$0xff] %v4160
  %4673 = vst [vmem:[%s2 + $0x1b0] sm:$0xff] %v4161
  %4674 = vst [vmem:[%s2 + $0x1b8] sm:$0xff] %v4162
  %4675 = vst [vmem:[%s2 + $0x1c0] sm:$0xff] %v4163
  %4676 = vst [vmem:[%s2 + $0x1c8] sm:$0xff] %v4164
  %4677 = vst [vmem:[%s2 + $0x1d0] sm:$0xff] %v4165
  %4678 = vst [vmem:[%s2 + $0x1d8] sm:$0xff] %v4166
  %4679 = vst [vmem:[%s2 + $0x1e0] sm:$0xff] %v4167
  %4680 = vst [vmem:[%s2 + $0x1e8] sm:$0xff] %v4168
  %4681 = vst [vmem:[%s2 + $0x1f0] sm:$0xff] %v4169
  %4682 = vst [vmem:[%s2 + $0x1f8] sm:$0xff] %v4170
  %4683 = vst [vmem:[%s2 + $0x200] sm:$0xff] %v4171
  %4684 = vst [vmem:[%s2 + $0x208] sm:$0xff] %v4172
  %4685 = vst [vmem:[%s2 + $0x210] sm:$0xff] %v4173
  %4686 = vst [vmem:[%s2 + $0x218] sm:$0xff] %v4174
  %4687 = vst [vmem:[%s2 + $0x220] sm:$0xff] %v4175
  %4688 = vst [vmem:[%s2 + $0x228] sm:$0xff] %v4176
  %4689 = vst [vmem:[%s2 + $0x230] sm:$0xff] %v4177
  %4690 = vst [vmem:[%s2 + $0x238] sm:$0xff] %v4178
  %4691 = vst [vmem:[%s2 + $0x240] sm:$0xff] %v4179
  %4692 = vst [vmem:[%s2 + $0x248] sm:$0xff] %v4180
  %4693 = vst [vmem:[%s2 + $0x250] sm:$0xff] %v4181
  %4694 = vst [vmem:[%s2 + $0x258] sm:$0xff] %v4182
  %4695 = vst [vmem:[%s2 + $0x260] sm:$0xff] %v4183
  %4696 = vst [vmem:[%s2 + $0x268] sm:$0xff] %v4184
  %4697 = vst [vmem:[%s2 + $0x270] sm:$0xff] %v4185
  %4698 = vst [vmem:[%s2 + $0x278] sm:$0xff] %v4186
  %4699 = vst [vmem:[%s2 + $0x280] sm:$0xff] %v4187
  %4700 = vst [vmem:[%s2 + $0x288] sm:$0xff] %v4188
  %4701 = vst [vmem:[%s2 + $0x290] sm:$0xff] %v4189
  %4702 = vst [vmem:[%s2 + $0x298] sm:$0xff] %v4190
  %4703 = vst [vmem:[%s2 + $0x2a0] sm:$0xff] %v4191
  %4704 = vst [vmem:[%s2 + $0x2a8] sm:$0xff] %v4192
  %4705 = vst [vmem:[%s2 + $0x2b0] sm:$0xff] %v4193
  %4706 = vst [vmem:[%s2 + $0x2b8] sm:$0xff] %v4194
  %4707 = vst [vmem:[%s2 + $0x2c0] sm:$0xff] %v4195
  %4708 = vst [vmem:[%s2 + $0x2c8] sm:$0xff] %v4196
  %4709 = vst [vmem:[%s2 + $0x2d0] sm:$0xff] %v4197
  %4710 = vst [vmem:[%s2 + $0x2d8] sm:$0xff] %v4198
  %4711 = vst [vmem:[%s2 + $0x2e0] sm:$0xff] %v4199
  %4712 = vst [vmem:[%s2 + $0x2e8] sm:$0xff] %v4200
  %4713 = vst [vmem:[%s2 + $0x2f0] sm:$0xff] %v4201
  %4714 = vst [vmem:[%s2 + $0x2f8] sm:$0xff] %v4202
  %4715 = vst [vmem:[%s2 + $0x300] sm:$0xff] %v4203
  %4716 = vst [vmem:[%s2 + $0x308] sm:$0xff] %v4204
  %4717 = vst [vmem:[%s2 + $0x310] sm:$0xff] %v4205
  %4718 = vst [vmem:[%s2 + $0x318] sm:$0xff] %v4206
  %4719 = vst [vmem:[%s2 + $0x320] sm:$0xff] %v4207
  %4720 = vst [vmem:[%s2 + $0x328] sm:$0xff] %v4208
  %4721 = vst [vmem:[%s2 + $0x330] sm:$0xff] %v4209
  %4722 = vst [vmem:[%s2 + $0x338] sm:$0xff] %v4210
  %4723 = vst [vmem:[%s2 + $0x340] sm:$0xff] %v4211
  %4724 = vst [vmem:[%s2 + $0x348] sm:$0xff] %v4212
  %4725 = vst [vmem:[%s2 + $0x350] sm:$0xff] %v4213
  %4726 = vst [vmem:[%s2 + $0x358] sm:$0xff] %v4214
  %4727 = vst [vmem:[%s2 + $0x360] sm:$0xff] %v4215
  %4728 = vst [vmem:[%s2 + $0x368] sm:$0xff] %v4216
  %4729 = vst [vmem:[%s2 + $0x370] sm:$0xff] %v4217
  %4730 = vst [vmem:[%s2 + $0x378] sm:$0xff] %v4218
  %4731 = vst [vmem:[%s2 + $0x380] sm:$0xff] %v4219
  %4732 = vst [vmem:[%s2 + $0x388] sm:$0xff] %v4220
  %4733 = vst [vmem:[%s2 + $0x390] sm:$0xff] %v4221
  %4734 = vst [vmem:[%s2 + $0x398] sm:$0xff] %v4222
  %4735 = vst [vmem:[%s2 + $0x3a0] sm:$0xff] %v4223
  %4736 = vst [vmem:[%s2 + $0x3a8] sm:$0xff] %v4224
  %4737 = vst [vmem:[%s2 + $0x3b0] sm:$0xff] %v4225
  %4738 = vst [vmem:[%s2 + $0x3b8] sm:$0xff] %v4226
  %4739 = vst [vmem:[%s2 + $0x3c0] sm:$0xff] %v4227
  %4740 = vst [vmem:[%s2 + $0x3c8] sm:$0xff] %v4228
  %4741 = vst [vmem:[%s2 + $0x3d0] sm:$0xff] %v4229
  %4742 = vst [vmem:[%s2 + $0x3d8] sm:$0xff] %v4230
  %4743 = vst [vmem:[%s2 + $0x3e0] sm:$0xff] %v4231
  %4744 = vst [vmem:[%s2 + $0x3e8] sm:$0xff] %v4232
  %4745 = vst [vmem:[%s2 + $0x3f0] sm:$0xff] %v4233
  %4746 = vst [vmem:[%s2 + $0x3f8] sm:$0xff] %v4234
  %4747 = vst [vmem:[%s2 + $0x400] sm:$0xff] %v4235
  %4748 = vst [vmem:[%s2 + $0x408] sm:$0xff] %v4236
  %4749 = vst [vmem:[%s2 + $0x410] sm:$0xff] %v4237
  %4750 = vst [vmem:[%s2 + $0x418] sm:$0xff] %v4238
  %4751 = vst [vmem:[%s2 + $0x420] sm:$0xff] %v4239
  %4752 = vst [vmem:[%s2 + $0x428] sm:$0xff] %v4240
  %4753 = vst [vmem:[%s2 + $0x430] sm:$0xff] %v4241
  %4754 = vst [vmem:[%s2 + $0x438] sm:$0xff] %v4242
  %4755 = vst [vmem:[%s2 + $0x440] sm:$0xff] %v4243
  %4756 = vst [vmem:[%s2 + $0x448] sm:$0xff] %v4244
  %4757 = vst [vmem:[%s2 + $0x450] sm:$0xff] %v4245
  %4758 = vst [vmem:[%s2 + $0x458] sm:$0xff] %v4246
  %4759 = vst [vmem:[%s2 + $0x460] sm:$0xff] %v4247
  %4760 = vst [vmem:[%s2 + $0x468] sm:$0xff] %v4248
  %4761 = vst [vmem:[%s2 + $0x470] sm:$0xff] %v4249
  %4762 = vst [vmem:[%s2 + $0x478] sm:$0xff] %v4250
  %4763 = vst [vmem:[%s2 + $0x480] sm:$0xff] %v4251
  %4764 = vst [vmem:[%s2 + $0x488] sm:$0xff] %v4252
  %4765 = vst [vmem:[%s2 + $0x490] sm:$0xff] %v4253
  %4766 = vst [vmem:[%s2 + $0x498] sm:$0xff] %v4254
  %4767 = vst [vmem:[%s2 + $0x4a0] sm:$0xff] %v4255
  %4768 = vst [vmem:[%s2 + $0x4a8] sm:$0xff] %v4256
  %4769 = vst [vmem:[%s2 + $0x4b0] sm:$0xff] %v4257
  %4770 = vst [vmem:[%s2 + $0x4b8] sm:$0xff] %v4258
  %4771 = vst [vmem:[%s2 + $0x4c0] sm:$0xff] %v4259
  %4772 = vst [vmem:[%s2 + $0x4c8] sm:$0xff] %v4260
  %4773 = vst [vmem:[%s2 + $0x4d0] sm:$0xff] %v4261
  %4774 = vst [vmem:[%s2 + $0x4d8] sm:$0xff] %v4262
  %4775 = vst [vmem:[%s2 + $0x4e0] sm:$0xff] %v4263
  %4776 = vst [vmem:[%s2 + $0x4e8] sm:$0xff] %v4264
  %4777 = vst [vmem:[%s2 + $0x4f0] sm:$0xff] %v4265
  %4778 = vst [vmem:[%s2 + $0x4f8] sm:$0xff] %v4266
  %4779 = vst [vmem:[%s2 + $0x500] sm:$0xff] %v4267
  %4780 = vst [vmem:[%s2 + $0x508] sm:$0xff] %v4268
  %4781 = vst [vmem:[%s2 + $0x510] sm:$0xff] %v4269
  %4782 = vst [vmem:[%s2 + $0x518] sm:$0xff] %v4270
  %4783 = vst [vmem:[%s2 + $0x520] sm:$0xff] %v4271
  %4784 = vst [vmem:[%s2 + $0x528] sm:$0xff] %v4272
  %4785 = vst [vmem:[%s2 + $0x530] sm:$0xff] %v4273
  %4786 = vst [vmem:[%s2 + $0x538] sm:$0xff] %v4274
  %4787 = vst [vmem:[%s2 + $0x540] sm:$0xff] %v4275
  %4788 = vst [vmem:[%s2 + $0x548] sm:$0xff] %v4276
  %4789 = vst [vmem:[%s2 + $0x550] sm:$0xff] %v4277
  %4790 = vst [vmem:[%s2 + $0x558] sm:$0xff] %v4278
  %4791 = vst [vmem:[%s2 + $0x560] sm:$0xff] %v4279
  %4792 = vst [vmem:[%s2 + $0x568] sm:$0xff] %v4280
  %4793 = vst [vmem:[%s2 + $0x570] sm:$0xff] %v4281
  %4794 = vst [vmem:[%s2 + $0x578] sm:$0xff] %v4282
  %4795 = vst [vmem:[%s2 + $0x580] sm:$0xff] %v4283
  %4796 = vst [vmem:[%s2 + $0x588] sm:$0xff] %v4284
  %4797 = vst [vmem:[%s2 + $0x590] sm:$0xff] %v4285
  %4798 = vst [vmem:[%s2 + $0x598] sm:$0xff] %v4286
  %4799 = vst [vmem:[%s2 + $0x5a0] sm:$0xff] %v4287
  %4800 = vst [vmem:[%s2 + $0x5a8] sm:$0xff] %v4288
  %4801 = vst [vmem:[%s2 + $0x5b0] sm:$0xff] %v4289
  %4802 = vst [vmem:[%s2 + $0x5b8] sm:$0xff] %v4290
  %4803 = vst [vmem:[%s2 + $0x5c0] sm:$0xff] %v4291
  %4804 = vst [vmem:[%s2 + $0x5c8] sm:$0xff] %v4292
  %4805 = vst [vmem:[%s2 + $0x5d0] sm:$0xff] %v4293
  %4806 = vst [vmem:[%s2 + $0x5d8] sm:$0xff] %v4294
  %4807 = vst [vmem:[%s2 + $0x5e0] sm:$0xff] %v4295
  %4808 = vst [vmem:[%s2 + $0x5e8] sm:$0xff] %v4296
  %4809 = vst [vmem:[%s2 + $0x5f0] sm:$0xff] %v4297
  %4810 = vst [vmem:[%s2 + $0x5f8] sm:$0xff] %v4298
  %4811 = vst [vmem:[%s2 + $0x600] sm:$0xff] %v4299
  %4812 = vst [vmem:[%s2 + $0x608] sm:$0xff] %v4300
  %4813 = vst [vmem:[%s2 + $0x610] sm:$0xff] %v4301
  %4814 = vst [vmem:[%s2 + $0x618] sm:$0xff] %v4302
  %4815 = vst [vmem:[%s2 + $0x620] sm:$0xff] %v4303
  %4816 = vst [vmem:[%s2 + $0x628] sm:$0xff] %v4304
  %4817 = vst [vmem:[%s2 + $0x630] sm:$0xff] %v4305
  %4818 = vst [vmem:[%s2 + $0x638] sm:$0xff] %v4306
  %4819 = vst [vmem:[%s2 + $0x640] sm:$0xff] %v4307
  %4820 = vst [vmem:[%s2 + $0x648] sm:$0xff] %v4308
  %4821 = vst [vmem:[%s2 + $0x650] sm:$0xff] %v4309
  %4822 = vst [vmem:[%s2 + $0x658] sm:$0xff] %v4310
  %4823 = vst [vmem:[%s2 + $0x660] sm:$0xff] %v4311
  %4824 = vst [vmem:[%s2 + $0x668] sm:$0xff] %v4312
  %4825 = vst [vmem:[%s2 + $0x670] sm:$0xff] %v4313
  %4826 = vst [vmem:[%s2 + $0x678] sm:$0xff] %v4314
  %4827 = vst [vmem:[%s2 + $0x680] sm:$0xff] %v4315
  %4828 = vst [vmem:[%s2 + $0x688] sm:$0xff] %v4316
  %4829 = vst [vmem:[%s2 + $0x690] sm:$0xff] %v4317
  %4830 = vst [vmem:[%s2 + $0x698] sm:$0xff] %v4318
  %4831 = vst [vmem:[%s2 + $0x6a0] sm:$0xff] %v4319
  %4832 = vst [vmem:[%s2 + $0x6a8] sm:$0xff] %v4320
  %4833 = vst [vmem:[%s2 + $0x6b0] sm:$0xff] %v4321
  %4834 = vst [vmem:[%s2 + $0x6b8] sm:$0xff] %v4322
  %4835 = vst [vmem:[%s2 + $0x6c0] sm:$0xff] %v4323
  %4836 = vst [vmem:[%s2 + $0x6c8] sm:$0xff] %v4324
  %4837 = vst [vmem:[%s2 + $0x6d0] sm:$0xff] %v4325
  %4838 = vst [vmem:[%s2 + $0x6d8] sm:$0xff] %v4326
  %4839 = vst [vmem:[%s2 + $0x6e0] sm:$0xff] %v4327
  %4840 = vst [vmem:[%s2 + $0x6e8] sm:$0xff] %v4328
  %4841 = vst [vmem:[%s2 + $0x6f0] sm:$0xff] %v4329
  %4842 = vst [vmem:[%s2 + $0x6f8] sm:$0xff] %v4330
  %4843 = vst [vmem:[%s2 + $0x700] sm:$0xff] %v4331
  %4844 = vst [vmem:[%s2 + $0x708] sm:$0xff] %v4332
  %4845 = vst [vmem:[%s2 + $0x710] sm:$0xff] %v4333
  %4846 = vst [vmem:[%s2 + $0x718] sm:$0xff] %v4334
  %4847 = vst [vmem:[%s2 + $0x720] sm:$0xff] %v4335
  %4848 = vst [vmem:[%s2 + $0x728] sm:$0xff] %v4336
  %4849 = vst [vmem:[%s2 + $0x730] sm:$0xff] %v4337
  %4850 = vst [vmem:[%s2 + $0x738] sm:$0xff] %v4338
  %4851 = vst [vmem:[%s2 + $0x740] sm:$0xff] %v4339
  %4852 = vst [vmem:[%s2 + $0x748] sm:$0xff] %v4340
  %4853 = vst [vmem:[%s2 + $0x750] sm:$0xff] %v4341
  %4854 = vst [vmem:[%s2 + $0x758] sm:$0xff] %v4342
  %4855 = vst [vmem:[%s2 + $0x760] sm:$0xff] %v4343
  %4856 = vst [vmem:[%s2 + $0x768] sm:$0xff] %v4344
  %4857 = vst [vmem:[%s2 + $0x770] sm:$0xff] %v4345
  %4858 = vst [vmem:[%s2 + $0x778] sm:$0xff] %v4346
  %4859 = vst [vmem:[%s2 + $0x780] sm:$0xff] %v4347
  %4860 = vst [vmem:[%s2 + $0x788] sm:$0xff] %v4348
  %4861 = vst [vmem:[%s2 + $0x790] sm:$0xff] %v4349
  %4862 = vst [vmem:[%s2 + $0x798] sm:$0xff] %v4350
  %4863 = vst [vmem:[%s2 + $0x7a0] sm:$0xff] %v4351
  %4864 = vst [vmem:[%s2 + $0x7a8] sm:$0xff] %v4352
  %4865 = vst [vmem:[%s2 + $0x7b0] sm:$0xff] %v4353
  %4866 = vst [vmem:[%s2 + $0x7b8] sm:$0xff] %v4354
  %4867 = vst [vmem:[%s2 + $0x7c0] sm:$0xff] %v4355
  %4868 = vst [vmem:[%s2 + $0x7c8] sm:$0xff] %v4356
  %4869 = vst [vmem:[%s2 + $0x7d0] sm:$0xff] %v4357
  %4870 = vst [vmem:[%s2 + $0x7d8] sm:$0xff] %v4358
  %4871 = vst [vmem:[%s2 + $0x7e0] sm:$0xff] %v4359
  %4872 = vst [vmem:[%s2 + $0x7e8] sm:$0xff] %v4360
  %4873 = vst [vmem:[%s2 + $0x7f0] sm:$0xff] %v4361
  %4874 = vst [vmem:[%s2 + $0x7f8] sm:$0xff] %v4362
  %4875 = vst [vmem:[%s2 + $0x800] sm:$0xff] %v4363
  %4876 = vst [vmem:[%s2 + $0x808] sm:$0xff] %v4364
  %4877 = vst [vmem:[%s2 + $0x810] sm:$0xff] %v4365
  %4878 = vst [vmem:[%s2 + $0x818] sm:$0xff] %v4366
  %4879 = vst [vmem:[%s2 + $0x820] sm:$0xff] %v4367
  %4880 = vst [vmem:[%s2 + $0x828] sm:$0xff] %v4368
  %4881 = vst [vmem:[%s2 + $0x830] sm:$0xff] %v4369
  %4882 = vst [vmem:[%s2 + $0x838] sm:$0xff] %v4370
  %4883 = vst [vmem:[%s2 + $0x840] sm:$0xff] %v4371
  %4884 = vst [vmem:[%s2 + $0x848] sm:$0xff] %v4372
  %4885 = vst [vmem:[%s2 + $0x850] sm:$0xff] %v4373
  %4886 = vst [vmem:[%s2 + $0x858] sm:$0xff] %v4374
  %4887 = vst [vmem:[%s2 + $0x860] sm:$0xff] %v4375
  %4888 = vst [vmem:[%s2 + $0x868] sm:$0xff] %v4376
  %4889 = vst [vmem:[%s2 + $0x870] sm:$0xff] %v4377
  %4890 = vst [vmem:[%s2 + $0x878] sm:$0xff] %v4378
  %4891 = vst [vmem:[%s2 + $0x880] sm:$0xff] %v4379
  %4892 = vst [vmem:[%s2 + $0x888] sm:$0xff] %v4380
  %4893 = vst [vmem:[%s2 + $0x890] sm:$0xff] %v4381
  %4894 = vst [vmem:[%s2 + $0x898] sm:$0xff] %v4382
  %4895 = vst [vmem:[%s2 + $0x8a0] sm:$0xff] %v4383
  %4896 = vst [vmem:[%s2 + $0x8a8] sm:$0xff] %v4384
  %4897 = vst [vmem:[%s2 + $0x8b0] sm:$0xff] %v4385
  %4898 = vst [vmem:[%s2 + $0x8b8] sm:$0xff] %v4386
  %4899 = vst [vmem:[%s2 + $0x8c0] sm:$0xff] %v4387
  %4900 = vst [vmem:[%s2 + $0x8c8] sm:$0xff] %v4388
  %4901 = vst [vmem:[%s2 + $0x8d0] sm:$0xff] %v4389
  %4902 = vst [vmem:[%s2 + $0x8d8] sm:$0xff] %v4390
  %4903 = vst [vmem:[%s2 + $0x8e0] sm:$0xff] %v4391
  %4904 = vst [vmem:[%s2 + $0x8e8] sm:$0xff] %v4392
  %4905 = vst [vmem:[%s2 + $0x8f0] sm:$0xff] %v4393
  %4906 = vst [vmem:[%s2 + $0x8f8] sm:$0xff] %v4394
  %4907 = vst [vmem:[%s2 + $0x900] sm:$0xff] %v4395
  %4908 = vst [vmem:[%s2 + $0x908] sm:$0xff] %v4396
  %4909 = vst [vmem:[%s2 + $0x910] sm:$0xff] %v4397
  %4910 = vst [vmem:[%s2 + $0x918] sm:$0xff] %v4398
  %4911 = vst [vmem:[%s2 + $0x920] sm:$0xff] %v4399
  %4912 = vst [vmem:[%s2 + $0x928] sm:$0xff] %v4400
  %4913 = vst [vmem:[%s2 + $0x930] sm:$0xff] %v4401
  %4914 = vst [vmem:[%s2 + $0x938] sm:$0xff] %v4402
  %4915 = vst [vmem:[%s2 + $0x940] sm:$0xff] %v4403
  %4916 = vst [vmem:[%s2 + $0x948] sm:$0xff] %v4404
  %4917 = vst [vmem:[%s2 + $0x950] sm:$0xff] %v4405
  %4918 = vst [vmem:[%s2 + $0x958] sm:$0xff] %v4406
  %4919 = vst [vmem:[%s2 + $0x960] sm:$0xff] %v4407
  %4920 = vst [vmem:[%s2 + $0x968] sm:$0xff] %v4408
  %4921 = vst [vmem:[%s2 + $0x970] sm:$0xff] %v4409
  %4922 = vst [vmem:[%s2 + $0x978] sm:$0xff] %v4410
  %4923 = vst [vmem:[%s2 + $0x980] sm:$0xff] %v4411
  %4924 = vst [vmem:[%s2 + $0x988] sm:$0xff] %v4412
  %4925 = vst [vmem:[%s2 + $0x990] sm:$0xff] %v4413
  %4926 = vst [vmem:[%s2 + $0x998] sm:$0xff] %v4414
  %4927 = vst [vmem:[%s2 + $0x9a0] sm:$0xff] %v4415
  %4928 = vst [vmem:[%s2 + $0x9a8] sm:$0xff] %v4416
  %4929 = vst [vmem:[%s2 + $0x9b0] sm:$0xff] %v4417
  %4930 = vst [vmem:[%s2 + $0x9b8] sm:$0xff] %v4418
  %4931 = vst [vmem:[%s2 + $0x9c0] sm:$0xff] %v4419
  %4932 = vst [vmem:[%s2 + $0x9c8] sm:$0xff] %v4420
  %4933 = vst [vmem:[%s2 + $0x9d0] sm:$0xff] %v4421
  %4934 = vst [vmem:[%s2 + $0x9d8] sm:$0xff] %v4422
  %4935 = vst [vmem:[%s2 + $0x9e0] sm:$0xff] %v4423
  %4936 = vst [vmem:[%s2 + $0x9e8] sm:$0xff] %v4424
  %4937 = vst [vmem:[%s2 + $0x9f0] sm:$0xff] %v4425
  %4938 = vst [vmem:[%s2 + $0x9f8] sm:$0xff] %v4426
  %4939 = vst [vmem:[%s2 + $0xa00] sm:$0xff] %v4427
  %4940 = vst [vmem:[%s2 + $0xa08] sm:$0xff] %v4428
  %4941 = vst [vmem:[%s2 + $0xa10] sm:$0xff] %v4429
  %4942 = vst [vmem:[%s2 + $0xa18] sm:$0xff] %v4430
  %4943 = vst [vmem:[%s2 + $0xa20] sm:$0xff] %v4431
  %4944 = vst [vmem:[%s2 + $0xa28] sm:$0xff] %v4432
  %4945 = vst [vmem:[%s2 + $0xa30] sm:$0xff] %v4433
  %4946 = vst [vmem:[%s2 + $0xa38] sm:$0xff] %v4434
  %4947 = vst [vmem:[%s2 + $0xa40] sm:$0xff] %v4435
  %4948 = vst [vmem:[%s2 + $0xa48] sm:$0xff] %v4436
  %4949 = vst [vmem:[%s2 + $0xa50] sm:$0xff] %v4437
  %4950 = vst [vmem:[%s2 + $0xa58] sm:$0xff] %v4438
  %4951 = vst [vmem:[%s2 + $0xa60] sm:$0xff] %v4439
  %4952 = vst [vmem:[%s2 + $0xa68] sm:$0xff] %v4440
  %4953 = vst [vmem:[%s2 + $0xa70] sm:$0xff] %v4441
  %4954 = vst [vmem:[%s2 + $0xa78] sm:$0xff] %v4442
  %4955 = vst [vmem:[%s2 + $0xa80] sm:$0xff] %v4443
  %4956 = vst [vmem:[%s2 + $0xa88] sm:$0xff] %v4444
  %4957 = vst [vmem:[%s2 + $0xa90] sm:$0xff] %v4445
  %4958 = vst [vmem:[%s2 + $0xa98] sm:$0xff] %v4446
  %4959 = vst [vmem:[%s2 + $0xaa0] sm:$0xff] %v4447
  %4960 = vst [vmem:[%s2 + $0xaa8] sm:$0xff] %v4448
  %4961 = vst [vmem:[%s2 + $0xab0] sm:$0xff] %v4449
  %4962 = vst [vmem:[%s2 + $0xab8] sm:$0xff] %v4450
  %4963 = vst [vmem:[%s2 + $0xac0] sm:$0xff] %v4451
  %4964 = vst [vmem:[%s2 + $0xac8] sm:$0xff] %v4452
  %4965 = vst [vmem:[%s2 + $0xad0] sm:$0xff] %v4453
  %4966 = vst [vmem:[%s2 + $0xad8] sm:$0xff] %v4454
  %4967 = vst [vmem:[%s2 + $0xae0] sm:$0xff] %v4455
  %4968 = vst [vmem:[%s2 + $0xae8] sm:$0xff] %v4456
  %4969 = vst [vmem:[%s2 + $0xaf0] sm:$0xff] %v4457
  %4970 = vst [vmem:[%s2 + $0xaf8] sm:$0xff] %v4458
  %4971 = vst [vmem:[%s2 + $0xb00] sm:$0xff] %v4459
  %4972 = vst [vmem:[%s2 + $0xb08] sm:$0xff] %v4460
  %4973 = vst [vmem:[%s2 + $0xb10] sm:$0xff] %v4461
  %4974 = vst [vmem:[%s2 + $0xb18] sm:$0xff] %v4462
  %4975 = vst [vmem:[%s2 + $0xb20] sm:$0xff] %v4463
  %4976 = vst [vmem:[%s2 + $0xb28] sm:$0xff] %v4464
  %4977 = vst [vmem:[%s2 + $0xb30] sm:$0xff] %v4465
  %4978 = vst [vmem:[%s2 + $0xb38] sm:$0xff] %v4466
  %4979 = vst [vmem:[%s2 + $0xb40] sm:$0xff] %v4467
  %4980 = vst [vmem:[%s2 + $0xb48] sm:$0xff] %v4468
  %4981 = vst [vmem:[%s2 + $0xb50] sm:$0xff] %v4469
  %4982 = vst [vmem:[%s2 + $0xb58] sm:$0xff] %v4470
  %4983 = vst [vmem:[%s2 + $0xb60] sm:$0xff] %v4471
  %4984 = vst [vmem:[%s2 + $0xb68] sm:$0xff] %v4472
  %4985 = vst [vmem:[%s2 + $0xb70] sm:$0xff] %v4473
  %4986 = vst [vmem:[%s2 + $0xb78] sm:$0xff] %v4474
  %4987 = vst [vmem:[%s2 + $0xb80] sm:$0xff] %v4475
  %4988 = vst [vmem:[%s2 + $0xb88] sm:$0xff] %v4476
  %4989 = vst [vmem:[%s2 + $0xb90] sm:$0xff] %v4477
  %4990 = vst [vmem:[%s2 + $0xb98] sm:$0xff] %v4478
  %4991 = vst [vmem:[%s2 + $0xba0] sm:$0xff] %v4479
  %4992 = vst [vmem:[%s2 + $0xba8] sm:$0xff] %v4480
  %4993 = vst [vmem:[%s2 + $0xbb0] sm:$0xff] %v4481
  %4994 = vst [vmem:[%s2 + $0xbb8] sm:$0xff] %v4482
  %4995 = vst [vmem:[%s2 + $0xbc0] sm:$0xff] %v4483
  %4996 = vst [vmem:[%s2 + $0xbc8] sm:$0xff] %v4484
  %4997 = vst [vmem:[%s2 + $0xbd0] sm:$0xff] %v4485
  %4998 = vst [vmem:[%s2 + $0xbd8] sm:$0xff] %v4486
  %4999 = vst [vmem:[%s2 + $0xbe0] sm:$0xff] %v4487
  %5000 = vst [vmem:[%s2 + $0xbe8] sm:$0xff] %v4488
  %5001 = vst [vmem:[%s2 + $0xbf0] sm:$0xff] %v4489
  %5002 = vst [vmem:[%s2 + $0xbf8] sm:$0xff] %v4490
  %5003 = vst [vmem:[%s2 + $0xc00] sm:$0xff] %v4491
  %5004 = vst [vmem:[%s2 + $0xc08] sm:$0xff] %v4492
  %5005 = vst [vmem:[%s2 + $0xc10] sm:$0xff] %v4493
  %5006 = vst [vmem:[%s2 + $0xc18] sm:$0xff] %v4494
  %5007 = vst [vmem:[%s2 + $0xc20] sm:$0xff] %v4495
  %5008 = vst [vmem:[%s2 + $0xc28] sm:$0xff] %v4496
  %5009 = vst [vmem:[%s2 + $0xc30] sm:$0xff] %v4497
  %5010 = vst [vmem:[%s2 + $0xc38] sm:$0xff] %v4498
  %5011 = vst [vmem:[%s2 + $0xc40] sm:$0xff] %v4499
  %5012 = vst [vmem:[%s2 + $0xc48] sm:$0xff] %v4500
  %5013 = vst [vmem:[%s2 + $0xc50] sm:$0xff] %v4501
  %5014 = vst [vmem:[%s2 + $0xc58] sm:$0xff] %v4502
  %5015 = vst [vmem:[%s2 + $0xc60] sm:$0xff] %v4503
  %5016 = vst [vmem:[%s2 + $0xc68] sm:$0xff] %v4504
  %5017 = vst [vmem:[%s2 + $0xc70] sm:$0xff] %v4505
  %5018 = vst [vmem:[%s2 + $0xc78] sm:$0xff] %v4506
  %5019 = vst [vmem:[%s2 + $0xc80] sm:$0xff] %v4507
  %5020 = vst [vmem:[%s2 + $0xc88] sm:$0xff] %v4508
  %5021 = vst [vmem:[%s2 + $0xc90] sm:$0xff] %v4509
  %5022 = vst [vmem:[%s2 + $0xc98] sm:$0xff] %v4510
  %5023 = vst [vmem:[%s2 + $0xca0] sm:$0xff] %v4511
  %5024 = vst [vmem:[%s2 + $0xca8] sm:$0xff] %v4512
  %5025 = vst [vmem:[%s2 + $0xcb0] sm:$0xff] %v4513
  %5026 = vst [vmem:[%s2 + $0xcb8] sm:$0xff] %v4514
  %5027 = vst [vmem:[%s2 + $0xcc0] sm:$0xff] %v4515
  %5028 = vst [vmem:[%s2 + $0xcc8] sm:$0xff] %v4516
  %5029 = vst [vmem:[%s2 + $0xcd0] sm:$0xff] %v4517
  %5030 = vst [vmem:[%s2 + $0xcd8] sm:$0xff] %v4518
  %5031 = vst [vmem:[%s2 + $0xce0] sm:$0xff] %v4519
  %5032 = vst [vmem:[%s2 + $0xce8] sm:$0xff] %v4520
  %5033 = vst [vmem:[%s2 + $0xcf0] sm:$0xff] %v4521
  %5034 = vst [vmem:[%s2 + $0xcf8] sm:$0xff] %v4522
  %5035 = vst [vmem:[%s2 + $0xd00] sm:$0xff] %v4523
  %5036 = vst [vmem:[%s2 + $0xd08] sm:$0xff] %v4524
  %5037 = vst [vmem:[%s2 + $0xd10] sm:$0xff] %v4525
  %5038 = vst [vmem:[%s2 + $0xd18] sm:$0xff] %v4526
  %5039 = vst [vmem:[%s2 + $0xd20] sm:$0xff] %v4527
  %5040 = vst [vmem:[%s2 + $0xd28] sm:$0xff] %v4528
  %5041 = vst [vmem:[%s2 + $0xd30] sm:$0xff] %v4529
  %5042 = vst [vmem:[%s2 + $0xd38] sm:$0xff] %v4530
  %5043 = vst [vmem:[%s2 + $0xd40] sm:$0xff] %v4531
  %5044 = vst [vmem:[%s2 + $0xd48] sm:$0xff] %v4532
  %5045 = vst [vmem:[%s2 + $0xd50] sm:$0xff] %v4533
  %5046 = vst [vmem:[%s2 + $0xd58] sm:$0xff] %v4534
  %5047 = vst [vmem:[%s2 + $0xd60] sm:$0xff] %v4535
  %5048 = vst [vmem:[%s2 + $0xd68] sm:$0xff] %v4536
  %5049 = vst [vmem:[%s2 + $0xd70] sm:$0xff] %v4537
  %5050 = vst [vmem:[%s2 + $0xd78] sm:$0xff] %v4538
  %5051 = vst [vmem:[%s2 + $0xd80] sm:$0xff] %v4539
  %5052 = vst [vmem:[%s2 + $0xd88] sm:$0xff] %v4540
  %5053 = vst [vmem:[%s2 + $0xd90] sm:$0xff] %v4541
  %5054 = vst [vmem:[%s2 + $0xd98] sm:$0xff] %v4542
  %5055 = vst [vmem:[%s2 + $0xda0] sm:$0xff] %v4543
  %5056 = vst [vmem:[%s2 + $0xda8] sm:$0xff] %v4544
  %5057 = vst [vmem:[%s2 + $0xdb0] sm:$0xff] %v4545
  %5058 = vst [vmem:[%s2 + $0xdb8] sm:$0xff] %v4546
  %5059 = vst [vmem:[%s2 + $0xdc0] sm:$0xff] %v4547
  %5060 = vst [vmem:[%s2 + $0xdc8] sm:$0xff] %v4548
  %5061 = vst [vmem:[%s2 + $0xdd0] sm:$0xff] %v4549
  %5062 = vst [vmem:[%s2 + $0xdd8] sm:$0xff] %v4550
  %5063 = vst [vmem:[%s2 + $0xde0] sm:$0xff] %v4551
  %5064 = vst [vmem:[%s2 + $0xde8] sm:$0xff] %v4552
  %5065 = vst [vmem:[%s2 + $0xdf0] sm:$0xff] %v4553
  %5066 = vst [vmem:[%s2 + $0xdf8] sm:$0xff] %v4554
  %5067 = vst [vmem:[%s2 + $0xe00] sm:$0xff] %v4555
  %5068 = vst [vmem:[%s2 + $0xe08] sm:$0xff] %v4556
  %5069 = vst [vmem:[%s2 + $0xe10] sm:$0xff] %v4557
  %5070 = vst [vmem:[%s2 + $0xe18] sm:$0xff] %v4558
  %5071 = vst [vmem:[%s2 + $0xe20] sm:$0xff] %v4559
  %5072 = vst [vmem:[%s2 + $0xe28] sm:$0xff] %v4560
  %5073 = vst [vmem:[%s2 + $0xe30] sm:$0xff] %v4561
  %5074 = vst [vmem:[%s2 + $0xe38] sm:$0xff] %v4562
  %5075 = vst [vmem:[%s2 + $0xe40] sm:$0xff] %v4563
  %5076 = vst [vmem:[%s2 + $0xe48] sm:$0xff] %v4564
  %5077 = vst [vmem:[%s2 + $0xe50] sm:$0xff] %v4565
  %5078 = vst [vmem:[%s2 + $0xe58] sm:$0xff] %v4566
  %5079 = vst [vmem:[%s2 + $0xe60] sm:$0xff] %v4567
  %5080 = vst [vmem:[%s2 + $0xe68] sm:$0xff] %v4568
  %5081 = vst [vmem:[%s2 + $0xe70] sm:$0xff] %v4569
  %5082 = vst [vmem:[%s2 + $0xe78] sm:$0xff] %v4570
  %5083 = vst [vmem:[%s2 + $0xe80] sm:$0xff] %v4571
  %5084 = vst [vmem:[%s2 + $0xe88] sm:$0xff] %v4572
  %5085 = vst [vmem:[%s2 + $0xe90] sm:$0xff] %v4573
  %5086 = vst [vmem:[%s2 + $0xe98] sm:$0xff] %v4574
  %5087 = vst [vmem:[%s2 + $0xea0] sm:$0xff] %v4575
  %5088 = vst [vmem:[%s2 + $0xea8] sm:$0xff] %v4576
  %5089 = vst [vmem:[%s2 + $0xeb0] sm:$0xff] %v4577
  %5090 = vst [vmem:[%s2 + $0xeb8] sm:$0xff] %v4578
  %5091 = vst [vmem:[%s2 + $0xec0] sm:$0xff] %v4579
  %5092 = vst [vmem:[%s2 + $0xec8] sm:$0xff] %v4580
  %5093 = vst [vmem:[%s2 + $0xed0] sm:$0xff] %v4581
  %5094 = vst [vmem:[%s2 + $0xed8] sm:$0xff] %v4582
  %5095 = vst [vmem:[%s2 + $0xee0] sm:$0xff] %v4583
  %5096 = vst [vmem:[%s2 + $0xee8] sm:$0xff] %v4584
  %5097 = vst [vmem:[%s2 + $0xef0] sm:$0xff] %v4585
  %5098 = vst [vmem:[%s2 + $0xef8] sm:$0xff] %v4586
  %5099 = vst [vmem:[%s2 + $0xf00] sm:$0xff] %v4587
  %5100 = vst [vmem:[%s2 + $0xf08] sm:$0xff] %v4588
  %5101 = vst [vmem:[%s2 + $0xf10] sm:$0xff] %v4589
  %5102 = vst [vmem:[%s2 + $0xf18] sm:$0xff] %v4590
  %5103 = vst [vmem:[%s2 + $0xf20] sm:$0xff] %v4591
  %5104 = vst [vmem:[%s2 + $0xf28] sm:$0xff] %v4592
  %5105 = vst [vmem:[%s2 + $0xf30] sm:$0xff] %v4593
  %5106 = vst [vmem:[%s2 + $0xf38] sm:$0xff] %v4594
  %5107 = vst [vmem:[%s2 + $0xf40] sm:$0xff] %v4595
  %5108 = vst [vmem:[%s2 + $0xf48] sm:$0xff] %v4596
  %5109 = vst [vmem:[%s2 + $0xf50] sm:$0xff] %v4597
  %5110 = vst [vmem:[%s2 + $0xf58] sm:$0xff] %v4598
  %5111 = vst [vmem:[%s2 + $0xf60] sm:$0xff] %v4599
  %5112 = vst [vmem:[%s2 + $0xf68] sm:$0xff] %v4600
  %5113 = vst [vmem:[%s2 + $0xf70] sm:$0xff] %v4601
  %5114 = vst [vmem:[%s2 + $0xf78] sm:$0xff] %v4602
  %5115 = vst [vmem:[%s2 + $0xf80] sm:$0xff] %v4603
  %5116 = vst [vmem:[%s2 + $0xf88] sm:$0xff] %v4604
  %5117 = vst [vmem:[%s2 + $0xf90] sm:$0xff] %v4605
  %5118 = vst [vmem:[%s2 + $0xf98] sm:$0xff] %v4606
  %5119 = vst [vmem:[%s2 + $0xfa0] sm:$0xff] %v4607
  %5120 = vst [vmem:[%s2 + $0xfa8] sm:$0xff] %v4608
  %5121 = vst [vmem:[%s2 + $0xfb0] sm:$0xff] %v4609
  %5122 = vst [vmem:[%s2 + $0xfb8] sm:$0xff] %v4610
  %5123 = vst [vmem:[%s2 + $0xfc0] sm:$0xff] %v4611
  %5124 = vst [vmem:[%s2 + $0xfc8] sm:$0xff] %v4612
  %5125 = vst [vmem:[%s2 + $0xfd0] sm:$0xff] %v4613
  %5126 = vst [vmem:[%s2 + $0xfd8] sm:$0xff] %v4614
  %5127 = vst [vmem:[%s2 + $0xfe0] sm:$0xff] %v4615
  %5128 = vst [vmem:[%s2 + $0xfe8] sm:$0xff] %v4616
  %5129 = vst [vmem:[%s2 + $0xff0] sm:$0xff] %v4617
  %5130 = vst [vmem:[%s2 + $0xff8] sm:$0xff] %v4618
  // Predicated region
  $region10: #{model_forward.3} parent=0 // pred_check
    _
  $region11: #{model_forward.3} parent=0 // pred_check_branch
    %5132 = sbr.rel (0) target = $region13
  $region12: #{model_forward.3} parent=0 // pred_region
    _
  $region13: #{model_forward.3} parent=0 // pred_fallthru
    _
  // Predicated region
  $region14: #{model_forward.3} parent=0 // pred_check
    _
  $region15: #{model_forward.3} parent=0 // pred_check_branch
    %5134 = sbr.rel (0) target = $region17
  $region16: #{model_forward.3} parent=0 // pred_region
    _
  $region17: #{model_forward.3} parent=0 // pred_fallthru
    _

</llo_original>
